<compile_context>
chip_gen: v5e
topology: v5e:2x2
jax: 0.10.0
libtpu: 0.0.40
codegen_flags: <defaults>
</compile_context>

<pallas_src>
import functools

import jax
import jax.numpy as jnp
from jax import lax
from jax.experimental import pallas as pl
from jax.experimental.pallas import tpu as pltpu


def _linear_attention_kernel(x_ref, wqkv_ref, wo_ref, bo_ref, o_ref, *,
                             num_heads, head_dim):
    """One batch-block per grid step.

    x_ref    : [Bt, N, C]  bf16
    wqkv_ref : [C, 3C]     bf16  (= [Wq^T | Wk^T | Wv^T])
    wo_ref   : [C, C]      bf16  (= scale * Wo^T)
    bo_ref   : [1, C]      f32
    o_ref    : [Bt, N, C]  output dtype
    """
    f32 = jnp.float32
    bf16 = jnp.bfloat16
    Bt, N, C = x_ref.shape
    H, d = num_heads, head_dim
    rows = Bt * N

    x2 = x_ref[...].reshape(rows, C)                      # leading-dim merge (free)
    w = wqkv_ref[...]                                     # [C, 3C] bf16

    # --- projections (qkv_bias=False).  Split so the full [rows, 3C] f32 tensor
    #     is never live; v is only ever a matmul operand -> cast to bf16 now. ---
    q = jnp.dot(x2, w[:, :C], preferred_element_type=f32)           # [rows, C] f32
    k = jnp.dot(x2, w[:, C:2 * C], preferred_element_type=f32)      # [rows, C] f32
    v_b = jnp.dot(x2, w[:, 2 * C:], preferred_element_type=f32).astype(bf16)

    # --- q: exact per-head softmax over head_dim. ------------------------------
    # Per-head max / sum are VPU/XLU segment reductions over d-lane groups
    # (no MXU flops spent on the denominator); exp / divide stay lane-dense.
    qmax_parts = []
    for h in range(H):
        m_h = jnp.max(q[:, h * d:(h + 1) * d], axis=-1, keepdims=True)
        qmax_parts.append(jnp.broadcast_to(m_h, (rows, d)))
    qmax = jnp.concatenate(qmax_parts, axis=-1)                     # [rows, C]
    q_exp = jnp.exp(q - qmax)                                       # f32, lane-dense
    qden_parts = []
    for h in range(H):
        s_h = jnp.sum(q_exp[:, h * d:(h + 1) * d], axis=-1, keepdims=True)
        qden_parts.append(jnp.broadcast_to(s_h, (rows, d)))
    qden = jnp.concatenate(qden_parts, axis=-1)                     # [rows, C]
    q_soft = (q_exp / qden).astype(bf16).reshape(Bt, N, C)          # exact softmax

    # --- k: softmax over the sequence axis.  The 1/sum normalization is folded
    #     into the [C, C] kv masking below instead of rescaling [N, C]. --------
    k3 = k.reshape(Bt, N, C)
    k3 = k3 - jnp.max(k3, axis=1, keepdims=True)
    k_exp = jnp.exp(k3)                                             # [Bt, N, C] f32
    ksum_inv = 1.0 / jnp.sum(k_exp, axis=1)                         # [Bt, C] f32

    # --- block-diagonal head mask generated in-kernel (no HBM input). ----------
    if d & (d - 1) == 0:   # power-of-two head_dim: exact integer group ids
        ri = lax.broadcasted_iota(jnp.int32, (C, C), 0)
        ci = lax.broadcasted_iota(jnp.int32, (C, C), 1)
        same_head = (ri & -d) == (ci & -d)
    else:                  # general head_dim: exact float floor((i+0.5)/d)
        ri = lax.broadcasted_iota(jnp.int32, (C, C), 0).astype(f32)
        ci = lax.broadcasted_iota(jnp.int32, (C, C), 1).astype(f32)
        inv_d = 1.0 / d
        same_head = (jnp.floor((ri + 0.5) * inv_d) ==
                     jnp.floor((ci + 0.5) * inv_d))
    mask = same_head.astype(f32)                                    # [C, C]

    # --- kv = softmax_N(k)^T v for all heads at once (dense, block-diag masked);
    #     the k-softmax denominator scales the [C, C] rows here. ---------------
    ktv = jnp.einsum('bnf,bnd->bfd', k_exp.astype(bf16), v_b.reshape(Bt, N, C),
                     preferred_element_type=f32)                    # [Bt, C, C]
    kv_bd = (ktv * (mask * ksum_inv[:, :, None])).astype(bf16)

    # --- y = softmax_d(q) @ kv ; output projection (softmax scale folded into Wo).
    y = jnp.einsum('bnf,bfd->bnd', q_soft, kv_bd, preferred_element_type=f32)
    out = jnp.dot(y.astype(bf16).reshape(rows, C), wo_ref[...],
                  preferred_element_type=f32)                       # [rows, C]
    out = out.reshape(Bt, N, C) + bo_ref[...]                       # bias in f32
    o_ref[...] = out.astype(o_ref.dtype)


def _vmem_capacity_bytes() -> int:
    try:
        info = pltpu.get_tpu_info()
        cap = getattr(info, "vmem_capacity_bytes", None)
        if cap:
            return int(cap)
    except Exception:
        pass
    return 128 * 1024 * 1024


def _plan_blocks(B, N, C, out_itemsize):
    """Generation-aware batch-block and scoped-VMEM-limit selection."""
    MiB = 1024 * 1024
    cap = _vmem_capacity_bytes()
    # v5e/v6e (128 MiB) -> ~100 MiB scoped limit; v7x-class (64 MiB) -> ~52 MiB.
    limit = max(min(cap - 12 * MiB, 100 * MiB), 32 * MiB)
    # Resident constants (worst case double-buffered).
    const_bytes = 2 * (3 * C * C * 2 + C * C * 2 + C * 4)
    # Per batch element: 2x pipelined bf16 x block + 2x output block
    # + ~9 [N, C] f32 intermediates + 2 [C, C] f32 (ktv / scaled mask).
    per_b = 2 * N * C * 2 + 2 * N * C * out_itemsize + 9 * N * C * 4 + 2 * C * C * 4
    budget = max(limit - const_bytes - 4 * MiB, per_b)
    bt = max(1, min(B, budget // per_b))
    two_core = cap <= 64 * MiB            # v7x-class: keep both TensorCores busy
    if two_core and B > 1:
        bt = min(bt, max(1, B // 2))      # >= 2 grid steps
    while B % bt:
        bt -= 1
    if two_core and B > 1:
        while (B // bt) % 2 and bt > 1:   # prefer an even grid length
            bt -= 1
            while B % bt:
                bt -= 1
    return bt, int(limit)


def vanilla_linear_attention(x, wq, wk, wv, wo, bo, *, num_heads,
                             batch_block=None, out_dtype=jnp.bfloat16):
    """x: [B, N, C]; wq/wk/wv/wo: PyTorch Linear layout [out, in] = [C, C]; bo: [C]."""
    B, N, C = x.shape
    assert C % num_heads == 0
    head_dim = C // num_heads
    scale = head_dim ** (-0.5)

    bt_auto, vmem_limit = _plan_blocks(B, N, C, jnp.dtype(out_dtype).itemsize)
    bt = batch_block if batch_block is not None else bt_auto
    assert B % bt == 0

    # One-time weight packing / pre-transpose in XLA (outside the kernel).
    bf16 = jnp.bfloat16
    wqkv = jnp.concatenate([wq.T, wk.T, wv.T], axis=1).astype(bf16)   # [C, 3C]
    wo_s = (wo.T * scale).astype(bf16)                                # [C, C]
    bo2 = jnp.reshape(bo, (1, C)).astype(jnp.float32)                 # [1, C]
    xb = x.astype(bf16)

    kernel = functools.partial(_linear_attention_kernel,
                               num_heads=num_heads, head_dim=head_dim)
    out_shape = jax.ShapeDtypeStruct((B, N, C), out_dtype)
    grid = (B // bt,)

    def build(single_buffer_consts):
        def const_spec(shape):
            kw = {}
            if single_buffer_consts:
                kw["pipeline_mode"] = pl.Buffered(1)
            return pl.BlockSpec(shape, lambda b: (0,) * len(shape), **kw)

        return pl.pallas_call(
            kernel,
            out_shape=out_shape,
            grid_spec=pltpu.PrefetchScalarGridSpec(
                num_scalar_prefetch=0,
                grid=grid,
                in_specs=[
                    pl.BlockSpec((bt, N, C), lambda b: (b, 0, 0)),    # x
                    const_spec((C, 3 * C)),                           # [Wq|Wk|Wv]^T
                    const_spec((C, C)),                               # scale * Wo^T
                    const_spec((1, C)),                               # proj bias
                ],
                out_specs=pl.BlockSpec((bt, N, C), lambda b: (b, 0, 0)),
            ),
            compiler_params=pltpu.CompilerParams(
                dimension_semantics=("parallel",),
                vmem_limit_bytes=vmem_limit),
        )

    try:
        # Constant index maps -> a single buffer suffices (saves double-buffering
        # ~10 MB of packed weights at ViT-L scale).
        return build(True)(xb, wqkv, wo_s, bo2)
    except Exception:
        # Fallback for JAX versions without BlockSpec.pipeline_mode support.
        return build(False)(xb, wqkv, wo_s, bo2)


def reference_linear_attention(x, wq, wk, wv, wo, bo, *, num_heads):
    """Pure-JAX f32 reference mirroring the PyTorch forward exactly."""
    B, N, C = x.shape
    d = C // num_heads
    scale = d ** (-0.5)
    q = (x @ wq.T).reshape(B, N, num_heads, d)
    k = (x @ wk.T).reshape(B, N, num_heads, d)
    v = (x @ wv.T).reshape(B, N, num_heads, d)
    q = jax.nn.softmax(q, axis=-1) * scale
    k = jax.nn.softmax(k, axis=1)
    kv = jnp.einsum('bnhf,bnhd->bhfd', k, v)
    y = jnp.einsum('bnhf,bhfd->bnhd', q, kv)
    y = y.reshape(B, N, C)
    return y @ wo.T + bo


if __name__ == "__main__":
    B, N, C = 2, 128, 128
    num_heads = 8                          # module default; head_dim = 16

    key = jax.random.PRNGKey(0)
    kx, kq, kk, kv_, ko, kb = jax.random.split(key, 6)

    x = jax.random.normal(kx, (B, N, C), dtype=jnp.float32)
    # Deterministic synthetic parameters (PyTorch Linear layout: [out, in]).
    wq = 0.05 * jax.random.normal(kq, (C, C), dtype=jnp.float32)
    wk = 0.05 * jax.random.normal(kk, (C, C), dtype=jnp.float32)
    wv = 0.05 * jax.random.normal(kv_, (C, C), dtype=jnp.float32)
    wo = 0.05 * jax.random.normal(ko, (C, C), dtype=jnp.float32)
    bo = 0.05 * jax.random.normal(kb, (C,), dtype=jnp.float32)

    out = vanilla_linear_attention(x, wq, wk, wv, wo, bo, num_heads=num_heads)
    out = jax.block_until_ready(out)

    ref = reference_linear_attention(x, wq, wk, wv, wo, bo, num_heads=num_heads)
    assert out.shape == (B, N, C)
    out_f32 = out.astype(jnp.float32)
    max_err = jnp.max(jnp.abs(out_f32 - ref))
    # bf16 matmul operands / bf16 output with f32 accumulation -> compare against
    # the f32 reference with a bf16-appropriate tolerance.
    assert jnp.allclose(out_f32, ref, atol=2e-2, rtol=2e-2), (
        f"max abs err = {max_err}")

    print("KERNEL_OK")
</pallas_src>

<mosaic_0001>
module attributes {stable_mosaic.version = 11 : i64} {
  func.func @_linear_attention_kernel(%arg0: i32, %arg1: memref<2x128x128xbf16, #tpu.memory_space<vmem>>, %arg2: memref<128x384xbf16, #tpu.memory_space<vmem>>, %arg3: memref<128x128xbf16, #tpu.memory_space<vmem>>, %arg4: memref<1x128xf32, #tpu.memory_space<vmem>>, %arg5: memref<2x128x128xbf16, #tpu.memory_space<vmem>>) attributes {dimension_semantics = [#tpu.dimension_semantics<parallel>], iteration_bounds = array<i64: 1>, scalar_prefetch = 0 : i64, scratch_operands = 0 : i64, tpu.core_type = #tpu.core_type<tc>, window_params = [{transform_indices = @transform_0, window_bounds = array<i64: 2, 128, 128>}, {pipeline_mode = #tpu.pipeline_mode<synchronous>, transform_indices = @transform_1, window_bounds = array<i64: 128, 384>}, {pipeline_mode = #tpu.pipeline_mode<synchronous>, transform_indices = @transform_2, window_bounds = array<i64: 128, 128>}, {pipeline_mode = #tpu.pipeline_mode<synchronous>, transform_indices = @transform_3, window_bounds = array<i64: 1, 128>}, {transform_indices = @transform_4, window_bounds = array<i64: 2, 128, 128>}]} {
    %c0 = arith.constant 0 : index
    %c0_0 = arith.constant 0 : index
    %c0_1 = arith.constant 0 : index
    %0 = vector.load %arg1[%c0, %c0_0, %c0_1] : memref<2x128x128xbf16, #tpu.memory_space<vmem>>, vector<2x128x128xbf16>
    %1 = vector.shape_cast %0 : vector<2x128x128xbf16> to vector<256x128xbf16>
    %c0_2 = arith.constant 0 : index
    %c0_3 = arith.constant 0 : index
    %2 = vector.load %arg2[%c0_2, %c0_3] : memref<128x384xbf16, #tpu.memory_space<vmem>>, vector<128x384xbf16>
    %3 = vector.extract_strided_slice %2 {offsets = [0, 0], sizes = [128, 128], strides = [1, 1]} : vector<128x384xbf16> to vector<128x128xbf16>
    %cst = arith.constant dense<0.000000e+00> : vector<256x128xf32>
    %4 = tpu.matmul %1, %3, %cst {dimension_numbers = #tpu.dot_dimension_numbers<[1], [0], [0], [1], [0, 0, 1, 1], [], []>} : vector<256x128xbf16>, vector<128x128xbf16>, vector<256x128xf32> -> vector<256x128xf32>
    %5 = vector.extract_strided_slice %2 {offsets = [0, 128], sizes = [128, 128], strides = [1, 1]} : vector<128x384xbf16> to vector<128x128xbf16>
    %cst_4 = arith.constant dense<0.000000e+00> : vector<256x128xf32>
    %6 = tpu.matmul %1, %5, %cst_4 {dimension_numbers = #tpu.dot_dimension_numbers<[1], [0], [0], [1], [0, 0, 1, 1], [], []>} : vector<256x128xbf16>, vector<128x128xbf16>, vector<256x128xf32> -> vector<256x128xf32>
    %7 = vector.extract_strided_slice %2 {offsets = [0, 256], sizes = [128, 128], strides = [1, 1]} : vector<128x384xbf16> to vector<128x128xbf16>
    %cst_5 = arith.constant dense<0.000000e+00> : vector<256x128xf32>
    %8 = tpu.matmul %1, %7, %cst_5 {dimension_numbers = #tpu.dot_dimension_numbers<[1], [0], [0], [1], [0, 0, 1, 1], [], []>} : vector<256x128xbf16>, vector<128x128xbf16>, vector<256x128xf32> -> vector<256x128xf32>
    %9 = arith.truncf %8 : vector<256x128xf32> to vector<256x128xbf16>
    %10 = vector.extract_strided_slice %4 {offsets = [0, 0], sizes = [256, 16], strides = [1, 1]} : vector<256x128xf32> to vector<256x16xf32>
    %cst_6 = arith.constant dense<0xFF800000> : vector<256xf32>
    %11 = vector.multi_reduction <maximumf>, %10, %cst_6 [1] : vector<256x16xf32> to vector<256xf32>
    %12 = vector.shape_cast %11 : vector<256xf32> to vector<256x1xf32>
    %13 = vector.shape_cast %12 : vector<256x1xf32> to vector<256x1xf32>
    %14 = vector.broadcast %13 : vector<256x1xf32> to vector<256x16xf32>
    %15 = vector.extract_strided_slice %4 {offsets = [0, 16], sizes = [256, 16], strides = [1, 1]} : vector<256x128xf32> to vector<256x16xf32>
    %cst_7 = arith.constant dense<0xFF800000> : vector<256xf32>
    %16 = vector.multi_reduction <maximumf>, %15, %cst_7 [1] : vector<256x16xf32> to vector<256xf32>
    %17 = vector.shape_cast %16 : vector<256xf32> to vector<256x1xf32>
    %18 = vector.shape_cast %17 : vector<256x1xf32> to vector<256x1xf32>
    %19 = vector.broadcast %18 : vector<256x1xf32> to vector<256x16xf32>
    %20 = vector.extract_strided_slice %4 {offsets = [0, 32], sizes = [256, 16], strides = [1, 1]} : vector<256x128xf32> to vector<256x16xf32>
    %cst_8 = arith.constant dense<0xFF800000> : vector<256xf32>
    %21 = vector.multi_reduction <maximumf>, %20, %cst_8 [1] : vector<256x16xf32> to vector<256xf32>
    %22 = vector.shape_cast %21 : vector<256xf32> to vector<256x1xf32>
    %23 = vector.shape_cast %22 : vector<256x1xf32> to vector<256x1xf32>
    %24 = vector.broadcast %23 : vector<256x1xf32> to vector<256x16xf32>
    %25 = vector.extract_strided_slice %4 {offsets = [0, 48], sizes = [256, 16], strides = [1, 1]} : vector<256x128xf32> to vector<256x16xf32>
    %cst_9 = arith.constant dense<0xFF800000> : vector<256xf32>
    %26 = vector.multi_reduction <maximumf>, %25, %cst_9 [1] : vector<256x16xf32> to vector<256xf32>
    %27 = vector.shape_cast %26 : vector<256xf32> to vector<256x1xf32>
    %28 = vector.shape_cast %27 : vector<256x1xf32> to vector<256x1xf32>
    %29 = vector.broadcast %28 : vector<256x1xf32> to vector<256x16xf32>
    %30 = vector.extract_strided_slice %4 {offsets = [0, 64], sizes = [256, 16], strides = [1, 1]} : vector<256x128xf32> to vector<256x16xf32>
    %cst_10 = arith.constant dense<0xFF800000> : vector<256xf32>
    %31 = vector.multi_reduction <maximumf>, %30, %cst_10 [1] : vector<256x16xf32> to vector<256xf32>
    %32 = vector.shape_cast %31 : vector<256xf32> to vector<256x1xf32>
    %33 = vector.shape_cast %32 : vector<256x1xf32> to vector<256x1xf32>
    %34 = vector.broadcast %33 : vector<256x1xf32> to vector<256x16xf32>
    %35 = vector.extract_strided_slice %4 {offsets = [0, 80], sizes = [256, 16], strides = [1, 1]} : vector<256x128xf32> to vector<256x16xf32>
    %cst_11 = arith.constant dense<0xFF800000> : vector<256xf32>
    %36 = vector.multi_reduction <maximumf>, %35, %cst_11 [1] : vector<256x16xf32> to vector<256xf32>
    %37 = vector.shape_cast %36 : vector<256xf32> to vector<256x1xf32>
    %38 = vector.shape_cast %37 : vector<256x1xf32> to vector<256x1xf32>
    %39 = vector.broadcast %38 : vector<256x1xf32> to vector<256x16xf32>
    %40 = vector.extract_strided_slice %4 {offsets = [0, 96], sizes = [256, 16], strides = [1, 1]} : vector<256x128xf32> to vector<256x16xf32>
    %cst_12 = arith.constant dense<0xFF800000> : vector<256xf32>
    %41 = vector.multi_reduction <maximumf>, %40, %cst_12 [1] : vector<256x16xf32> to vector<256xf32>
    %42 = vector.shape_cast %41 : vector<256xf32> to vector<256x1xf32>
    %43 = vector.shape_cast %42 : vector<256x1xf32> to vector<256x1xf32>
    %44 = vector.broadcast %43 : vector<256x1xf32> to vector<256x16xf32>
    %45 = vector.extract_strided_slice %4 {offsets = [0, 112], sizes = [256, 16], strides = [1, 1]} : vector<256x128xf32> to vector<256x16xf32>
    %cst_13 = arith.constant dense<0xFF800000> : vector<256xf32>
    %46 = vector.multi_reduction <maximumf>, %45, %cst_13 [1] : vector<256x16xf32> to vector<256xf32>
    %47 = vector.shape_cast %46 : vector<256xf32> to vector<256x1xf32>
    %48 = vector.shape_cast %47 : vector<256x1xf32> to vector<256x1xf32>
    %49 = vector.broadcast %48 : vector<256x1xf32> to vector<256x16xf32>
    %50 = tpu.concatenate %14, %19, %24, %29, %34, %39, %44, %49 in 1 : vector<256x16xf32>, vector<256x16xf32>, vector<256x16xf32>, vector<256x16xf32>, vector<256x16xf32>, vector<256x16xf32>, vector<256x16xf32>, vector<256x16xf32> -> vector<256x128xf32>
    %51 = arith.subf %4, %50 : vector<256x128xf32>
    %52 = math.exp %51 : vector<256x128xf32>
    %53 = vector.extract_strided_slice %52 {offsets = [0, 0], sizes = [256, 16], strides = [1, 1]} : vector<256x128xf32> to vector<256x16xf32>
    %cst_14 = arith.constant dense<0.000000e+00> : vector<256xf32>
    %54 = vector.multi_reduction <add>, %53, %cst_14 [1] : vector<256x16xf32> to vector<256xf32>
    %55 = vector.shape_cast %54 : vector<256xf32> to vector<256x1xf32>
    %56 = vector.shape_cast %55 : vector<256x1xf32> to vector<256x1xf32>
    %57 = vector.broadcast %56 : vector<256x1xf32> to vector<256x16xf32>
    %58 = vector.extract_strided_slice %52 {offsets = [0, 16], sizes = [256, 16], strides = [1, 1]} : vector<256x128xf32> to vector<256x16xf32>
    %cst_15 = arith.constant dense<0.000000e+00> : vector<256xf32>
    %59 = vector.multi_reduction <add>, %58, %cst_15 [1] : vector<256x16xf32> to vector<256xf32>
    %60 = vector.shape_cast %59 : vector<256xf32> to vector<256x1xf32>
    %61 = vector.shape_cast %60 : vector<256x1xf32> to vector<256x1xf32>
    %62 = vector.broadcast %61 : vector<256x1xf32> to vector<256x16xf32>
    %63 = vector.extract_strided_slice %52 {offsets = [0, 32], sizes = [256, 16], strides = [1, 1]} : vector<256x128xf32> to vector<256x16xf32>
    %cst_16 = arith.constant dense<0.000000e+00> : vector<256xf32>
    %64 = vector.multi_reduction <add>, %63, %cst_16 [1] : vector<256x16xf32> to vector<256xf32>
    %65 = vector.shape_cast %64 : vector<256xf32> to vector<256x1xf32>
    %66 = vector.shape_cast %65 : vector<256x1xf32> to vector<256x1xf32>
    %67 = vector.broadcast %66 : vector<256x1xf32> to vector<256x16xf32>
    %68 = vector.extract_strided_slice %52 {offsets = [0, 48], sizes = [256, 16], strides = [1, 1]} : vector<256x128xf32> to vector<256x16xf32>
    %cst_17 = arith.constant dense<0.000000e+00> : vector<256xf32>
    %69 = vector.multi_reduction <add>, %68, %cst_17 [1] : vector<256x16xf32> to vector<256xf32>
    %70 = vector.shape_cast %69 : vector<256xf32> to vector<256x1xf32>
    %71 = vector.shape_cast %70 : vector<256x1xf32> to vector<256x1xf32>
    %72 = vector.broadcast %71 : vector<256x1xf32> to vector<256x16xf32>
    %73 = vector.extract_strided_slice %52 {offsets = [0, 64], sizes = [256, 16], strides = [1, 1]} : vector<256x128xf32> to vector<256x16xf32>
    %cst_18 = arith.constant dense<0.000000e+00> : vector<256xf32>
    %74 = vector.multi_reduction <add>, %73, %cst_18 [1] : vector<256x16xf32> to vector<256xf32>
    %75 = vector.shape_cast %74 : vector<256xf32> to vector<256x1xf32>
    %76 = vector.shape_cast %75 : vector<256x1xf32> to vector<256x1xf32>
    %77 = vector.broadcast %76 : vector<256x1xf32> to vector<256x16xf32>
    %78 = vector.extract_strided_slice %52 {offsets = [0, 80], sizes = [256, 16], strides = [1, 1]} : vector<256x128xf32> to vector<256x16xf32>
    %cst_19 = arith.constant dense<0.000000e+00> : vector<256xf32>
    %79 = vector.multi_reduction <add>, %78, %cst_19 [1] : vector<256x16xf32> to vector<256xf32>
    %80 = vector.shape_cast %79 : vector<256xf32> to vector<256x1xf32>
    %81 = vector.shape_cast %80 : vector<256x1xf32> to vector<256x1xf32>
    %82 = vector.broadcast %81 : vector<256x1xf32> to vector<256x16xf32>
    %83 = vector.extract_strided_slice %52 {offsets = [0, 96], sizes = [256, 16], strides = [1, 1]} : vector<256x128xf32> to vector<256x16xf32>
    %cst_20 = arith.constant dense<0.000000e+00> : vector<256xf32>
    %84 = vector.multi_reduction <add>, %83, %cst_20 [1] : vector<256x16xf32> to vector<256xf32>
    %85 = vector.shape_cast %84 : vector<256xf32> to vector<256x1xf32>
    %86 = vector.shape_cast %85 : vector<256x1xf32> to vector<256x1xf32>
    %87 = vector.broadcast %86 : vector<256x1xf32> to vector<256x16xf32>
    %88 = vector.extract_strided_slice %52 {offsets = [0, 112], sizes = [256, 16], strides = [1, 1]} : vector<256x128xf32> to vector<256x16xf32>
    %cst_21 = arith.constant dense<0.000000e+00> : vector<256xf32>
    %89 = vector.multi_reduction <add>, %88, %cst_21 [1] : vector<256x16xf32> to vector<256xf32>
    %90 = vector.shape_cast %89 : vector<256xf32> to vector<256x1xf32>
    %91 = vector.shape_cast %90 : vector<256x1xf32> to vector<256x1xf32>
    %92 = vector.broadcast %91 : vector<256x1xf32> to vector<256x16xf32>
    %93 = tpu.concatenate %57, %62, %67, %72, %77, %82, %87, %92 in 1 : vector<256x16xf32>, vector<256x16xf32>, vector<256x16xf32>, vector<256x16xf32>, vector<256x16xf32>, vector<256x16xf32>, vector<256x16xf32>, vector<256x16xf32> -> vector<256x128xf32>
    %94 = arith.divf %52, %93 : vector<256x128xf32>
    %95 = arith.truncf %94 : vector<256x128xf32> to vector<256x128xbf16>
    %96 = vector.shape_cast %95 : vector<256x128xbf16> to vector<2x128x128xbf16>
    %97 = vector.shape_cast %6 : vector<256x128xf32> to vector<2x128x128xf32>
    %cst_22 = arith.constant dense<0xFF800000> : vector<2x128xf32>
    %98 = vector.multi_reduction <maximumf>, %97, %cst_22 [1] : vector<2x128x128xf32> to vector<2x128xf32>
    %99 = vector.shape_cast %98 : vector<2x128xf32> to vector<2x1x128xf32>
    %100 = vector.broadcast %99 : vector<2x1x128xf32> to vector<2x128x128xf32>
    %101 = arith.subf %97, %100 : vector<2x128x128xf32>
    %102 = math.exp %101 : vector<2x128x128xf32>
    %cst_23 = arith.constant dense<0.000000e+00> : vector<2x128xf32>
    %103 = vector.multi_reduction <add>, %102, %cst_23 [1] : vector<2x128x128xf32> to vector<2x128xf32>
    %cst_24 = arith.constant 1.000000e+00 : f32
    %104 = vector.broadcast %cst_24 : f32 to vector<2x128xf32>
    %105 = arith.divf %104, %103 : vector<2x128xf32>
    %106 = tpu.iota {dimensions = array<i32: 0>} : vector<128x128xi32>
    %107 = tpu.iota {dimensions = array<i32: 1>} : vector<128x128xi32>
    %c-16_i32 = arith.constant -16 : i32
    %108 = vector.broadcast %c-16_i32 : i32 to vector<128x128xi32>
    %109 = arith.andi %106, %108 : vector<128x128xi32>
    %c-16_i32_25 = arith.constant -16 : i32
    %110 = vector.broadcast %c-16_i32_25 : i32 to vector<128x128xi32>
    %111 = arith.andi %107, %110 : vector<128x128xi32>
    %112 = arith.cmpi eq, %109, %111 : vector<128x128xi32>
    %113 = arith.extui %112 : vector<128x128xi1> to vector<128x128xi32>
    %114 = arith.sitofp %113 : vector<128x128xi32> to vector<128x128xf32>
    %115 = arith.truncf %102 : vector<2x128x128xf32> to vector<2x128x128xbf16>
    %116 = vector.shape_cast %9 : vector<256x128xbf16> to vector<2x128x128xbf16>
    "tpu.trace_start"() <{level = 10 : i32, message = "bnf,bnd->bfd"}> : () -> ()
    %cst_26 = arith.constant dense<0.000000e+00> : vector<2x128x128xf32>
    %117 = tpu.matmul %115, %116, %cst_26 {dimension_numbers = #tpu.dot_dimension_numbers<[1], [1], [2], [2], [0, 0, 0, 2, 1, 2], [0], [0]>} : vector<2x128x128xbf16>, vector<2x128x128xbf16>, vector<2x128x128xf32> -> vector<2x128x128xf32>
    "tpu.trace_stop"() : () -> ()
    %118 = vector.shape_cast %105 : vector<2x128xf32> to vector<2x128x1xf32>
    %119 = vector.shape_cast %114 : vector<128x128xf32> to vector<1x128x128xf32>
    %120 = vector.broadcast %119 : vector<1x128x128xf32> to vector<2x128x128xf32>
    %121 = vector.broadcast %118 : vector<2x128x1xf32> to vector<2x128x128xf32>
    %122 = arith.mulf %120, %121 : vector<2x128x128xf32>
    %123 = arith.mulf %117, %122 : vector<2x128x128xf32>
    %124 = arith.truncf %123 : vector<2x128x128xf32> to vector<2x128x128xbf16>
    "tpu.trace_start"() <{level = 10 : i32, message = "bnf,bfd->bnd"}> : () -> ()
    %cst_27 = arith.constant dense<0.000000e+00> : vector<2x128x128xf32>
    %125 = tpu.matmul %96, %124, %cst_27 {dimension_numbers = #tpu.dot_dimension_numbers<[2], [1], [1], [2], [0, 0, 0, 1, 1, 2], [0], [0]>} : vector<2x128x128xbf16>, vector<2x128x128xbf16>, vector<2x128x128xf32> -> vector<2x128x128xf32>
    "tpu.trace_stop"() : () -> ()
    %126 = arith.truncf %125 : vector<2x128x128xf32> to vector<2x128x128xbf16>
    %127 = vector.shape_cast %126 : vector<2x128x128xbf16> to vector<256x128xbf16>
    %c0_28 = arith.constant 0 : index
    %c0_29 = arith.constant 0 : index
    %128 = vector.load %arg3[%c0_28, %c0_29] : memref<128x128xbf16, #tpu.memory_space<vmem>>, vector<128x128xbf16>
    %cst_30 = arith.constant dense<0.000000e+00> : vector<256x128xf32>
    %129 = tpu.matmul %127, %128, %cst_30 {dimension_numbers = #tpu.dot_dimension_numbers<[1], [0], [0], [1], [0, 0, 1, 1], [], []>} : vector<256x128xbf16>, vector<128x128xbf16>, vector<256x128xf32> -> vector<256x128xf32>
    %130 = vector.shape_cast %129 : vector<256x128xf32> to vector<2x128x128xf32>
    %c0_31 = arith.constant 0 : index
    %c0_32 = arith.constant 0 : index
    %131 = vector.load %arg4[%c0_31, %c0_32] : memref<1x128xf32, #tpu.memory_space<vmem>>, vector<1x128xf32>
    %132 = vector.shape_cast %131 : vector<1x128xf32> to vector<1x1x128xf32>
    %133 = vector.broadcast %132 : vector<1x1x128xf32> to vector<2x128x128xf32>
    %134 = arith.addf %130, %133 : vector<2x128x128xf32>
    %135 = arith.truncf %134 : vector<2x128x128xf32> to vector<2x128x128xbf16>
    %c0_33 = arith.constant 0 : index
    %c0_34 = arith.constant 0 : index
    %c0_35 = arith.constant 0 : index
    %136 = vector.load %arg5[%c0_33, %c0_34, %c0_35] : memref<2x128x128xbf16, #tpu.memory_space<vmem>>, vector<2x128x128xbf16>
    tpu.vector_store %arg5[%c0_33, %c0_34, %c0_35], %135 {strides = array<i32>} : memref<2x128x128xbf16, #tpu.memory_space<vmem>>, vector<2x128x128xbf16>,
    return
  }
  func.func @transform_0(%arg0: i32) -> (i32, i32, i32) {
    %c0_i32 = arith.constant 0 : i32
    %c0_i32_0 = arith.constant 0 : i32
    %c0_i32_1 = arith.constant 0 : i32
    return %arg0, %c0_i32, %c0_i32_0 : i32, i32, i32
  }
  func.func @transform_1(%arg0: i32) -> (i32, i32) {
    %c0_i32 = arith.constant 0 : i32
    %c0_i32_0 = arith.constant 0 : i32
    %c0_i32_1 = arith.constant 0 : i32
    return %c0_i32, %c0_i32_0 : i32, i32
  }
  func.func @transform_2(%arg0: i32) -> (i32, i32) {
    %c0_i32 = arith.constant 0 : i32
    %c0_i32_0 = arith.constant 0 : i32
    %c0_i32_1 = arith.constant 0 : i32
    return %c0_i32, %c0_i32_0 : i32, i32
  }
  func.func @transform_3(%arg0: i32) -> (i32, i32) {
    %c0_i32 = arith.constant 0 : i32
    %c0_i32_0 = arith.constant 0 : i32
    %c0_i32_1 = arith.constant 0 : i32
    return %c0_i32, %c0_i32_0 : i32, i32
  }
  func.func @transform_4(%arg0: i32) -> (i32, i32, i32) {
    %c0_i32 = arith.constant 0 : i32
    %c0_i32_0 = arith.constant 0 : i32
    %c0_i32_1 = arith.constant 0 : i32
    return %arg0, %c0_i32, %c0_i32_0 : i32, i32, i32
  }
}

module attributes {stable_mosaic.version = 11 : i64} {
  func.func @_linear_attention_kernel(%arg0: i32, %arg1: memref<2x128x128xbf16, #tpu.memory_space<vmem>>, %arg2: memref<128x384xbf16, #tpu.memory_space<vmem>>, %arg3: memref<128x128xbf16, #tpu.memory_space<vmem>>, %arg4: memref<1x128xf32, #tpu.memory_space<vmem>>, %arg5: memref<2x128x128xbf16, #tpu.memory_space<vmem>>) attributes {dimension_semantics = [#tpu.dimension_semantics<parallel>], iteration_bounds = array<i64: 1>, scalar_prefetch = 0 : i64, scratch_operands = 0 : i64, tpu.core_type = #tpu.core_type<tc>, window_params = [{transform_indices = @transform_0, window_bounds = array<i64: 2, 128, 128>}, {pipeline_mode = #tpu.pipeline_mode<synchronous>, transform_indices = @transform_1, window_bounds = array<i64: 128, 384>}, {pipeline_mode = #tpu.pipeline_mode<synchronous>, transform_indices = @transform_2, window_bounds = array<i64: 128, 128>}, {pipeline_mode = #tpu.pipeline_mode<synchronous>, transform_indices = @transform_3, window_bounds = array<i64: 1, 128>}, {transform_indices = @transform_4, window_bounds = array<i64: 2, 128, 128>}]} {
    %c0 = arith.constant 0 : index
    %c0_0 = arith.constant 0 : index
    %c0_1 = arith.constant 0 : index
    %0 = vector.load %arg1[%c0, %c0_0, %c0_1] : memref<2x128x128xbf16, #tpu.memory_space<vmem>>, vector<2x128x128xbf16>
    %1 = vector.shape_cast %0 : vector<2x128x128xbf16> to vector<256x128xbf16>
    %c0_2 = arith.constant 0 : index
    %c0_3 = arith.constant 0 : index
    %2 = vector.load %arg2[%c0_2, %c0_3] : memref<128x384xbf16, #tpu.memory_space<vmem>>, vector<128x384xbf16>
    %3 = vector.extract_strided_slice %2 {offsets = [0, 0], sizes = [128, 128], strides = [1, 1]} : vector<128x384xbf16> to vector<128x128xbf16>
    %cst = arith.constant dense<0.000000e+00> : vector<256x128xf32>
    %4 = tpu.matmul %1, %3, %cst {dimension_numbers = #tpu.dot_dimension_numbers<[1], [0], [0], [1], [0, 0, 1, 1], [], []>} : vector<256x128xbf16>, vector<128x128xbf16>, vector<256x128xf32> -> vector<256x128xf32>
    %5 = vector.extract_strided_slice %2 {offsets = [0, 128], sizes = [128, 128], strides = [1, 1]} : vector<128x384xbf16> to vector<128x128xbf16>
    %cst_4 = arith.constant dense<0.000000e+00> : vector<256x128xf32>
    %6 = tpu.matmul %1, %5, %cst_4 {dimension_numbers = #tpu.dot_dimension_numbers<[1], [0], [0], [1], [0, 0, 1, 1], [], []>} : vector<256x128xbf16>, vector<128x128xbf16>, vector<256x128xf32> -> vector<256x128xf32>
    %7 = vector.extract_strided_slice %2 {offsets = [0, 256], sizes = [128, 128], strides = [1, 1]} : vector<128x384xbf16> to vector<128x128xbf16>
    %cst_5 = arith.constant dense<0.000000e+00> : vector<256x128xf32>
    %8 = tpu.matmul %1, %7, %cst_5 {dimension_numbers = #tpu.dot_dimension_numbers<[1], [0], [0], [1], [0, 0, 1, 1], [], []>} : vector<256x128xbf16>, vector<128x128xbf16>, vector<256x128xf32> -> vector<256x128xf32>
    %9 = arith.truncf %8 : vector<256x128xf32> to vector<256x128xbf16>
    %10 = vector.extract_strided_slice %4 {offsets = [0, 0], sizes = [256, 16], strides = [1, 1]} : vector<256x128xf32> to vector<256x16xf32>
    %cst_6 = arith.constant dense<0xFF800000> : vector<256xf32>
    %11 = vector.multi_reduction <maximumf>, %10, %cst_6 [1] : vector<256x16xf32> to vector<256xf32>
    %12 = vector.shape_cast %11 : vector<256xf32> to vector<256x1xf32>
    %13 = vector.shape_cast %12 : vector<256x1xf32> to vector<256x1xf32>
    %14 = vector.broadcast %13 : vector<256x1xf32> to vector<256x16xf32>
    %15 = vector.extract_strided_slice %4 {offsets = [0, 16], sizes = [256, 16], strides = [1, 1]} : vector<256x128xf32> to vector<256x16xf32>
    %cst_7 = arith.constant dense<0xFF800000> : vector<256xf32>
    %16 = vector.multi_reduction <maximumf>, %15, %cst_7 [1] : vector<256x16xf32> to vector<256xf32>
    %17 = vector.shape_cast %16 : vector<256xf32> to vector<256x1xf32>
    %18 = vector.shape_cast %17 : vector<256x1xf32> to vector<256x1xf32>
    %19 = vector.broadcast %18 : vector<256x1xf32> to vector<256x16xf32>
    %20 = vector.extract_strided_slice %4 {offsets = [0, 32], sizes = [256, 16], strides = [1, 1]} : vector<256x128xf32> to vector<256x16xf32>
    %cst_8 = arith.constant dense<0xFF800000> : vector<256xf32>
    %21 = vector.multi_reduction <maximumf>, %20, %cst_8 [1] : vector<256x16xf32> to vector<256xf32>
    %22 = vector.shape_cast %21 : vector<256xf32> to vector<256x1xf32>
    %23 = vector.shape_cast %22 : vector<256x1xf32> to vector<256x1xf32>
    %24 = vector.broadcast %23 : vector<256x1xf32> to vector<256x16xf32>
    %25 = vector.extract_strided_slice %4 {offsets = [0, 48], sizes = [256, 16], strides = [1, 1]} : vector<256x128xf32> to vector<256x16xf32>
    %cst_9 = arith.constant dense<0xFF800000> : vector<256xf32>
    %26 = vector.multi_reduction <maximumf>, %25, %cst_9 [1] : vector<256x16xf32> to vector<256xf32>
    %27 = vector.shape_cast %26 : vector<256xf32> to vector<256x1xf32>
    %28 = vector.shape_cast %27 : vector<256x1xf32> to vector<256x1xf32>
    %29 = vector.broadcast %28 : vector<256x1xf32> to vector<256x16xf32>
    %30 = vector.extract_strided_slice %4 {offsets = [0, 64], sizes = [256, 16], strides = [1, 1]} : vector<256x128xf32> to vector<256x16xf32>
    %cst_10 = arith.constant dense<0xFF800000> : vector<256xf32>
    %31 = vector.multi_reduction <maximumf>, %30, %cst_10 [1] : vector<256x16xf32> to vector<256xf32>
    %32 = vector.shape_cast %31 : vector<256xf32> to vector<256x1xf32>
    %33 = vector.shape_cast %32 : vector<256x1xf32> to vector<256x1xf32>
    %34 = vector.broadcast %33 : vector<256x1xf32> to vector<256x16xf32>
    %35 = vector.extract_strided_slice %4 {offsets = [0, 80], sizes = [256, 16], strides = [1, 1]} : vector<256x128xf32> to vector<256x16xf32>
    %cst_11 = arith.constant dense<0xFF800000> : vector<256xf32>
    %36 = vector.multi_reduction <maximumf>, %35, %cst_11 [1] : vector<256x16xf32> to vector<256xf32>
    %37 = vector.shape_cast %36 : vector<256xf32> to vector<256x1xf32>
    %38 = vector.shape_cast %37 : vector<256x1xf32> to vector<256x1xf32>
    %39 = vector.broadcast %38 : vector<256x1xf32> to vector<256x16xf32>
    %40 = vector.extract_strided_slice %4 {offsets = [0, 96], sizes = [256, 16], strides = [1, 1]} : vector<256x128xf32> to vector<256x16xf32>
    %cst_12 = arith.constant dense<0xFF800000> : vector<256xf32>
    %41 = vector.multi_reduction <maximumf>, %40, %cst_12 [1] : vector<256x16xf32> to vector<256xf32>
    %42 = vector.shape_cast %41 : vector<256xf32> to vector<256x1xf32>
    %43 = vector.shape_cast %42 : vector<256x1xf32> to vector<256x1xf32>
    %44 = vector.broadcast %43 : vector<256x1xf32> to vector<256x16xf32>
    %45 = vector.extract_strided_slice %4 {offsets = [0, 112], sizes = [256, 16], strides = [1, 1]} : vector<256x128xf32> to vector<256x16xf32>
    %cst_13 = arith.constant dense<0xFF800000> : vector<256xf32>
    %46 = vector.multi_reduction <maximumf>, %45, %cst_13 [1] : vector<256x16xf32> to vector<256xf32>
    %47 = vector.shape_cast %46 : vector<256xf32> to vector<256x1xf32>
    %48 = vector.shape_cast %47 : vector<256x1xf32> to vector<256x1xf32>
    %49 = vector.broadcast %48 : vector<256x1xf32> to vector<256x16xf32>
    %50 = tpu.concatenate %14, %19, %24, %29, %34, %39, %44, %49 in 1 : vector<256x16xf32>, vector<256x16xf32>, vector<256x16xf32>, vector<256x16xf32>, vector<256x16xf32>, vector<256x16xf32>, vector<256x16xf32>, vector<256x16xf32> -> vector<256x128xf32>
    %51 = arith.subf %4, %50 : vector<256x128xf32>
    %52 = math.exp %51 : vector<256x128xf32>
    %53 = vector.extract_strided_slice %52 {offsets = [0, 0], sizes = [256, 16], strides = [1, 1]} : vector<256x128xf32> to vector<256x16xf32>
    %cst_14 = arith.constant dense<0.000000e+00> : vector<256xf32>
    %54 = vector.multi_reduction <add>, %53, %cst_14 [1] : vector<256x16xf32> to vector<256xf32>
    %55 = vector.shape_cast %54 : vector<256xf32> to vector<256x1xf32>
    %56 = vector.shape_cast %55 : vector<256x1xf32> to vector<256x1xf32>
    %57 = vector.broadcast %56 : vector<256x1xf32> to vector<256x16xf32>
    %58 = vector.extract_strided_slice %52 {offsets = [0, 16], sizes = [256, 16], strides = [1, 1]} : vector<256x128xf32> to vector<256x16xf32>
    %cst_15 = arith.constant dense<0.000000e+00> : vector<256xf32>
    %59 = vector.multi_reduction <add>, %58, %cst_15 [1] : vector<256x16xf32> to vector<256xf32>
    %60 = vector.shape_cast %59 : vector<256xf32> to vector<256x1xf32>
    %61 = vector.shape_cast %60 : vector<256x1xf32> to vector<256x1xf32>
    %62 = vector.broadcast %61 : vector<256x1xf32> to vector<256x16xf32>
    %63 = vector.extract_strided_slice %52 {offsets = [0, 32], sizes = [256, 16], strides = [1, 1]} : vector<256x128xf32> to vector<256x16xf32>
    %cst_16 = arith.constant dense<0.000000e+00> : vector<256xf32>
    %64 = vector.multi_reduction <add>, %63, %cst_16 [1] : vector<256x16xf32> to vector<256xf32>
    %65 = vector.shape_cast %64 : vector<256xf32> to vector<256x1xf32>
    %66 = vector.shape_cast %65 : vector<256x1xf32> to vector<256x1xf32>
    %67 = vector.broadcast %66 : vector<256x1xf32> to vector<256x16xf32>
    %68 = vector.extract_strided_slice %52 {offsets = [0, 48], sizes = [256, 16], strides = [1, 1]} : vector<256x128xf32> to vector<256x16xf32>
    %cst_17 = arith.constant dense<0.000000e+00> : vector<256xf32>
    %69 = vector.multi_reduction <add>, %68, %cst_17 [1] : vector<256x16xf32> to vector<256xf32>
    %70 = vector.shape_cast %69 : vector<256xf32> to vector<256x1xf32>
    %71 = vector.shape_cast %70 : vector<256x1xf32> to vector<256x1xf32>
    %72 = vector.broadcast %71 : vector<256x1xf32> to vector<256x16xf32>
    %73 = vector.extract_strided_slice %52 {offsets = [0, 64], sizes = [256, 16], strides = [1, 1]} : vector<256x128xf32> to vector<256x16xf32>
    %cst_18 = arith.constant dense<0.000000e+00> : vector<256xf32>
    %74 = vector.multi_reduction <add>, %73, %cst_18 [1] : vector<256x16xf32> to vector<256xf32>
    %75 = vector.shape_cast %74 : vector<256xf32> to vector<256x1xf32>
    %76 = vector.shape_cast %75 : vector<256x1xf32> to vector<256x1xf32>
    %77 = vector.broadcast %76 : vector<256x1xf32> to vector<256x16xf32>
    %78 = vector.extract_strided_slice %52 {offsets = [0, 80], sizes = [256, 16], strides = [1, 1]} : vector<256x128xf32> to vector<256x16xf32>
    %cst_19 = arith.constant dense<0.000000e+00> : vector<256xf32>
    %79 = vector.multi_reduction <add>, %78, %cst_19 [1] : vector<256x16xf32> to vector<256xf32>
    %80 = vector.shape_cast %79 : vector<256xf32> to vector<256x1xf32>
    %81 = vector.shape_cast %80 : vector<256x1xf32> to vector<256x1xf32>
    %82 = vector.broadcast %81 : vector<256x1xf32> to vector<256x16xf32>
    %83 = vector.extract_strided_slice %52 {offsets = [0, 96], sizes = [256, 16], strides = [1, 1]} : vector<256x128xf32> to vector<256x16xf32>
    %cst_20 = arith.constant dense<0.000000e+00> : vector<256xf32>
    %84 = vector.multi_reduction <add>, %83, %cst_20 [1] : vector<256x16xf32> to vector<256xf32>
    %85 = vector.shape_cast %84 : vector<256xf32> to vector<256x1xf32>
    %86 = vector.shape_cast %85 : vector<256x1xf32> to vector<256x1xf32>
    %87 = vector.broadcast %86 : vector<256x1xf32> to vector<256x16xf32>
    %88 = vector.extract_strided_slice %52 {offsets = [0, 112], sizes = [256, 16], strides = [1, 1]} : vector<256x128xf32> to vector<256x16xf32>
    %cst_21 = arith.constant dense<0.000000e+00> : vector<256xf32>
    %89 = vector.multi_reduction <add>, %88, %cst_21 [1] : vector<256x16xf32> to vector<256xf32>
    %90 = vector.shape_cast %89 : vector<256xf32> to vector<256x1xf32>
    %91 = vector.shape_cast %90 : vector<256x1xf32> to vector<256x1xf32>
    %92 = vector.broadcast %91 : vector<256x1xf32> to vector<256x16xf32>
    %93 = tpu.concatenate %57, %62, %67, %72, %77, %82, %87, %92 in 1 : vector<256x16xf32>, vector<256x16xf32>, vector<256x16xf32>, vector<256x16xf32>, vector<256x16xf32>, vector<256x16xf32>, vector<256x16xf32>, vector<256x16xf32> -> vector<256x128xf32>
    %94 = arith.divf %52, %93 : vector<256x128xf32>
    %95 = arith.truncf %94 : vector<256x128xf32> to vector<256x128xbf16>
    %96 = vector.shape_cast %95 : vector<256x128xbf16> to vector<2x128x128xbf16>
    %97 = vector.shape_cast %6 : vector<256x128xf32> to vector<2x128x128xf32>
    %cst_22 = arith.constant dense<0xFF800000> : vector<2x128xf32>
    %98 = vector.multi_reduction <maximumf>, %97, %cst_22 [1] : vector<2x128x128xf32> to vector<2x128xf32>
    %99 = vector.shape_cast %98 : vector<2x128xf32> to vector<2x1x128xf32>
    %100 = vector.broadcast %99 : vector<2x1x128xf32> to vector<2x128x128xf32>
    %101 = arith.subf %97, %100 : vector<2x128x128xf32>
    %102 = math.exp %101 : vector<2x128x128xf32>
    %cst_23 = arith.constant dense<0.000000e+00> : vector<2x128xf32>
    %103 = vector.multi_reduction <add>, %102, %cst_23 [1] : vector<2x128x128xf32> to vector<2x128xf32>
    %cst_24 = arith.constant 1.000000e+00 : f32
    %104 = vector.broadcast %cst_24 : f32 to vector<2x128xf32>
    %105 = arith.divf %104, %103 : vector<2x128xf32>
    %106 = tpu.iota {dimensions = array<i32: 0>} : vector<128x128xi32>
    %107 = tpu.iota {dimensions = array<i32: 1>} : vector<128x128xi32>
    %c-16_i32 = arith.constant -16 : i32
    %108 = vector.broadcast %c-16_i32 : i32 to vector<128x128xi32>
    %109 = arith.andi %106, %108 : vector<128x128xi32>
    %c-16_i32_25 = arith.constant -16 : i32
    %110 = vector.broadcast %c-16_i32_25 : i32 to vector<128x128xi32>
    %111 = arith.andi %107, %110 : vector<128x128xi32>
    %112 = arith.cmpi eq, %109, %111 : vector<128x128xi32>
    %113 = arith.extui %112 : vector<128x128xi1> to vector<128x128xi32>
    %114 = arith.sitofp %113 : vector<128x128xi32> to vector<128x128xf32>
    %115 = arith.truncf %102 : vector<2x128x128xf32> to vector<2x128x128xbf16>
    %116 = vector.shape_cast %9 : vector<256x128xbf16> to vector<2x128x128xbf16>
    "tpu.trace_start"() <{level = 10 : i32, message = "bnf,bnd->bfd"}> : () -> ()
    %cst_26 = arith.constant dense<0.000000e+00> : vector<2x128x128xf32>
    %117 = tpu.matmul %115, %116, %cst_26 {dimension_numbers = #tpu.dot_dimension_numbers<[1], [1], [2], [2], [0, 0, 0, 2, 1, 2], [0], [0]>} : vector<2x128x128xbf16>, vector<2x128x128xbf16>, vector<2x128x128xf32> -> vector<2x128x128xf32>
    "tpu.trace_stop"() : () -> ()
    %118 = vector.shape_cast %105 : vector<2x128xf32> to vector<2x128x1xf32>
    %119 = vector.shape_cast %114 : vector<128x128xf32> to vector<1x128x128xf32>
    %120 = vector.broadcast %119 : vector<1x128x128xf32> to vector<2x128x128xf32>
    %121 = vector.broadcast %118 : vector<2x128x1xf32> to vector<2x128x128xf32>
    %122 = arith.mulf %120, %121 : vector<2x128x128xf32>
    %123 = arith.mulf %117, %122 : vector<2x128x128xf32>
    %124 = arith.truncf %123 : vector<2x128x128xf32> to vector<2x128x128xbf16>
    "tpu.trace_start"() <{level = 10 : i32, message = "bnf,bfd->bnd"}> : () -> ()
    %cst_27 = arith.constant dense<0.000000e+00> : vector<2x128x128xf32>
    %125 = tpu.matmul %96, %124, %cst_27 {dimension_numbers = #tpu.dot_dimension_numbers<[2], [1], [1], [2], [0, 0, 0, 1, 1, 2], [0], [0]>} : vector<2x128x128xbf16>, vector<2x128x128xbf16>, vector<2x128x128xf32> -> vector<2x128x128xf32>
    "tpu.trace_stop"() : () -> ()
    %126 = arith.truncf %125 : vector<2x128x128xf32> to vector<2x128x128xbf16>
    %127 = vector.shape_cast %126 : vector<2x128x128xbf16> to vector<256x128xbf16>
    %c0_28 = arith.constant 0 : index
    %c0_29 = arith.constant 0 : index
    %128 = vector.load %arg3[%c0_28, %c0_29] : memref<128x128xbf16, #tpu.memory_space<vmem>>, vector<128x128xbf16>
    %cst_30 = arith.constant dense<0.000000e+00> : vector<256x128xf32>
    %129 = tpu.matmul %127, %128, %cst_30 {dimension_numbers = #tpu.dot_dimension_numbers<[1], [0], [0], [1], [0, 0, 1, 1], [], []>} : vector<256x128xbf16>, vector<128x128xbf16>, vector<256x128xf32> -> vector<256x128xf32>
    %130 = vector.shape_cast %129 : vector<256x128xf32> to vector<2x128x128xf32>
    %c0_31 = arith.constant 0 : index
    %c0_32 = arith.constant 0 : index
    %131 = vector.load %arg4[%c0_31, %c0_32] : memref<1x128xf32, #tpu.memory_space<vmem>>, vector<1x128xf32>
    %132 = vector.shape_cast %131 : vector<1x128xf32> to vector<1x1x128xf32>
    %133 = vector.broadcast %132 : vector<1x1x128xf32> to vector<2x128x128xf32>
    %134 = arith.addf %130, %133 : vector<2x128x128xf32>
    %135 = arith.truncf %134 : vector<2x128x128xf32> to vector<2x128x128xbf16>
    %c0_33 = arith.constant 0 : index
    %c0_34 = arith.constant 0 : index
    %c0_35 = arith.constant 0 : index
    %136 = vector.load %arg5[%c0_33, %c0_34, %c0_35] : memref<2x128x128xbf16, #tpu.memory_space<vmem>>, vector<2x128x128xbf16>
    tpu.vector_store %arg5[%c0_33, %c0_34, %c0_35], %135 {strides = array<i32>} : memref<2x128x128xbf16, #tpu.memory_space<vmem>>, vector<2x128x128xbf16>,
    return
  }
  func.func @transform_0(%arg0: i32) -> (i32, i32, i32) {
    %c0_i32 = arith.constant 0 : i32
    %c0_i32_0 = arith.constant 0 : i32
    %c0_i32_1 = arith.constant 0 : i32
    return %arg0, %c0_i32, %c0_i32_0 : i32, i32, i32
  }
  func.func @transform_1(%arg0: i32) -> (i32, i32) {
    %c0_i32 = arith.constant 0 : i32
    %c0_i32_0 = arith.constant 0 : i32
    %c0_i32_1 = arith.constant 0 : i32
    return %c0_i32, %c0_i32_0 : i32, i32
  }
  func.func @transform_2(%arg0: i32) -> (i32, i32) {
    %c0_i32 = arith.constant 0 : i32
    %c0_i32_0 = arith.constant 0 : i32
    %c0_i32_1 = arith.constant 0 : i32
    return %c0_i32, %c0_i32_0 : i32, i32
  }
  func.func @transform_3(%arg0: i32) -> (i32, i32) {
    %c0_i32 = arith.constant 0 : i32
    %c0_i32_0 = arith.constant 0 : i32
    %c0_i32_1 = arith.constant 0 : i32
    return %c0_i32, %c0_i32_0 : i32, i32
  }
  func.func @transform_4(%arg0: i32) -> (i32, i32, i32) {
    %c0_i32 = arith.constant 0 : i32
    %c0_i32_0 = arith.constant 0 : i32
    %c0_i32_1 = arith.constant 0 : i32
    return %arg0, %c0_i32, %c0_i32_0 : i32, i32, i32
  }
}

</mosaic_0001>

<llo_original>
// kernel: tpu_custom_call.1
$region0: #{tpu_custom_call.1}
  #allocation0 [shape = 'u32[]', space=smem, size = 0x4, offset = 0x4, fixed_abs, tag = 'smem constant byte address 0x4 - core index']
  #allocation1 [shape = 'u32[72,128]{1,0:T(1,128)}', space=vmem, size = 0x9000, scoped, tag = 'internal scratch']
  %s0 = inlined_call_operand.hbm [shape: bf16[2,128,128], index: 0, kind: input, shape index: {}]
  %s1 = inlined_call_operand.hbm [shape: bf16[128,384], index: 1, kind: input, shape index: {}]
  %s2 = inlined_call_operand.hbm [shape: bf16[128,128], index: 2, kind: input, shape index: {}]
  %s3 = inlined_call_operand.vmem [shape: f32[1,128], index: 3, kind: input, shape index: {}]
  %s4 = inlined_call_operand.hbm [shape: bf16[2,128,128], index: 4, kind: output, shape index: {}]
  %s5 = sld [smem:[#allocation0]]
  $region38: #{tpu_custom_call.1} parent=0
    _
  %s7 = ssub.s32 1, %s5
  %s8 = scalar_select 0, %s7, %s5
  $region1: #{tpu_custom_call.1} parent=0
    #allocation2 [shape = 'u8[65536]{0}', space=vmem, size = 0x10000, scoped, tag = 'input window, operand 0, single buffered']
    #allocation3 [shape = 's32[1]{0}', space=sflag, size = 0x4, scoped, tag = 'scoped memory for tpu_custom_call.1']
    #allocation4 [shape = 's32[1]{0}', space=sflag, size = 0x4, scoped, tag = 'scoped memory for tpu_custom_call.1']
    #allocation5 [shape = 'u8[98304]{0}', space=vmem, size = 0x18000, scoped, tag = 'input window, operand 1, single buffered']
    #allocation6 [shape = 's32[1]{0}', space=sflag, size = 0x4, scoped, tag = 'scoped memory for tpu_custom_call.1']
    #allocation7 [shape = 'u8[32768]{0}', space=vmem, size = 0x8000, scoped, tag = 'input window, operand 2, single buffered']
    #allocation8 [shape = 'u8[65536]{0}', space=vmem, size = 0x10000, scoped, tag = 'output window, operand 0, single buffered']
    %9 = vsyncpa [#allocation3], 0
    %10 = vsyncpa [#allocation6], 0
    %11 = vsyncpa [#allocation4], 0
    // Predicated region
    $region2: #{tpu_custom_call.1} parent=1 // pred_check
      _
    $region3: #{tpu_custom_call.1} parent=1 // pred_check_branch
      %13 = sbr.rel (0) target = $region5
    $region4: #{tpu_custom_call.1} parent=1 // pred_region
      %15 = vsyncadd [#allocation3], 0
      %s16 = sshll.u32 %s0, 4
      %s17 = int_to_ptr.hbm [resolvable:$true] %s16
      %s18 = sshll.u32 [#allocation2], 4
      %s19 = int_to_ptr.vmem [resolvable:$true] %s18
      %24 = dma.hbm_to_vmem [thread:$0]  %s17, 2048, %s19, [#allocation3], 64, 64, 4
    $region5: #{tpu_custom_call.1} parent=1 // pred_fallthru
      _
    // Predicated region
    $region6: #{tpu_custom_call.1} parent=1 // pred_check
      _
    $region7: #{tpu_custom_call.1} parent=1 // pred_check_branch
      %26 = sbr.rel (0) target = $region9
    $region8: #{tpu_custom_call.1} parent=1 // pred_region
      %28 = vsyncadd [#allocation6], 0
      %s29 = sshll.u32 %s1, 4
      %s30 = int_to_ptr.hbm [resolvable:$true] %s29
      %s31 = sshll.u32 [#allocation5], 4
      %s32 = int_to_ptr.vmem [resolvable:$true] %s31
      %37 = dma.hbm_to_vmem [thread:$0]  %s30, 3072, %s32, [#allocation6], 192, 192, 12
    $region9: #{tpu_custom_call.1} parent=1 // pred_fallthru
      _
    // Predicated region
    $region10: #{tpu_custom_call.1} parent=1 // pred_check
      _
    $region11: #{tpu_custom_call.1} parent=1 // pred_check_branch
      %39 = sbr.rel (0) target = $region13
    $region12: #{tpu_custom_call.1} parent=1 // pred_region
      %41 = vsyncadd [#allocation6], 0
      %s42 = sshll.u32 %s2, 4
      %s43 = int_to_ptr.hbm [resolvable:$true] %s42
      %s44 = sshll.u32 [#allocation7], 4
      %s45 = int_to_ptr.vmem [resolvable:$true] %s44
      %50 = dma.hbm_to_vmem [thread:$0]  %s43, 1024, %s45, [#allocation6], 64, 64, 4
    $region13: #{tpu_custom_call.1} parent=1 // pred_fallthru
      _
    // Predicated region
    $region14: #{tpu_custom_call.1} parent=1 // pred_check
      _
    $region15: #{tpu_custom_call.1} parent=1 // pred_check_branch
      %52 = sbr.rel (0) target = $region17
    $region16: #{tpu_custom_call.1} parent=1 // pred_region
      _
    $region17: #{tpu_custom_call.1} parent=1 // pred_fallthru
      _
    // Predicated region
    $region18: #{tpu_custom_call.1} parent=1 // pred_check
      _
    $region19: #{tpu_custom_call.1} parent=1 // pred_check_branch
      %54 = sbr.rel (0) target = $region21
    $region20: #{tpu_custom_call.1} parent=1 // pred_region
      %56 = dma.done [#allocation3], 2048
    $region21: #{tpu_custom_call.1} parent=1 // pred_fallthru
      _
    // Predicated region
    $region22: #{tpu_custom_call.1} parent=1 // pred_check
      _
    $region23: #{tpu_custom_call.1} parent=1 // pred_check_branch
      %58 = sbr.rel (0) target = $region25
    $region24: #{tpu_custom_call.1} parent=1 // pred_region
      %60 = dma.done [#allocation6], 3072
    $region25: #{tpu_custom_call.1} parent=1 // pred_fallthru
      _
    // Predicated region
    $region26: #{tpu_custom_call.1} parent=1 // pred_check
      _
    $region27: #{tpu_custom_call.1} parent=1 // pred_check_branch
      %62 = sbr.rel (0) target = $region29
    $region28: #{tpu_custom_call.1} parent=1 // pred_region
      %64 = dma.done [#allocation6], 1024
    $region29: #{tpu_custom_call.1} parent=1 // pred_fallthru
      _
    %v65 = vld [vmem:[#allocation2] sm:$0xf]
    %v66 = vld [vmem:[#allocation2 + $0x4] sm:$0xf]
    %v67 = vld [vmem:[#allocation2 + $0x8] sm:$0xf]
    %v68 = vld [vmem:[#allocation2 + $0xc] sm:$0xf]
    %v69 = vld [vmem:[#allocation2 + $0x10] sm:$0xf]
    %v70 = vld [vmem:[#allocation2 + $0x14] sm:$0xf]
    %v71 = vld [vmem:[#allocation2 + $0x18] sm:$0xf]
    %v72 = vld [vmem:[#allocation2 + $0x1c] sm:$0xf]
    %v73 = vld [vmem:[#allocation2 + $0x20] sm:$0xf]
    %v74 = vld [vmem:[#allocation2 + $0x24] sm:$0xf]
    %v75 = vld [vmem:[#allocation2 + $0x28] sm:$0xf]
    %v76 = vld [vmem:[#allocation2 + $0x2c] sm:$0xf]
    %v77 = vld [vmem:[#allocation2 + $0x30] sm:$0xf]
    %v78 = vld [vmem:[#allocation2 + $0x34] sm:$0xf]
    %v79 = vld [vmem:[#allocation2 + $0x38] sm:$0xf]
    %v80 = vld [vmem:[#allocation2 + $0x3c] sm:$0xf]
    %v81 = vld [vmem:[#allocation2 + $0x40] sm:$0xf]
    %v82 = vld [vmem:[#allocation2 + $0x44] sm:$0xf]
    %v83 = vld [vmem:[#allocation2 + $0x48] sm:$0xf]
    %v84 = vld [vmem:[#allocation2 + $0x4c] sm:$0xf]
    %v85 = vld [vmem:[#allocation2 + $0x50] sm:$0xf]
    %v86 = vld [vmem:[#allocation2 + $0x54] sm:$0xf]
    %v87 = vld [vmem:[#allocation2 + $0x58] sm:$0xf]
    %v88 = vld [vmem:[#allocation2 + $0x5c] sm:$0xf]
    %v89 = vld [vmem:[#allocation2 + $0x60] sm:$0xf]
    %v90 = vld [vmem:[#allocation2 + $0x64] sm:$0xf]
    %v91 = vld [vmem:[#allocation2 + $0x68] sm:$0xf]
    %v92 = vld [vmem:[#allocation2 + $0x6c] sm:$0xf]
    %v93 = vld [vmem:[#allocation2 + $0x70] sm:$0xf]
    %v94 = vld [vmem:[#allocation2 + $0x74] sm:$0xf]
    %v95 = vld [vmem:[#allocation2 + $0x78] sm:$0xf]
    %v96 = vld [vmem:[#allocation2 + $0x7c] sm:$0xf]
    %v97 = vld [vmem:[#allocation5] sm:$0xff]
    %v98 = vld [vmem:[#allocation5 + $0x8] sm:$0xf]
    %v99 = vld [vmem:[#allocation5 + $0xc] sm:$0xff]
    %v100 = vld [vmem:[#allocation5 + $0x14] sm:$0xf]
    %v101 = vld [vmem:[#allocation5 + $0x18] sm:$0xff]
    %v102 = vld [vmem:[#allocation5 + $0x20] sm:$0xf]
    %v103 = vld [vmem:[#allocation5 + $0x24] sm:$0xff]
    %v104 = vld [vmem:[#allocation5 + $0x2c] sm:$0xf]
    %v105 = vld [vmem:[#allocation5 + $0x30] sm:$0xff]
    %v106 = vld [vmem:[#allocation5 + $0x38] sm:$0xf]
    %v107 = vld [vmem:[#allocation5 + $0x3c] sm:$0xff]
    %v108 = vld [vmem:[#allocation5 + $0x44] sm:$0xf]
    %v109 = vld [vmem:[#allocation5 + $0x48] sm:$0xff]
    %v110 = vld [vmem:[#allocation5 + $0x50] sm:$0xf]
    %v111 = vld [vmem:[#allocation5 + $0x54] sm:$0xff]
    %v112 = vld [vmem:[#allocation5 + $0x5c] sm:$0xf]
    %v113 = vld [vmem:[#allocation5 + $0x60] sm:$0xff]
    %v114 = vld [vmem:[#allocation5 + $0x68] sm:$0xf]
    %v115 = vld [vmem:[#allocation5 + $0x6c] sm:$0xff]
    %v116 = vld [vmem:[#allocation5 + $0x74] sm:$0xf]
    %v117 = vld [vmem:[#allocation5 + $0x78] sm:$0xff]
    %v118 = vld [vmem:[#allocation5 + $0x80] sm:$0xf]
    %v119 = vld [vmem:[#allocation5 + $0x84] sm:$0xff]
    %v120 = vld [vmem:[#allocation5 + $0x8c] sm:$0xf]
    %v121 = vld [vmem:[#allocation5 + $0x90] sm:$0xff]
    %v122 = vld [vmem:[#allocation5 + $0x98] sm:$0xf]
    %v123 = vld [vmem:[#allocation5 + $0x9c] sm:$0xff]
    %v124 = vld [vmem:[#allocation5 + $0xa4] sm:$0xf]
    %v125 = vld [vmem:[#allocation5 + $0xa8] sm:$0xff]
    %v126 = vld [vmem:[#allocation5 + $0xb0] sm:$0xf]
    %v127 = vld [vmem:[#allocation5 + $0xb4] sm:$0xff]
    %v128 = vld [vmem:[#allocation5 + $0xbc] sm:$0xf]
    %v161 = vunpack.c.l.b16 %v65
    %v162 = vunpack.c.l.b16 %v66
    %v163 = vunpack.c.l.b16 %v67
    %v164 = vunpack.c.l.b16 %v68
    %v165 = vunpack.c.l.b16 %v69
    %v166 = vunpack.c.l.b16 %v70
    %v167 = vunpack.c.l.b16 %v71
    %v168 = vunpack.c.l.b16 %v72
    %v169 = vunpack.c.l.b16 %v73
    %v170 = vunpack.c.l.b16 %v74
    %v171 = vunpack.c.l.b16 %v75
    %v172 = vunpack.c.l.b16 %v76
    %v173 = vunpack.c.l.b16 %v77
    %v174 = vunpack.c.l.b16 %v78
    %v175 = vunpack.c.l.b16 %v79
    %v176 = vunpack.c.l.b16 %v80
    %v177 = vunpack.c.l.b16 %v81
    %v178 = vunpack.c.l.b16 %v82
    %v179 = vunpack.c.l.b16 %v83
    %v180 = vunpack.c.l.b16 %v84
    %v181 = vunpack.c.l.b16 %v85
    %v182 = vunpack.c.l.b16 %v86
    %v183 = vunpack.c.l.b16 %v87
    %v184 = vunpack.c.l.b16 %v88
    %v185 = vunpack.c.l.b16 %v89
    %v186 = vunpack.c.l.b16 %v90
    %v187 = vunpack.c.l.b16 %v91
    %v188 = vunpack.c.l.b16 %v92
    %v189 = vunpack.c.l.b16 %v93
    %v190 = vunpack.c.l.b16 %v94
    %v191 = vunpack.c.l.b16 %v95
    %v192 = vunpack.c.l.b16 %v96
    %v193 = vpack.c.b16 %v162, %v161
    %v194 = vpack.c.b16 %v164, %v163
    %v195 = vpack.c.b16 %v166, %v165
    %v196 = vpack.c.b16 %v168, %v167
    %v197 = vpack.c.b16 %v170, %v169
    %v198 = vpack.c.b16 %v172, %v171
    %v199 = vpack.c.b16 %v174, %v173
    %v200 = vpack.c.b16 %v176, %v175
    %v201 = vpack.c.b16 %v178, %v177
    %v202 = vpack.c.b16 %v180, %v179
    %v203 = vpack.c.b16 %v182, %v181
    %v204 = vpack.c.b16 %v184, %v183
    %v205 = vpack.c.b16 %v186, %v185
    %v206 = vpack.c.b16 %v188, %v187
    %v207 = vpack.c.b16 %v190, %v189
    %v208 = vpack.c.b16 %v192, %v191
    %v241 = vunpack.c.l.b16 %v97
    %v242 = vunpack.c.l.b16 %v99
    %v243 = vunpack.c.l.b16 %v101
    %v244 = vunpack.c.l.b16 %v103
    %v245 = vunpack.c.l.b16 %v105
    %v246 = vunpack.c.l.b16 %v107
    %v247 = vunpack.c.l.b16 %v109
    %v248 = vunpack.c.l.b16 %v111
    %v249 = vunpack.c.l.b16 %v113
    %v250 = vunpack.c.l.b16 %v115
    %v251 = vunpack.c.l.b16 %v117
    %v252 = vunpack.c.l.b16 %v119
    %v253 = vunpack.c.l.b16 %v121
    %v254 = vunpack.c.l.b16 %v123
    %v255 = vunpack.c.l.b16 %v125
    %v256 = vunpack.c.l.b16 %v127
    %v257 = vpack.c.b16 %v242, %v241
    %v258 = vpack.c.b16 %v244, %v243
    %v259 = vpack.c.b16 %v246, %v245
    %v260 = vpack.c.b16 %v248, %v247
    %v261 = vpack.c.b16 %v250, %v249
    %v262 = vpack.c.b16 %v252, %v251
    %v263 = vpack.c.b16 %v254, %v253
    %v264 = vpack.c.b16 %v256, %v255
    %273 = vmatpush.bf16.msra.mxu0 %v264
    %274 = vmatpush.bf16.msra.mxu0 %v263
    %275 = vmatpush.bf16.msra.mxu0 %v262
    %276 = vmatpush.bf16.msra.mxu0 %v261
    %277 = vmatpush.bf16.msra.mxu0 %v260
    %278 = vmatpush.bf16.msra.mxu0 %v259
    %279 = vmatpush.bf16.msra.mxu0 %v258
    %280 = vmatpush.bf16.msra.mxu0 %v257
    %281 = vmatmul.bf16.gmra.mxu0 %v193
    %v282 = vpop.f32.mrf.mxu0
    %v283 = vadd.f32 0.0, %v282
    %v284 = vpop.f32.mrf.mxu0
    %v285 = vadd.f32 0.0, %v284
    %286 = vmatmul.bf16.gmra.mxu0 %v194
    %v287 = vpop.f32.mrf.mxu0
    %v288 = vadd.f32 0.0, %v287
    %v289 = vpop.f32.mrf.mxu0
    %v290 = vadd.f32 0.0, %v289
    %291 = vmatmul.bf16.gmra.mxu0 %v195
    %v292 = vpop.f32.mrf.mxu0
    %v293 = vadd.f32 0.0, %v292
    %v294 = vpop.f32.mrf.mxu0
    %v295 = vadd.f32 0.0, %v294
    %296 = vmatmul.bf16.gmra.mxu0 %v196
    %v297 = vpop.f32.mrf.mxu0
    %v298 = vadd.f32 0.0, %v297
    %v299 = vpop.f32.mrf.mxu0
    %v300 = vadd.f32 0.0, %v299
    %301 = vmatmul.bf16.gmra.mxu0 %v197
    %v302 = vpop.f32.mrf.mxu0
    %v303 = vadd.f32 0.0, %v302
    %v304 = vpop.f32.mrf.mxu0
    %v305 = vadd.f32 0.0, %v304
    %306 = vmatmul.bf16.gmra.mxu0 %v198
    %v307 = vpop.f32.mrf.mxu0
    %v308 = vadd.f32 0.0, %v307
    %v309 = vpop.f32.mrf.mxu0
    %v310 = vadd.f32 0.0, %v309
    %311 = vmatmul.bf16.gmra.mxu0 %v199
    %v312 = vpop.f32.mrf.mxu0
    %v313 = vadd.f32 0.0, %v312
    %v314 = vpop.f32.mrf.mxu0
    %v315 = vadd.f32 0.0, %v314
    %316 = vmatmul.bf16.gmra.mxu0 %v200
    %v317 = vpop.f32.mrf.mxu0
    %v318 = vadd.f32 0.0, %v317
    %v319 = vpop.f32.mrf.mxu0
    %v320 = vadd.f32 0.0, %v319
    %321 = vmatmul.bf16.gmra.mxu0 %v201
    %v322 = vpop.f32.mrf.mxu0
    %v323 = vadd.f32 0.0, %v322
    %v324 = vpop.f32.mrf.mxu0
    %v325 = vadd.f32 0.0, %v324
    %326 = vmatmul.bf16.gmra.mxu0 %v202
    %v327 = vpop.f32.mrf.mxu0
    %v328 = vadd.f32 0.0, %v327
    %v329 = vpop.f32.mrf.mxu0
    %v330 = vadd.f32 0.0, %v329
    %331 = vmatmul.bf16.gmra.mxu0 %v203
    %v332 = vpop.f32.mrf.mxu0
    %v333 = vadd.f32 0.0, %v332
    %v334 = vpop.f32.mrf.mxu0
    %v335 = vadd.f32 0.0, %v334
    %336 = vmatmul.bf16.gmra.mxu0 %v204
    %v337 = vpop.f32.mrf.mxu0
    %v338 = vadd.f32 0.0, %v337
    %v339 = vpop.f32.mrf.mxu0
    %v340 = vadd.f32 0.0, %v339
    %341 = vmatmul.bf16.gmra.mxu0 %v205
    %v342 = vpop.f32.mrf.mxu0
    %v343 = vadd.f32 0.0, %v342
    %v344 = vpop.f32.mrf.mxu0
    %v345 = vadd.f32 0.0, %v344
    %346 = vmatmul.bf16.gmra.mxu0 %v206
    %v347 = vpop.f32.mrf.mxu0
    %v348 = vadd.f32 0.0, %v347
    %v349 = vpop.f32.mrf.mxu0
    %v350 = vadd.f32 0.0, %v349
    %351 = vmatmul.bf16.gmra.mxu0 %v207
    %v352 = vpop.f32.mrf.mxu0
    %v353 = vadd.f32 0.0, %v352
    %v354 = vpop.f32.mrf.mxu0
    %v355 = vadd.f32 0.0, %v354
    %356 = vmatmul.bf16.gmra.mxu0 %v208
    %v357 = vpop.f32.mrf.mxu0
    %v358 = vadd.f32 0.0, %v357
    %v359 = vpop.f32.mrf.mxu0
    %v360 = vadd.f32 0.0, %v359
    %361 = vdwg.mxu0
    %v362 = vunpack.c.h.b16 %v97
    %v363 = vunpack.c.h.b16 %v99
    %v364 = vunpack.c.h.b16 %v101
    %v365 = vunpack.c.h.b16 %v103
    %v366 = vunpack.c.h.b16 %v105
    %v367 = vunpack.c.h.b16 %v107
    %v368 = vunpack.c.h.b16 %v109
    %v369 = vunpack.c.h.b16 %v111
    %v370 = vunpack.c.h.b16 %v113
    %v371 = vunpack.c.h.b16 %v115
    %v372 = vunpack.c.h.b16 %v117
    %v373 = vunpack.c.h.b16 %v119
    %v374 = vunpack.c.h.b16 %v121
    %v375 = vunpack.c.h.b16 %v123
    %v376 = vunpack.c.h.b16 %v125
    %v377 = vunpack.c.h.b16 %v127
    %v378 = vpack.c.b16 %v363, %v362
    %v379 = vpack.c.b16 %v365, %v364
    %v380 = vpack.c.b16 %v367, %v366
    %v381 = vpack.c.b16 %v369, %v368
    %v382 = vpack.c.b16 %v371, %v370
    %v383 = vpack.c.b16 %v373, %v372
    %v384 = vpack.c.b16 %v375, %v374
    %v385 = vpack.c.b16 %v377, %v376
    %394 = vmatpush.bf16.msra.mxu0 %v385
    %395 = vmatpush.bf16.msra.mxu0 %v384
    %396 = vmatpush.bf16.msra.mxu0 %v383
    %397 = vmatpush.bf16.msra.mxu0 %v382
    %398 = vmatpush.bf16.msra.mxu0 %v381
    %399 = vmatpush.bf16.msra.mxu0 %v380
    %400 = vmatpush.bf16.msra.mxu0 %v379
    %401 = vmatpush.bf16.msra.mxu0 %v378
    %402 = vmatmul.bf16.gmra.mxu0 %v193
    %v403 = vpop.f32.mrf.mxu0
    %v404 = vadd.f32 0.0, %v403
    %v405 = vpop.f32.mrf.mxu0
    %v406 = vadd.f32 0.0, %v405
    %407 = vmatmul.bf16.gmra.mxu0 %v194
    %v408 = vpop.f32.mrf.mxu0
    %v409 = vadd.f32 0.0, %v408
    %v410 = vpop.f32.mrf.mxu0
    %v411 = vadd.f32 0.0, %v410
    %412 = vmatmul.bf16.gmra.mxu0 %v195
    %v413 = vpop.f32.mrf.mxu0
    %v414 = vadd.f32 0.0, %v413
    %v415 = vpop.f32.mrf.mxu0
    %v416 = vadd.f32 0.0, %v415
    %417 = vmatmul.bf16.gmra.mxu0 %v196
    %v418 = vpop.f32.mrf.mxu0
    %v419 = vadd.f32 0.0, %v418
    %v420 = vpop.f32.mrf.mxu0
    %v421 = vadd.f32 0.0, %v420
    %422 = vmatmul.bf16.gmra.mxu0 %v197
    %v423 = vpop.f32.mrf.mxu0
    %v424 = vadd.f32 0.0, %v423
    %v425 = vpop.f32.mrf.mxu0
    %v426 = vadd.f32 0.0, %v425
    %427 = vmatmul.bf16.gmra.mxu0 %v198
    %v428 = vpop.f32.mrf.mxu0
    %v429 = vadd.f32 0.0, %v428
    %v430 = vpop.f32.mrf.mxu0
    %v431 = vadd.f32 0.0, %v430
    %432 = vmatmul.bf16.gmra.mxu0 %v199
    %v433 = vpop.f32.mrf.mxu0
    %v434 = vadd.f32 0.0, %v433
    %v435 = vpop.f32.mrf.mxu0
    %v436 = vadd.f32 0.0, %v435
    %437 = vmatmul.bf16.gmra.mxu0 %v200
    %v438 = vpop.f32.mrf.mxu0
    %v439 = vadd.f32 0.0, %v438
    %v440 = vpop.f32.mrf.mxu0
    %v441 = vadd.f32 0.0, %v440
    %442 = vmatmul.bf16.gmra.mxu0 %v201
    %v443 = vpop.f32.mrf.mxu0
    %v444 = vadd.f32 0.0, %v443
    %v445 = vpop.f32.mrf.mxu0
    %v446 = vadd.f32 0.0, %v445
    %447 = vmatmul.bf16.gmra.mxu0 %v202
    %v448 = vpop.f32.mrf.mxu0
    %v449 = vadd.f32 0.0, %v448
    %v450 = vpop.f32.mrf.mxu0
    %v451 = vadd.f32 0.0, %v450
    %452 = vmatmul.bf16.gmra.mxu0 %v203
    %v453 = vpop.f32.mrf.mxu0
    %v454 = vadd.f32 0.0, %v453
    %v455 = vpop.f32.mrf.mxu0
    %v456 = vadd.f32 0.0, %v455
    %457 = vmatmul.bf16.gmra.mxu0 %v204
    %v458 = vpop.f32.mrf.mxu0
    %v459 = vadd.f32 0.0, %v458
    %v460 = vpop.f32.mrf.mxu0
    %v461 = vadd.f32 0.0, %v460
    %462 = vmatmul.bf16.gmra.mxu0 %v205
    %v463 = vpop.f32.mrf.mxu0
    %v464 = vadd.f32 0.0, %v463
    %v465 = vpop.f32.mrf.mxu0
    %v466 = vadd.f32 0.0, %v465
    %467 = vmatmul.bf16.gmra.mxu0 %v206
    %v468 = vpop.f32.mrf.mxu0
    %v469 = vadd.f32 0.0, %v468
    %v470 = vpop.f32.mrf.mxu0
    %v471 = vadd.f32 0.0, %v470
    %472 = vmatmul.bf16.gmra.mxu0 %v207
    %v473 = vpop.f32.mrf.mxu0
    %v474 = vadd.f32 0.0, %v473
    %v475 = vpop.f32.mrf.mxu0
    %v476 = vadd.f32 0.0, %v475
    %477 = vmatmul.bf16.gmra.mxu0 %v208
    %v478 = vpop.f32.mrf.mxu0
    %v479 = vadd.f32 0.0, %v478
    %v480 = vpop.f32.mrf.mxu0
    %v481 = vadd.f32 0.0, %v480
    %482 = vdwg.mxu0
    %v499 = vunpack.c.l.b16 %v98
    %v500 = vunpack.c.l.b16 %v100
    %v501 = vunpack.c.l.b16 %v102
    %v502 = vunpack.c.l.b16 %v104
    %v503 = vunpack.c.l.b16 %v106
    %v504 = vunpack.c.l.b16 %v108
    %v505 = vunpack.c.l.b16 %v110
    %v506 = vunpack.c.l.b16 %v112
    %v507 = vunpack.c.l.b16 %v114
    %v508 = vunpack.c.l.b16 %v116
    %v509 = vunpack.c.l.b16 %v118
    %v510 = vunpack.c.l.b16 %v120
    %v511 = vunpack.c.l.b16 %v122
    %v512 = vunpack.c.l.b16 %v124
    %v513 = vunpack.c.l.b16 %v126
    %v514 = vunpack.c.l.b16 %v128
    %v515 = vpack.c.b16 %v500, %v499
    %v516 = vpack.c.b16 %v502, %v501
    %v517 = vpack.c.b16 %v504, %v503
    %v518 = vpack.c.b16 %v506, %v505
    %v519 = vpack.c.b16 %v508, %v507
    %v520 = vpack.c.b16 %v510, %v509
    %v521 = vpack.c.b16 %v512, %v511
    %v522 = vpack.c.b16 %v514, %v513
    %531 = vmatpush.bf16.msra.mxu0 %v522
    %532 = vmatpush.bf16.msra.mxu0 %v521
    %533 = vmatpush.bf16.msra.mxu0 %v520
    %534 = vmatpush.bf16.msra.mxu0 %v519
    %535 = vmatpush.bf16.msra.mxu0 %v518
    %536 = vmatpush.bf16.msra.mxu0 %v517
    %537 = vmatpush.bf16.msra.mxu0 %v516
    %538 = vmatpush.bf16.msra.mxu0 %v515
    %539 = vmatmul.bf16.gmra.mxu0 %v193
    %v540 = vpop.f32.mrf.mxu0
    %v541 = vadd.f32 0.0, %v540
    %v542 = vpop.f32.mrf.mxu0
    %v543 = vadd.f32 0.0, %v542
    %544 = vmatmul.bf16.gmra.mxu0 %v194
    %v545 = vpop.f32.mrf.mxu0
    %v546 = vadd.f32 0.0, %v545
    %v547 = vpop.f32.mrf.mxu0
    %v548 = vadd.f32 0.0, %v547
    %549 = vmatmul.bf16.gmra.mxu0 %v195
    %v550 = vpop.f32.mrf.mxu0
    %v551 = vadd.f32 0.0, %v550
    %v552 = vpop.f32.mrf.mxu0
    %v553 = vadd.f32 0.0, %v552
    %554 = vmatmul.bf16.gmra.mxu0 %v196
    %v555 = vpop.f32.mrf.mxu0
    %v556 = vadd.f32 0.0, %v555
    %v557 = vpop.f32.mrf.mxu0
    %v558 = vadd.f32 0.0, %v557
    %559 = vmatmul.bf16.gmra.mxu0 %v197
    %v560 = vpop.f32.mrf.mxu0
    %v561 = vadd.f32 0.0, %v560
    %v562 = vpop.f32.mrf.mxu0
    %v563 = vadd.f32 0.0, %v562
    %564 = vmatmul.bf16.gmra.mxu0 %v198
    %v565 = vpop.f32.mrf.mxu0
    %v566 = vadd.f32 0.0, %v565
    %v567 = vpop.f32.mrf.mxu0
    %v568 = vadd.f32 0.0, %v567
    %569 = vmatmul.bf16.gmra.mxu0 %v199
    %v570 = vpop.f32.mrf.mxu0
    %v571 = vadd.f32 0.0, %v570
    %v572 = vpop.f32.mrf.mxu0
    %v573 = vadd.f32 0.0, %v572
    %574 = vmatmul.bf16.gmra.mxu0 %v200
    %v575 = vpop.f32.mrf.mxu0
    %v576 = vadd.f32 0.0, %v575
    %v577 = vpop.f32.mrf.mxu0
    %v578 = vadd.f32 0.0, %v577
    %579 = vmatmul.bf16.gmra.mxu0 %v201
    %v580 = vpop.f32.mrf.mxu0
    %v581 = vadd.f32 0.0, %v580
    %v582 = vpop.f32.mrf.mxu0
    %v583 = vadd.f32 0.0, %v582
    %584 = vmatmul.bf16.gmra.mxu0 %v202
    %v585 = vpop.f32.mrf.mxu0
    %v586 = vadd.f32 0.0, %v585
    %v587 = vpop.f32.mrf.mxu0
    %v588 = vadd.f32 0.0, %v587
    %589 = vmatmul.bf16.gmra.mxu0 %v203
    %v590 = vpop.f32.mrf.mxu0
    %v591 = vadd.f32 0.0, %v590
    %v592 = vpop.f32.mrf.mxu0
    %v593 = vadd.f32 0.0, %v592
    %594 = vmatmul.bf16.gmra.mxu0 %v204
    %v595 = vpop.f32.mrf.mxu0
    %v596 = vadd.f32 0.0, %v595
    %v597 = vpop.f32.mrf.mxu0
    %v598 = vadd.f32 0.0, %v597
    %599 = vmatmul.bf16.gmra.mxu0 %v205
    %v600 = vpop.f32.mrf.mxu0
    %v601 = vadd.f32 0.0, %v600
    %v602 = vpop.f32.mrf.mxu0
    %v603 = vadd.f32 0.0, %v602
    %604 = vmatmul.bf16.gmra.mxu0 %v206
    %v605 = vpop.f32.mrf.mxu0
    %v606 = vadd.f32 0.0, %v605
    %v607 = vpop.f32.mrf.mxu0
    %v608 = vadd.f32 0.0, %v607
    %609 = vmatmul.bf16.gmra.mxu0 %v207
    %v610 = vpop.f32.mrf.mxu0
    %v611 = vadd.f32 0.0, %v610
    %v612 = vpop.f32.mrf.mxu0
    %v613 = vadd.f32 0.0, %v612
    %614 = vmatmul.bf16.gmra.mxu0 %v208
    %v615 = vpop.f32.mrf.mxu0
    %v616 = vadd.f32 0.0, %v615
    %v617 = vpop.f32.mrf.mxu0
    %v618 = vadd.f32 0.0, %v617
    %619 = vdwg.mxu0
    %v620 = vpack.c.bf16 %v541, %v541
    %v621 = vpack.c.bf16 %v543, %v543
    %v622 = vpack.c.bf16 %v546, %v546
    %v623 = vpack.c.bf16 %v548, %v548
    %v624 = vpack.c.bf16 %v551, %v551
    %v625 = vpack.c.bf16 %v553, %v553
    %v626 = vpack.c.bf16 %v556, %v556
    %v627 = vpack.c.bf16 %v558, %v558
    %v628 = vpack.c.bf16 %v561, %v561
    %v629 = vpack.c.bf16 %v563, %v563
    %v630 = vpack.c.bf16 %v566, %v566
    %v631 = vpack.c.bf16 %v568, %v568
    %v632 = vpack.c.bf16 %v571, %v571
    %v633 = vpack.c.bf16 %v573, %v573
    %v634 = vpack.c.bf16 %v576, %v576
    %v635 = vpack.c.bf16 %v578, %v578
    %v636 = vpack.c.bf16 %v581, %v581
    %v637 = vpack.c.bf16 %v583, %v583
    %v638 = vpack.c.bf16 %v586, %v586
    %v639 = vpack.c.bf16 %v588, %v588
    %v640 = vpack.c.bf16 %v591, %v591
    %v641 = vpack.c.bf16 %v593, %v593
    %v642 = vpack.c.bf16 %v596, %v596
    %v643 = vpack.c.bf16 %v598, %v598
    %v644 = vpack.c.bf16 %v601, %v601
    %v645 = vpack.c.bf16 %v603, %v603
    %v646 = vpack.c.bf16 %v606, %v606
    %v647 = vpack.c.bf16 %v608, %v608
    %v648 = vpack.c.bf16 %v611, %v611
    %v649 = vpack.c.bf16 %v613, %v613
    %v650 = vpack.c.bf16 %v616, %v616
    %v651 = vpack.c.bf16 %v618, %v618
    %vm652 = vcmask 130048
    %v653 = vsel %vm652, %v283, -inf
    %654 = vmax.xlane.f32.xlu0 %v653
    %v655 = vpop.xlane.xlu0 %654
    %v656 = vsel %vm652, %v285, -inf
    %657 = vmax.xlane.f32.xlu0 %v656
    %v658 = vpop.xlane.xlu0 %657
    %v659 = vsel %vm652, %v288, -inf
    %660 = vmax.xlane.f32.xlu0 %v659
    %v661 = vpop.xlane.xlu0 %660
    %v662 = vsel %vm652, %v290, -inf
    %663 = vmax.xlane.f32.xlu0 %v662
    %v664 = vpop.xlane.xlu0 %663
    %v665 = vsel %vm652, %v293, -inf
    %666 = vmax.xlane.f32.xlu0 %v665
    %v667 = vpop.xlane.xlu0 %666
    %v668 = vsel %vm652, %v295, -inf
    %669 = vmax.xlane.f32.xlu0 %v668
    %v670 = vpop.xlane.xlu0 %669
    %v671 = vsel %vm652, %v298, -inf
    %672 = vmax.xlane.f32.xlu0 %v671
    %v673 = vpop.xlane.xlu0 %672
    %v674 = vsel %vm652, %v300, -inf
    %675 = vmax.xlane.f32.xlu0 %v674
    %v676 = vpop.xlane.xlu0 %675
    %v677 = vsel %vm652, %v303, -inf
    %678 = vmax.xlane.f32.xlu0 %v677
    %v679 = vpop.xlane.xlu0 %678
    %v680 = vsel %vm652, %v305, -inf
    %681 = vmax.xlane.f32.xlu0 %v680
    %v682 = vpop.xlane.xlu0 %681
    %v683 = vsel %vm652, %v308, -inf
    %684 = vmax.xlane.f32.xlu0 %v683
    %v685 = vpop.xlane.xlu0 %684
    %v686 = vsel %vm652, %v310, -inf
    %687 = vmax.xlane.f32.xlu0 %v686
    %v688 = vpop.xlane.xlu0 %687
    %v689 = vsel %vm652, %v313, -inf
    %690 = vmax.xlane.f32.xlu0 %v689
    %v691 = vpop.xlane.xlu0 %690
    %v692 = vsel %vm652, %v315, -inf
    %693 = vmax.xlane.f32.xlu0 %v692
    %v694 = vpop.xlane.xlu0 %693
    %v695 = vsel %vm652, %v318, -inf
    %696 = vmax.xlane.f32.xlu0 %v695
    %v697 = vpop.xlane.xlu0 %696
    %v698 = vsel %vm652, %v320, -inf
    %699 = vmax.xlane.f32.xlu0 %v698
    %v700 = vpop.xlane.xlu0 %699
    %v701 = vsel %vm652, %v323, -inf
    %702 = vmax.xlane.f32.xlu0 %v701
    %v703 = vpop.xlane.xlu0 %702
    %v704 = vsel %vm652, %v325, -inf
    %705 = vmax.xlane.f32.xlu0 %v704
    %v706 = vpop.xlane.xlu0 %705
    %v707 = vsel %vm652, %v328, -inf
    %708 = vmax.xlane.f32.xlu0 %v707
    %v709 = vpop.xlane.xlu0 %708
    %v710 = vsel %vm652, %v330, -inf
    %711 = vmax.xlane.f32.xlu0 %v710
    %v712 = vpop.xlane.xlu0 %711
    %v713 = vsel %vm652, %v333, -inf
    %714 = vmax.xlane.f32.xlu0 %v713
    %v715 = vpop.xlane.xlu0 %714
    %v716 = vsel %vm652, %v335, -inf
    %717 = vmax.xlane.f32.xlu0 %v716
    %v718 = vpop.xlane.xlu0 %717
    %v719 = vsel %vm652, %v338, -inf
    %720 = vmax.xlane.f32.xlu0 %v719
    %v721 = vpop.xlane.xlu0 %720
    %v722 = vsel %vm652, %v340, -inf
    %723 = vmax.xlane.f32.xlu0 %v722
    %v724 = vpop.xlane.xlu0 %723
    %v725 = vsel %vm652, %v343, -inf
    %726 = vmax.xlane.f32.xlu0 %v725
    %v727 = vpop.xlane.xlu0 %726
    %v728 = vsel %vm652, %v345, -inf
    %729 = vmax.xlane.f32.xlu0 %v728
    %v730 = vpop.xlane.xlu0 %729
    %v731 = vsel %vm652, %v348, -inf
    %732 = vmax.xlane.f32.xlu0 %v731
    %v733 = vpop.xlane.xlu0 %732
    %v734 = vsel %vm652, %v350, -inf
    %735 = vmax.xlane.f32.xlu0 %v734
    %v736 = vpop.xlane.xlu0 %735
    %v737 = vsel %vm652, %v353, -inf
    %738 = vmax.xlane.f32.xlu0 %v737
    %v739 = vpop.xlane.xlu0 %738
    %v740 = vsel %vm652, %v355, -inf
    %741 = vmax.xlane.f32.xlu0 %v740
    %v742 = vpop.xlane.xlu0 %741
    %v743 = vsel %vm652, %v358, -inf
    %744 = vmax.xlane.f32.xlu0 %v743
    %v745 = vpop.xlane.xlu0 %744
    %v746 = vsel %vm652, %v360, -inf
    %747 = vmax.xlane.f32.xlu0 %v746
    %v748 = vpop.xlane.xlu0 %747
    %vm749 = vcmask 261248
    %v750 = vsel %vm749, %v283, -inf
    %751 = vmax.xlane.f32.xlu0 %v750
    %v752 = vpop.xlane.xlu0 %751
    %v753 = vsel %vm749, %v285, -inf
    %754 = vmax.xlane.f32.xlu0 %v753
    %v755 = vpop.xlane.xlu0 %754
    %v756 = vsel %vm749, %v288, -inf
    %757 = vmax.xlane.f32.xlu0 %v756
    %v758 = vpop.xlane.xlu0 %757
    %v759 = vsel %vm749, %v290, -inf
    %760 = vmax.xlane.f32.xlu0 %v759
    %v761 = vpop.xlane.xlu0 %760
    %v762 = vsel %vm749, %v293, -inf
    %763 = vmax.xlane.f32.xlu0 %v762
    %v764 = vpop.xlane.xlu0 %763
    %v765 = vsel %vm749, %v295, -inf
    %766 = vmax.xlane.f32.xlu0 %v765
    %v767 = vpop.xlane.xlu0 %766
    %v768 = vsel %vm749, %v298, -inf
    %769 = vmax.xlane.f32.xlu0 %v768
    %v770 = vpop.xlane.xlu0 %769
    %v771 = vsel %vm749, %v300, -inf
    %772 = vmax.xlane.f32.xlu0 %v771
    %v773 = vpop.xlane.xlu0 %772
    %v774 = vsel %vm749, %v303, -inf
    %775 = vmax.xlane.f32.xlu0 %v774
    %v776 = vpop.xlane.xlu0 %775
    %v777 = vsel %vm749, %v305, -inf
    %778 = vmax.xlane.f32.xlu0 %v777
    %v779 = vpop.xlane.xlu0 %778
    %v780 = vsel %vm749, %v308, -inf
    %781 = vmax.xlane.f32.xlu0 %v780
    %v782 = vpop.xlane.xlu0 %781
    %v783 = vsel %vm749, %v310, -inf
    %784 = vmax.xlane.f32.xlu0 %v783
    %v785 = vpop.xlane.xlu0 %784
    %v786 = vsel %vm749, %v313, -inf
    %787 = vmax.xlane.f32.xlu0 %v786
    %v788 = vpop.xlane.xlu0 %787
    %v789 = vsel %vm749, %v315, -inf
    %790 = vmax.xlane.f32.xlu0 %v789
    %v791 = vpop.xlane.xlu0 %790
    %v792 = vsel %vm749, %v318, -inf
    %793 = vmax.xlane.f32.xlu0 %v792
    %v794 = vpop.xlane.xlu0 %793
    %v795 = vsel %vm749, %v320, -inf
    %796 = vmax.xlane.f32.xlu0 %v795
    %v797 = vpop.xlane.xlu0 %796
    %v798 = vsel %vm749, %v323, -inf
    %799 = vmax.xlane.f32.xlu0 %v798
    %v800 = vpop.xlane.xlu0 %799
    %v801 = vsel %vm749, %v325, -inf
    %802 = vmax.xlane.f32.xlu0 %v801
    %v803 = vpop.xlane.xlu0 %802
    %v804 = vsel %vm749, %v328, -inf
    %805 = vmax.xlane.f32.xlu0 %v804
    %v806 = vpop.xlane.xlu0 %805
    %v807 = vsel %vm749, %v330, -inf
    %808 = vmax.xlane.f32.xlu0 %v807
    %v809 = vpop.xlane.xlu0 %808
    %v810 = vsel %vm749, %v333, -inf
    %811 = vmax.xlane.f32.xlu0 %v810
    %v812 = vpop.xlane.xlu0 %811
    %v813 = vsel %vm749, %v335, -inf
    %814 = vmax.xlane.f32.xlu0 %v813
    %v815 = vpop.xlane.xlu0 %814
    %v816 = vsel %vm749, %v338, -inf
    %817 = vmax.xlane.f32.xlu0 %v816
    %v818 = vpop.xlane.xlu0 %817
    %v819 = vsel %vm749, %v340, -inf
    %820 = vmax.xlane.f32.xlu0 %v819
    %v821 = vpop.xlane.xlu0 %820
    %v822 = vsel %vm749, %v343, -inf
    %823 = vmax.xlane.f32.xlu0 %v822
    %v824 = vpop.xlane.xlu0 %823
    %v825 = vsel %vm749, %v345, -inf
    %826 = vmax.xlane.f32.xlu0 %v825
    %v827 = vpop.xlane.xlu0 %826
    %v828 = vsel %vm749, %v348, -inf
    %829 = vmax.xlane.f32.xlu0 %v828
    %v830 = vpop.xlane.xlu0 %829
    %v831 = vsel %vm749, %v350, -inf
    %832 = vmax.xlane.f32.xlu0 %v831
    %v833 = vpop.xlane.xlu0 %832
    %v834 = vsel %vm749, %v353, -inf
    %835 = vmax.xlane.f32.xlu0 %v834
    %v836 = vpop.xlane.xlu0 %835
    %v837 = vsel %vm749, %v355, -inf
    %838 = vmax.xlane.f32.xlu0 %v837
    %v839 = vpop.xlane.xlu0 %838
    %v840 = vsel %vm749, %v358, -inf
    %841 = vmax.xlane.f32.xlu0 %v840
    %v842 = vpop.xlane.xlu0 %841
    %v843 = vsel %vm749, %v360, -inf
    %844 = vmax.xlane.f32.xlu0 %v843
    %v845 = vpop.xlane.xlu0 %844
    %vm846 = vcmask 392448
    %v847 = vsel %vm846, %v283, -inf
    %848 = vmax.xlane.f32.xlu0 %v847
    %v849 = vpop.xlane.xlu0 %848
    %v850 = vsel %vm846, %v285, -inf
    %851 = vmax.xlane.f32.xlu0 %v850
    %v852 = vpop.xlane.xlu0 %851
    %v853 = vsel %vm846, %v288, -inf
    %854 = vmax.xlane.f32.xlu0 %v853
    %v855 = vpop.xlane.xlu0 %854
    %v856 = vsel %vm846, %v290, -inf
    %857 = vmax.xlane.f32.xlu0 %v856
    %v858 = vpop.xlane.xlu0 %857
    %v859 = vsel %vm846, %v293, -inf
    %860 = vmax.xlane.f32.xlu0 %v859
    %v861 = vpop.xlane.xlu0 %860
    %v862 = vsel %vm846, %v295, -inf
    %863 = vmax.xlane.f32.xlu0 %v862
    %v864 = vpop.xlane.xlu0 %863
    %v865 = vsel %vm846, %v298, -inf
    %866 = vmax.xlane.f32.xlu0 %v865
    %v867 = vpop.xlane.xlu0 %866
    %v868 = vsel %vm846, %v300, -inf
    %869 = vmax.xlane.f32.xlu0 %v868
    %v870 = vpop.xlane.xlu0 %869
    %v871 = vsel %vm846, %v303, -inf
    %872 = vmax.xlane.f32.xlu0 %v871
    %v873 = vpop.xlane.xlu0 %872
    %v874 = vsel %vm846, %v305, -inf
    %875 = vmax.xlane.f32.xlu0 %v874
    %v876 = vpop.xlane.xlu0 %875
    %v877 = vsel %vm846, %v308, -inf
    %878 = vmax.xlane.f32.xlu0 %v877
    %v879 = vpop.xlane.xlu0 %878
    %v880 = vsel %vm846, %v310, -inf
    %881 = vmax.xlane.f32.xlu0 %v880
    %v882 = vpop.xlane.xlu0 %881
    %v883 = vsel %vm846, %v313, -inf
    %884 = vmax.xlane.f32.xlu0 %v883
    %v885 = vpop.xlane.xlu0 %884
    %v886 = vsel %vm846, %v315, -inf
    %887 = vmax.xlane.f32.xlu0 %v886
    %v888 = vpop.xlane.xlu0 %887
    %v889 = vsel %vm846, %v318, -inf
    %890 = vmax.xlane.f32.xlu0 %v889
    %v891 = vpop.xlane.xlu0 %890
    %v892 = vsel %vm846, %v320, -inf
    %893 = vmax.xlane.f32.xlu0 %v892
    %v894 = vpop.xlane.xlu0 %893
    %v895 = vsel %vm846, %v323, -inf
    %896 = vmax.xlane.f32.xlu0 %v895
    %v897 = vpop.xlane.xlu0 %896
    %v898 = vsel %vm846, %v325, -inf
    %899 = vmax.xlane.f32.xlu0 %v898
    %v900 = vpop.xlane.xlu0 %899
    %v901 = vsel %vm846, %v328, -inf
    %902 = vmax.xlane.f32.xlu0 %v901
    %v903 = vpop.xlane.xlu0 %902
    %v904 = vsel %vm846, %v330, -inf
    %905 = vmax.xlane.f32.xlu0 %v904
    %v906 = vpop.xlane.xlu0 %905
    %v907 = vsel %vm846, %v333, -inf
    %908 = vmax.xlane.f32.xlu0 %v907
    %v909 = vpop.xlane.xlu0 %908
    %v910 = vsel %vm846, %v335, -inf
    %911 = vmax.xlane.f32.xlu0 %v910
    %v912 = vpop.xlane.xlu0 %911
    %v913 = vsel %vm846, %v338, -inf
    %914 = vmax.xlane.f32.xlu0 %v913
    %v915 = vpop.xlane.xlu0 %914
    %v916 = vsel %vm846, %v340, -inf
    %917 = vmax.xlane.f32.xlu0 %v916
    %v918 = vpop.xlane.xlu0 %917
    %v919 = vsel %vm846, %v343, -inf
    %920 = vmax.xlane.f32.xlu0 %v919
    %v921 = vpop.xlane.xlu0 %920
    %v922 = vsel %vm846, %v345, -inf
    %923 = vmax.xlane.f32.xlu0 %v922
    %v924 = vpop.xlane.xlu0 %923
    %v925 = vsel %vm846, %v348, -inf
    %926 = vmax.xlane.f32.xlu0 %v925
    %v927 = vpop.xlane.xlu0 %926
    %v928 = vsel %vm846, %v350, -inf
    %929 = vmax.xlane.f32.xlu0 %v928
    %v930 = vpop.xlane.xlu0 %929
    %v931 = vsel %vm846, %v353, -inf
    %932 = vmax.xlane.f32.xlu0 %v931
    %v933 = vpop.xlane.xlu0 %932
    %v934 = vsel %vm846, %v355, -inf
    %935 = vmax.xlane.f32.xlu0 %v934
    %v936 = vpop.xlane.xlu0 %935
    %v937 = vsel %vm846, %v358, -inf
    %938 = vmax.xlane.f32.xlu0 %v937
    %v939 = vpop.xlane.xlu0 %938
    %v940 = vsel %vm846, %v360, -inf
    %941 = vmax.xlane.f32.xlu0 %v940
    %v942 = vpop.xlane.xlu0 %941
    %vm943 = vcmask 523648
    %v944 = vsel %vm943, %v283, -inf
    %945 = vmax.xlane.f32.xlu0 %v944
    %v946 = vpop.xlane.xlu0 %945
    %v947 = vsel %vm943, %v285, -inf
    %948 = vmax.xlane.f32.xlu0 %v947
    %v949 = vpop.xlane.xlu0 %948
    %v950 = vsel %vm943, %v288, -inf
    %951 = vmax.xlane.f32.xlu0 %v950
    %v952 = vpop.xlane.xlu0 %951
    %v953 = vsel %vm943, %v290, -inf
    %954 = vmax.xlane.f32.xlu0 %v953
    %v955 = vpop.xlane.xlu0 %954
    %v956 = vsel %vm943, %v293, -inf
    %957 = vmax.xlane.f32.xlu0 %v956
    %v958 = vpop.xlane.xlu0 %957
    %v959 = vsel %vm943, %v295, -inf
    %960 = vmax.xlane.f32.xlu0 %v959
    %v961 = vpop.xlane.xlu0 %960
    %v962 = vsel %vm943, %v298, -inf
    %963 = vmax.xlane.f32.xlu0 %v962
    %v964 = vpop.xlane.xlu0 %963
    %v965 = vsel %vm943, %v300, -inf
    %966 = vmax.xlane.f32.xlu0 %v965
    %v967 = vpop.xlane.xlu0 %966
    %v968 = vsel %vm943, %v303, -inf
    %969 = vmax.xlane.f32.xlu0 %v968
    %v970 = vpop.xlane.xlu0 %969
    %v971 = vsel %vm943, %v305, -inf
    %972 = vmax.xlane.f32.xlu0 %v971
    %v973 = vpop.xlane.xlu0 %972
    %v974 = vsel %vm943, %v308, -inf
    %975 = vmax.xlane.f32.xlu0 %v974
    %v976 = vpop.xlane.xlu0 %975
    %v977 = vsel %vm943, %v310, -inf
    %978 = vmax.xlane.f32.xlu0 %v977
    %v979 = vpop.xlane.xlu0 %978
    %v980 = vsel %vm943, %v313, -inf
    %981 = vmax.xlane.f32.xlu0 %v980
    %v982 = vpop.xlane.xlu0 %981
    %v983 = vsel %vm943, %v315, -inf
    %984 = vmax.xlane.f32.xlu0 %v983
    %v985 = vpop.xlane.xlu0 %984
    %v986 = vsel %vm943, %v318, -inf
    %987 = vmax.xlane.f32.xlu0 %v986
    %v988 = vpop.xlane.xlu0 %987
    %v989 = vsel %vm943, %v320, -inf
    %990 = vmax.xlane.f32.xlu0 %v989
    %v991 = vpop.xlane.xlu0 %990
    %v992 = vsel %vm943, %v323, -inf
    %993 = vmax.xlane.f32.xlu0 %v992
    %v994 = vpop.xlane.xlu0 %993
    %v995 = vsel %vm943, %v325, -inf
    %996 = vmax.xlane.f32.xlu0 %v995
    %v997 = vpop.xlane.xlu0 %996
    %v998 = vsel %vm943, %v328, -inf
    %999 = vmax.xlane.f32.xlu0 %v998
    %v1000 = vpop.xlane.xlu0 %999
    %v1001 = vsel %vm943, %v330, -inf
    %1002 = vmax.xlane.f32.xlu0 %v1001
    %v1003 = vpop.xlane.xlu0 %1002
    %v1004 = vsel %vm943, %v333, -inf
    %1005 = vmax.xlane.f32.xlu0 %v1004
    %v1006 = vpop.xlane.xlu0 %1005
    %v1007 = vsel %vm943, %v335, -inf
    %1008 = vmax.xlane.f32.xlu0 %v1007
    %v1009 = vpop.xlane.xlu0 %1008
    %v1010 = vsel %vm943, %v338, -inf
    %1011 = vmax.xlane.f32.xlu0 %v1010
    %v1012 = vpop.xlane.xlu0 %1011
    %v1013 = vsel %vm943, %v340, -inf
    %1014 = vmax.xlane.f32.xlu0 %v1013
    %v1015 = vpop.xlane.xlu0 %1014
    %v1016 = vsel %vm943, %v343, -inf
    %1017 = vmax.xlane.f32.xlu0 %v1016
    %v1018 = vpop.xlane.xlu0 %1017
    %v1019 = vsel %vm943, %v345, -inf
    %1020 = vmax.xlane.f32.xlu0 %v1019
    %v1021 = vpop.xlane.xlu0 %1020
    %v1022 = vsel %vm943, %v348, -inf
    %1023 = vmax.xlane.f32.xlu0 %v1022
    %v1024 = vpop.xlane.xlu0 %1023
    %v1025 = vsel %vm943, %v350, -inf
    %1026 = vmax.xlane.f32.xlu0 %v1025
    %v1027 = vpop.xlane.xlu0 %1026
    %v1028 = vsel %vm943, %v353, -inf
    %1029 = vmax.xlane.f32.xlu0 %v1028
    %v1030 = vpop.xlane.xlu0 %1029
    %v1031 = vsel %vm943, %v355, -inf
    %1032 = vmax.xlane.f32.xlu0 %v1031
    %v1033 = vpop.xlane.xlu0 %1032
    %v1034 = vsel %vm943, %v358, -inf
    %1035 = vmax.xlane.f32.xlu0 %v1034
    %v1036 = vpop.xlane.xlu0 %1035
    %v1037 = vsel %vm943, %v360, -inf
    %1038 = vmax.xlane.f32.xlu0 %v1037
    %v1039 = vpop.xlane.xlu0 %1038
    %vm1040 = vcmask 654848
    %v1041 = vsel %vm1040, %v283, -inf
    %1042 = vmax.xlane.f32.xlu0 %v1041
    %v1043 = vpop.xlane.xlu0 %1042
    %v1044 = vsel %vm1040, %v285, -inf
    %1045 = vmax.xlane.f32.xlu0 %v1044
    %v1046 = vpop.xlane.xlu0 %1045
    %v1047 = vsel %vm1040, %v288, -inf
    %1048 = vmax.xlane.f32.xlu0 %v1047
    %v1049 = vpop.xlane.xlu0 %1048
    %v1050 = vsel %vm1040, %v290, -inf
    %1051 = vmax.xlane.f32.xlu0 %v1050
    %v1052 = vpop.xlane.xlu0 %1051
    %v1053 = vsel %vm1040, %v293, -inf
    %1054 = vmax.xlane.f32.xlu0 %v1053
    %v1055 = vpop.xlane.xlu0 %1054
    %v1056 = vsel %vm1040, %v295, -inf
    %1057 = vmax.xlane.f32.xlu0 %v1056
    %v1058 = vpop.xlane.xlu0 %1057
    %v1059 = vsel %vm1040, %v298, -inf
    %1060 = vmax.xlane.f32.xlu0 %v1059
    %v1061 = vpop.xlane.xlu0 %1060
    %v1062 = vsel %vm1040, %v300, -inf
    %1063 = vmax.xlane.f32.xlu0 %v1062
    %v1064 = vpop.xlane.xlu0 %1063
    %v1065 = vsel %vm1040, %v303, -inf
    %1066 = vmax.xlane.f32.xlu0 %v1065
    %v1067 = vpop.xlane.xlu0 %1066
    %v1068 = vsel %vm1040, %v305, -inf
    %1069 = vmax.xlane.f32.xlu0 %v1068
    %v1070 = vpop.xlane.xlu0 %1069
    %v1071 = vsel %vm1040, %v308, -inf
    %1072 = vmax.xlane.f32.xlu0 %v1071
    %v1073 = vpop.xlane.xlu0 %1072
    %v1074 = vsel %vm1040, %v310, -inf
    %1075 = vmax.xlane.f32.xlu0 %v1074
    %v1076 = vpop.xlane.xlu0 %1075
    %v1077 = vsel %vm1040, %v313, -inf
    %1078 = vmax.xlane.f32.xlu0 %v1077
    %v1079 = vpop.xlane.xlu0 %1078
    %v1080 = vsel %vm1040, %v315, -inf
    %1081 = vmax.xlane.f32.xlu0 %v1080
    %v1082 = vpop.xlane.xlu0 %1081
    %v1083 = vsel %vm1040, %v318, -inf
    %1084 = vmax.xlane.f32.xlu0 %v1083
    %v1085 = vpop.xlane.xlu0 %1084
    %v1086 = vsel %vm1040, %v320, -inf
    %1087 = vmax.xlane.f32.xlu0 %v1086
    %v1088 = vpop.xlane.xlu0 %1087
    %v1089 = vsel %vm1040, %v323, -inf
    %1090 = vmax.xlane.f32.xlu0 %v1089
    %v1091 = vpop.xlane.xlu0 %1090
    %v1092 = vsel %vm1040, %v325, -inf
    %1093 = vmax.xlane.f32.xlu0 %v1092
    %v1094 = vpop.xlane.xlu0 %1093
    %v1095 = vsel %vm1040, %v328, -inf
    %1096 = vmax.xlane.f32.xlu0 %v1095
    %v1097 = vpop.xlane.xlu0 %1096
    %v1098 = vsel %vm1040, %v330, -inf
    %1099 = vmax.xlane.f32.xlu0 %v1098
    %v1100 = vpop.xlane.xlu0 %1099
    %v1101 = vsel %vm1040, %v333, -inf
    %1102 = vmax.xlane.f32.xlu0 %v1101
    %v1103 = vpop.xlane.xlu0 %1102
    %v1104 = vsel %vm1040, %v335, -inf
    %1105 = vmax.xlane.f32.xlu0 %v1104
    %v1106 = vpop.xlane.xlu0 %1105
    %v1107 = vsel %vm1040, %v338, -inf
    %1108 = vmax.xlane.f32.xlu0 %v1107
    %v1109 = vpop.xlane.xlu0 %1108
    %v1110 = vsel %vm1040, %v340, -inf
    %1111 = vmax.xlane.f32.xlu0 %v1110
    %v1112 = vpop.xlane.xlu0 %1111
    %v1113 = vsel %vm1040, %v343, -inf
    %1114 = vmax.xlane.f32.xlu0 %v1113
    %v1115 = vpop.xlane.xlu0 %1114
    %v1116 = vsel %vm1040, %v345, -inf
    %1117 = vmax.xlane.f32.xlu0 %v1116
    %v1118 = vpop.xlane.xlu0 %1117
    %v1119 = vsel %vm1040, %v348, -inf
    %1120 = vmax.xlane.f32.xlu0 %v1119
    %v1121 = vpop.xlane.xlu0 %1120
    %v1122 = vsel %vm1040, %v350, -inf
    %1123 = vmax.xlane.f32.xlu0 %v1122
    %v1124 = vpop.xlane.xlu0 %1123
    %v1125 = vsel %vm1040, %v353, -inf
    %1126 = vmax.xlane.f32.xlu0 %v1125
    %v1127 = vpop.xlane.xlu0 %1126
    %v1128 = vsel %vm1040, %v355, -inf
    %1129 = vmax.xlane.f32.xlu0 %v1128
    %v1130 = vpop.xlane.xlu0 %1129
    %v1131 = vsel %vm1040, %v358, -inf
    %1132 = vmax.xlane.f32.xlu0 %v1131
    %v1133 = vpop.xlane.xlu0 %1132
    %v1134 = vsel %vm1040, %v360, -inf
    %1135 = vmax.xlane.f32.xlu0 %v1134
    %v1136 = vpop.xlane.xlu0 %1135
    %vm1137 = vcmask 786048
    %v1138 = vsel %vm1137, %v283, -inf
    %1139 = vmax.xlane.f32.xlu0 %v1138
    %v1140 = vpop.xlane.xlu0 %1139
    %v1141 = vsel %vm1137, %v285, -inf
    %1142 = vmax.xlane.f32.xlu0 %v1141
    %v1143 = vpop.xlane.xlu0 %1142
    %v1144 = vsel %vm1137, %v288, -inf
    %1145 = vmax.xlane.f32.xlu0 %v1144
    %v1146 = vpop.xlane.xlu0 %1145
    %v1147 = vsel %vm1137, %v290, -inf
    %1148 = vmax.xlane.f32.xlu0 %v1147
    %v1149 = vpop.xlane.xlu0 %1148
    %v1150 = vsel %vm1137, %v293, -inf
    %1151 = vmax.xlane.f32.xlu0 %v1150
    %v1152 = vpop.xlane.xlu0 %1151
    %v1153 = vsel %vm1137, %v295, -inf
    %1154 = vmax.xlane.f32.xlu0 %v1153
    %v1155 = vpop.xlane.xlu0 %1154
    %v1156 = vsel %vm1137, %v298, -inf
    %1157 = vmax.xlane.f32.xlu0 %v1156
    %v1158 = vpop.xlane.xlu0 %1157
    %v1159 = vsel %vm1137, %v300, -inf
    %1160 = vmax.xlane.f32.xlu0 %v1159
    %v1161 = vpop.xlane.xlu0 %1160
    %v1162 = vsel %vm1137, %v303, -inf
    %1163 = vmax.xlane.f32.xlu0 %v1162
    %v1164 = vpop.xlane.xlu0 %1163
    %v1165 = vsel %vm1137, %v305, -inf
    %1166 = vmax.xlane.f32.xlu0 %v1165
    %v1167 = vpop.xlane.xlu0 %1166
    %v1168 = vsel %vm1137, %v308, -inf
    %1169 = vmax.xlane.f32.xlu0 %v1168
    %v1170 = vpop.xlane.xlu0 %1169
    %v1171 = vsel %vm1137, %v310, -inf
    %1172 = vmax.xlane.f32.xlu0 %v1171
    %v1173 = vpop.xlane.xlu0 %1172
    %v1174 = vsel %vm1137, %v313, -inf
    %1175 = vmax.xlane.f32.xlu0 %v1174
    %v1176 = vpop.xlane.xlu0 %1175
    %v1177 = vsel %vm1137, %v315, -inf
    %1178 = vmax.xlane.f32.xlu0 %v1177
    %v1179 = vpop.xlane.xlu0 %1178
    %v1180 = vsel %vm1137, %v318, -inf
    %1181 = vmax.xlane.f32.xlu0 %v1180
    %v1182 = vpop.xlane.xlu0 %1181
    %v1183 = vsel %vm1137, %v320, -inf
    %1184 = vmax.xlane.f32.xlu0 %v1183
    %v1185 = vpop.xlane.xlu0 %1184
    %v1186 = vsel %vm1137, %v323, -inf
    %1187 = vmax.xlane.f32.xlu0 %v1186
    %v1188 = vpop.xlane.xlu0 %1187
    %v1189 = vsel %vm1137, %v325, -inf
    %1190 = vmax.xlane.f32.xlu0 %v1189
    %v1191 = vpop.xlane.xlu0 %1190
    %v1192 = vsel %vm1137, %v328, -inf
    %1193 = vmax.xlane.f32.xlu0 %v1192
    %v1194 = vpop.xlane.xlu0 %1193
    %v1195 = vsel %vm1137, %v330, -inf
    %1196 = vmax.xlane.f32.xlu0 %v1195
    %v1197 = vpop.xlane.xlu0 %1196
    %v1198 = vsel %vm1137, %v333, -inf
    %1199 = vmax.xlane.f32.xlu0 %v1198
    %v1200 = vpop.xlane.xlu0 %1199
    %v1201 = vsel %vm1137, %v335, -inf
    %1202 = vmax.xlane.f32.xlu0 %v1201
    %v1203 = vpop.xlane.xlu0 %1202
    %v1204 = vsel %vm1137, %v338, -inf
    %1205 = vmax.xlane.f32.xlu0 %v1204
    %v1206 = vpop.xlane.xlu0 %1205
    %v1207 = vsel %vm1137, %v340, -inf
    %1208 = vmax.xlane.f32.xlu0 %v1207
    %v1209 = vpop.xlane.xlu0 %1208
    %v1210 = vsel %vm1137, %v343, -inf
    %1211 = vmax.xlane.f32.xlu0 %v1210
    %v1212 = vpop.xlane.xlu0 %1211
    %v1213 = vsel %vm1137, %v345, -inf
    %1214 = vmax.xlane.f32.xlu0 %v1213
    %v1215 = vpop.xlane.xlu0 %1214
    %v1216 = vsel %vm1137, %v348, -inf
    %1217 = vmax.xlane.f32.xlu0 %v1216
    %v1218 = vpop.xlane.xlu0 %1217
    %v1219 = vsel %vm1137, %v350, -inf
    %1220 = vmax.xlane.f32.xlu0 %v1219
    %v1221 = vpop.xlane.xlu0 %1220
    %v1222 = vsel %vm1137, %v353, -inf
    %1223 = vmax.xlane.f32.xlu0 %v1222
    %v1224 = vpop.xlane.xlu0 %1223
    %v1225 = vsel %vm1137, %v355, -inf
    %1226 = vmax.xlane.f32.xlu0 %v1225
    %v1227 = vpop.xlane.xlu0 %1226
    %v1228 = vsel %vm1137, %v358, -inf
    %1229 = vmax.xlane.f32.xlu0 %v1228
    %v1230 = vpop.xlane.xlu0 %1229
    %v1231 = vsel %vm1137, %v360, -inf
    %1232 = vmax.xlane.f32.xlu0 %v1231
    %v1233 = vpop.xlane.xlu0 %1232
    %vm1234 = vcmask 917248
    %v1235 = vsel %vm1234, %v283, -inf
    %1236 = vmax.xlane.f32.xlu0 %v1235
    %v1237 = vpop.xlane.xlu0 %1236
    %v1238 = vsel %vm1234, %v285, -inf
    %1239 = vmax.xlane.f32.xlu0 %v1238
    %v1240 = vpop.xlane.xlu0 %1239
    %v1241 = vsel %vm1234, %v288, -inf
    %1242 = vmax.xlane.f32.xlu0 %v1241
    %v1243 = vpop.xlane.xlu0 %1242
    %v1244 = vsel %vm1234, %v290, -inf
    %1245 = vmax.xlane.f32.xlu0 %v1244
    %v1246 = vpop.xlane.xlu0 %1245
    %v1247 = vsel %vm1234, %v293, -inf
    %1248 = vmax.xlane.f32.xlu0 %v1247
    %v1249 = vpop.xlane.xlu0 %1248
    %v1250 = vsel %vm1234, %v295, -inf
    %1251 = vmax.xlane.f32.xlu0 %v1250
    %v1252 = vpop.xlane.xlu0 %1251
    %v1253 = vsel %vm1234, %v298, -inf
    %1254 = vmax.xlane.f32.xlu0 %v1253
    %v1255 = vpop.xlane.xlu0 %1254
    %v1256 = vsel %vm1234, %v300, -inf
    %1257 = vmax.xlane.f32.xlu0 %v1256
    %v1258 = vpop.xlane.xlu0 %1257
    %v1259 = vsel %vm1234, %v303, -inf
    %1260 = vmax.xlane.f32.xlu0 %v1259
    %v1261 = vpop.xlane.xlu0 %1260
    %v1262 = vsel %vm1234, %v305, -inf
    %1263 = vmax.xlane.f32.xlu0 %v1262
    %v1264 = vpop.xlane.xlu0 %1263
    %v1265 = vsel %vm1234, %v308, -inf
    %1266 = vmax.xlane.f32.xlu0 %v1265
    %v1267 = vpop.xlane.xlu0 %1266
    %v1268 = vsel %vm1234, %v310, -inf
    %1269 = vmax.xlane.f32.xlu0 %v1268
    %v1270 = vpop.xlane.xlu0 %1269
    %v1271 = vsel %vm1234, %v313, -inf
    %1272 = vmax.xlane.f32.xlu0 %v1271
    %v1273 = vpop.xlane.xlu0 %1272
    %v1274 = vsel %vm1234, %v315, -inf
    %1275 = vmax.xlane.f32.xlu0 %v1274
    %v1276 = vpop.xlane.xlu0 %1275
    %v1277 = vsel %vm1234, %v318, -inf
    %1278 = vmax.xlane.f32.xlu0 %v1277
    %v1279 = vpop.xlane.xlu0 %1278
    %v1280 = vsel %vm1234, %v320, -inf
    %1281 = vmax.xlane.f32.xlu0 %v1280
    %v1282 = vpop.xlane.xlu0 %1281
    %v1283 = vsel %vm1234, %v323, -inf
    %1284 = vmax.xlane.f32.xlu0 %v1283
    %v1285 = vpop.xlane.xlu0 %1284
    %v1286 = vsel %vm1234, %v325, -inf
    %1287 = vmax.xlane.f32.xlu0 %v1286
    %v1288 = vpop.xlane.xlu0 %1287
    %v1289 = vsel %vm1234, %v328, -inf
    %1290 = vmax.xlane.f32.xlu0 %v1289
    %v1291 = vpop.xlane.xlu0 %1290
    %v1292 = vsel %vm1234, %v330, -inf
    %1293 = vmax.xlane.f32.xlu0 %v1292
    %v1294 = vpop.xlane.xlu0 %1293
    %v1295 = vsel %vm1234, %v333, -inf
    %1296 = vmax.xlane.f32.xlu0 %v1295
    %v1297 = vpop.xlane.xlu0 %1296
    %v1298 = vsel %vm1234, %v335, -inf
    %1299 = vmax.xlane.f32.xlu0 %v1298
    %v1300 = vpop.xlane.xlu0 %1299
    %v1301 = vsel %vm1234, %v338, -inf
    %1302 = vmax.xlane.f32.xlu0 %v1301
    %v1303 = vpop.xlane.xlu0 %1302
    %v1304 = vsel %vm1234, %v340, -inf
    %1305 = vmax.xlane.f32.xlu0 %v1304
    %v1306 = vpop.xlane.xlu0 %1305
    %v1307 = vsel %vm1234, %v343, -inf
    %1308 = vmax.xlane.f32.xlu0 %v1307
    %v1309 = vpop.xlane.xlu0 %1308
    %v1310 = vsel %vm1234, %v345, -inf
    %1311 = vmax.xlane.f32.xlu0 %v1310
    %v1312 = vpop.xlane.xlu0 %1311
    %v1313 = vsel %vm1234, %v348, -inf
    %1314 = vmax.xlane.f32.xlu0 %v1313
    %v1315 = vpop.xlane.xlu0 %1314
    %v1316 = vsel %vm1234, %v350, -inf
    %1317 = vmax.xlane.f32.xlu0 %v1316
    %v1318 = vpop.xlane.xlu0 %1317
    %v1319 = vsel %vm1234, %v353, -inf
    %1320 = vmax.xlane.f32.xlu0 %v1319
    %v1321 = vpop.xlane.xlu0 %1320
    %v1322 = vsel %vm1234, %v355, -inf
    %1323 = vmax.xlane.f32.xlu0 %v1322
    %v1324 = vpop.xlane.xlu0 %1323
    %v1325 = vsel %vm1234, %v358, -inf
    %1326 = vmax.xlane.f32.xlu0 %v1325
    %v1327 = vpop.xlane.xlu0 %1326
    %v1328 = vsel %vm1234, %v360, -inf
    %1329 = vmax.xlane.f32.xlu0 %v1328
    %v1330 = vpop.xlane.xlu0 %1329
    %vm1331 = vcmask 1048448
    %v1332 = vsel %vm1331, %v283, -inf
    %1333 = vmax.xlane.f32.xlu0 %v1332
    %v1334 = vpop.xlane.xlu0 %1333
    %v1335 = vsel %vm1331, %v285, -inf
    %1336 = vmax.xlane.f32.xlu0 %v1335
    %v1337 = vpop.xlane.xlu0 %1336
    %v1338 = vsel %vm1331, %v288, -inf
    %1339 = vmax.xlane.f32.xlu0 %v1338
    %v1340 = vpop.xlane.xlu0 %1339
    %v1341 = vsel %vm1331, %v290, -inf
    %1342 = vmax.xlane.f32.xlu0 %v1341
    %v1343 = vpop.xlane.xlu0 %1342
    %v1344 = vsel %vm1331, %v293, -inf
    %1345 = vmax.xlane.f32.xlu0 %v1344
    %v1346 = vpop.xlane.xlu0 %1345
    %v1347 = vsel %vm1331, %v295, -inf
    %1348 = vmax.xlane.f32.xlu0 %v1347
    %v1349 = vpop.xlane.xlu0 %1348
    %v1350 = vsel %vm1331, %v298, -inf
    %1351 = vmax.xlane.f32.xlu0 %v1350
    %v1352 = vpop.xlane.xlu0 %1351
    %v1353 = vsel %vm1331, %v300, -inf
    %1354 = vmax.xlane.f32.xlu0 %v1353
    %v1355 = vpop.xlane.xlu0 %1354
    %v1356 = vsel %vm1331, %v303, -inf
    %1357 = vmax.xlane.f32.xlu0 %v1356
    %v1358 = vpop.xlane.xlu0 %1357
    %v1359 = vsel %vm1331, %v305, -inf
    %1360 = vmax.xlane.f32.xlu0 %v1359
    %v1361 = vpop.xlane.xlu0 %1360
    %v1362 = vsel %vm1331, %v308, -inf
    %1363 = vmax.xlane.f32.xlu0 %v1362
    %v1364 = vpop.xlane.xlu0 %1363
    %v1365 = vsel %vm1331, %v310, -inf
    %1366 = vmax.xlane.f32.xlu0 %v1365
    %v1367 = vpop.xlane.xlu0 %1366
    %v1368 = vsel %vm1331, %v313, -inf
    %1369 = vmax.xlane.f32.xlu0 %v1368
    %v1370 = vpop.xlane.xlu0 %1369
    %v1371 = vsel %vm1331, %v315, -inf
    %1372 = vmax.xlane.f32.xlu0 %v1371
    %v1373 = vpop.xlane.xlu0 %1372
    %v1374 = vsel %vm1331, %v318, -inf
    %1375 = vmax.xlane.f32.xlu0 %v1374
    %v1376 = vpop.xlane.xlu0 %1375
    %v1377 = vsel %vm1331, %v320, -inf
    %1378 = vmax.xlane.f32.xlu0 %v1377
    %v1379 = vpop.xlane.xlu0 %1378
    %v1380 = vsel %vm1331, %v323, -inf
    %1381 = vmax.xlane.f32.xlu0 %v1380
    %v1382 = vpop.xlane.xlu0 %1381
    %v1383 = vsel %vm1331, %v325, -inf
    %1384 = vmax.xlane.f32.xlu0 %v1383
    %v1385 = vpop.xlane.xlu0 %1384
    %v1386 = vsel %vm1331, %v328, -inf
    %1387 = vmax.xlane.f32.xlu0 %v1386
    %v1388 = vpop.xlane.xlu0 %1387
    %v1389 = vsel %vm1331, %v330, -inf
    %1390 = vmax.xlane.f32.xlu0 %v1389
    %v1391 = vpop.xlane.xlu0 %1390
    %v1392 = vsel %vm1331, %v333, -inf
    %1393 = vmax.xlane.f32.xlu0 %v1392
    %v1394 = vpop.xlane.xlu0 %1393
    %v1395 = vsel %vm1331, %v335, -inf
    %1396 = vmax.xlane.f32.xlu0 %v1395
    %v1397 = vpop.xlane.xlu0 %1396
    %v1398 = vsel %vm1331, %v338, -inf
    %1399 = vmax.xlane.f32.xlu0 %v1398
    %v1400 = vpop.xlane.xlu0 %1399
    %v1401 = vsel %vm1331, %v340, -inf
    %1402 = vmax.xlane.f32.xlu0 %v1401
    %v1403 = vpop.xlane.xlu0 %1402
    %v1404 = vsel %vm1331, %v343, -inf
    %1405 = vmax.xlane.f32.xlu0 %v1404
    %v1406 = vpop.xlane.xlu0 %1405
    %v1407 = vsel %vm1331, %v345, -inf
    %1408 = vmax.xlane.f32.xlu0 %v1407
    %v1409 = vpop.xlane.xlu0 %1408
    %v1410 = vsel %vm1331, %v348, -inf
    %1411 = vmax.xlane.f32.xlu0 %v1410
    %v1412 = vpop.xlane.xlu0 %1411
    %v1413 = vsel %vm1331, %v350, -inf
    %1414 = vmax.xlane.f32.xlu0 %v1413
    %v1415 = vpop.xlane.xlu0 %1414
    %v1416 = vsel %vm1331, %v353, -inf
    %1417 = vmax.xlane.f32.xlu0 %v1416
    %v1418 = vpop.xlane.xlu0 %1417
    %v1419 = vsel %vm1331, %v355, -inf
    %1420 = vmax.xlane.f32.xlu0 %v1419
    %v1421 = vpop.xlane.xlu0 %1420
    %v1422 = vsel %vm1331, %v358, -inf
    %1423 = vmax.xlane.f32.xlu0 %v1422
    %v1424 = vpop.xlane.xlu0 %1423
    %v1425 = vsel %vm1331, %v360, -inf
    %1426 = vmax.xlane.f32.xlu0 %v1425
    %v1427 = vpop.xlane.xlu0 %1426
    %v1428 = vsel %vm652, %v655, %v752
    %v1429 = vsel %vm652, %v658, %v755
    %v1430 = vsel %vm652, %v661, %v758
    %v1431 = vsel %vm652, %v664, %v761
    %v1432 = vsel %vm652, %v667, %v764
    %v1433 = vsel %vm652, %v670, %v767
    %v1434 = vsel %vm652, %v673, %v770
    %v1435 = vsel %vm652, %v676, %v773
    %v1436 = vsel %vm652, %v679, %v776
    %v1437 = vsel %vm652, %v682, %v779
    %v1438 = vsel %vm652, %v685, %v782
    %v1439 = vsel %vm652, %v688, %v785
    %v1440 = vsel %vm652, %v691, %v788
    %v1441 = vsel %vm652, %v694, %v791
    %v1442 = vsel %vm652, %v697, %v794
    %v1443 = vsel %vm652, %v700, %v797
    %v1444 = vsel %vm652, %v703, %v800
    %v1445 = vsel %vm652, %v706, %v803
    %v1446 = vsel %vm652, %v709, %v806
    %v1447 = vsel %vm652, %v712, %v809
    %v1448 = vsel %vm652, %v715, %v812
    %v1449 = vsel %vm652, %v718, %v815
    %v1450 = vsel %vm652, %v721, %v818
    %v1451 = vsel %vm652, %v724, %v821
    %v1452 = vsel %vm652, %v727, %v824
    %v1453 = vsel %vm652, %v730, %v827
    %v1454 = vsel %vm652, %v733, %v830
    %v1455 = vsel %vm652, %v736, %v833
    %v1456 = vsel %vm652, %v739, %v836
    %v1457 = vsel %vm652, %v742, %v839
    %v1458 = vsel %vm652, %v745, %v842
    %v1459 = vsel %vm652, %v748, %v845
    %vm1460 = vcmask 261120
    %v1461 = vsel %vm1460, %v1428, %v849
    %v1462 = vsel %vm1460, %v1429, %v852
    %v1463 = vsel %vm1460, %v1430, %v855
    %v1464 = vsel %vm1460, %v1431, %v858
    %v1465 = vsel %vm1460, %v1432, %v861
    %v1466 = vsel %vm1460, %v1433, %v864
    %v1467 = vsel %vm1460, %v1434, %v867
    %v1468 = vsel %vm1460, %v1435, %v870
    %v1469 = vsel %vm1460, %v1436, %v873
    %v1470 = vsel %vm1460, %v1437, %v876
    %v1471 = vsel %vm1460, %v1438, %v879
    %v1472 = vsel %vm1460, %v1439, %v882
    %v1473 = vsel %vm1460, %v1440, %v885
    %v1474 = vsel %vm1460, %v1441, %v888
    %v1475 = vsel %vm1460, %v1442, %v891
    %v1476 = vsel %vm1460, %v1443, %v894
    %v1477 = vsel %vm1460, %v1444, %v897
    %v1478 = vsel %vm1460, %v1445, %v900
    %v1479 = vsel %vm1460, %v1446, %v903
    %v1480 = vsel %vm1460, %v1447, %v906
    %v1481 = vsel %vm1460, %v1448, %v909
    %v1482 = vsel %vm1460, %v1449, %v912
    %v1483 = vsel %vm1460, %v1450, %v915
    %v1484 = vsel %vm1460, %v1451, %v918
    %v1485 = vsel %vm1460, %v1452, %v921
    %v1486 = vsel %vm1460, %v1453, %v924
    %v1487 = vsel %vm1460, %v1454, %v927
    %v1488 = vsel %vm1460, %v1455, %v930
    %v1489 = vsel %vm1460, %v1456, %v933
    %v1490 = vsel %vm1460, %v1457, %v936
    %v1491 = vsel %vm1460, %v1458, %v939
    %v1492 = vsel %vm1460, %v1459, %v942
    %vm1493 = vcmask 392192
    %v1494 = vsel %vm1493, %v1461, %v946
    %v1495 = vsel %vm1493, %v1462, %v949
    %v1496 = vsel %vm1493, %v1463, %v952
    %v1497 = vsel %vm1493, %v1464, %v955
    %v1498 = vsel %vm1493, %v1465, %v958
    %v1499 = vsel %vm1493, %v1466, %v961
    %v1500 = vsel %vm1493, %v1467, %v964
    %v1501 = vsel %vm1493, %v1468, %v967
    %v1502 = vsel %vm1493, %v1469, %v970
    %v1503 = vsel %vm1493, %v1470, %v973
    %v1504 = vsel %vm1493, %v1471, %v976
    %v1505 = vsel %vm1493, %v1472, %v979
    %v1506 = vsel %vm1493, %v1473, %v982
    %v1507 = vsel %vm1493, %v1474, %v985
    %v1508 = vsel %vm1493, %v1475, %v988
    %v1509 = vsel %vm1493, %v1476, %v991
    %v1510 = vsel %vm1493, %v1477, %v994
    %v1511 = vsel %vm1493, %v1478, %v997
    %v1512 = vsel %vm1493, %v1479, %v1000
    %v1513 = vsel %vm1493, %v1480, %v1003
    %v1514 = vsel %vm1493, %v1481, %v1006
    %v1515 = vsel %vm1493, %v1482, %v1009
    %v1516 = vsel %vm1493, %v1483, %v1012
    %v1517 = vsel %vm1493, %v1484, %v1015
    %v1518 = vsel %vm1493, %v1485, %v1018
    %v1519 = vsel %vm1493, %v1486, %v1021
    %v1520 = vsel %vm1493, %v1487, %v1024
    %v1521 = vsel %vm1493, %v1488, %v1027
    %v1522 = vsel %vm1493, %v1489, %v1030
    %v1523 = vsel %vm1493, %v1490, %v1033
    %v1524 = vsel %vm1493, %v1491, %v1036
    %v1525 = vsel %vm1493, %v1492, %v1039
    %vm1526 = vcmask 523264
    %v1527 = vsel %vm1526, %v1494, %v1043
    %v1528 = vsel %vm1526, %v1495, %v1046
    %v1529 = vsel %vm1526, %v1496, %v1049
    %v1530 = vsel %vm1526, %v1497, %v1052
    %v1531 = vsel %vm1526, %v1498, %v1055
    %v1532 = vsel %vm1526, %v1499, %v1058
    %v1533 = vsel %vm1526, %v1500, %v1061
    %v1534 = vsel %vm1526, %v1501, %v1064
    %v1535 = vsel %vm1526, %v1502, %v1067
    %v1536 = vsel %vm1526, %v1503, %v1070
    %v1537 = vsel %vm1526, %v1504, %v1073
    %v1538 = vsel %vm1526, %v1505, %v1076
    %v1539 = vsel %vm1526, %v1506, %v1079
    %v1540 = vsel %vm1526, %v1507, %v1082
    %v1541 = vsel %vm1526, %v1508, %v1085
    %v1542 = vsel %vm1526, %v1509, %v1088
    %v1543 = vsel %vm1526, %v1510, %v1091
    %v1544 = vsel %vm1526, %v1511, %v1094
    %v1545 = vsel %vm1526, %v1512, %v1097
    %v1546 = vsel %vm1526, %v1513, %v1100
    %v1547 = vsel %vm1526, %v1514, %v1103
    %v1548 = vsel %vm1526, %v1515, %v1106
    %v1549 = vsel %vm1526, %v1516, %v1109
    %v1550 = vsel %vm1526, %v1517, %v1112
    %v1551 = vsel %vm1526, %v1518, %v1115
    %v1552 = vsel %vm1526, %v1519, %v1118
    %v1553 = vsel %vm1526, %v1520, %v1121
    %v1554 = vsel %vm1526, %v1521, %v1124
    %v1555 = vsel %vm1526, %v1522, %v1127
    %v1556 = vsel %vm1526, %v1523, %v1130
    %v1557 = vsel %vm1526, %v1524, %v1133
    %v1558 = vsel %vm1526, %v1525, %v1136
    %vm1559 = vcmask 654336
    %v1560 = vsel %vm1559, %v1527, %v1140
    %v1561 = vsel %vm1559, %v1528, %v1143
    %v1562 = vsel %vm1559, %v1529, %v1146
    %v1563 = vsel %vm1559, %v1530, %v1149
    %v1564 = vsel %vm1559, %v1531, %v1152
    %v1565 = vsel %vm1559, %v1532, %v1155
    %v1566 = vsel %vm1559, %v1533, %v1158
    %v1567 = vsel %vm1559, %v1534, %v1161
    %v1568 = vsel %vm1559, %v1535, %v1164
    %v1569 = vsel %vm1559, %v1536, %v1167
    %v1570 = vsel %vm1559, %v1537, %v1170
    %v1571 = vsel %vm1559, %v1538, %v1173
    %v1572 = vsel %vm1559, %v1539, %v1176
    %v1573 = vsel %vm1559, %v1540, %v1179
    %v1574 = vsel %vm1559, %v1541, %v1182
    %v1575 = vsel %vm1559, %v1542, %v1185
    %v1576 = vsel %vm1559, %v1543, %v1188
    %v1577 = vsel %vm1559, %v1544, %v1191
    %v1578 = vsel %vm1559, %v1545, %v1194
    %v1579 = vsel %vm1559, %v1546, %v1197
    %v1580 = vsel %vm1559, %v1547, %v1200
    %v1581 = vsel %vm1559, %v1548, %v1203
    %v1582 = vsel %vm1559, %v1549, %v1206
    %v1583 = vsel %vm1559, %v1550, %v1209
    %v1584 = vsel %vm1559, %v1551, %v1212
    %v1585 = vsel %vm1559, %v1552, %v1215
    %v1586 = vsel %vm1559, %v1553, %v1218
    %v1587 = vsel %vm1559, %v1554, %v1221
    %v1588 = vsel %vm1559, %v1555, %v1224
    %v1589 = vsel %vm1559, %v1556, %v1227
    %v1590 = vsel %vm1559, %v1557, %v1230
    %v1591 = vsel %vm1559, %v1558, %v1233
    %vm1592 = vcmask 785408
    %v1593 = vsel %vm1592, %v1560, %v1237
    %v1594 = vsel %vm1592, %v1561, %v1240
    %v1595 = vsel %vm1592, %v1562, %v1243
    %v1596 = vsel %vm1592, %v1563, %v1246
    %v1597 = vsel %vm1592, %v1564, %v1249
    %v1598 = vsel %vm1592, %v1565, %v1252
    %v1599 = vsel %vm1592, %v1566, %v1255
    %v1600 = vsel %vm1592, %v1567, %v1258
    %v1601 = vsel %vm1592, %v1568, %v1261
    %v1602 = vsel %vm1592, %v1569, %v1264
    %v1603 = vsel %vm1592, %v1570, %v1267
    %v1604 = vsel %vm1592, %v1571, %v1270
    %v1605 = vsel %vm1592, %v1572, %v1273
    %v1606 = vsel %vm1592, %v1573, %v1276
    %v1607 = vsel %vm1592, %v1574, %v1279
    %v1608 = vsel %vm1592, %v1575, %v1282
    %v1609 = vsel %vm1592, %v1576, %v1285
    %v1610 = vsel %vm1592, %v1577, %v1288
    %v1611 = vsel %vm1592, %v1578, %v1291
    %v1612 = vsel %vm1592, %v1579, %v1294
    %v1613 = vsel %vm1592, %v1580, %v1297
    %v1614 = vsel %vm1592, %v1581, %v1300
    %v1615 = vsel %vm1592, %v1582, %v1303
    %v1616 = vsel %vm1592, %v1583, %v1306
    %v1617 = vsel %vm1592, %v1584, %v1309
    %v1618 = vsel %vm1592, %v1585, %v1312
    %v1619 = vsel %vm1592, %v1586, %v1315
    %v1620 = vsel %vm1592, %v1587, %v1318
    %v1621 = vsel %vm1592, %v1588, %v1321
    %v1622 = vsel %vm1592, %v1589, %v1324
    %v1623 = vsel %vm1592, %v1590, %v1327
    %v1624 = vsel %vm1592, %v1591, %v1330
    %vm1625 = vcmask 916480
    %v1626 = vsel %vm1625, %v1593, %v1334
    %v1627 = vsel %vm1625, %v1594, %v1337
    %v1628 = vsel %vm1625, %v1595, %v1340
    %v1629 = vsel %vm1625, %v1596, %v1343
    %v1630 = vsel %vm1625, %v1597, %v1346
    %v1631 = vsel %vm1625, %v1598, %v1349
    %v1632 = vsel %vm1625, %v1599, %v1352
    %v1633 = vsel %vm1625, %v1600, %v1355
    %v1634 = vsel %vm1625, %v1601, %v1358
    %v1635 = vsel %vm1625, %v1602, %v1361
    %v1636 = vsel %vm1625, %v1603, %v1364
    %v1637 = vsel %vm1625, %v1604, %v1367
    %v1638 = vsel %vm1625, %v1605, %v1370
    %v1639 = vsel %vm1625, %v1606, %v1373
    %v1640 = vsel %vm1625, %v1607, %v1376
    %v1641 = vsel %vm1625, %v1608, %v1379
    %v1642 = vsel %vm1625, %v1609, %v1382
    %v1643 = vsel %vm1625, %v1610, %v1385
    %v1644 = vsel %vm1625, %v1611, %v1388
    %v1645 = vsel %vm1625, %v1612, %v1391
    %v1646 = vsel %vm1625, %v1613, %v1394
    %v1647 = vsel %vm1625, %v1614, %v1397
    %v1648 = vsel %vm1625, %v1615, %v1400
    %v1649 = vsel %vm1625, %v1616, %v1403
    %v1650 = vsel %vm1625, %v1617, %v1406
    %v1651 = vsel %vm1625, %v1618, %v1409
    %v1652 = vsel %vm1625, %v1619, %v1412
    %v1653 = vsel %vm1625, %v1620, %v1415
    %v1654 = vsel %vm1625, %v1621, %v1418
    %v1655 = vsel %vm1625, %v1622, %v1421
    %v1656 = vsel %vm1625, %v1623, %v1424
    %v1657 = vsel %vm1625, %v1624, %v1427
    %v1658 = vsub.f32 %v283, %v1626
    %v1659 = vsub.f32 %v285, %v1627
    %v1660 = vsub.f32 %v288, %v1628
    %v1661 = vsub.f32 %v290, %v1629
    %v1662 = vsub.f32 %v293, %v1630
    %v1663 = vsub.f32 %v295, %v1631
    %v1664 = vsub.f32 %v298, %v1632
    %v1665 = vsub.f32 %v300, %v1633
    %v1666 = vsub.f32 %v303, %v1634
    %v1667 = vsub.f32 %v305, %v1635
    %v1668 = vsub.f32 %v308, %v1636
    %v1669 = vsub.f32 %v310, %v1637
    %v1670 = vsub.f32 %v313, %v1638
    %v1671 = vsub.f32 %v315, %v1639
    %v1672 = vsub.f32 %v318, %v1640
    %v1673 = vsub.f32 %v320, %v1641
    %v1674 = vsub.f32 %v323, %v1642
    %v1675 = vsub.f32 %v325, %v1643
    %v1676 = vsub.f32 %v328, %v1644
    %v1677 = vsub.f32 %v330, %v1645
    %v1678 = vsub.f32 %v333, %v1646
    %v1679 = vsub.f32 %v335, %v1647
    %v1680 = vsub.f32 %v338, %v1648
    %v1681 = vsub.f32 %v340, %v1649
    %v1682 = vsub.f32 %v343, %v1650
    %v1683 = vsub.f32 %v345, %v1651
    %v1684 = vsub.f32 %v348, %v1652
    %v1685 = vsub.f32 %v350, %v1653
    %v1686 = vsub.f32 %v353, %v1654
    %v1687 = vsub.f32 %v355, %v1655
    %v1688 = vsub.f32 %v358, %v1656
    %v1689 = vsub.f32 %v360, %v1657
    %v1690 = vmul.f32 %v1658, 1.442695
    %v1691 = vpow.pop %v1690
    %v1692 = vmul.f32 %v1659, 1.442695
    %v1693 = vpow.pop %v1692
    %v1694 = vmul.f32 %v1660, 1.442695
    %v1695 = vpow.pop %v1694
    %v1696 = vmul.f32 %v1661, 1.442695
    %v1697 = vpow.pop %v1696
    %v1698 = vmul.f32 %v1662, 1.442695
    %v1699 = vpow.pop %v1698
    %v1700 = vmul.f32 %v1663, 1.442695
    %v1701 = vpow.pop %v1700
    %v1702 = vmul.f32 %v1664, 1.442695
    %v1703 = vpow.pop %v1702
    %v1704 = vmul.f32 %v1665, 1.442695
    %v1705 = vpow.pop %v1704
    %v1706 = vmul.f32 %v1666, 1.442695
    %v1707 = vpow.pop %v1706
    %v1708 = vmul.f32 %v1667, 1.442695
    %v1709 = vpow.pop %v1708
    %v1710 = vmul.f32 %v1668, 1.442695
    %v1711 = vpow.pop %v1710
    %v1712 = vmul.f32 %v1669, 1.442695
    %v1713 = vpow.pop %v1712
    %v1714 = vmul.f32 %v1670, 1.442695
    %v1715 = vpow.pop %v1714
    %v1716 = vmul.f32 %v1671, 1.442695
    %v1717 = vpow.pop %v1716
    %v1718 = vmul.f32 %v1672, 1.442695
    %v1719 = vpow.pop %v1718
    %v1720 = vmul.f32 %v1673, 1.442695
    %v1721 = vpow.pop %v1720
    %v1722 = vmul.f32 %v1674, 1.442695
    %v1723 = vpow.pop %v1722
    %v1724 = vmul.f32 %v1675, 1.442695
    %v1725 = vpow.pop %v1724
    %v1726 = vmul.f32 %v1676, 1.442695
    %v1727 = vpow.pop %v1726
    %v1728 = vmul.f32 %v1677, 1.442695
    %v1729 = vpow.pop %v1728
    %v1730 = vmul.f32 %v1678, 1.442695
    %v1731 = vpow.pop %v1730
    %v1732 = vmul.f32 %v1679, 1.442695
    %v1733 = vpow.pop %v1732
    %v1734 = vmul.f32 %v1680, 1.442695
    %v1735 = vpow.pop %v1734
    %v1736 = vmul.f32 %v1681, 1.442695
    %v1737 = vpow.pop %v1736
    %v1738 = vmul.f32 %v1682, 1.442695
    %v1739 = vpow.pop %v1738
    %v1740 = vmul.f32 %v1683, 1.442695
    %v1741 = vpow.pop %v1740
    %v1742 = vmul.f32 %v1684, 1.442695
    %v1743 = vpow.pop %v1742
    %v1744 = vmul.f32 %v1685, 1.442695
    %v1745 = vpow.pop %v1744
    %v1746 = vmul.f32 %v1686, 1.442695
    %v1747 = vpow.pop %v1746
    %v1748 = vmul.f32 %v1687, 1.442695
    %v1749 = vpow.pop %v1748
    %v1750 = vmul.f32 %v1688, 1.442695
    %v1751 = vpow.pop %v1750
    %v1752 = vmul.f32 %v1689, 1.442695
    %v1753 = vpow.pop %v1752
    %v1754 = vsel %vm652, %v1691, 0.0
    %1755 = vadd.xlane.f32.xlu0 %v1754
    %v1756 = vpop.xlane.xlu0 %1755
    %v1757 = vsel %vm652, %v1693, 0.0
    %1758 = vadd.xlane.f32.xlu0 %v1757
    %v1759 = vpop.xlane.xlu0 %1758
    %v1760 = vsel %vm652, %v1695, 0.0
    %1761 = vadd.xlane.f32.xlu0 %v1760
    %v1762 = vpop.xlane.xlu0 %1761
    %v1763 = vsel %vm652, %v1697, 0.0
    %1764 = vadd.xlane.f32.xlu0 %v1763
    %v1765 = vpop.xlane.xlu0 %1764
    %v1766 = vsel %vm652, %v1699, 0.0
    %1767 = vadd.xlane.f32.xlu0 %v1766
    %v1768 = vpop.xlane.xlu0 %1767
    %v1769 = vsel %vm652, %v1701, 0.0
    %1770 = vadd.xlane.f32.xlu0 %v1769
    %v1771 = vpop.xlane.xlu0 %1770
    %v1772 = vsel %vm652, %v1703, 0.0
    %1773 = vadd.xlane.f32.xlu0 %v1772
    %v1774 = vpop.xlane.xlu0 %1773
    %v1775 = vsel %vm652, %v1705, 0.0
    %1776 = vadd.xlane.f32.xlu0 %v1775
    %v1777 = vpop.xlane.xlu0 %1776
    %v1778 = vsel %vm652, %v1707, 0.0
    %1779 = vadd.xlane.f32.xlu0 %v1778
    %v1780 = vpop.xlane.xlu0 %1779
    %v1781 = vsel %vm652, %v1709, 0.0
    %1782 = vadd.xlane.f32.xlu0 %v1781
    %v1783 = vpop.xlane.xlu0 %1782
    %v1784 = vsel %vm652, %v1711, 0.0
    %1785 = vadd.xlane.f32.xlu0 %v1784
    %v1786 = vpop.xlane.xlu0 %1785
    %v1787 = vsel %vm652, %v1713, 0.0
    %1788 = vadd.xlane.f32.xlu0 %v1787
    %v1789 = vpop.xlane.xlu0 %1788
    %v1790 = vsel %vm652, %v1715, 0.0
    %1791 = vadd.xlane.f32.xlu0 %v1790
    %v1792 = vpop.xlane.xlu0 %1791
    %v1793 = vsel %vm652, %v1717, 0.0
    %1794 = vadd.xlane.f32.xlu0 %v1793
    %v1795 = vpop.xlane.xlu0 %1794
    %v1796 = vsel %vm652, %v1719, 0.0
    %1797 = vadd.xlane.f32.xlu0 %v1796
    %v1798 = vpop.xlane.xlu0 %1797
    %v1799 = vsel %vm652, %v1721, 0.0
    %1800 = vadd.xlane.f32.xlu0 %v1799
    %v1801 = vpop.xlane.xlu0 %1800
    %v1802 = vsel %vm652, %v1723, 0.0
    %1803 = vadd.xlane.f32.xlu0 %v1802
    %v1804 = vpop.xlane.xlu0 %1803
    %v1805 = vsel %vm652, %v1725, 0.0
    %1806 = vadd.xlane.f32.xlu0 %v1805
    %v1807 = vpop.xlane.xlu0 %1806
    %v1808 = vsel %vm652, %v1727, 0.0
    %1809 = vadd.xlane.f32.xlu0 %v1808
    %v1810 = vpop.xlane.xlu0 %1809
    %v1811 = vsel %vm652, %v1729, 0.0
    %1812 = vadd.xlane.f32.xlu0 %v1811
    %v1813 = vpop.xlane.xlu0 %1812
    %v1814 = vsel %vm652, %v1731, 0.0
    %1815 = vadd.xlane.f32.xlu0 %v1814
    %v1816 = vpop.xlane.xlu0 %1815
    %v1817 = vsel %vm652, %v1733, 0.0
    %1818 = vadd.xlane.f32.xlu0 %v1817
    %v1819 = vpop.xlane.xlu0 %1818
    %v1820 = vsel %vm652, %v1735, 0.0
    %1821 = vadd.xlane.f32.xlu0 %v1820
    %v1822 = vpop.xlane.xlu0 %1821
    %v1823 = vsel %vm652, %v1737, 0.0
    %1824 = vadd.xlane.f32.xlu0 %v1823
    %v1825 = vpop.xlane.xlu0 %1824
    %v1826 = vsel %vm652, %v1739, 0.0
    %1827 = vadd.xlane.f32.xlu0 %v1826
    %v1828 = vpop.xlane.xlu0 %1827
    %v1829 = vsel %vm652, %v1741, 0.0
    %1830 = vadd.xlane.f32.xlu0 %v1829
    %v1831 = vpop.xlane.xlu0 %1830
    %v1832 = vsel %vm652, %v1743, 0.0
    %1833 = vadd.xlane.f32.xlu0 %v1832
    %v1834 = vpop.xlane.xlu0 %1833
    %v1835 = vsel %vm652, %v1745, 0.0
    %1836 = vadd.xlane.f32.xlu0 %v1835
    %v1837 = vpop.xlane.xlu0 %1836
    %v1838 = vsel %vm652, %v1747, 0.0
    %1839 = vadd.xlane.f32.xlu0 %v1838
    %v1840 = vpop.xlane.xlu0 %1839
    %v1841 = vsel %vm652, %v1749, 0.0
    %1842 = vadd.xlane.f32.xlu0 %v1841
    %v1843 = vpop.xlane.xlu0 %1842
    %v1844 = vsel %vm652, %v1751, 0.0
    %1845 = vadd.xlane.f32.xlu0 %v1844
    %v1846 = vpop.xlane.xlu0 %1845
    %v1847 = vsel %vm652, %v1753, 0.0
    %1848 = vadd.xlane.f32.xlu0 %v1847
    %v1849 = vpop.xlane.xlu0 %1848
    %1882 = vrot.lane.b32.xlu0 %v1691, 112
    %v1883 = vpop.permute.xlu0 %1882
    %1884 = vrot.lane.b32.xlu0 %v1693, 112
    %v1885 = vpop.permute.xlu0 %1884
    %1886 = vrot.lane.b32.xlu0 %v1695, 112
    %v1887 = vpop.permute.xlu0 %1886
    %1888 = vrot.lane.b32.xlu0 %v1697, 112
    %v1889 = vpop.permute.xlu0 %1888
    %1890 = vrot.lane.b32.xlu0 %v1699, 112
    %v1891 = vpop.permute.xlu0 %1890
    %1892 = vrot.lane.b32.xlu0 %v1701, 112
    %v1893 = vpop.permute.xlu0 %1892
    %1894 = vrot.lane.b32.xlu0 %v1703, 112
    %v1895 = vpop.permute.xlu0 %1894
    %1896 = vrot.lane.b32.xlu0 %v1705, 112
    %v1897 = vpop.permute.xlu0 %1896
    %1898 = vrot.lane.b32.xlu0 %v1707, 112
    %v1899 = vpop.permute.xlu0 %1898
    %1900 = vrot.lane.b32.xlu0 %v1709, 112
    %v1901 = vpop.permute.xlu0 %1900
    %1902 = vrot.lane.b32.xlu0 %v1711, 112
    %v1903 = vpop.permute.xlu0 %1902
    %1904 = vrot.lane.b32.xlu0 %v1713, 112
    %v1905 = vpop.permute.xlu0 %1904
    %1906 = vrot.lane.b32.xlu0 %v1715, 112
    %v1907 = vpop.permute.xlu0 %1906
    %1908 = vrot.lane.b32.xlu0 %v1717, 112
    %v1909 = vpop.permute.xlu0 %1908
    %1910 = vrot.lane.b32.xlu0 %v1719, 112
    %v1911 = vpop.permute.xlu0 %1910
    %1912 = vrot.lane.b32.xlu0 %v1721, 112
    %v1913 = vpop.permute.xlu0 %1912
    %1914 = vrot.lane.b32.xlu0 %v1723, 112
    %v1915 = vpop.permute.xlu0 %1914
    %1916 = vrot.lane.b32.xlu0 %v1725, 112
    %v1917 = vpop.permute.xlu0 %1916
    %1918 = vrot.lane.b32.xlu0 %v1727, 112
    %v1919 = vpop.permute.xlu0 %1918
    %1920 = vrot.lane.b32.xlu0 %v1729, 112
    %v1921 = vpop.permute.xlu0 %1920
    %1922 = vrot.lane.b32.xlu0 %v1731, 112
    %v1923 = vpop.permute.xlu0 %1922
    %1924 = vrot.lane.b32.xlu0 %v1733, 112
    %v1925 = vpop.permute.xlu0 %1924
    %1926 = vrot.lane.b32.xlu0 %v1735, 112
    %v1927 = vpop.permute.xlu0 %1926
    %1928 = vrot.lane.b32.xlu0 %v1737, 112
    %v1929 = vpop.permute.xlu0 %1928
    %1930 = vrot.lane.b32.xlu0 %v1739, 112
    %v1931 = vpop.permute.xlu0 %1930
    %1932 = vrot.lane.b32.xlu0 %v1741, 112
    %v1933 = vpop.permute.xlu0 %1932
    %1934 = vrot.lane.b32.xlu0 %v1743, 112
    %v1935 = vpop.permute.xlu0 %1934
    %1936 = vrot.lane.b32.xlu0 %v1745, 112
    %v1937 = vpop.permute.xlu0 %1936
    %1938 = vrot.lane.b32.xlu0 %v1747, 112
    %v1939 = vpop.permute.xlu0 %1938
    %1940 = vrot.lane.b32.xlu0 %v1749, 112
    %v1941 = vpop.permute.xlu0 %1940
    %1942 = vrot.lane.b32.xlu0 %v1751, 112
    %v1943 = vpop.permute.xlu0 %1942
    %1944 = vrot.lane.b32.xlu0 %v1753, 112
    %v1945 = vpop.permute.xlu0 %1944
    %v1978 = vsel %vm652, %v1883, 0.0
    %1979 = vadd.xlane.f32.xlu0 %v1978
    %v1980 = vpop.xlane.xlu0 %1979
    %v1981 = vsel %vm652, %v1885, 0.0
    %1982 = vadd.xlane.f32.xlu0 %v1981
    %v1983 = vpop.xlane.xlu0 %1982
    %v1984 = vsel %vm652, %v1887, 0.0
    %1985 = vadd.xlane.f32.xlu0 %v1984
    %v1986 = vpop.xlane.xlu0 %1985
    %v1987 = vsel %vm652, %v1889, 0.0
    %1988 = vadd.xlane.f32.xlu0 %v1987
    %v1989 = vpop.xlane.xlu0 %1988
    %v1990 = vsel %vm652, %v1891, 0.0
    %1991 = vadd.xlane.f32.xlu0 %v1990
    %v1992 = vpop.xlane.xlu0 %1991
    %v1993 = vsel %vm652, %v1893, 0.0
    %1994 = vadd.xlane.f32.xlu0 %v1993
    %v1995 = vpop.xlane.xlu0 %1994
    %v1996 = vsel %vm652, %v1895, 0.0
    %1997 = vadd.xlane.f32.xlu0 %v1996
    %v1998 = vpop.xlane.xlu0 %1997
    %v1999 = vsel %vm652, %v1897, 0.0
    %2000 = vadd.xlane.f32.xlu0 %v1999
    %v2001 = vpop.xlane.xlu0 %2000
    %v2002 = vsel %vm652, %v1899, 0.0
    %2003 = vadd.xlane.f32.xlu0 %v2002
    %v2004 = vpop.xlane.xlu0 %2003
    %v2005 = vsel %vm652, %v1901, 0.0
    %2006 = vadd.xlane.f32.xlu0 %v2005
    %v2007 = vpop.xlane.xlu0 %2006
    %v2008 = vsel %vm652, %v1903, 0.0
    %2009 = vadd.xlane.f32.xlu0 %v2008
    %v2010 = vpop.xlane.xlu0 %2009
    %v2011 = vsel %vm652, %v1905, 0.0
    %2012 = vadd.xlane.f32.xlu0 %v2011
    %v2013 = vpop.xlane.xlu0 %2012
    %v2014 = vsel %vm652, %v1907, 0.0
    %2015 = vadd.xlane.f32.xlu0 %v2014
    %v2016 = vpop.xlane.xlu0 %2015
    %v2017 = vsel %vm652, %v1909, 0.0
    %2018 = vadd.xlane.f32.xlu0 %v2017
    %v2019 = vpop.xlane.xlu0 %2018
    %v2020 = vsel %vm652, %v1911, 0.0
    %2021 = vadd.xlane.f32.xlu0 %v2020
    %v2022 = vpop.xlane.xlu0 %2021
    %v2023 = vsel %vm652, %v1913, 0.0
    %2024 = vadd.xlane.f32.xlu0 %v2023
    %v2025 = vpop.xlane.xlu0 %2024
    %v2026 = vsel %vm652, %v1915, 0.0
    %2027 = vadd.xlane.f32.xlu0 %v2026
    %v2028 = vpop.xlane.xlu0 %2027
    %v2029 = vsel %vm652, %v1917, 0.0
    %2030 = vadd.xlane.f32.xlu0 %v2029
    %v2031 = vpop.xlane.xlu0 %2030
    %v2032 = vsel %vm652, %v1919, 0.0
    %2033 = vadd.xlane.f32.xlu0 %v2032
    %v2034 = vpop.xlane.xlu0 %2033
    %v2035 = vsel %vm652, %v1921, 0.0
    %2036 = vadd.xlane.f32.xlu0 %v2035
    %v2037 = vpop.xlane.xlu0 %2036
    %v2038 = vsel %vm652, %v1923, 0.0
    %2039 = vadd.xlane.f32.xlu0 %v2038
    %v2040 = vpop.xlane.xlu0 %2039
    %v2041 = vsel %vm652, %v1925, 0.0
    %2042 = vadd.xlane.f32.xlu0 %v2041
    %v2043 = vpop.xlane.xlu0 %2042
    %v2044 = vsel %vm652, %v1927, 0.0
    %2045 = vadd.xlane.f32.xlu0 %v2044
    %v2046 = vpop.xlane.xlu0 %2045
    %v2047 = vsel %vm652, %v1929, 0.0
    %2048 = vadd.xlane.f32.xlu0 %v2047
    %v2049 = vpop.xlane.xlu0 %2048
    %v2050 = vsel %vm652, %v1931, 0.0
    %2051 = vadd.xlane.f32.xlu0 %v2050
    %v2052 = vpop.xlane.xlu0 %2051
    %v2053 = vsel %vm652, %v1933, 0.0
    %2054 = vadd.xlane.f32.xlu0 %v2053
    %v2055 = vpop.xlane.xlu0 %2054
    %v2056 = vsel %vm652, %v1935, 0.0
    %2057 = vadd.xlane.f32.xlu0 %v2056
    %v2058 = vpop.xlane.xlu0 %2057
    %v2059 = vsel %vm652, %v1937, 0.0
    %2060 = vadd.xlane.f32.xlu0 %v2059
    %v2061 = vpop.xlane.xlu0 %2060
    %v2062 = vsel %vm652, %v1939, 0.0
    %2063 = vadd.xlane.f32.xlu0 %v2062
    %v2064 = vpop.xlane.xlu0 %2063
    %v2065 = vsel %vm652, %v1941, 0.0
    %2066 = vadd.xlane.f32.xlu0 %v2065
    %v2067 = vpop.xlane.xlu0 %2066
    %v2068 = vsel %vm652, %v1943, 0.0
    %2069 = vadd.xlane.f32.xlu0 %v2068
    %v2070 = vpop.xlane.xlu0 %2069
    %v2071 = vsel %vm652, %v1945, 0.0
    %2072 = vadd.xlane.f32.xlu0 %v2071
    %v2073 = vpop.xlane.xlu0 %2072
    %2074 = vrot.lane.b32.xlu0 %v1691, 96
    %v2075 = vpop.permute.xlu0 %2074
    %2076 = vrot.lane.b32.xlu0 %v1693, 96
    %v2077 = vpop.permute.xlu0 %2076
    %2078 = vrot.lane.b32.xlu0 %v1695, 96
    %v2079 = vpop.permute.xlu0 %2078
    %2080 = vrot.lane.b32.xlu0 %v1697, 96
    %v2081 = vpop.permute.xlu0 %2080
    %2082 = vrot.lane.b32.xlu0 %v1699, 96
    %v2083 = vpop.permute.xlu0 %2082
    %2084 = vrot.lane.b32.xlu0 %v1701, 96
    %v2085 = vpop.permute.xlu0 %2084
    %2086 = vrot.lane.b32.xlu0 %v1703, 96
    %v2087 = vpop.permute.xlu0 %2086
    %2088 = vrot.lane.b32.xlu0 %v1705, 96
    %v2089 = vpop.permute.xlu0 %2088
    %2090 = vrot.lane.b32.xlu0 %v1707, 96
    %v2091 = vpop.permute.xlu0 %2090
    %2092 = vrot.lane.b32.xlu0 %v1709, 96
    %v2093 = vpop.permute.xlu0 %2092
    %2094 = vrot.lane.b32.xlu0 %v1711, 96
    %v2095 = vpop.permute.xlu0 %2094
    %2096 = vrot.lane.b32.xlu0 %v1713, 96
    %v2097 = vpop.permute.xlu0 %2096
    %2098 = vrot.lane.b32.xlu0 %v1715, 96
    %v2099 = vpop.permute.xlu0 %2098
    %2100 = vrot.lane.b32.xlu0 %v1717, 96
    %v2101 = vpop.permute.xlu0 %2100
    %2102 = vrot.lane.b32.xlu0 %v1719, 96
    %v2103 = vpop.permute.xlu0 %2102
    %2104 = vrot.lane.b32.xlu0 %v1721, 96
    %v2105 = vpop.permute.xlu0 %2104
    %2106 = vrot.lane.b32.xlu0 %v1723, 96
    %v2107 = vpop.permute.xlu0 %2106
    %2108 = vrot.lane.b32.xlu0 %v1725, 96
    %v2109 = vpop.permute.xlu0 %2108
    %2110 = vrot.lane.b32.xlu0 %v1727, 96
    %v2111 = vpop.permute.xlu0 %2110
    %2112 = vrot.lane.b32.xlu0 %v1729, 96
    %v2113 = vpop.permute.xlu0 %2112
    %2114 = vrot.lane.b32.xlu0 %v1731, 96
    %v2115 = vpop.permute.xlu0 %2114
    %2116 = vrot.lane.b32.xlu0 %v1733, 96
    %v2117 = vpop.permute.xlu0 %2116
    %2118 = vrot.lane.b32.xlu0 %v1735, 96
    %v2119 = vpop.permute.xlu0 %2118
    %2120 = vrot.lane.b32.xlu0 %v1737, 96
    %v2121 = vpop.permute.xlu0 %2120
    %2122 = vrot.lane.b32.xlu0 %v1739, 96
    %v2123 = vpop.permute.xlu0 %2122
    %2124 = vrot.lane.b32.xlu0 %v1741, 96
    %v2125 = vpop.permute.xlu0 %2124
    %2126 = vrot.lane.b32.xlu0 %v1743, 96
    %v2127 = vpop.permute.xlu0 %2126
    %2128 = vrot.lane.b32.xlu0 %v1745, 96
    %v2129 = vpop.permute.xlu0 %2128
    %2130 = vrot.lane.b32.xlu0 %v1747, 96
    %v2131 = vpop.permute.xlu0 %2130
    %2132 = vrot.lane.b32.xlu0 %v1749, 96
    %v2133 = vpop.permute.xlu0 %2132
    %2134 = vrot.lane.b32.xlu0 %v1751, 96
    %v2135 = vpop.permute.xlu0 %2134
    %2136 = vrot.lane.b32.xlu0 %v1753, 96
    %v2137 = vpop.permute.xlu0 %2136
    %v2170 = vsel %vm652, %v2075, 0.0
    %2171 = vadd.xlane.f32.xlu0 %v2170
    %v2172 = vpop.xlane.xlu0 %2171
    %v2173 = vsel %vm652, %v2077, 0.0
    %2174 = vadd.xlane.f32.xlu0 %v2173
    %v2175 = vpop.xlane.xlu0 %2174
    %v2176 = vsel %vm652, %v2079, 0.0
    %2177 = vadd.xlane.f32.xlu0 %v2176
    %v2178 = vpop.xlane.xlu0 %2177
    %v2179 = vsel %vm652, %v2081, 0.0
    %2180 = vadd.xlane.f32.xlu0 %v2179
    %v2181 = vpop.xlane.xlu0 %2180
    %v2182 = vsel %vm652, %v2083, 0.0
    %2183 = vadd.xlane.f32.xlu0 %v2182
    %v2184 = vpop.xlane.xlu0 %2183
    %v2185 = vsel %vm652, %v2085, 0.0
    %2186 = vadd.xlane.f32.xlu0 %v2185
    %v2187 = vpop.xlane.xlu0 %2186
    %v2188 = vsel %vm652, %v2087, 0.0
    %2189 = vadd.xlane.f32.xlu0 %v2188
    %v2190 = vpop.xlane.xlu0 %2189
    %v2191 = vsel %vm652, %v2089, 0.0
    %2192 = vadd.xlane.f32.xlu0 %v2191
    %v2193 = vpop.xlane.xlu0 %2192
    %v2194 = vsel %vm652, %v2091, 0.0
    %2195 = vadd.xlane.f32.xlu0 %v2194
    %v2196 = vpop.xlane.xlu0 %2195
    %v2197 = vsel %vm652, %v2093, 0.0
    %2198 = vadd.xlane.f32.xlu0 %v2197
    %v2199 = vpop.xlane.xlu0 %2198
    %v2200 = vsel %vm652, %v2095, 0.0
    %2201 = vadd.xlane.f32.xlu0 %v2200
    %v2202 = vpop.xlane.xlu0 %2201
    %v2203 = vsel %vm652, %v2097, 0.0
    %2204 = vadd.xlane.f32.xlu0 %v2203
    %v2205 = vpop.xlane.xlu0 %2204
    %v2206 = vsel %vm652, %v2099, 0.0
    %2207 = vadd.xlane.f32.xlu0 %v2206
    %v2208 = vpop.xlane.xlu0 %2207
    %v2209 = vsel %vm652, %v2101, 0.0
    %2210 = vadd.xlane.f32.xlu0 %v2209
    %v2211 = vpop.xlane.xlu0 %2210
    %v2212 = vsel %vm652, %v2103, 0.0
    %2213 = vadd.xlane.f32.xlu0 %v2212
    %v2214 = vpop.xlane.xlu0 %2213
    %v2215 = vsel %vm652, %v2105, 0.0
    %2216 = vadd.xlane.f32.xlu0 %v2215
    %v2217 = vpop.xlane.xlu0 %2216
    %v2218 = vsel %vm652, %v2107, 0.0
    %2219 = vadd.xlane.f32.xlu0 %v2218
    %v2220 = vpop.xlane.xlu0 %2219
    %v2221 = vsel %vm652, %v2109, 0.0
    %2222 = vadd.xlane.f32.xlu0 %v2221
    %v2223 = vpop.xlane.xlu0 %2222
    %v2224 = vsel %vm652, %v2111, 0.0
    %2225 = vadd.xlane.f32.xlu0 %v2224
    %v2226 = vpop.xlane.xlu0 %2225
    %v2227 = vsel %vm652, %v2113, 0.0
    %2228 = vadd.xlane.f32.xlu0 %v2227
    %v2229 = vpop.xlane.xlu0 %2228
    %v2230 = vsel %vm652, %v2115, 0.0
    %2231 = vadd.xlane.f32.xlu0 %v2230
    %v2232 = vpop.xlane.xlu0 %2231
    %v2233 = vsel %vm652, %v2117, 0.0
    %2234 = vadd.xlane.f32.xlu0 %v2233
    %v2235 = vpop.xlane.xlu0 %2234
    %v2236 = vsel %vm652, %v2119, 0.0
    %2237 = vadd.xlane.f32.xlu0 %v2236
    %v2238 = vpop.xlane.xlu0 %2237
    %v2239 = vsel %vm652, %v2121, 0.0
    %2240 = vadd.xlane.f32.xlu0 %v2239
    %v2241 = vpop.xlane.xlu0 %2240
    %v2242 = vsel %vm652, %v2123, 0.0
    %2243 = vadd.xlane.f32.xlu0 %v2242
    %v2244 = vpop.xlane.xlu0 %2243
    %v2245 = vsel %vm652, %v2125, 0.0
    %2246 = vadd.xlane.f32.xlu0 %v2245
    %v2247 = vpop.xlane.xlu0 %2246
    %v2248 = vsel %vm652, %v2127, 0.0
    %2249 = vadd.xlane.f32.xlu0 %v2248
    %v2250 = vpop.xlane.xlu0 %2249
    %v2251 = vsel %vm652, %v2129, 0.0
    %2252 = vadd.xlane.f32.xlu0 %v2251
    %v2253 = vpop.xlane.xlu0 %2252
    %v2254 = vsel %vm652, %v2131, 0.0
    %2255 = vadd.xlane.f32.xlu0 %v2254
    %v2256 = vpop.xlane.xlu0 %2255
    %v2257 = vsel %vm652, %v2133, 0.0
    %2258 = vadd.xlane.f32.xlu0 %v2257
    %v2259 = vpop.xlane.xlu0 %2258
    %v2260 = vsel %vm652, %v2135, 0.0
    %2261 = vadd.xlane.f32.xlu0 %v2260
    %v2262 = vpop.xlane.xlu0 %2261
    %v2263 = vsel %vm652, %v2137, 0.0
    %2264 = vadd.xlane.f32.xlu0 %v2263
    %v2265 = vpop.xlane.xlu0 %2264
    %2266 = vrot.lane.b32.xlu0 %v1691, 80
    %v2267 = vpop.permute.xlu0 %2266
    %2268 = vrot.lane.b32.xlu0 %v1693, 80
    %v2269 = vpop.permute.xlu0 %2268
    %2270 = vrot.lane.b32.xlu0 %v1695, 80
    %v2271 = vpop.permute.xlu0 %2270
    %2272 = vrot.lane.b32.xlu0 %v1697, 80
    %v2273 = vpop.permute.xlu0 %2272
    %2274 = vrot.lane.b32.xlu0 %v1699, 80
    %v2275 = vpop.permute.xlu0 %2274
    %2276 = vrot.lane.b32.xlu0 %v1701, 80
    %v2277 = vpop.permute.xlu0 %2276
    %2278 = vrot.lane.b32.xlu0 %v1703, 80
    %v2279 = vpop.permute.xlu0 %2278
    %2280 = vrot.lane.b32.xlu0 %v1705, 80
    %v2281 = vpop.permute.xlu0 %2280
    %2282 = vrot.lane.b32.xlu0 %v1707, 80
    %v2283 = vpop.permute.xlu0 %2282
    %2284 = vrot.lane.b32.xlu0 %v1709, 80
    %v2285 = vpop.permute.xlu0 %2284
    %2286 = vrot.lane.b32.xlu0 %v1711, 80
    %v2287 = vpop.permute.xlu0 %2286
    %2288 = vrot.lane.b32.xlu0 %v1713, 80
    %v2289 = vpop.permute.xlu0 %2288
    %2290 = vrot.lane.b32.xlu0 %v1715, 80
    %v2291 = vpop.permute.xlu0 %2290
    %2292 = vrot.lane.b32.xlu0 %v1717, 80
    %v2293 = vpop.permute.xlu0 %2292
    %2294 = vrot.lane.b32.xlu0 %v1719, 80
    %v2295 = vpop.permute.xlu0 %2294
    %2296 = vrot.lane.b32.xlu0 %v1721, 80
    %v2297 = vpop.permute.xlu0 %2296
    %2298 = vrot.lane.b32.xlu0 %v1723, 80
    %v2299 = vpop.permute.xlu0 %2298
    %2300 = vrot.lane.b32.xlu0 %v1725, 80
    %v2301 = vpop.permute.xlu0 %2300
    %2302 = vrot.lane.b32.xlu0 %v1727, 80
    %v2303 = vpop.permute.xlu0 %2302
    %2304 = vrot.lane.b32.xlu0 %v1729, 80
    %v2305 = vpop.permute.xlu0 %2304
    %2306 = vrot.lane.b32.xlu0 %v1731, 80
    %v2307 = vpop.permute.xlu0 %2306
    %2308 = vrot.lane.b32.xlu0 %v1733, 80
    %v2309 = vpop.permute.xlu0 %2308
    %2310 = vrot.lane.b32.xlu0 %v1735, 80
    %v2311 = vpop.permute.xlu0 %2310
    %2312 = vrot.lane.b32.xlu0 %v1737, 80
    %v2313 = vpop.permute.xlu0 %2312
    %2314 = vrot.lane.b32.xlu0 %v1739, 80
    %v2315 = vpop.permute.xlu0 %2314
    %2316 = vrot.lane.b32.xlu0 %v1741, 80
    %v2317 = vpop.permute.xlu0 %2316
    %2318 = vrot.lane.b32.xlu0 %v1743, 80
    %v2319 = vpop.permute.xlu0 %2318
    %2320 = vrot.lane.b32.xlu0 %v1745, 80
    %v2321 = vpop.permute.xlu0 %2320
    %2322 = vrot.lane.b32.xlu0 %v1747, 80
    %v2323 = vpop.permute.xlu0 %2322
    %2324 = vrot.lane.b32.xlu0 %v1749, 80
    %v2325 = vpop.permute.xlu0 %2324
    %2326 = vrot.lane.b32.xlu0 %v1751, 80
    %v2327 = vpop.permute.xlu0 %2326
    %2328 = vrot.lane.b32.xlu0 %v1753, 80
    %v2329 = vpop.permute.xlu0 %2328
    %v2362 = vsel %vm652, %v2267, 0.0
    %2363 = vadd.xlane.f32.xlu0 %v2362
    %v2364 = vpop.xlane.xlu0 %2363
    %v2365 = vsel %vm652, %v2269, 0.0
    %2366 = vadd.xlane.f32.xlu0 %v2365
    %v2367 = vpop.xlane.xlu0 %2366
    %v2368 = vsel %vm652, %v2271, 0.0
    %2369 = vadd.xlane.f32.xlu0 %v2368
    %v2370 = vpop.xlane.xlu0 %2369
    %v2371 = vsel %vm652, %v2273, 0.0
    %2372 = vadd.xlane.f32.xlu0 %v2371
    %v2373 = vpop.xlane.xlu0 %2372
    %v2374 = vsel %vm652, %v2275, 0.0
    %2375 = vadd.xlane.f32.xlu0 %v2374
    %v2376 = vpop.xlane.xlu0 %2375
    %v2377 = vsel %vm652, %v2277, 0.0
    %2378 = vadd.xlane.f32.xlu0 %v2377
    %v2379 = vpop.xlane.xlu0 %2378
    %v2380 = vsel %vm652, %v2279, 0.0
    %2381 = vadd.xlane.f32.xlu0 %v2380
    %v2382 = vpop.xlane.xlu0 %2381
    %v2383 = vsel %vm652, %v2281, 0.0
    %2384 = vadd.xlane.f32.xlu0 %v2383
    %v2385 = vpop.xlane.xlu0 %2384
    %v2386 = vsel %vm652, %v2283, 0.0
    %2387 = vadd.xlane.f32.xlu0 %v2386
    %v2388 = vpop.xlane.xlu0 %2387
    %v2389 = vsel %vm652, %v2285, 0.0
    %2390 = vadd.xlane.f32.xlu0 %v2389
    %v2391 = vpop.xlane.xlu0 %2390
    %v2392 = vsel %vm652, %v2287, 0.0
    %2393 = vadd.xlane.f32.xlu0 %v2392
    %v2394 = vpop.xlane.xlu0 %2393
    %v2395 = vsel %vm652, %v2289, 0.0
    %2396 = vadd.xlane.f32.xlu0 %v2395
    %v2397 = vpop.xlane.xlu0 %2396
    %v2398 = vsel %vm652, %v2291, 0.0
    %2399 = vadd.xlane.f32.xlu0 %v2398
    %v2400 = vpop.xlane.xlu0 %2399
    %v2401 = vsel %vm652, %v2293, 0.0
    %2402 = vadd.xlane.f32.xlu0 %v2401
    %v2403 = vpop.xlane.xlu0 %2402
    %v2404 = vsel %vm652, %v2295, 0.0
    %2405 = vadd.xlane.f32.xlu0 %v2404
    %v2406 = vpop.xlane.xlu0 %2405
    %v2407 = vsel %vm652, %v2297, 0.0
    %2408 = vadd.xlane.f32.xlu0 %v2407
    %v2409 = vpop.xlane.xlu0 %2408
    %v2410 = vsel %vm652, %v2299, 0.0
    %2411 = vadd.xlane.f32.xlu0 %v2410
    %v2412 = vpop.xlane.xlu0 %2411
    %v2413 = vsel %vm652, %v2301, 0.0
    %2414 = vadd.xlane.f32.xlu0 %v2413
    %v2415 = vpop.xlane.xlu0 %2414
    %v2416 = vsel %vm652, %v2303, 0.0
    %2417 = vadd.xlane.f32.xlu0 %v2416
    %v2418 = vpop.xlane.xlu0 %2417
    %v2419 = vsel %vm652, %v2305, 0.0
    %2420 = vadd.xlane.f32.xlu0 %v2419
    %v2421 = vpop.xlane.xlu0 %2420
    %v2422 = vsel %vm652, %v2307, 0.0
    %2423 = vadd.xlane.f32.xlu0 %v2422
    %v2424 = vpop.xlane.xlu0 %2423
    %v2425 = vsel %vm652, %v2309, 0.0
    %2426 = vadd.xlane.f32.xlu0 %v2425
    %v2427 = vpop.xlane.xlu0 %2426
    %v2428 = vsel %vm652, %v2311, 0.0
    %2429 = vadd.xlane.f32.xlu0 %v2428
    %v2430 = vpop.xlane.xlu0 %2429
    %v2431 = vsel %vm652, %v2313, 0.0
    %2432 = vadd.xlane.f32.xlu0 %v2431
    %v2433 = vpop.xlane.xlu0 %2432
    %v2434 = vsel %vm652, %v2315, 0.0
    %2435 = vadd.xlane.f32.xlu0 %v2434
    %v2436 = vpop.xlane.xlu0 %2435
    %v2437 = vsel %vm652, %v2317, 0.0
    %2438 = vadd.xlane.f32.xlu0 %v2437
    %v2439 = vpop.xlane.xlu0 %2438
    %v2440 = vsel %vm652, %v2319, 0.0
    %2441 = vadd.xlane.f32.xlu0 %v2440
    %v2442 = vpop.xlane.xlu0 %2441
    %v2443 = vsel %vm652, %v2321, 0.0
    %2444 = vadd.xlane.f32.xlu0 %v2443
    %v2445 = vpop.xlane.xlu0 %2444
    %v2446 = vsel %vm652, %v2323, 0.0
    %2447 = vadd.xlane.f32.xlu0 %v2446
    %v2448 = vpop.xlane.xlu0 %2447
    %v2449 = vsel %vm652, %v2325, 0.0
    %2450 = vadd.xlane.f32.xlu0 %v2449
    %v2451 = vpop.xlane.xlu0 %2450
    %v2452 = vsel %vm652, %v2327, 0.0
    %2453 = vadd.xlane.f32.xlu0 %v2452
    %v2454 = vpop.xlane.xlu0 %2453
    %v2455 = vsel %vm652, %v2329, 0.0
    %2456 = vadd.xlane.f32.xlu0 %v2455
    %v2457 = vpop.xlane.xlu0 %2456
    %2458 = vrot.lane.b32.xlu0 %v1691, 64
    %v2459 = vpop.permute.xlu0 %2458
    %2460 = vrot.lane.b32.xlu0 %v1693, 64
    %v2461 = vpop.permute.xlu0 %2460
    %2462 = vrot.lane.b32.xlu0 %v1695, 64
    %v2463 = vpop.permute.xlu0 %2462
    %2464 = vrot.lane.b32.xlu0 %v1697, 64
    %v2465 = vpop.permute.xlu0 %2464
    %2466 = vrot.lane.b32.xlu0 %v1699, 64
    %v2467 = vpop.permute.xlu0 %2466
    %2468 = vrot.lane.b32.xlu0 %v1701, 64
    %v2469 = vpop.permute.xlu0 %2468
    %2470 = vrot.lane.b32.xlu0 %v1703, 64
    %v2471 = vpop.permute.xlu0 %2470
    %2472 = vrot.lane.b32.xlu0 %v1705, 64
    %v2473 = vpop.permute.xlu0 %2472
    %2474 = vrot.lane.b32.xlu0 %v1707, 64
    %v2475 = vpop.permute.xlu0 %2474
    %2476 = vrot.lane.b32.xlu0 %v1709, 64
    %v2477 = vpop.permute.xlu0 %2476
    %2478 = vrot.lane.b32.xlu0 %v1711, 64
    %v2479 = vpop.permute.xlu0 %2478
    %2480 = vrot.lane.b32.xlu0 %v1713, 64
    %v2481 = vpop.permute.xlu0 %2480
    %2482 = vrot.lane.b32.xlu0 %v1715, 64
    %v2483 = vpop.permute.xlu0 %2482
    %2484 = vrot.lane.b32.xlu0 %v1717, 64
    %v2485 = vpop.permute.xlu0 %2484
    %2486 = vrot.lane.b32.xlu0 %v1719, 64
    %v2487 = vpop.permute.xlu0 %2486
    %2488 = vrot.lane.b32.xlu0 %v1721, 64
    %v2489 = vpop.permute.xlu0 %2488
    %2490 = vrot.lane.b32.xlu0 %v1723, 64
    %v2491 = vpop.permute.xlu0 %2490
    %2492 = vrot.lane.b32.xlu0 %v1725, 64
    %v2493 = vpop.permute.xlu0 %2492
    %2494 = vrot.lane.b32.xlu0 %v1727, 64
    %v2495 = vpop.permute.xlu0 %2494
    %2496 = vrot.lane.b32.xlu0 %v1729, 64
    %v2497 = vpop.permute.xlu0 %2496
    %2498 = vrot.lane.b32.xlu0 %v1731, 64
    %v2499 = vpop.permute.xlu0 %2498
    %2500 = vrot.lane.b32.xlu0 %v1733, 64
    %v2501 = vpop.permute.xlu0 %2500
    %2502 = vrot.lane.b32.xlu0 %v1735, 64
    %v2503 = vpop.permute.xlu0 %2502
    %2504 = vrot.lane.b32.xlu0 %v1737, 64
    %v2505 = vpop.permute.xlu0 %2504
    %2506 = vrot.lane.b32.xlu0 %v1739, 64
    %v2507 = vpop.permute.xlu0 %2506
    %2508 = vrot.lane.b32.xlu0 %v1741, 64
    %v2509 = vpop.permute.xlu0 %2508
    %2510 = vrot.lane.b32.xlu0 %v1743, 64
    %v2511 = vpop.permute.xlu0 %2510
    %2512 = vrot.lane.b32.xlu0 %v1745, 64
    %v2513 = vpop.permute.xlu0 %2512
    %2514 = vrot.lane.b32.xlu0 %v1747, 64
    %v2515 = vpop.permute.xlu0 %2514
    %2516 = vrot.lane.b32.xlu0 %v1749, 64
    %v2517 = vpop.permute.xlu0 %2516
    %2518 = vrot.lane.b32.xlu0 %v1751, 64
    %v2519 = vpop.permute.xlu0 %2518
    %2520 = vrot.lane.b32.xlu0 %v1753, 64
    %v2521 = vpop.permute.xlu0 %2520
    %v2554 = vsel %vm652, %v2459, 0.0
    %2555 = vadd.xlane.f32.xlu0 %v2554
    %v2556 = vpop.xlane.xlu0 %2555
    %v2557 = vsel %vm652, %v2461, 0.0
    %2558 = vadd.xlane.f32.xlu0 %v2557
    %v2559 = vpop.xlane.xlu0 %2558
    %v2560 = vsel %vm652, %v2463, 0.0
    %2561 = vadd.xlane.f32.xlu0 %v2560
    %v2562 = vpop.xlane.xlu0 %2561
    %v2563 = vsel %vm652, %v2465, 0.0
    %2564 = vadd.xlane.f32.xlu0 %v2563
    %v2565 = vpop.xlane.xlu0 %2564
    %v2566 = vsel %vm652, %v2467, 0.0
    %2567 = vadd.xlane.f32.xlu0 %v2566
    %v2568 = vpop.xlane.xlu0 %2567
    %v2569 = vsel %vm652, %v2469, 0.0
    %2570 = vadd.xlane.f32.xlu0 %v2569
    %v2571 = vpop.xlane.xlu0 %2570
    %v2572 = vsel %vm652, %v2471, 0.0
    %2573 = vadd.xlane.f32.xlu0 %v2572
    %v2574 = vpop.xlane.xlu0 %2573
    %v2575 = vsel %vm652, %v2473, 0.0
    %2576 = vadd.xlane.f32.xlu0 %v2575
    %v2577 = vpop.xlane.xlu0 %2576
    %v2578 = vsel %vm652, %v2475, 0.0
    %2579 = vadd.xlane.f32.xlu0 %v2578
    %v2580 = vpop.xlane.xlu0 %2579
    %v2581 = vsel %vm652, %v2477, 0.0
    %2582 = vadd.xlane.f32.xlu0 %v2581
    %v2583 = vpop.xlane.xlu0 %2582
    %v2584 = vsel %vm652, %v2479, 0.0
    %2585 = vadd.xlane.f32.xlu0 %v2584
    %v2586 = vpop.xlane.xlu0 %2585
    %v2587 = vsel %vm652, %v2481, 0.0
    %2588 = vadd.xlane.f32.xlu0 %v2587
    %v2589 = vpop.xlane.xlu0 %2588
    %v2590 = vsel %vm652, %v2483, 0.0
    %2591 = vadd.xlane.f32.xlu0 %v2590
    %v2592 = vpop.xlane.xlu0 %2591
    %v2593 = vsel %vm652, %v2485, 0.0
    %2594 = vadd.xlane.f32.xlu0 %v2593
    %v2595 = vpop.xlane.xlu0 %2594
    %v2596 = vsel %vm652, %v2487, 0.0
    %2597 = vadd.xlane.f32.xlu0 %v2596
    %v2598 = vpop.xlane.xlu0 %2597
    %v2599 = vsel %vm652, %v2489, 0.0
    %2600 = vadd.xlane.f32.xlu0 %v2599
    %v2601 = vpop.xlane.xlu0 %2600
    %v2602 = vsel %vm652, %v2491, 0.0
    %2603 = vadd.xlane.f32.xlu0 %v2602
    %v2604 = vpop.xlane.xlu0 %2603
    %v2605 = vsel %vm652, %v2493, 0.0
    %2606 = vadd.xlane.f32.xlu0 %v2605
    %v2607 = vpop.xlane.xlu0 %2606
    %v2608 = vsel %vm652, %v2495, 0.0
    %2609 = vadd.xlane.f32.xlu0 %v2608
    %v2610 = vpop.xlane.xlu0 %2609
    %v2611 = vsel %vm652, %v2497, 0.0
    %2612 = vadd.xlane.f32.xlu0 %v2611
    %v2613 = vpop.xlane.xlu0 %2612
    %v2614 = vsel %vm652, %v2499, 0.0
    %2615 = vadd.xlane.f32.xlu0 %v2614
    %v2616 = vpop.xlane.xlu0 %2615
    %v2617 = vsel %vm652, %v2501, 0.0
    %2618 = vadd.xlane.f32.xlu0 %v2617
    %v2619 = vpop.xlane.xlu0 %2618
    %v2620 = vsel %vm652, %v2503, 0.0
    %2621 = vadd.xlane.f32.xlu0 %v2620
    %v2622 = vpop.xlane.xlu0 %2621
    %v2623 = vsel %vm652, %v2505, 0.0
    %2624 = vadd.xlane.f32.xlu0 %v2623
    %v2625 = vpop.xlane.xlu0 %2624
    %v2626 = vsel %vm652, %v2507, 0.0
    %2627 = vadd.xlane.f32.xlu0 %v2626
    %v2628 = vpop.xlane.xlu0 %2627
    %v2629 = vsel %vm652, %v2509, 0.0
    %2630 = vadd.xlane.f32.xlu0 %v2629
    %v2631 = vpop.xlane.xlu0 %2630
    %v2632 = vsel %vm652, %v2511, 0.0
    %2633 = vadd.xlane.f32.xlu0 %v2632
    %v2634 = vpop.xlane.xlu0 %2633
    %v2635 = vsel %vm652, %v2513, 0.0
    %2636 = vadd.xlane.f32.xlu0 %v2635
    %v2637 = vpop.xlane.xlu0 %2636
    %v2638 = vsel %vm652, %v2515, 0.0
    %2639 = vadd.xlane.f32.xlu0 %v2638
    %v2640 = vpop.xlane.xlu0 %2639
    %v2641 = vsel %vm652, %v2517, 0.0
    %2642 = vadd.xlane.f32.xlu0 %v2641
    %v2643 = vpop.xlane.xlu0 %2642
    %v2644 = vsel %vm652, %v2519, 0.0
    %2645 = vadd.xlane.f32.xlu0 %v2644
    %v2646 = vpop.xlane.xlu0 %2645
    %v2647 = vsel %vm652, %v2521, 0.0
    %2648 = vadd.xlane.f32.xlu0 %v2647
    %v2649 = vpop.xlane.xlu0 %2648
    %2650 = vrot.lane.b32.xlu0 %v1691, 48
    %v2651 = vpop.permute.xlu0 %2650
    %2652 = vrot.lane.b32.xlu0 %v1693, 48
    %v2653 = vpop.permute.xlu0 %2652
    %2654 = vrot.lane.b32.xlu0 %v1695, 48
    %v2655 = vpop.permute.xlu0 %2654
    %2656 = vrot.lane.b32.xlu0 %v1697, 48
    %v2657 = vpop.permute.xlu0 %2656
    %2658 = vrot.lane.b32.xlu0 %v1699, 48
    %v2659 = vpop.permute.xlu0 %2658
    %2660 = vrot.lane.b32.xlu0 %v1701, 48
    %v2661 = vpop.permute.xlu0 %2660
    %2662 = vrot.lane.b32.xlu0 %v1703, 48
    %v2663 = vpop.permute.xlu0 %2662
    %2664 = vrot.lane.b32.xlu0 %v1705, 48
    %v2665 = vpop.permute.xlu0 %2664
    %2666 = vrot.lane.b32.xlu0 %v1707, 48
    %v2667 = vpop.permute.xlu0 %2666
    %2668 = vrot.lane.b32.xlu0 %v1709, 48
    %v2669 = vpop.permute.xlu0 %2668
    %2670 = vrot.lane.b32.xlu0 %v1711, 48
    %v2671 = vpop.permute.xlu0 %2670
    %2672 = vrot.lane.b32.xlu0 %v1713, 48
    %v2673 = vpop.permute.xlu0 %2672
    %2674 = vrot.lane.b32.xlu0 %v1715, 48
    %v2675 = vpop.permute.xlu0 %2674
    %2676 = vrot.lane.b32.xlu0 %v1717, 48
    %v2677 = vpop.permute.xlu0 %2676
    %2678 = vrot.lane.b32.xlu0 %v1719, 48
    %v2679 = vpop.permute.xlu0 %2678
    %2680 = vrot.lane.b32.xlu0 %v1721, 48
    %v2681 = vpop.permute.xlu0 %2680
    %2682 = vrot.lane.b32.xlu0 %v1723, 48
    %v2683 = vpop.permute.xlu0 %2682
    %2684 = vrot.lane.b32.xlu0 %v1725, 48
    %v2685 = vpop.permute.xlu0 %2684
    %2686 = vrot.lane.b32.xlu0 %v1727, 48
    %v2687 = vpop.permute.xlu0 %2686
    %2688 = vrot.lane.b32.xlu0 %v1729, 48
    %v2689 = vpop.permute.xlu0 %2688
    %2690 = vrot.lane.b32.xlu0 %v1731, 48
    %v2691 = vpop.permute.xlu0 %2690
    %2692 = vrot.lane.b32.xlu0 %v1733, 48
    %v2693 = vpop.permute.xlu0 %2692
    %2694 = vrot.lane.b32.xlu0 %v1735, 48
    %v2695 = vpop.permute.xlu0 %2694
    %2696 = vrot.lane.b32.xlu0 %v1737, 48
    %v2697 = vpop.permute.xlu0 %2696
    %2698 = vrot.lane.b32.xlu0 %v1739, 48
    %v2699 = vpop.permute.xlu0 %2698
    %2700 = vrot.lane.b32.xlu0 %v1741, 48
    %v2701 = vpop.permute.xlu0 %2700
    %2702 = vrot.lane.b32.xlu0 %v1743, 48
    %v2703 = vpop.permute.xlu0 %2702
    %2704 = vrot.lane.b32.xlu0 %v1745, 48
    %v2705 = vpop.permute.xlu0 %2704
    %2706 = vrot.lane.b32.xlu0 %v1747, 48
    %v2707 = vpop.permute.xlu0 %2706
    %2708 = vrot.lane.b32.xlu0 %v1749, 48
    %v2709 = vpop.permute.xlu0 %2708
    %2710 = vrot.lane.b32.xlu0 %v1751, 48
    %v2711 = vpop.permute.xlu0 %2710
    %2712 = vrot.lane.b32.xlu0 %v1753, 48
    %v2713 = vpop.permute.xlu0 %2712
    %v2746 = vsel %vm652, %v2651, 0.0
    %2747 = vadd.xlane.f32.xlu0 %v2746
    %v2748 = vpop.xlane.xlu0 %2747
    %v2749 = vsel %vm652, %v2653, 0.0
    %2750 = vadd.xlane.f32.xlu0 %v2749
    %v2751 = vpop.xlane.xlu0 %2750
    %v2752 = vsel %vm652, %v2655, 0.0
    %2753 = vadd.xlane.f32.xlu0 %v2752
    %v2754 = vpop.xlane.xlu0 %2753
    %v2755 = vsel %vm652, %v2657, 0.0
    %2756 = vadd.xlane.f32.xlu0 %v2755
    %v2757 = vpop.xlane.xlu0 %2756
    %v2758 = vsel %vm652, %v2659, 0.0
    %2759 = vadd.xlane.f32.xlu0 %v2758
    %v2760 = vpop.xlane.xlu0 %2759
    %v2761 = vsel %vm652, %v2661, 0.0
    %2762 = vadd.xlane.f32.xlu0 %v2761
    %v2763 = vpop.xlane.xlu0 %2762
    %v2764 = vsel %vm652, %v2663, 0.0
    %2765 = vadd.xlane.f32.xlu0 %v2764
    %v2766 = vpop.xlane.xlu0 %2765
    %v2767 = vsel %vm652, %v2665, 0.0
    %2768 = vadd.xlane.f32.xlu0 %v2767
    %v2769 = vpop.xlane.xlu0 %2768
    %v2770 = vsel %vm652, %v2667, 0.0
    %2771 = vadd.xlane.f32.xlu0 %v2770
    %v2772 = vpop.xlane.xlu0 %2771
    %v2773 = vsel %vm652, %v2669, 0.0
    %2774 = vadd.xlane.f32.xlu0 %v2773
    %v2775 = vpop.xlane.xlu0 %2774
    %v2776 = vsel %vm652, %v2671, 0.0
    %2777 = vadd.xlane.f32.xlu0 %v2776
    %v2778 = vpop.xlane.xlu0 %2777
    %v2779 = vsel %vm652, %v2673, 0.0
    %2780 = vadd.xlane.f32.xlu0 %v2779
    %v2781 = vpop.xlane.xlu0 %2780
    %v2782 = vsel %vm652, %v2675, 0.0
    %2783 = vadd.xlane.f32.xlu0 %v2782
    %v2784 = vpop.xlane.xlu0 %2783
    %v2785 = vsel %vm652, %v2677, 0.0
    %2786 = vadd.xlane.f32.xlu0 %v2785
    %v2787 = vpop.xlane.xlu0 %2786
    %v2788 = vsel %vm652, %v2679, 0.0
    %2789 = vadd.xlane.f32.xlu0 %v2788
    %v2790 = vpop.xlane.xlu0 %2789
    %v2791 = vsel %vm652, %v2681, 0.0
    %2792 = vadd.xlane.f32.xlu0 %v2791
    %v2793 = vpop.xlane.xlu0 %2792
    %v2794 = vsel %vm652, %v2683, 0.0
    %2795 = vadd.xlane.f32.xlu0 %v2794
    %v2796 = vpop.xlane.xlu0 %2795
    %v2797 = vsel %vm652, %v2685, 0.0
    %2798 = vadd.xlane.f32.xlu0 %v2797
    %v2799 = vpop.xlane.xlu0 %2798
    %v2800 = vsel %vm652, %v2687, 0.0
    %2801 = vadd.xlane.f32.xlu0 %v2800
    %v2802 = vpop.xlane.xlu0 %2801
    %v2803 = vsel %vm652, %v2689, 0.0
    %2804 = vadd.xlane.f32.xlu0 %v2803
    %v2805 = vpop.xlane.xlu0 %2804
    %v2806 = vsel %vm652, %v2691, 0.0
    %2807 = vadd.xlane.f32.xlu0 %v2806
    %v2808 = vpop.xlane.xlu0 %2807
    %v2809 = vsel %vm652, %v2693, 0.0
    %2810 = vadd.xlane.f32.xlu0 %v2809
    %v2811 = vpop.xlane.xlu0 %2810
    %v2812 = vsel %vm652, %v2695, 0.0
    %2813 = vadd.xlane.f32.xlu0 %v2812
    %v2814 = vpop.xlane.xlu0 %2813
    %v2815 = vsel %vm652, %v2697, 0.0
    %2816 = vadd.xlane.f32.xlu0 %v2815
    %v2817 = vpop.xlane.xlu0 %2816
    %v2818 = vsel %vm652, %v2699, 0.0
    %2819 = vadd.xlane.f32.xlu0 %v2818
    %v2820 = vpop.xlane.xlu0 %2819
    %v2821 = vsel %vm652, %v2701, 0.0
    %2822 = vadd.xlane.f32.xlu0 %v2821
    %v2823 = vpop.xlane.xlu0 %2822
    %v2824 = vsel %vm652, %v2703, 0.0
    %2825 = vadd.xlane.f32.xlu0 %v2824
    %v2826 = vpop.xlane.xlu0 %2825
    %v2827 = vsel %vm652, %v2705, 0.0
    %2828 = vadd.xlane.f32.xlu0 %v2827
    %v2829 = vpop.xlane.xlu0 %2828
    %v2830 = vsel %vm652, %v2707, 0.0
    %2831 = vadd.xlane.f32.xlu0 %v2830
    %v2832 = vpop.xlane.xlu0 %2831
    %v2833 = vsel %vm652, %v2709, 0.0
    %2834 = vadd.xlane.f32.xlu0 %v2833
    %v2835 = vpop.xlane.xlu0 %2834
    %v2836 = vsel %vm652, %v2711, 0.0
    %2837 = vadd.xlane.f32.xlu0 %v2836
    %v2838 = vpop.xlane.xlu0 %2837
    %v2839 = vsel %vm652, %v2713, 0.0
    %2840 = vadd.xlane.f32.xlu0 %v2839
    %v2841 = vpop.xlane.xlu0 %2840
    %2842 = vrot.lane.b32.xlu0 %v1691, 32
    %v2843 = vpop.permute.xlu0 %2842
    %2844 = vrot.lane.b32.xlu0 %v1693, 32
    %v2845 = vpop.permute.xlu0 %2844
    %2846 = vrot.lane.b32.xlu0 %v1695, 32
    %v2847 = vpop.permute.xlu0 %2846
    %2848 = vrot.lane.b32.xlu0 %v1697, 32
    %v2849 = vpop.permute.xlu0 %2848
    %2850 = vrot.lane.b32.xlu0 %v1699, 32
    %v2851 = vpop.permute.xlu0 %2850
    %2852 = vrot.lane.b32.xlu0 %v1701, 32
    %v2853 = vpop.permute.xlu0 %2852
    %2854 = vrot.lane.b32.xlu0 %v1703, 32
    %v2855 = vpop.permute.xlu0 %2854
    %2856 = vrot.lane.b32.xlu0 %v1705, 32
    %v2857 = vpop.permute.xlu0 %2856
    %2858 = vrot.lane.b32.xlu0 %v1707, 32
    %v2859 = vpop.permute.xlu0 %2858
    %2860 = vrot.lane.b32.xlu0 %v1709, 32
    %v2861 = vpop.permute.xlu0 %2860
    %2862 = vrot.lane.b32.xlu0 %v1711, 32
    %v2863 = vpop.permute.xlu0 %2862
    %2864 = vrot.lane.b32.xlu0 %v1713, 32
    %v2865 = vpop.permute.xlu0 %2864
    %2866 = vrot.lane.b32.xlu0 %v1715, 32
    %v2867 = vpop.permute.xlu0 %2866
    %2868 = vrot.lane.b32.xlu0 %v1717, 32
    %v2869 = vpop.permute.xlu0 %2868
    %2870 = vrot.lane.b32.xlu0 %v1719, 32
    %v2871 = vpop.permute.xlu0 %2870
    %2872 = vrot.lane.b32.xlu0 %v1721, 32
    %v2873 = vpop.permute.xlu0 %2872
    %2874 = vrot.lane.b32.xlu0 %v1723, 32
    %v2875 = vpop.permute.xlu0 %2874
    %2876 = vrot.lane.b32.xlu0 %v1725, 32
    %v2877 = vpop.permute.xlu0 %2876
    %2878 = vrot.lane.b32.xlu0 %v1727, 32
    %v2879 = vpop.permute.xlu0 %2878
    %2880 = vrot.lane.b32.xlu0 %v1729, 32
    %v2881 = vpop.permute.xlu0 %2880
    %2882 = vrot.lane.b32.xlu0 %v1731, 32
    %v2883 = vpop.permute.xlu0 %2882
    %2884 = vrot.lane.b32.xlu0 %v1733, 32
    %v2885 = vpop.permute.xlu0 %2884
    %2886 = vrot.lane.b32.xlu0 %v1735, 32
    %v2887 = vpop.permute.xlu0 %2886
    %2888 = vrot.lane.b32.xlu0 %v1737, 32
    %v2889 = vpop.permute.xlu0 %2888
    %2890 = vrot.lane.b32.xlu0 %v1739, 32
    %v2891 = vpop.permute.xlu0 %2890
    %2892 = vrot.lane.b32.xlu0 %v1741, 32
    %v2893 = vpop.permute.xlu0 %2892
    %2894 = vrot.lane.b32.xlu0 %v1743, 32
    %v2895 = vpop.permute.xlu0 %2894
    %2896 = vrot.lane.b32.xlu0 %v1745, 32
    %v2897 = vpop.permute.xlu0 %2896
    %2898 = vrot.lane.b32.xlu0 %v1747, 32
    %v2899 = vpop.permute.xlu0 %2898
    %2900 = vrot.lane.b32.xlu0 %v1749, 32
    %v2901 = vpop.permute.xlu0 %2900
    %2902 = vrot.lane.b32.xlu0 %v1751, 32
    %v2903 = vpop.permute.xlu0 %2902
    %2904 = vrot.lane.b32.xlu0 %v1753, 32
    %v2905 = vpop.permute.xlu0 %2904
    %v2938 = vsel %vm652, %v2843, 0.0
    %2939 = vadd.xlane.f32.xlu0 %v2938
    %v2940 = vpop.xlane.xlu0 %2939
    %v2941 = vsel %vm652, %v2845, 0.0
    %2942 = vadd.xlane.f32.xlu0 %v2941
    %v2943 = vpop.xlane.xlu0 %2942
    %v2944 = vsel %vm652, %v2847, 0.0
    %2945 = vadd.xlane.f32.xlu0 %v2944
    %v2946 = vpop.xlane.xlu0 %2945
    %v2947 = vsel %vm652, %v2849, 0.0
    %2948 = vadd.xlane.f32.xlu0 %v2947
    %v2949 = vpop.xlane.xlu0 %2948
    %v2950 = vsel %vm652, %v2851, 0.0
    %2951 = vadd.xlane.f32.xlu0 %v2950
    %v2952 = vpop.xlane.xlu0 %2951
    %v2953 = vsel %vm652, %v2853, 0.0
    %2954 = vadd.xlane.f32.xlu0 %v2953
    %v2955 = vpop.xlane.xlu0 %2954
    %v2956 = vsel %vm652, %v2855, 0.0
    %2957 = vadd.xlane.f32.xlu0 %v2956
    %v2958 = vpop.xlane.xlu0 %2957
    %v2959 = vsel %vm652, %v2857, 0.0
    %2960 = vadd.xlane.f32.xlu0 %v2959
    %v2961 = vpop.xlane.xlu0 %2960
    %v2962 = vsel %vm652, %v2859, 0.0
    %2963 = vadd.xlane.f32.xlu0 %v2962
    %v2964 = vpop.xlane.xlu0 %2963
    %v2965 = vsel %vm652, %v2861, 0.0
    %2966 = vadd.xlane.f32.xlu0 %v2965
    %v2967 = vpop.xlane.xlu0 %2966
    %v2968 = vsel %vm652, %v2863, 0.0
    %2969 = vadd.xlane.f32.xlu0 %v2968
    %v2970 = vpop.xlane.xlu0 %2969
    %v2971 = vsel %vm652, %v2865, 0.0
    %2972 = vadd.xlane.f32.xlu0 %v2971
    %v2973 = vpop.xlane.xlu0 %2972
    %v2974 = vsel %vm652, %v2867, 0.0
    %2975 = vadd.xlane.f32.xlu0 %v2974
    %v2976 = vpop.xlane.xlu0 %2975
    %v2977 = vsel %vm652, %v2869, 0.0
    %2978 = vadd.xlane.f32.xlu0 %v2977
    %v2979 = vpop.xlane.xlu0 %2978
    %v2980 = vsel %vm652, %v2871, 0.0
    %2981 = vadd.xlane.f32.xlu0 %v2980
    %v2982 = vpop.xlane.xlu0 %2981
    %v2983 = vsel %vm652, %v2873, 0.0
    %2984 = vadd.xlane.f32.xlu0 %v2983
    %v2985 = vpop.xlane.xlu0 %2984
    %v2986 = vsel %vm652, %v2875, 0.0
    %2987 = vadd.xlane.f32.xlu0 %v2986
    %v2988 = vpop.xlane.xlu0 %2987
    %v2989 = vsel %vm652, %v2877, 0.0
    %2990 = vadd.xlane.f32.xlu0 %v2989
    %v2991 = vpop.xlane.xlu0 %2990
    %v2992 = vsel %vm652, %v2879, 0.0
    %2993 = vadd.xlane.f32.xlu0 %v2992
    %v2994 = vpop.xlane.xlu0 %2993
    %v2995 = vsel %vm652, %v2881, 0.0
    %2996 = vadd.xlane.f32.xlu0 %v2995
    %v2997 = vpop.xlane.xlu0 %2996
    %v2998 = vsel %vm652, %v2883, 0.0
    %2999 = vadd.xlane.f32.xlu0 %v2998
    %v3000 = vpop.xlane.xlu0 %2999
    %v3001 = vsel %vm652, %v2885, 0.0
    %3002 = vadd.xlane.f32.xlu0 %v3001
    %v3003 = vpop.xlane.xlu0 %3002
    %v3004 = vsel %vm652, %v2887, 0.0
    %3005 = vadd.xlane.f32.xlu0 %v3004
    %v3006 = vpop.xlane.xlu0 %3005
    %v3007 = vsel %vm652, %v2889, 0.0
    %3008 = vadd.xlane.f32.xlu0 %v3007
    %v3009 = vpop.xlane.xlu0 %3008
    %v3010 = vsel %vm652, %v2891, 0.0
    %3011 = vadd.xlane.f32.xlu0 %v3010
    %v3012 = vpop.xlane.xlu0 %3011
    %v3013 = vsel %vm652, %v2893, 0.0
    %3014 = vadd.xlane.f32.xlu0 %v3013
    %v3015 = vpop.xlane.xlu0 %3014
    %v3016 = vsel %vm652, %v2895, 0.0
    %3017 = vadd.xlane.f32.xlu0 %v3016
    %v3018 = vpop.xlane.xlu0 %3017
    %v3019 = vsel %vm652, %v2897, 0.0
    %3020 = vadd.xlane.f32.xlu0 %v3019
    %v3021 = vpop.xlane.xlu0 %3020
    %v3022 = vsel %vm652, %v2899, 0.0
    %3023 = vadd.xlane.f32.xlu0 %v3022
    %v3024 = vpop.xlane.xlu0 %3023
    %v3025 = vsel %vm652, %v2901, 0.0
    %3026 = vadd.xlane.f32.xlu0 %v3025
    %v3027 = vpop.xlane.xlu0 %3026
    %v3028 = vsel %vm652, %v2903, 0.0
    %3029 = vadd.xlane.f32.xlu0 %v3028
    %v3030 = vpop.xlane.xlu0 %3029
    %v3031 = vsel %vm652, %v2905, 0.0
    %3032 = vadd.xlane.f32.xlu0 %v3031
    %v3033 = vpop.xlane.xlu0 %3032
    %3034 = vrot.lane.b32.xlu0 %v1691, 16
    %v3035 = vpop.permute.xlu0 %3034
    %3036 = vrot.lane.b32.xlu0 %v1693, 16
    %v3037 = vpop.permute.xlu0 %3036
    %3038 = vrot.lane.b32.xlu0 %v1695, 16
    %v3039 = vpop.permute.xlu0 %3038
    %3040 = vrot.lane.b32.xlu0 %v1697, 16
    %v3041 = vpop.permute.xlu0 %3040
    %3042 = vrot.lane.b32.xlu0 %v1699, 16
    %v3043 = vpop.permute.xlu0 %3042
    %3044 = vrot.lane.b32.xlu0 %v1701, 16
    %v3045 = vpop.permute.xlu0 %3044
    %3046 = vrot.lane.b32.xlu0 %v1703, 16
    %v3047 = vpop.permute.xlu0 %3046
    %3048 = vrot.lane.b32.xlu0 %v1705, 16
    %v3049 = vpop.permute.xlu0 %3048
    %3050 = vrot.lane.b32.xlu0 %v1707, 16
    %v3051 = vpop.permute.xlu0 %3050
    %3052 = vrot.lane.b32.xlu0 %v1709, 16
    %v3053 = vpop.permute.xlu0 %3052
    %3054 = vrot.lane.b32.xlu0 %v1711, 16
    %v3055 = vpop.permute.xlu0 %3054
    %3056 = vrot.lane.b32.xlu0 %v1713, 16
    %v3057 = vpop.permute.xlu0 %3056
    %3058 = vrot.lane.b32.xlu0 %v1715, 16
    %v3059 = vpop.permute.xlu0 %3058
    %3060 = vrot.lane.b32.xlu0 %v1717, 16
    %v3061 = vpop.permute.xlu0 %3060
    %3062 = vrot.lane.b32.xlu0 %v1719, 16
    %v3063 = vpop.permute.xlu0 %3062
    %3064 = vrot.lane.b32.xlu0 %v1721, 16
    %v3065 = vpop.permute.xlu0 %3064
    %3066 = vrot.lane.b32.xlu0 %v1723, 16
    %v3067 = vpop.permute.xlu0 %3066
    %3068 = vrot.lane.b32.xlu0 %v1725, 16
    %v3069 = vpop.permute.xlu0 %3068
    %3070 = vrot.lane.b32.xlu0 %v1727, 16
    %v3071 = vpop.permute.xlu0 %3070
    %3072 = vrot.lane.b32.xlu0 %v1729, 16
    %v3073 = vpop.permute.xlu0 %3072
    %3074 = vrot.lane.b32.xlu0 %v1731, 16
    %v3075 = vpop.permute.xlu0 %3074
    %3076 = vrot.lane.b32.xlu0 %v1733, 16
    %v3077 = vpop.permute.xlu0 %3076
    %3078 = vrot.lane.b32.xlu0 %v1735, 16
    %v3079 = vpop.permute.xlu0 %3078
    %3080 = vrot.lane.b32.xlu0 %v1737, 16
    %v3081 = vpop.permute.xlu0 %3080
    %3082 = vrot.lane.b32.xlu0 %v1739, 16
    %v3083 = vpop.permute.xlu0 %3082
    %3084 = vrot.lane.b32.xlu0 %v1741, 16
    %v3085 = vpop.permute.xlu0 %3084
    %3086 = vrot.lane.b32.xlu0 %v1743, 16
    %v3087 = vpop.permute.xlu0 %3086
    %3088 = vrot.lane.b32.xlu0 %v1745, 16
    %v3089 = vpop.permute.xlu0 %3088
    %3090 = vrot.lane.b32.xlu0 %v1747, 16
    %v3091 = vpop.permute.xlu0 %3090
    %3092 = vrot.lane.b32.xlu0 %v1749, 16
    %v3093 = vpop.permute.xlu0 %3092
    %3094 = vrot.lane.b32.xlu0 %v1751, 16
    %v3095 = vpop.permute.xlu0 %3094
    %3096 = vrot.lane.b32.xlu0 %v1753, 16
    %v3097 = vpop.permute.xlu0 %3096
    %v3130 = vsel %vm652, %v3035, 0.0
    %3131 = vadd.xlane.f32.xlu0 %v3130
    %v3132 = vpop.xlane.xlu0 %3131
    %v3133 = vsel %vm652, %v3037, 0.0
    %3134 = vadd.xlane.f32.xlu0 %v3133
    %v3135 = vpop.xlane.xlu0 %3134
    %v3136 = vsel %vm652, %v3039, 0.0
    %3137 = vadd.xlane.f32.xlu0 %v3136
    %v3138 = vpop.xlane.xlu0 %3137
    %v3139 = vsel %vm652, %v3041, 0.0
    %3140 = vadd.xlane.f32.xlu0 %v3139
    %v3141 = vpop.xlane.xlu0 %3140
    %v3142 = vsel %vm652, %v3043, 0.0
    %3143 = vadd.xlane.f32.xlu0 %v3142
    %v3144 = vpop.xlane.xlu0 %3143
    %v3145 = vsel %vm652, %v3045, 0.0
    %3146 = vadd.xlane.f32.xlu0 %v3145
    %v3147 = vpop.xlane.xlu0 %3146
    %v3148 = vsel %vm652, %v3047, 0.0
    %3149 = vadd.xlane.f32.xlu0 %v3148
    %v3150 = vpop.xlane.xlu0 %3149
    %v3151 = vsel %vm652, %v3049, 0.0
    %3152 = vadd.xlane.f32.xlu0 %v3151
    %v3153 = vpop.xlane.xlu0 %3152
    %v3154 = vsel %vm652, %v3051, 0.0
    %3155 = vadd.xlane.f32.xlu0 %v3154
    %v3156 = vpop.xlane.xlu0 %3155
    %v3157 = vsel %vm652, %v3053, 0.0
    %3158 = vadd.xlane.f32.xlu0 %v3157
    %v3159 = vpop.xlane.xlu0 %3158
    %v3160 = vsel %vm652, %v3055, 0.0
    %3161 = vadd.xlane.f32.xlu0 %v3160
    %v3162 = vpop.xlane.xlu0 %3161
    %v3163 = vsel %vm652, %v3057, 0.0
    %3164 = vadd.xlane.f32.xlu0 %v3163
    %v3165 = vpop.xlane.xlu0 %3164
    %v3166 = vsel %vm652, %v3059, 0.0
    %3167 = vadd.xlane.f32.xlu0 %v3166
    %v3168 = vpop.xlane.xlu0 %3167
    %v3169 = vsel %vm652, %v3061, 0.0
    %3170 = vadd.xlane.f32.xlu0 %v3169
    %v3171 = vpop.xlane.xlu0 %3170
    %v3172 = vsel %vm652, %v3063, 0.0
    %3173 = vadd.xlane.f32.xlu0 %v3172
    %v3174 = vpop.xlane.xlu0 %3173
    %v3175 = vsel %vm652, %v3065, 0.0
    %3176 = vadd.xlane.f32.xlu0 %v3175
    %v3177 = vpop.xlane.xlu0 %3176
    %v3178 = vsel %vm652, %v3067, 0.0
    %3179 = vadd.xlane.f32.xlu0 %v3178
    %v3180 = vpop.xlane.xlu0 %3179
    %v3181 = vsel %vm652, %v3069, 0.0
    %3182 = vadd.xlane.f32.xlu0 %v3181
    %v3183 = vpop.xlane.xlu0 %3182
    %v3184 = vsel %vm652, %v3071, 0.0
    %3185 = vadd.xlane.f32.xlu0 %v3184
    %v3186 = vpop.xlane.xlu0 %3185
    %v3187 = vsel %vm652, %v3073, 0.0
    %3188 = vadd.xlane.f32.xlu0 %v3187
    %v3189 = vpop.xlane.xlu0 %3188
    %v3190 = vsel %vm652, %v3075, 0.0
    %3191 = vadd.xlane.f32.xlu0 %v3190
    %v3192 = vpop.xlane.xlu0 %3191
    %v3193 = vsel %vm652, %v3077, 0.0
    %3194 = vadd.xlane.f32.xlu0 %v3193
    %v3195 = vpop.xlane.xlu0 %3194
    %v3196 = vsel %vm652, %v3079, 0.0
    %3197 = vadd.xlane.f32.xlu0 %v3196
    %v3198 = vpop.xlane.xlu0 %3197
    %v3199 = vsel %vm652, %v3081, 0.0
    %3200 = vadd.xlane.f32.xlu0 %v3199
    %v3201 = vpop.xlane.xlu0 %3200
    %v3202 = vsel %vm652, %v3083, 0.0
    %3203 = vadd.xlane.f32.xlu0 %v3202
    %v3204 = vpop.xlane.xlu0 %3203
    %v3205 = vsel %vm652, %v3085, 0.0
    %3206 = vadd.xlane.f32.xlu0 %v3205
    %v3207 = vpop.xlane.xlu0 %3206
    %v3208 = vsel %vm652, %v3087, 0.0
    %3209 = vadd.xlane.f32.xlu0 %v3208
    %v3210 = vpop.xlane.xlu0 %3209
    %v3211 = vsel %vm652, %v3089, 0.0
    %3212 = vadd.xlane.f32.xlu0 %v3211
    %v3213 = vpop.xlane.xlu0 %3212
    %v3214 = vsel %vm652, %v3091, 0.0
    %3215 = vadd.xlane.f32.xlu0 %v3214
    %v3216 = vpop.xlane.xlu0 %3215
    %v3217 = vsel %vm652, %v3093, 0.0
    %3218 = vadd.xlane.f32.xlu0 %v3217
    %v3219 = vpop.xlane.xlu0 %3218
    %v3220 = vsel %vm652, %v3095, 0.0
    %3221 = vadd.xlane.f32.xlu0 %v3220
    %v3222 = vpop.xlane.xlu0 %3221
    %v3223 = vsel %vm652, %v3097, 0.0
    %3224 = vadd.xlane.f32.xlu0 %v3223
    %v3225 = vpop.xlane.xlu0 %3224
    %v3226 = vsel %vm652, %v1756, %v1980
    %v3227 = vsel %vm652, %v1759, %v1983
    %v3228 = vsel %vm652, %v1762, %v1986
    %v3229 = vsel %vm652, %v1765, %v1989
    %v3230 = vsel %vm652, %v1768, %v1992
    %v3231 = vsel %vm652, %v1771, %v1995
    %v3232 = vsel %vm652, %v1774, %v1998
    %v3233 = vsel %vm652, %v1777, %v2001
    %v3234 = vsel %vm652, %v1780, %v2004
    %v3235 = vsel %vm652, %v1783, %v2007
    %v3236 = vsel %vm652, %v1786, %v2010
    %v3237 = vsel %vm652, %v1789, %v2013
    %v3238 = vsel %vm652, %v1792, %v2016
    %v3239 = vsel %vm652, %v1795, %v2019
    %v3240 = vsel %vm652, %v1798, %v2022
    %v3241 = vsel %vm652, %v1801, %v2025
    %v3242 = vsel %vm652, %v1804, %v2028
    %v3243 = vsel %vm652, %v1807, %v2031
    %v3244 = vsel %vm652, %v1810, %v2034
    %v3245 = vsel %vm652, %v1813, %v2037
    %v3246 = vsel %vm652, %v1816, %v2040
    %v3247 = vsel %vm652, %v1819, %v2043
    %v3248 = vsel %vm652, %v1822, %v2046
    %v3249 = vsel %vm652, %v1825, %v2049
    %v3250 = vsel %vm652, %v1828, %v2052
    %v3251 = vsel %vm652, %v1831, %v2055
    %v3252 = vsel %vm652, %v1834, %v2058
    %v3253 = vsel %vm652, %v1837, %v2061
    %v3254 = vsel %vm652, %v1840, %v2064
    %v3255 = vsel %vm652, %v1843, %v2067
    %v3256 = vsel %vm652, %v1846, %v2070
    %v3257 = vsel %vm652, %v1849, %v2073
    %v3258 = vsel %vm1460, %v3226, %v2172
    %v3259 = vsel %vm1460, %v3227, %v2175
    %v3260 = vsel %vm1460, %v3228, %v2178
    %v3261 = vsel %vm1460, %v3229, %v2181
    %v3262 = vsel %vm1460, %v3230, %v2184
    %v3263 = vsel %vm1460, %v3231, %v2187
    %v3264 = vsel %vm1460, %v3232, %v2190
    %v3265 = vsel %vm1460, %v3233, %v2193
    %v3266 = vsel %vm1460, %v3234, %v2196
    %v3267 = vsel %vm1460, %v3235, %v2199
    %v3268 = vsel %vm1460, %v3236, %v2202
    %v3269 = vsel %vm1460, %v3237, %v2205
    %v3270 = vsel %vm1460, %v3238, %v2208
    %v3271 = vsel %vm1460, %v3239, %v2211
    %v3272 = vsel %vm1460, %v3240, %v2214
    %v3273 = vsel %vm1460, %v3241, %v2217
    %v3274 = vsel %vm1460, %v3242, %v2220
    %v3275 = vsel %vm1460, %v3243, %v2223
    %v3276 = vsel %vm1460, %v3244, %v2226
    %v3277 = vsel %vm1460, %v3245, %v2229
    %v3278 = vsel %vm1460, %v3246, %v2232
    %v3279 = vsel %vm1460, %v3247, %v2235
    %v3280 = vsel %vm1460, %v3248, %v2238
    %v3281 = vsel %vm1460, %v3249, %v2241
    %v3282 = vsel %vm1460, %v3250, %v2244
    %v3283 = vsel %vm1460, %v3251, %v2247
    %v3284 = vsel %vm1460, %v3252, %v2250
    %v3285 = vsel %vm1460, %v3253, %v2253
    %v3286 = vsel %vm1460, %v3254, %v2256
    %v3287 = vsel %vm1460, %v3255, %v2259
    %v3288 = vsel %vm1460, %v3256, %v2262
    %v3289 = vsel %vm1460, %v3257, %v2265
    %v3290 = vsel %vm1493, %v3258, %v2364
    %v3291 = vsel %vm1493, %v3259, %v2367
    %v3292 = vsel %vm1493, %v3260, %v2370
    %v3293 = vsel %vm1493, %v3261, %v2373
    %v3294 = vsel %vm1493, %v3262, %v2376
    %v3295 = vsel %vm1493, %v3263, %v2379
    %v3296 = vsel %vm1493, %v3264, %v2382
    %v3297 = vsel %vm1493, %v3265, %v2385
    %v3298 = vsel %vm1493, %v3266, %v2388
    %v3299 = vsel %vm1493, %v3267, %v2391
    %v3300 = vsel %vm1493, %v3268, %v2394
    %v3301 = vsel %vm1493, %v3269, %v2397
    %v3302 = vsel %vm1493, %v3270, %v2400
    %v3303 = vsel %vm1493, %v3271, %v2403
    %v3304 = vsel %vm1493, %v3272, %v2406
    %v3305 = vsel %vm1493, %v3273, %v2409
    %v3306 = vsel %vm1493, %v3274, %v2412
    %v3307 = vsel %vm1493, %v3275, %v2415
    %v3308 = vsel %vm1493, %v3276, %v2418
    %v3309 = vsel %vm1493, %v3277, %v2421
    %v3310 = vsel %vm1493, %v3278, %v2424
    %v3311 = vsel %vm1493, %v3279, %v2427
    %v3312 = vsel %vm1493, %v3280, %v2430
    %v3313 = vsel %vm1493, %v3281, %v2433
    %v3314 = vsel %vm1493, %v3282, %v2436
    %v3315 = vsel %vm1493, %v3283, %v2439
    %v3316 = vsel %vm1493, %v3284, %v2442
    %v3317 = vsel %vm1493, %v3285, %v2445
    %v3318 = vsel %vm1493, %v3286, %v2448
    %v3319 = vsel %vm1493, %v3287, %v2451
    %v3320 = vsel %vm1493, %v3288, %v2454
    %v3321 = vsel %vm1493, %v3289, %v2457
    %v3322 = vsel %vm1526, %v3290, %v2556
    %v3323 = vsel %vm1526, %v3291, %v2559
    %v3324 = vsel %vm1526, %v3292, %v2562
    %v3325 = vsel %vm1526, %v3293, %v2565
    %v3326 = vsel %vm1526, %v3294, %v2568
    %v3327 = vsel %vm1526, %v3295, %v2571
    %v3328 = vsel %vm1526, %v3296, %v2574
    %v3329 = vsel %vm1526, %v3297, %v2577
    %v3330 = vsel %vm1526, %v3298, %v2580
    %v3331 = vsel %vm1526, %v3299, %v2583
    %v3332 = vsel %vm1526, %v3300, %v2586
    %v3333 = vsel %vm1526, %v3301, %v2589
    %v3334 = vsel %vm1526, %v3302, %v2592
    %v3335 = vsel %vm1526, %v3303, %v2595
    %v3336 = vsel %vm1526, %v3304, %v2598
    %v3337 = vsel %vm1526, %v3305, %v2601
    %v3338 = vsel %vm1526, %v3306, %v2604
    %v3339 = vsel %vm1526, %v3307, %v2607
    %v3340 = vsel %vm1526, %v3308, %v2610
    %v3341 = vsel %vm1526, %v3309, %v2613
    %v3342 = vsel %vm1526, %v3310, %v2616
    %v3343 = vsel %vm1526, %v3311, %v2619
    %v3344 = vsel %vm1526, %v3312, %v2622
    %v3345 = vsel %vm1526, %v3313, %v2625
    %v3346 = vsel %vm1526, %v3314, %v2628
    %v3347 = vsel %vm1526, %v3315, %v2631
    %v3348 = vsel %vm1526, %v3316, %v2634
    %v3349 = vsel %vm1526, %v3317, %v2637
    %v3350 = vsel %vm1526, %v3318, %v2640
    %v3351 = vsel %vm1526, %v3319, %v2643
    %v3352 = vsel %vm1526, %v3320, %v2646
    %v3353 = vsel %vm1526, %v3321, %v2649
    %v3354 = vsel %vm1559, %v3322, %v2748
    %v3355 = vsel %vm1559, %v3323, %v2751
    %v3356 = vsel %vm1559, %v3324, %v2754
    %v3357 = vsel %vm1559, %v3325, %v2757
    %v3358 = vsel %vm1559, %v3326, %v2760
    %v3359 = vsel %vm1559, %v3327, %v2763
    %v3360 = vsel %vm1559, %v3328, %v2766
    %v3361 = vsel %vm1559, %v3329, %v2769
    %v3362 = vsel %vm1559, %v3330, %v2772
    %v3363 = vsel %vm1559, %v3331, %v2775
    %v3364 = vsel %vm1559, %v3332, %v2778
    %v3365 = vsel %vm1559, %v3333, %v2781
    %v3366 = vsel %vm1559, %v3334, %v2784
    %v3367 = vsel %vm1559, %v3335, %v2787
    %v3368 = vsel %vm1559, %v3336, %v2790
    %v3369 = vsel %vm1559, %v3337, %v2793
    %v3370 = vsel %vm1559, %v3338, %v2796
    %v3371 = vsel %vm1559, %v3339, %v2799
    %v3372 = vsel %vm1559, %v3340, %v2802
    %v3373 = vsel %vm1559, %v3341, %v2805
    %v3374 = vsel %vm1559, %v3342, %v2808
    %v3375 = vsel %vm1559, %v3343, %v2811
    %v3376 = vsel %vm1559, %v3344, %v2814
    %v3377 = vsel %vm1559, %v3345, %v2817
    %v3378 = vsel %vm1559, %v3346, %v2820
    %v3379 = vsel %vm1559, %v3347, %v2823
    %v3380 = vsel %vm1559, %v3348, %v2826
    %v3381 = vsel %vm1559, %v3349, %v2829
    %v3382 = vsel %vm1559, %v3350, %v2832
    %v3383 = vsel %vm1559, %v3351, %v2835
    %v3384 = vsel %vm1559, %v3352, %v2838
    %v3385 = vsel %vm1559, %v3353, %v2841
    %v3386 = vsel %vm1592, %v3354, %v2940
    %v3387 = vsel %vm1592, %v3355, %v2943
    %v3388 = vsel %vm1592, %v3356, %v2946
    %v3389 = vsel %vm1592, %v3357, %v2949
    %v3390 = vsel %vm1592, %v3358, %v2952
    %v3391 = vsel %vm1592, %v3359, %v2955
    %v3392 = vsel %vm1592, %v3360, %v2958
    %v3393 = vsel %vm1592, %v3361, %v2961
    %v3394 = vsel %vm1592, %v3362, %v2964
    %v3395 = vsel %vm1592, %v3363, %v2967
    %v3396 = vsel %vm1592, %v3364, %v2970
    %v3397 = vsel %vm1592, %v3365, %v2973
    %v3398 = vsel %vm1592, %v3366, %v2976
    %v3399 = vsel %vm1592, %v3367, %v2979
    %v3400 = vsel %vm1592, %v3368, %v2982
    %v3401 = vsel %vm1592, %v3369, %v2985
    %v3402 = vsel %vm1592, %v3370, %v2988
    %v3403 = vsel %vm1592, %v3371, %v2991
    %v3404 = vsel %vm1592, %v3372, %v2994
    %v3405 = vsel %vm1592, %v3373, %v2997
    %v3406 = vsel %vm1592, %v3374, %v3000
    %v3407 = vsel %vm1592, %v3375, %v3003
    %v3408 = vsel %vm1592, %v3376, %v3006
    %v3409 = vsel %vm1592, %v3377, %v3009
    %v3410 = vsel %vm1592, %v3378, %v3012
    %v3411 = vsel %vm1592, %v3379, %v3015
    %v3412 = vsel %vm1592, %v3380, %v3018
    %v3413 = vsel %vm1592, %v3381, %v3021
    %v3414 = vsel %vm1592, %v3382, %v3024
    %v3415 = vsel %vm1592, %v3383, %v3027
    %v3416 = vsel %vm1592, %v3384, %v3030
    %v3417 = vsel %vm1592, %v3385, %v3033
    %v3418 = vsel %vm1625, %v3386, %v3132
    %v3419 = vsel %vm1625, %v3387, %v3135
    %v3420 = vsel %vm1625, %v3388, %v3138
    %v3421 = vsel %vm1625, %v3389, %v3141
    %v3422 = vsel %vm1625, %v3390, %v3144
    %v3423 = vsel %vm1625, %v3391, %v3147
    %v3424 = vsel %vm1625, %v3392, %v3150
    %v3425 = vsel %vm1625, %v3393, %v3153
    %v3426 = vsel %vm1625, %v3394, %v3156
    %v3427 = vsel %vm1625, %v3395, %v3159
    %v3428 = vsel %vm1625, %v3396, %v3162
    %v3429 = vsel %vm1625, %v3397, %v3165
    %v3430 = vsel %vm1625, %v3398, %v3168
    %v3431 = vsel %vm1625, %v3399, %v3171
    %v3432 = vsel %vm1625, %v3400, %v3174
    %v3433 = vsel %vm1625, %v3401, %v3177
    %v3434 = vsel %vm1625, %v3402, %v3180
    %v3435 = vsel %vm1625, %v3403, %v3183
    %v3436 = vsel %vm1625, %v3404, %v3186
    %v3437 = vsel %vm1625, %v3405, %v3189
    %v3438 = vsel %vm1625, %v3406, %v3192
    %v3439 = vsel %vm1625, %v3407, %v3195
    %v3440 = vsel %vm1625, %v3408, %v3198
    %v3441 = vsel %vm1625, %v3409, %v3201
    %v3442 = vsel %vm1625, %v3410, %v3204
    %v3443 = vsel %vm1625, %v3411, %v3207
    %v3444 = vsel %vm1625, %v3412, %v3210
    %v3445 = vsel %vm1625, %v3413, %v3213
    %v3446 = vsel %vm1625, %v3414, %v3216
    %v3447 = vsel %vm1625, %v3415, %v3219
    %v3448 = vsel %vm1625, %v3416, %v3222
    %v3449 = vsel %vm1625, %v3417, %v3225
    %v3450 = vrcp.pop %v3418
    %v3451 = vmul.f32 %v3418, %v3450
    %v3452 = vsub.f32 1.0, %v3451
    %v3453 = vmul.f32 %v3450, %v3452
    %v3454 = vadd.f32 %v3450, %v3453
    %vm3455 = vweird.f32 %v3418
    %vm3456 = vweird.f32 %v3450
    %vm3457 = vmor %vm3455, %vm3456
    %v3458 = vsel %vm3457, %v3450, %v3454
    %v3459 = vand.u32 2147483647, %v3418
    %vm3460 = vcmp.eq.f32.partialorder %v3459, 8.507059e+37
    %v3461 = vand.u32 %v3418, 2147483648
    %v3462 = vor.u32 1.1754944e-38, %v3461
    %v3463 = vsel %vm3460, %v3462, %v3458
    %v3464 = vmul.f32 %v1691, %v3463
    %v3465 = vrcp.pop %v3419
    %v3466 = vmul.f32 %v3419, %v3465
    %v3467 = vsub.f32 1.0, %v3466
    %v3468 = vmul.f32 %v3465, %v3467
    %v3469 = vadd.f32 %v3465, %v3468
    %vm3470 = vweird.f32 %v3419
    %vm3471 = vweird.f32 %v3465
    %vm3472 = vmor %vm3470, %vm3471
    %v3473 = vsel %vm3472, %v3465, %v3469
    %v3474 = vand.u32 2147483647, %v3419
    %vm3475 = vcmp.eq.f32.partialorder %v3474, 8.507059e+37
    %v3476 = vand.u32 %v3419, 2147483648
    %v3477 = vor.u32 1.1754944e-38, %v3476
    %v3478 = vsel %vm3475, %v3477, %v3473
    %v3479 = vmul.f32 %v1693, %v3478
    %v3480 = vrcp.pop %v3420
    %v3481 = vmul.f32 %v3420, %v3480
    %v3482 = vsub.f32 1.0, %v3481
    %v3483 = vmul.f32 %v3480, %v3482
    %v3484 = vadd.f32 %v3480, %v3483
    %vm3485 = vweird.f32 %v3420
    %vm3486 = vweird.f32 %v3480
    %vm3487 = vmor %vm3485, %vm3486
    %v3488 = vsel %vm3487, %v3480, %v3484
    %v3489 = vand.u32 2147483647, %v3420
    %vm3490 = vcmp.eq.f32.partialorder %v3489, 8.507059e+37
    %v3491 = vand.u32 %v3420, 2147483648
    %v3492 = vor.u32 1.1754944e-38, %v3491
    %v3493 = vsel %vm3490, %v3492, %v3488
    %v3494 = vmul.f32 %v1695, %v3493
    %v3495 = vrcp.pop %v3421
    %v3496 = vmul.f32 %v3421, %v3495
    %v3497 = vsub.f32 1.0, %v3496
    %v3498 = vmul.f32 %v3495, %v3497
    %v3499 = vadd.f32 %v3495, %v3498
    %vm3500 = vweird.f32 %v3421
    %vm3501 = vweird.f32 %v3495
    %vm3502 = vmor %vm3500, %vm3501
    %v3503 = vsel %vm3502, %v3495, %v3499
    %v3504 = vand.u32 2147483647, %v3421
    %vm3505 = vcmp.eq.f32.partialorder %v3504, 8.507059e+37
    %v3506 = vand.u32 %v3421, 2147483648
    %v3507 = vor.u32 1.1754944e-38, %v3506
    %v3508 = vsel %vm3505, %v3507, %v3503
    %v3509 = vmul.f32 %v1697, %v3508
    %v3510 = vrcp.pop %v3422
    %v3511 = vmul.f32 %v3422, %v3510
    %v3512 = vsub.f32 1.0, %v3511
    %v3513 = vmul.f32 %v3510, %v3512
    %v3514 = vadd.f32 %v3510, %v3513
    %vm3515 = vweird.f32 %v3422
    %vm3516 = vweird.f32 %v3510
    %vm3517 = vmor %vm3515, %vm3516
    %v3518 = vsel %vm3517, %v3510, %v3514
    %v3519 = vand.u32 2147483647, %v3422
    %vm3520 = vcmp.eq.f32.partialorder %v3519, 8.507059e+37
    %v3521 = vand.u32 %v3422, 2147483648
    %v3522 = vor.u32 1.1754944e-38, %v3521
    %v3523 = vsel %vm3520, %v3522, %v3518
    %v3524 = vmul.f32 %v1699, %v3523
    %v3525 = vrcp.pop %v3423
    %v3526 = vmul.f32 %v3423, %v3525
    %v3527 = vsub.f32 1.0, %v3526
    %v3528 = vmul.f32 %v3525, %v3527
    %v3529 = vadd.f32 %v3525, %v3528
    %vm3530 = vweird.f32 %v3423
    %vm3531 = vweird.f32 %v3525
    %vm3532 = vmor %vm3530, %vm3531
    %v3533 = vsel %vm3532, %v3525, %v3529
    %v3534 = vand.u32 2147483647, %v3423
    %vm3535 = vcmp.eq.f32.partialorder %v3534, 8.507059e+37
    %v3536 = vand.u32 %v3423, 2147483648
    %v3537 = vor.u32 1.1754944e-38, %v3536
    %v3538 = vsel %vm3535, %v3537, %v3533
    %v3539 = vmul.f32 %v1701, %v3538
    %v3540 = vrcp.pop %v3424
    %v3541 = vmul.f32 %v3424, %v3540
    %v3542 = vsub.f32 1.0, %v3541
    %v3543 = vmul.f32 %v3540, %v3542
    %v3544 = vadd.f32 %v3540, %v3543
    %vm3545 = vweird.f32 %v3424
    %vm3546 = vweird.f32 %v3540
    %vm3547 = vmor %vm3545, %vm3546
    %v3548 = vsel %vm3547, %v3540, %v3544
    %v3549 = vand.u32 2147483647, %v3424
    %vm3550 = vcmp.eq.f32.partialorder %v3549, 8.507059e+37
    %v3551 = vand.u32 %v3424, 2147483648
    %v3552 = vor.u32 1.1754944e-38, %v3551
    %v3553 = vsel %vm3550, %v3552, %v3548
    %v3554 = vmul.f32 %v1703, %v3553
    %v3555 = vrcp.pop %v3425
    %v3556 = vmul.f32 %v3425, %v3555
    %v3557 = vsub.f32 1.0, %v3556
    %v3558 = vmul.f32 %v3555, %v3557
    %v3559 = vadd.f32 %v3555, %v3558
    %vm3560 = vweird.f32 %v3425
    %vm3561 = vweird.f32 %v3555
    %vm3562 = vmor %vm3560, %vm3561
    %v3563 = vsel %vm3562, %v3555, %v3559
    %v3564 = vand.u32 2147483647, %v3425
    %vm3565 = vcmp.eq.f32.partialorder %v3564, 8.507059e+37
    %v3566 = vand.u32 %v3425, 2147483648
    %v3567 = vor.u32 1.1754944e-38, %v3566
    %v3568 = vsel %vm3565, %v3567, %v3563
    %v3569 = vmul.f32 %v1705, %v3568
    %v3570 = vrcp.pop %v3426
    %v3571 = vmul.f32 %v3426, %v3570
    %v3572 = vsub.f32 1.0, %v3571
    %v3573 = vmul.f32 %v3570, %v3572
    %v3574 = vadd.f32 %v3570, %v3573
    %vm3575 = vweird.f32 %v3426
    %vm3576 = vweird.f32 %v3570
    %vm3577 = vmor %vm3575, %vm3576
    %v3578 = vsel %vm3577, %v3570, %v3574
    %v3579 = vand.u32 2147483647, %v3426
    %vm3580 = vcmp.eq.f32.partialorder %v3579, 8.507059e+37
    %v3581 = vand.u32 %v3426, 2147483648
    %v3582 = vor.u32 1.1754944e-38, %v3581
    %v3583 = vsel %vm3580, %v3582, %v3578
    %v3584 = vmul.f32 %v1707, %v3583
    %v3585 = vrcp.pop %v3427
    %v3586 = vmul.f32 %v3427, %v3585
    %v3587 = vsub.f32 1.0, %v3586
    %v3588 = vmul.f32 %v3585, %v3587
    %v3589 = vadd.f32 %v3585, %v3588
    %vm3590 = vweird.f32 %v3427
    %vm3591 = vweird.f32 %v3585
    %vm3592 = vmor %vm3590, %vm3591
    %v3593 = vsel %vm3592, %v3585, %v3589
    %v3594 = vand.u32 2147483647, %v3427
    %vm3595 = vcmp.eq.f32.partialorder %v3594, 8.507059e+37
    %v3596 = vand.u32 %v3427, 2147483648
    %v3597 = vor.u32 1.1754944e-38, %v3596
    %v3598 = vsel %vm3595, %v3597, %v3593
    %v3599 = vmul.f32 %v1709, %v3598
    %v3600 = vrcp.pop %v3428
    %v3601 = vmul.f32 %v3428, %v3600
    %v3602 = vsub.f32 1.0, %v3601
    %v3603 = vmul.f32 %v3600, %v3602
    %v3604 = vadd.f32 %v3600, %v3603
    %vm3605 = vweird.f32 %v3428
    %vm3606 = vweird.f32 %v3600
    %vm3607 = vmor %vm3605, %vm3606
    %v3608 = vsel %vm3607, %v3600, %v3604
    %v3609 = vand.u32 2147483647, %v3428
    %vm3610 = vcmp.eq.f32.partialorder %v3609, 8.507059e+37
    %v3611 = vand.u32 %v3428, 2147483648
    %v3612 = vor.u32 1.1754944e-38, %v3611
    %v3613 = vsel %vm3610, %v3612, %v3608
    %v3614 = vmul.f32 %v1711, %v3613
    %v3615 = vrcp.pop %v3429
    %v3616 = vmul.f32 %v3429, %v3615
    %v3617 = vsub.f32 1.0, %v3616
    %v3618 = vmul.f32 %v3615, %v3617
    %v3619 = vadd.f32 %v3615, %v3618
    %vm3620 = vweird.f32 %v3429
    %vm3621 = vweird.f32 %v3615
    %vm3622 = vmor %vm3620, %vm3621
    %v3623 = vsel %vm3622, %v3615, %v3619
    %v3624 = vand.u32 2147483647, %v3429
    %vm3625 = vcmp.eq.f32.partialorder %v3624, 8.507059e+37
    %v3626 = vand.u32 %v3429, 2147483648
    %v3627 = vor.u32 1.1754944e-38, %v3626
    %v3628 = vsel %vm3625, %v3627, %v3623
    %v3629 = vmul.f32 %v1713, %v3628
    %v3630 = vrcp.pop %v3430
    %v3631 = vmul.f32 %v3430, %v3630
    %v3632 = vsub.f32 1.0, %v3631
    %v3633 = vmul.f32 %v3630, %v3632
    %v3634 = vadd.f32 %v3630, %v3633
    %vm3635 = vweird.f32 %v3430
    %vm3636 = vweird.f32 %v3630
    %vm3637 = vmor %vm3635, %vm3636
    %v3638 = vsel %vm3637, %v3630, %v3634
    %v3639 = vand.u32 2147483647, %v3430
    %vm3640 = vcmp.eq.f32.partialorder %v3639, 8.507059e+37
    %v3641 = vand.u32 %v3430, 2147483648
    %v3642 = vor.u32 1.1754944e-38, %v3641
    %v3643 = vsel %vm3640, %v3642, %v3638
    %v3644 = vmul.f32 %v1715, %v3643
    %v3645 = vrcp.pop %v3431
    %v3646 = vmul.f32 %v3431, %v3645
    %v3647 = vsub.f32 1.0, %v3646
    %v3648 = vmul.f32 %v3645, %v3647
    %v3649 = vadd.f32 %v3645, %v3648
    %vm3650 = vweird.f32 %v3431
    %vm3651 = vweird.f32 %v3645
    %vm3652 = vmor %vm3650, %vm3651
    %v3653 = vsel %vm3652, %v3645, %v3649
    %v3654 = vand.u32 2147483647, %v3431
    %vm3655 = vcmp.eq.f32.partialorder %v3654, 8.507059e+37
    %v3656 = vand.u32 %v3431, 2147483648
    %v3657 = vor.u32 1.1754944e-38, %v3656
    %v3658 = vsel %vm3655, %v3657, %v3653
    %v3659 = vmul.f32 %v1717, %v3658
    %v3660 = vrcp.pop %v3432
    %v3661 = vmul.f32 %v3432, %v3660
    %v3662 = vsub.f32 1.0, %v3661
    %v3663 = vmul.f32 %v3660, %v3662
    %v3664 = vadd.f32 %v3660, %v3663
    %vm3665 = vweird.f32 %v3432
    %vm3666 = vweird.f32 %v3660
    %vm3667 = vmor %vm3665, %vm3666
    %v3668 = vsel %vm3667, %v3660, %v3664
    %v3669 = vand.u32 2147483647, %v3432
    %vm3670 = vcmp.eq.f32.partialorder %v3669, 8.507059e+37
    %v3671 = vand.u32 %v3432, 2147483648
    %v3672 = vor.u32 1.1754944e-38, %v3671
    %v3673 = vsel %vm3670, %v3672, %v3668
    %v3674 = vmul.f32 %v1719, %v3673
    %v3675 = vrcp.pop %v3433
    %v3676 = vmul.f32 %v3433, %v3675
    %v3677 = vsub.f32 1.0, %v3676
    %v3678 = vmul.f32 %v3675, %v3677
    %v3679 = vadd.f32 %v3675, %v3678
    %vm3680 = vweird.f32 %v3433
    %vm3681 = vweird.f32 %v3675
    %vm3682 = vmor %vm3680, %vm3681
    %v3683 = vsel %vm3682, %v3675, %v3679
    %v3684 = vand.u32 2147483647, %v3433
    %vm3685 = vcmp.eq.f32.partialorder %v3684, 8.507059e+37
    %v3686 = vand.u32 %v3433, 2147483648
    %v3687 = vor.u32 1.1754944e-38, %v3686
    %v3688 = vsel %vm3685, %v3687, %v3683
    %v3689 = vmul.f32 %v1721, %v3688
    %v3690 = vrcp.pop %v3434
    %v3691 = vmul.f32 %v3434, %v3690
    %v3692 = vsub.f32 1.0, %v3691
    %v3693 = vmul.f32 %v3690, %v3692
    %v3694 = vadd.f32 %v3690, %v3693
    %vm3695 = vweird.f32 %v3434
    %vm3696 = vweird.f32 %v3690
    %vm3697 = vmor %vm3695, %vm3696
    %v3698 = vsel %vm3697, %v3690, %v3694
    %v3699 = vand.u32 2147483647, %v3434
    %vm3700 = vcmp.eq.f32.partialorder %v3699, 8.507059e+37
    %v3701 = vand.u32 %v3434, 2147483648
    %v3702 = vor.u32 1.1754944e-38, %v3701
    %v3703 = vsel %vm3700, %v3702, %v3698
    %v3704 = vmul.f32 %v1723, %v3703
    %v3705 = vrcp.pop %v3435
    %v3706 = vmul.f32 %v3435, %v3705
    %v3707 = vsub.f32 1.0, %v3706
    %v3708 = vmul.f32 %v3705, %v3707
    %v3709 = vadd.f32 %v3705, %v3708
    %vm3710 = vweird.f32 %v3435
    %vm3711 = vweird.f32 %v3705
    %vm3712 = vmor %vm3710, %vm3711
    %v3713 = vsel %vm3712, %v3705, %v3709
    %v3714 = vand.u32 2147483647, %v3435
    %vm3715 = vcmp.eq.f32.partialorder %v3714, 8.507059e+37
    %v3716 = vand.u32 %v3435, 2147483648
    %v3717 = vor.u32 1.1754944e-38, %v3716
    %v3718 = vsel %vm3715, %v3717, %v3713
    %v3719 = vmul.f32 %v1725, %v3718
    %v3720 = vrcp.pop %v3436
    %v3721 = vmul.f32 %v3436, %v3720
    %v3722 = vsub.f32 1.0, %v3721
    %v3723 = vmul.f32 %v3720, %v3722
    %v3724 = vadd.f32 %v3720, %v3723
    %vm3725 = vweird.f32 %v3436
    %vm3726 = vweird.f32 %v3720
    %vm3727 = vmor %vm3725, %vm3726
    %v3728 = vsel %vm3727, %v3720, %v3724
    %v3729 = vand.u32 2147483647, %v3436
    %vm3730 = vcmp.eq.f32.partialorder %v3729, 8.507059e+37
    %v3731 = vand.u32 %v3436, 2147483648
    %v3732 = vor.u32 1.1754944e-38, %v3731
    %v3733 = vsel %vm3730, %v3732, %v3728
    %v3734 = vmul.f32 %v1727, %v3733
    %v3735 = vrcp.pop %v3437
    %v3736 = vmul.f32 %v3437, %v3735
    %v3737 = vsub.f32 1.0, %v3736
    %v3738 = vmul.f32 %v3735, %v3737
    %v3739 = vadd.f32 %v3735, %v3738
    %vm3740 = vweird.f32 %v3437
    %vm3741 = vweird.f32 %v3735
    %vm3742 = vmor %vm3740, %vm3741
    %v3743 = vsel %vm3742, %v3735, %v3739
    %v3744 = vand.u32 2147483647, %v3437
    %vm3745 = vcmp.eq.f32.partialorder %v3744, 8.507059e+37
    %v3746 = vand.u32 %v3437, 2147483648
    %v3747 = vor.u32 1.1754944e-38, %v3746
    %v3748 = vsel %vm3745, %v3747, %v3743
    %v3749 = vmul.f32 %v1729, %v3748
    %v3750 = vrcp.pop %v3438
    %v3751 = vmul.f32 %v3438, %v3750
    %v3752 = vsub.f32 1.0, %v3751
    %v3753 = vmul.f32 %v3750, %v3752
    %v3754 = vadd.f32 %v3750, %v3753
    %vm3755 = vweird.f32 %v3438
    %vm3756 = vweird.f32 %v3750
    %vm3757 = vmor %vm3755, %vm3756
    %v3758 = vsel %vm3757, %v3750, %v3754
    %v3759 = vand.u32 2147483647, %v3438
    %vm3760 = vcmp.eq.f32.partialorder %v3759, 8.507059e+37
    %v3761 = vand.u32 %v3438, 2147483648
    %v3762 = vor.u32 1.1754944e-38, %v3761
    %v3763 = vsel %vm3760, %v3762, %v3758
    %v3764 = vmul.f32 %v1731, %v3763
    %v3765 = vrcp.pop %v3439
    %v3766 = vmul.f32 %v3439, %v3765
    %v3767 = vsub.f32 1.0, %v3766
    %v3768 = vmul.f32 %v3765, %v3767
    %v3769 = vadd.f32 %v3765, %v3768
    %vm3770 = vweird.f32 %v3439
    %vm3771 = vweird.f32 %v3765
    %vm3772 = vmor %vm3770, %vm3771
    %v3773 = vsel %vm3772, %v3765, %v3769
    %v3774 = vand.u32 2147483647, %v3439
    %vm3775 = vcmp.eq.f32.partialorder %v3774, 8.507059e+37
    %v3776 = vand.u32 %v3439, 2147483648
    %v3777 = vor.u32 1.1754944e-38, %v3776
    %v3778 = vsel %vm3775, %v3777, %v3773
    %v3779 = vmul.f32 %v1733, %v3778
    %v3780 = vrcp.pop %v3440
    %v3781 = vmul.f32 %v3440, %v3780
    %v3782 = vsub.f32 1.0, %v3781
    %v3783 = vmul.f32 %v3780, %v3782
    %v3784 = vadd.f32 %v3780, %v3783
    %vm3785 = vweird.f32 %v3440
    %vm3786 = vweird.f32 %v3780
    %vm3787 = vmor %vm3785, %vm3786
    %v3788 = vsel %vm3787, %v3780, %v3784
    %v3789 = vand.u32 2147483647, %v3440
    %vm3790 = vcmp.eq.f32.partialorder %v3789, 8.507059e+37
    %v3791 = vand.u32 %v3440, 2147483648
    %v3792 = vor.u32 1.1754944e-38, %v3791
    %v3793 = vsel %vm3790, %v3792, %v3788
    %v3794 = vmul.f32 %v1735, %v3793
    %v3795 = vrcp.pop %v3441
    %v3796 = vmul.f32 %v3441, %v3795
    %v3797 = vsub.f32 1.0, %v3796
    %v3798 = vmul.f32 %v3795, %v3797
    %v3799 = vadd.f32 %v3795, %v3798
    %vm3800 = vweird.f32 %v3441
    %vm3801 = vweird.f32 %v3795
    %vm3802 = vmor %vm3800, %vm3801
    %v3803 = vsel %vm3802, %v3795, %v3799
    %v3804 = vand.u32 2147483647, %v3441
    %vm3805 = vcmp.eq.f32.partialorder %v3804, 8.507059e+37
    %v3806 = vand.u32 %v3441, 2147483648
    %v3807 = vor.u32 1.1754944e-38, %v3806
    %v3808 = vsel %vm3805, %v3807, %v3803
    %v3809 = vmul.f32 %v1737, %v3808
    %v3810 = vrcp.pop %v3442
    %v3811 = vmul.f32 %v3442, %v3810
    %v3812 = vsub.f32 1.0, %v3811
    %v3813 = vmul.f32 %v3810, %v3812
    %v3814 = vadd.f32 %v3810, %v3813
    %vm3815 = vweird.f32 %v3442
    %vm3816 = vweird.f32 %v3810
    %vm3817 = vmor %vm3815, %vm3816
    %v3818 = vsel %vm3817, %v3810, %v3814
    %v3819 = vand.u32 2147483647, %v3442
    %vm3820 = vcmp.eq.f32.partialorder %v3819, 8.507059e+37
    %v3821 = vand.u32 %v3442, 2147483648
    %v3822 = vor.u32 1.1754944e-38, %v3821
    %v3823 = vsel %vm3820, %v3822, %v3818
    %v3824 = vmul.f32 %v1739, %v3823
    %v3825 = vrcp.pop %v3443
    %v3826 = vmul.f32 %v3443, %v3825
    %v3827 = vsub.f32 1.0, %v3826
    %v3828 = vmul.f32 %v3825, %v3827
    %v3829 = vadd.f32 %v3825, %v3828
    %vm3830 = vweird.f32 %v3443
    %vm3831 = vweird.f32 %v3825
    %vm3832 = vmor %vm3830, %vm3831
    %v3833 = vsel %vm3832, %v3825, %v3829
    %v3834 = vand.u32 2147483647, %v3443
    %vm3835 = vcmp.eq.f32.partialorder %v3834, 8.507059e+37
    %v3836 = vand.u32 %v3443, 2147483648
    %v3837 = vor.u32 1.1754944e-38, %v3836
    %v3838 = vsel %vm3835, %v3837, %v3833
    %v3839 = vmul.f32 %v1741, %v3838
    %v3840 = vrcp.pop %v3444
    %v3841 = vmul.f32 %v3444, %v3840
    %v3842 = vsub.f32 1.0, %v3841
    %v3843 = vmul.f32 %v3840, %v3842
    %v3844 = vadd.f32 %v3840, %v3843
    %vm3845 = vweird.f32 %v3444
    %vm3846 = vweird.f32 %v3840
    %vm3847 = vmor %vm3845, %vm3846
    %v3848 = vsel %vm3847, %v3840, %v3844
    %v3849 = vand.u32 2147483647, %v3444
    %vm3850 = vcmp.eq.f32.partialorder %v3849, 8.507059e+37
    %v3851 = vand.u32 %v3444, 2147483648
    %v3852 = vor.u32 1.1754944e-38, %v3851
    %v3853 = vsel %vm3850, %v3852, %v3848
    %v3854 = vmul.f32 %v1743, %v3853
    %v3855 = vrcp.pop %v3445
    %v3856 = vmul.f32 %v3445, %v3855
    %v3857 = vsub.f32 1.0, %v3856
    %v3858 = vmul.f32 %v3855, %v3857
    %v3859 = vadd.f32 %v3855, %v3858
    %vm3860 = vweird.f32 %v3445
    %vm3861 = vweird.f32 %v3855
    %vm3862 = vmor %vm3860, %vm3861
    %v3863 = vsel %vm3862, %v3855, %v3859
    %v3864 = vand.u32 2147483647, %v3445
    %vm3865 = vcmp.eq.f32.partialorder %v3864, 8.507059e+37
    %v3866 = vand.u32 %v3445, 2147483648
    %v3867 = vor.u32 1.1754944e-38, %v3866
    %v3868 = vsel %vm3865, %v3867, %v3863
    %v3869 = vmul.f32 %v1745, %v3868
    %v3870 = vrcp.pop %v3446
    %v3871 = vmul.f32 %v3446, %v3870
    %v3872 = vsub.f32 1.0, %v3871
    %v3873 = vmul.f32 %v3870, %v3872
    %v3874 = vadd.f32 %v3870, %v3873
    %vm3875 = vweird.f32 %v3446
    %vm3876 = vweird.f32 %v3870
    %vm3877 = vmor %vm3875, %vm3876
    %v3878 = vsel %vm3877, %v3870, %v3874
    %v3879 = vand.u32 2147483647, %v3446
    %vm3880 = vcmp.eq.f32.partialorder %v3879, 8.507059e+37
    %v3881 = vand.u32 %v3446, 2147483648
    %v3882 = vor.u32 1.1754944e-38, %v3881
    %v3883 = vsel %vm3880, %v3882, %v3878
    %v3884 = vmul.f32 %v1747, %v3883
    %v3885 = vrcp.pop %v3447
    %v3886 = vmul.f32 %v3447, %v3885
    %v3887 = vsub.f32 1.0, %v3886
    %v3888 = vmul.f32 %v3885, %v3887
    %v3889 = vadd.f32 %v3885, %v3888
    %vm3890 = vweird.f32 %v3447
    %vm3891 = vweird.f32 %v3885
    %vm3892 = vmor %vm3890, %vm3891
    %v3893 = vsel %vm3892, %v3885, %v3889
    %v3894 = vand.u32 2147483647, %v3447
    %vm3895 = vcmp.eq.f32.partialorder %v3894, 8.507059e+37
    %v3896 = vand.u32 %v3447, 2147483648
    %v3897 = vor.u32 1.1754944e-38, %v3896
    %v3898 = vsel %vm3895, %v3897, %v3893
    %v3899 = vmul.f32 %v1749, %v3898
    %v3900 = vrcp.pop %v3448
    %v3901 = vmul.f32 %v3448, %v3900
    %v3902 = vsub.f32 1.0, %v3901
    %v3903 = vmul.f32 %v3900, %v3902
    %v3904 = vadd.f32 %v3900, %v3903
    %vm3905 = vweird.f32 %v3448
    %vm3906 = vweird.f32 %v3900
    %vm3907 = vmor %vm3905, %vm3906
    %v3908 = vsel %vm3907, %v3900, %v3904
    %v3909 = vand.u32 2147483647, %v3448
    %vm3910 = vcmp.eq.f32.partialorder %v3909, 8.507059e+37
    %v3911 = vand.u32 %v3448, 2147483648
    %v3912 = vor.u32 1.1754944e-38, %v3911
    %v3913 = vsel %vm3910, %v3912, %v3908
    %v3914 = vmul.f32 %v1751, %v3913
    %v3915 = vrcp.pop %v3449
    %v3916 = vmul.f32 %v3449, %v3915
    %v3917 = vsub.f32 1.0, %v3916
    %v3918 = vmul.f32 %v3915, %v3917
    %v3919 = vadd.f32 %v3915, %v3918
    %vm3920 = vweird.f32 %v3449
    %vm3921 = vweird.f32 %v3915
    %vm3922 = vmor %vm3920, %vm3921
    %v3923 = vsel %vm3922, %v3915, %v3919
    %v3924 = vand.u32 2147483647, %v3449
    %vm3925 = vcmp.eq.f32.partialorder %v3924, 8.507059e+37
    %v3926 = vand.u32 %v3449, 2147483648
    %v3927 = vor.u32 1.1754944e-38, %v3926
    %v3928 = vsel %vm3925, %v3927, %v3923
    %v3929 = vmul.f32 %v1753, %v3928
    %v3930 = vpack.c.bf16 %v3464, %v3464
    %v3931 = vpack.c.bf16 %v3479, %v3479
    %v3932 = vpack.c.bf16 %v3494, %v3494
    %v3933 = vpack.c.bf16 %v3509, %v3509
    %v3934 = vpack.c.bf16 %v3524, %v3524
    %v3935 = vpack.c.bf16 %v3539, %v3539
    %v3936 = vpack.c.bf16 %v3554, %v3554
    %v3937 = vpack.c.bf16 %v3569, %v3569
    %v3938 = vpack.c.bf16 %v3584, %v3584
    %v3939 = vpack.c.bf16 %v3599, %v3599
    %v3940 = vpack.c.bf16 %v3614, %v3614
    %v3941 = vpack.c.bf16 %v3629, %v3629
    %v3942 = vpack.c.bf16 %v3644, %v3644
    %v3943 = vpack.c.bf16 %v3659, %v3659
    %v3944 = vpack.c.bf16 %v3674, %v3674
    %v3945 = vpack.c.bf16 %v3689, %v3689
    %v3946 = vpack.c.bf16 %v3704, %v3704
    %v3947 = vpack.c.bf16 %v3719, %v3719
    %v3948 = vpack.c.bf16 %v3734, %v3734
    %v3949 = vpack.c.bf16 %v3749, %v3749
    %v3950 = vpack.c.bf16 %v3764, %v3764
    %v3951 = vpack.c.bf16 %v3779, %v3779
    %v3952 = vpack.c.bf16 %v3794, %v3794
    %v3953 = vpack.c.bf16 %v3809, %v3809
    %v3954 = vpack.c.bf16 %v3824, %v3824
    %v3955 = vpack.c.bf16 %v3839, %v3839
    %v3956 = vpack.c.bf16 %v3854, %v3854
    %v3957 = vpack.c.bf16 %v3869, %v3869
    %v3958 = vpack.c.bf16 %v3884, %v3884
    %v3959 = vpack.c.bf16 %v3899, %v3899
    %v3960 = vpack.c.bf16 %v3914, %v3914
    %v3961 = vpack.c.bf16 %v3929, %v3929
    %v3962 = vmax.f32 %v404, %v409
    %v3963 = vmax.f32 %v406, %v411
    %v3964 = vmax.f32 %v3962, %v414
    %v3965 = vmax.f32 %v3963, %v416
    %v3966 = vmax.f32 %v3964, %v419
    %v3967 = vmax.f32 %v3965, %v421
    %v3968 = vmax.f32 %v3966, %v424
    %v3969 = vmax.f32 %v3967, %v426
    %v3970 = vmax.f32 %v3968, %v429
    %v3971 = vmax.f32 %v3969, %v431
    %v3972 = vmax.f32 %v3970, %v434
    %v3973 = vmax.f32 %v3971, %v436
    %v3974 = vmax.f32 %v3972, %v439
    %v3975 = vmax.f32 %v3973, %v441
    %v3976 = vmax.f32 %v3974, %v3975
    %v3977 = vrot.slane %v3976, 4
    %v3978 = vmax.f32 %v3976, %v3977
    %v3979 = vrot.slane %v3978, 2
    %v3980 = vmax.f32 %v3978, %v3979
    %v3981 = vrot.slane %v3980, 1
    %v3982 = vmax.f32 %v3980, %v3981
    %v3983 = vmax.f32 %v444, %v449
    %v3984 = vmax.f32 %v446, %v451
    %v3985 = vmax.f32 %v3983, %v454
    %v3986 = vmax.f32 %v3984, %v456
    %v3987 = vmax.f32 %v3985, %v459
    %v3988 = vmax.f32 %v3986, %v461
    %v3989 = vmax.f32 %v3987, %v464
    %v3990 = vmax.f32 %v3988, %v466
    %v3991 = vmax.f32 %v3989, %v469
    %v3992 = vmax.f32 %v3990, %v471
    %v3993 = vmax.f32 %v3991, %v474
    %v3994 = vmax.f32 %v3992, %v476
    %v3995 = vmax.f32 %v3993, %v479
    %v3996 = vmax.f32 %v3994, %v481
    %v3997 = vmax.f32 %v3995, %v3996
    %v3998 = vrot.slane %v3997, 4
    %v3999 = vmax.f32 %v3997, %v3998
    %v4000 = vrot.slane %v3999, 2
    %v4001 = vmax.f32 %v3999, %v4000
    %v4002 = vrot.slane %v4001, 1
    %v4003 = vmax.f32 %v4001, %v4002
    %v4004 = vsub.f32 %v404, %v3982
    %v4005 = vsub.f32 %v406, %v3982
    %v4006 = vsub.f32 %v409, %v3982
    %v4007 = vsub.f32 %v411, %v3982
    %v4008 = vsub.f32 %v414, %v3982
    %v4009 = vsub.f32 %v416, %v3982
    %v4010 = vsub.f32 %v419, %v3982
    %v4011 = vsub.f32 %v421, %v3982
    %v4012 = vsub.f32 %v424, %v3982
    %v4013 = vsub.f32 %v426, %v3982
    %v4014 = vsub.f32 %v429, %v3982
    %v4015 = vsub.f32 %v431, %v3982
    %v4016 = vsub.f32 %v434, %v3982
    %v4017 = vsub.f32 %v436, %v3982
    %v4018 = vsub.f32 %v439, %v3982
    %v4019 = vsub.f32 %v441, %v3982
    %v4020 = vsub.f32 %v444, %v4003
    %v4021 = vsub.f32 %v446, %v4003
    %v4022 = vsub.f32 %v449, %v4003
    %v4023 = vsub.f32 %v451, %v4003
    %v4024 = vsub.f32 %v454, %v4003
    %v4025 = vsub.f32 %v456, %v4003
    %v4026 = vsub.f32 %v459, %v4003
    %v4027 = vsub.f32 %v461, %v4003
    %v4028 = vsub.f32 %v464, %v4003
    %v4029 = vsub.f32 %v466, %v4003
    %v4030 = vsub.f32 %v469, %v4003
    %v4031 = vsub.f32 %v471, %v4003
    %v4032 = vsub.f32 %v474, %v4003
    %v4033 = vsub.f32 %v476, %v4003
    %v4034 = vsub.f32 %v479, %v4003
    %v4035 = vsub.f32 %v481, %v4003
    %v4036 = vmul.f32 %v4004, 1.442695
    %v4037 = vpow.pop %v4036
    %v4038 = vmul.f32 %v4005, 1.442695
    %v4039 = vpow.pop %v4038
    %v4040 = vmul.f32 %v4006, 1.442695
    %v4041 = vpow.pop %v4040
    %v4042 = vmul.f32 %v4007, 1.442695
    %v4043 = vpow.pop %v4042
    %v4044 = vmul.f32 %v4008, 1.442695
    %v4045 = vpow.pop %v4044
    %v4046 = vmul.f32 %v4009, 1.442695
    %v4047 = vpow.pop %v4046
    %v4048 = vmul.f32 %v4010, 1.442695
    %v4049 = vpow.pop %v4048
    %v4050 = vmul.f32 %v4011, 1.442695
    %v4051 = vpow.pop %v4050
    %v4052 = vmul.f32 %v4012, 1.442695
    %v4053 = vpow.pop %v4052
    %v4054 = vmul.f32 %v4013, 1.442695
    %v4055 = vpow.pop %v4054
    %v4056 = vmul.f32 %v4014, 1.442695
    %v4057 = vpow.pop %v4056
    %v4058 = vmul.f32 %v4015, 1.442695
    %v4059 = vpow.pop %v4058
    %v4060 = vmul.f32 %v4016, 1.442695
    %v4061 = vpow.pop %v4060
    %v4062 = vmul.f32 %v4017, 1.442695
    %v4063 = vpow.pop %v4062
    %v4064 = vmul.f32 %v4018, 1.442695
    %v4065 = vpow.pop %v4064
    %v4066 = vmul.f32 %v4019, 1.442695
    %v4067 = vpow.pop %v4066
    %v4068 = vmul.f32 %v4020, 1.442695
    %v4069 = vpow.pop %v4068
    %v4070 = vmul.f32 %v4021, 1.442695
    %v4071 = vpow.pop %v4070
    %v4072 = vmul.f32 %v4022, 1.442695
    %v4073 = vpow.pop %v4072
    %v4074 = vmul.f32 %v4023, 1.442695
    %v4075 = vpow.pop %v4074
    %v4076 = vmul.f32 %v4024, 1.442695
    %v4077 = vpow.pop %v4076
    %v4078 = vmul.f32 %v4025, 1.442695
    %v4079 = vpow.pop %v4078
    %v4080 = vmul.f32 %v4026, 1.442695
    %v4081 = vpow.pop %v4080
    %v4082 = vmul.f32 %v4027, 1.442695
    %v4083 = vpow.pop %v4082
    %v4084 = vmul.f32 %v4028, 1.442695
    %v4085 = vpow.pop %v4084
    %v4086 = vmul.f32 %v4029, 1.442695
    %v4087 = vpow.pop %v4086
    %v4088 = vmul.f32 %v4030, 1.442695
    %v4089 = vpow.pop %v4088
    %v4090 = vmul.f32 %v4031, 1.442695
    %v4091 = vpow.pop %v4090
    %v4092 = vmul.f32 %v4032, 1.442695
    %v4093 = vpow.pop %v4092
    %v4094 = vmul.f32 %v4033, 1.442695
    %v4095 = vpow.pop %v4094
    %v4096 = vmul.f32 %v4034, 1.442695
    %v4097 = vpow.pop %v4096
    %v4098 = vmul.f32 %v4035, 1.442695
    %v4099 = vpow.pop %v4098
    %v4100 = vadd.f32 %v4037, %v4039
    %v4101 = vadd.f32 %v4100, %v4041
    %v4102 = vadd.f32 %v4101, %v4043
    %v4103 = vadd.f32 %v4102, %v4045
    %v4104 = vadd.f32 %v4103, %v4047
    %v4105 = vadd.f32 %v4104, %v4049
    %v4106 = vadd.f32 %v4105, %v4051
    %v4107 = vadd.f32 %v4106, %v4053
    %v4108 = vadd.f32 %v4107, %v4055
    %v4109 = vadd.f32 %v4108, %v4057
    %v4110 = vadd.f32 %v4109, %v4059
    %v4111 = vadd.f32 %v4110, %v4061
    %v4112 = vadd.f32 %v4111, %v4063
    %v4113 = vadd.f32 %v4112, %v4065
    %v4114 = vadd.f32 %v4113, %v4067
    %v4115 = vrot.slane %v4114, 4
    %v4116 = vadd.f32 %v4114, %v4115
    %v4117 = vrot.slane %v4116, 2
    %v4118 = vadd.f32 %v4116, %v4117
    %v4119 = vrot.slane %v4118, 1
    %v4120 = vadd.f32 %v4118, %v4119
    %v4121 = vadd.f32 %v4069, %v4071
    %v4122 = vadd.f32 %v4121, %v4073
    %v4123 = vadd.f32 %v4122, %v4075
    %v4124 = vadd.f32 %v4123, %v4077
    %v4125 = vadd.f32 %v4124, %v4079
    %v4126 = vadd.f32 %v4125, %v4081
    %v4127 = vadd.f32 %v4126, %v4083
    %v4128 = vadd.f32 %v4127, %v4085
    %v4129 = vadd.f32 %v4128, %v4087
    %v4130 = vadd.f32 %v4129, %v4089
    %v4131 = vadd.f32 %v4130, %v4091
    %v4132 = vadd.f32 %v4131, %v4093
    %v4133 = vadd.f32 %v4132, %v4095
    %v4134 = vadd.f32 %v4133, %v4097
    %v4135 = vadd.f32 %v4134, %v4099
    %v4136 = vrot.slane %v4135, 4
    %v4137 = vadd.f32 %v4135, %v4136
    %v4138 = vrot.slane %v4137, 2
    %v4139 = vadd.f32 %v4137, %v4138
    %v4140 = vrot.slane %v4139, 1
    %v4141 = vadd.f32 %v4139, %v4140
    %v4142 = vrcp.pop %v4120
    %v4143 = vmul.f32 %v4120, %v4142
    %v4144 = vsub.f32 1.0, %v4143
    %v4145 = vmul.f32 %v4142, %v4144
    %v4146 = vadd.f32 %v4142, %v4145
    %vm4147 = vweird.f32 %v4120
    %vm4148 = vweird.f32 %v4142
    %vm4149 = vmor %vm4147, %vm4148
    %v4150 = vsel %vm4149, %v4142, %v4146
    %v4151 = vand.u32 2147483647, %v4120
    %vm4152 = vcmp.eq.f32.partialorder %v4151, 8.507059e+37
    %v4153 = vand.u32 %v4120, 2147483648
    %v4154 = vor.u32 1.1754944e-38, %v4153
    %v4155 = vsel %vm4152, %v4154, %v4150
    %v4156 = vmul.f32 1.0, %v4155
    %v4157 = vrcp.pop %v4141
    %v4158 = vmul.f32 %v4141, %v4157
    %v4159 = vsub.f32 1.0, %v4158
    %v4160 = vmul.f32 %v4157, %v4159
    %v4161 = vadd.f32 %v4157, %v4160
    %vm4162 = vweird.f32 %v4141
    %vm4163 = vweird.f32 %v4157
    %vm4164 = vmor %vm4162, %vm4163
    %v4165 = vsel %vm4164, %v4157, %v4161
    %v4166 = vand.u32 2147483647, %v4141
    %vm4167 = vcmp.eq.f32.partialorder %v4166, 8.507059e+37
    %v4168 = vand.u32 %v4141, 2147483648
    %v4169 = vor.u32 1.1754944e-38, %v4168
    %v4170 = vsel %vm4167, %v4169, %v4165
    %v4171 = vmul.f32 1.0, %v4170
    %v4172 = vlaneseq
    %v4173 = vshrl.u32 %v4172, 7
    %v4174 = vadd.s32 %v4173, 8
    %v4175 = vadd.s32 %v4173, 16
    %v4176 = vadd.s32 %v4173, 24
    %v4177 = vadd.s32 %v4173, 32
    %v4178 = vadd.s32 %v4173, 40
    %v4179 = vadd.s32 %v4173, 48
    %v4180 = vadd.s32 %v4173, 56
    %v4181 = vadd.s32 %v4173, 64
    %v4182 = vadd.s32 %v4173, 72
    %v4183 = vadd.s32 %v4173, 80
    %v4184 = vadd.s32 %v4173, 88
    %v4185 = vadd.s32 %v4173, 96
    %v4186 = vadd.s32 %v4173, 104
    %v4187 = vadd.s32 %v4173, 112
    %v4188 = vadd.s32 %v4173, 120
    %v4189 = vlaneseq
    %v4190 = vand.u32 %v4189, 127
    %v4191 = vand.u32 %v4173, 4294967280
    %v4192 = vand.u32 %v4174, 4294967280
    %v4193 = vand.u32 %v4175, 4294967280
    %v4194 = vand.u32 %v4176, 4294967280
    %v4195 = vand.u32 %v4177, 4294967280
    %v4196 = vand.u32 %v4178, 4294967280
    %v4197 = vand.u32 %v4179, 4294967280
    %v4198 = vand.u32 %v4180, 4294967280
    %v4199 = vand.u32 %v4181, 4294967280
    %v4200 = vand.u32 %v4182, 4294967280
    %v4201 = vand.u32 %v4183, 4294967280
    %v4202 = vand.u32 %v4184, 4294967280
    %v4203 = vand.u32 %v4185, 4294967280
    %v4204 = vand.u32 %v4186, 4294967280
    %v4205 = vand.u32 %v4187, 4294967280
    %v4206 = vand.u32 %v4188, 4294967280
    %v4207 = vand.u32 %v4190, 4294967280
    %vm4208 = vcmp.eq.s32.totalorder %v4191, %v4207
    %vm4209 = vcmp.eq.s32.totalorder %v4192, %v4207
    %vm4210 = vcmp.eq.s32.totalorder %v4193, %v4207
    %vm4211 = vcmp.eq.s32.totalorder %v4194, %v4207
    %vm4212 = vcmp.eq.s32.totalorder %v4195, %v4207
    %vm4213 = vcmp.eq.s32.totalorder %v4196, %v4207
    %vm4214 = vcmp.eq.s32.totalorder %v4197, %v4207
    %vm4215 = vcmp.eq.s32.totalorder %v4198, %v4207
    %vm4216 = vcmp.eq.s32.totalorder %v4199, %v4207
    %vm4217 = vcmp.eq.s32.totalorder %v4200, %v4207
    %vm4218 = vcmp.eq.s32.totalorder %v4201, %v4207
    %vm4219 = vcmp.eq.s32.totalorder %v4202, %v4207
    %vm4220 = vcmp.eq.s32.totalorder %v4203, %v4207
    %vm4221 = vcmp.eq.s32.totalorder %v4204, %v4207
    %vm4222 = vcmp.eq.s32.totalorder %v4205, %v4207
    %vm4223 = vcmp.eq.s32.totalorder %v4206, %v4207
    %v4224 = vsel %vm4208, 1, 0
    %v4225 = vsel %vm4209, 1, 0
    %v4226 = vsel %vm4210, 1, 0
    %v4227 = vsel %vm4211, 1, 0
    %v4228 = vsel %vm4212, 1, 0
    %v4229 = vsel %vm4213, 1, 0
    %v4230 = vsel %vm4214, 1, 0
    %v4231 = vsel %vm4215, 1, 0
    %v4232 = vsel %vm4216, 1, 0
    %v4233 = vsel %vm4217, 1, 0
    %v4234 = vsel %vm4218, 1, 0
    %v4235 = vsel %vm4219, 1, 0
    %v4236 = vsel %vm4220, 1, 0
    %v4237 = vsel %vm4221, 1, 0
    %v4238 = vsel %vm4222, 1, 0
    %v4239 = vsel %vm4223, 1, 0
    %v4240 = vcvt.s32.f32 %v4224
    %v4241 = vcvt.s32.f32 %v4225
    %v4242 = vcvt.s32.f32 %v4226
    %v4243 = vcvt.s32.f32 %v4227
    %v4244 = vcvt.s32.f32 %v4228
    %v4245 = vcvt.s32.f32 %v4229
    %v4246 = vcvt.s32.f32 %v4230
    %v4247 = vcvt.s32.f32 %v4231
    %v4248 = vcvt.s32.f32 %v4232
    %v4249 = vcvt.s32.f32 %v4233
    %v4250 = vcvt.s32.f32 %v4234
    %v4251 = vcvt.s32.f32 %v4235
    %v4252 = vcvt.s32.f32 %v4236
    %v4253 = vcvt.s32.f32 %v4237
    %v4254 = vcvt.s32.f32 %v4238
    %v4255 = vcvt.s32.f32 %v4239
    %v4256 = vpack.c.bf16 %v4037, %v4037
    %v4257 = vpack.c.bf16 %v4039, %v4039
    %v4258 = vpack.c.bf16 %v4041, %v4041
    %v4259 = vpack.c.bf16 %v4043, %v4043
    %v4260 = vpack.c.bf16 %v4045, %v4045
    %v4261 = vpack.c.bf16 %v4047, %v4047
    %v4262 = vpack.c.bf16 %v4049, %v4049
    %v4263 = vpack.c.bf16 %v4051, %v4051
    %v4264 = vpack.c.bf16 %v4053, %v4053
    %v4265 = vpack.c.bf16 %v4055, %v4055
    %v4266 = vpack.c.bf16 %v4057, %v4057
    %v4267 = vpack.c.bf16 %v4059, %v4059
    %v4268 = vpack.c.bf16 %v4061, %v4061
    %v4269 = vpack.c.bf16 %v4063, %v4063
    %v4270 = vpack.c.bf16 %v4065, %v4065
    %v4271 = vpack.c.bf16 %v4067, %v4067
    %v4272 = vpack.c.bf16 %v4069, %v4069
    %v4273 = vpack.c.bf16 %v4071, %v4071
    %v4274 = vpack.c.bf16 %v4073, %v4073
    %v4275 = vpack.c.bf16 %v4075, %v4075
    %v4276 = vpack.c.bf16 %v4077, %v4077
    %v4277 = vpack.c.bf16 %v4079, %v4079
    %v4278 = vpack.c.bf16 %v4081, %v4081
    %v4279 = vpack.c.bf16 %v4083, %v4083
    %v4280 = vpack.c.bf16 %v4085, %v4085
    %v4281 = vpack.c.bf16 %v4087, %v4087
    %v4282 = vpack.c.bf16 %v4089, %v4089
    %v4283 = vpack.c.bf16 %v4091, %v4091
    %v4284 = vpack.c.bf16 %v4093, %v4093
    %v4285 = vpack.c.bf16 %v4095, %v4095
    %v4286 = vpack.c.bf16 %v4097, %v4097
    %v4287 = vpack.c.bf16 %v4099, %v4099
    %v4304 = vunpack.c.l.b16 %v4256
    %v4305 = vunpack.c.l.b16 %v4257
    %v4306 = vunpack.c.l.b16 %v4258
    %v4307 = vunpack.c.l.b16 %v4259
    %v4308 = vunpack.c.l.b16 %v4260
    %v4309 = vunpack.c.l.b16 %v4261
    %v4310 = vunpack.c.l.b16 %v4262
    %v4311 = vunpack.c.l.b16 %v4263
    %v4312 = vunpack.c.l.b16 %v4264
    %v4313 = vunpack.c.l.b16 %v4265
    %v4314 = vunpack.c.l.b16 %v4266
    %v4315 = vunpack.c.l.b16 %v4267
    %v4316 = vunpack.c.l.b16 %v4268
    %v4317 = vunpack.c.l.b16 %v4269
    %v4318 = vunpack.c.l.b16 %v4270
    %v4319 = vunpack.c.l.b16 %v4271
    %v4320 = vpack.c.b16 %v4305, %v4304
    %v4321 = vpack.c.b16 %v4307, %v4306
    %v4322 = vpack.c.b16 %v4309, %v4308
    %v4323 = vpack.c.b16 %v4311, %v4310
    %v4324 = vpack.c.b16 %v4313, %v4312
    %v4325 = vpack.c.b16 %v4315, %v4314
    %v4326 = vpack.c.b16 %v4317, %v4316
    %v4327 = vpack.c.b16 %v4319, %v4318
    %4336 = vxpose.xlu0.c.b16.start [1/8] %v4320, 128
    %4337 = vxpose.xlu0.c.b16.cont [2/8] %v4321, 128
    %4338 = vxpose.xlu0.c.b16.cont [3/8] %v4322, 128
    %4339 = vxpose.xlu0.c.b16.cont [4/8] %v4323, 128
    %4340 = vxpose.xlu0.c.b16.cont [5/8] %v4324, 128
    %4341 = vxpose.xlu0.c.b16.cont [6/8] %v4325, 128
    %4342 = vxpose.xlu0.c.b16.cont [7/8] %v4326, 128
    %4343 = vxpose.xlu0.c.b16.end [8/8] %v4327, 128
    %v4344 = vpop.trf.xlu0
    %v4345 = vpop.trf.xlu0
    %v4346 = vpop.trf.xlu0
    %v4347 = vpop.trf.xlu0
    %v4348 = vpop.trf.xlu0
    %v4349 = vpop.trf.xlu0
    %v4350 = vpop.trf.xlu0
    %v4351 = vpop.trf.xlu0
    %v4368 = vunpack.c.l.b16 %v620
    %v4369 = vunpack.c.l.b16 %v621
    %v4370 = vunpack.c.l.b16 %v622
    %v4371 = vunpack.c.l.b16 %v623
    %v4372 = vunpack.c.l.b16 %v624
    %v4373 = vunpack.c.l.b16 %v625
    %v4374 = vunpack.c.l.b16 %v626
    %v4375 = vunpack.c.l.b16 %v627
    %v4376 = vunpack.c.l.b16 %v628
    %v4377 = vunpack.c.l.b16 %v629
    %v4378 = vunpack.c.l.b16 %v630
    %v4379 = vunpack.c.l.b16 %v631
    %v4380 = vunpack.c.l.b16 %v632
    %v4381 = vunpack.c.l.b16 %v633
    %v4382 = vunpack.c.l.b16 %v634
    %v4383 = vunpack.c.l.b16 %v635
    %v4384 = vpack.c.b16 %v4369, %v4368
    %v4385 = vpack.c.b16 %v4371, %v4370
    %v4386 = vpack.c.b16 %v4373, %v4372
    %v4387 = vpack.c.b16 %v4375, %v4374
    %v4388 = vpack.c.b16 %v4377, %v4376
    %v4389 = vpack.c.b16 %v4379, %v4378
    %v4390 = vpack.c.b16 %v4381, %v4380
    %v4391 = vpack.c.b16 %v4383, %v4382
    %4400 = vmatpush.bf16.msra.mxu0 %v4391
    %4401 = vmatpush.bf16.msra.mxu0 %v4390
    %4402 = vmatpush.bf16.msra.mxu0 %v4389
    %4403 = vmatpush.bf16.msra.mxu0 %v4388
    %4404 = vmatpush.bf16.msra.mxu0 %v4387
    %4405 = vmatpush.bf16.msra.mxu0 %v4386
    %4406 = vmatpush.bf16.msra.mxu0 %v4385
    %4407 = vmatpush.bf16.msra.mxu0 %v4384
    %4408 = vmatmul.bf16.gmra.mxu0 %v4344
    %v4409 = vpop.f32.mrf.mxu0
    %v4410 = vadd.f32 0.0, %v4409
    %v4411 = vpop.f32.mrf.mxu0
    %v4412 = vadd.f32 0.0, %v4411
    %4413 = vmatmul.bf16.gmra.mxu0 %v4345
    %v4414 = vpop.f32.mrf.mxu0
    %v4415 = vadd.f32 0.0, %v4414
    %v4416 = vpop.f32.mrf.mxu0
    %v4417 = vadd.f32 0.0, %v4416
    %4418 = vmatmul.bf16.gmra.mxu0 %v4346
    %v4419 = vpop.f32.mrf.mxu0
    %v4420 = vadd.f32 0.0, %v4419
    %v4421 = vpop.f32.mrf.mxu0
    %v4422 = vadd.f32 0.0, %v4421
    %4423 = vmatmul.bf16.gmra.mxu0 %v4347
    %v4424 = vpop.f32.mrf.mxu0
    %v4425 = vadd.f32 0.0, %v4424
    %v4426 = vpop.f32.mrf.mxu0
    %v4427 = vadd.f32 0.0, %v4426
    %4428 = vmatmul.bf16.gmra.mxu0 %v4348
    %v4429 = vpop.f32.mrf.mxu0
    %v4430 = vadd.f32 0.0, %v4429
    %v4431 = vpop.f32.mrf.mxu0
    %v4432 = vadd.f32 0.0, %v4431
    %4433 = vmatmul.bf16.gmra.mxu0 %v4349
    %v4434 = vpop.f32.mrf.mxu0
    %v4435 = vadd.f32 0.0, %v4434
    %v4436 = vpop.f32.mrf.mxu0
    %v4437 = vadd.f32 0.0, %v4436
    %4438 = vmatmul.bf16.gmra.mxu0 %v4350
    %v4439 = vpop.f32.mrf.mxu0
    %v4440 = vadd.f32 0.0, %v4439
    %v4441 = vpop.f32.mrf.mxu0
    %v4442 = vadd.f32 0.0, %v4441
    %4443 = vmatmul.bf16.gmra.mxu0 %v4351
    %v4444 = vpop.f32.mrf.mxu0
    %v4445 = vadd.f32 0.0, %v4444
    %v4446 = vpop.f32.mrf.mxu0
    %v4447 = vadd.f32 0.0, %v4446
    %4448 = vdwg.mxu0
    %v4465 = vunpack.c.l.b16 %v4272
    %v4466 = vunpack.c.l.b16 %v4273
    %v4467 = vunpack.c.l.b16 %v4274
    %v4468 = vunpack.c.l.b16 %v4275
    %v4469 = vunpack.c.l.b16 %v4276
    %v4470 = vunpack.c.l.b16 %v4277
    %v4471 = vunpack.c.l.b16 %v4278
    %v4472 = vunpack.c.l.b16 %v4279
    %v4473 = vunpack.c.l.b16 %v4280
    %v4474 = vunpack.c.l.b16 %v4281
    %v4475 = vunpack.c.l.b16 %v4282
    %v4476 = vunpack.c.l.b16 %v4283
    %v4477 = vunpack.c.l.b16 %v4284
    %v4478 = vunpack.c.l.b16 %v4285
    %v4479 = vunpack.c.l.b16 %v4286
    %v4480 = vunpack.c.l.b16 %v4287
    %v4481 = vpack.c.b16 %v4466, %v4465
    %v4482 = vpack.c.b16 %v4468, %v4467
    %v4483 = vpack.c.b16 %v4470, %v4469
    %v4484 = vpack.c.b16 %v4472, %v4471
    %v4485 = vpack.c.b16 %v4474, %v4473
    %v4486 = vpack.c.b16 %v4476, %v4475
    %v4487 = vpack.c.b16 %v4478, %v4477
    %v4488 = vpack.c.b16 %v4480, %v4479
    %4497 = vxpose.xlu0.c.b16.start [1/8] %v4481, 128
    %4498 = vxpose.xlu0.c.b16.cont [2/8] %v4482, 128
    %4499 = vxpose.xlu0.c.b16.cont [3/8] %v4483, 128
    %4500 = vxpose.xlu0.c.b16.cont [4/8] %v4484, 128
    %4501 = vxpose.xlu0.c.b16.cont [5/8] %v4485, 128
    %4502 = vxpose.xlu0.c.b16.cont [6/8] %v4486, 128
    %4503 = vxpose.xlu0.c.b16.cont [7/8] %v4487, 128
    %4504 = vxpose.xlu0.c.b16.end [8/8] %v4488, 128
    %v4505 = vpop.trf.xlu0
    %v4506 = vpop.trf.xlu0
    %v4507 = vpop.trf.xlu0
    %v4508 = vpop.trf.xlu0
    %v4509 = vpop.trf.xlu0
    %v4510 = vpop.trf.xlu0
    %v4511 = vpop.trf.xlu0
    %v4512 = vpop.trf.xlu0
    %v4529 = vunpack.c.l.b16 %v636
    %v4530 = vunpack.c.l.b16 %v637
    %v4531 = vunpack.c.l.b16 %v638
    %v4532 = vunpack.c.l.b16 %v639
    %v4533 = vunpack.c.l.b16 %v640
    %v4534 = vunpack.c.l.b16 %v641
    %v4535 = vunpack.c.l.b16 %v642
    %v4536 = vunpack.c.l.b16 %v643
    %v4537 = vunpack.c.l.b16 %v644
    %v4538 = vunpack.c.l.b16 %v645
    %v4539 = vunpack.c.l.b16 %v646
    %v4540 = vunpack.c.l.b16 %v647
    %v4541 = vunpack.c.l.b16 %v648
    %v4542 = vunpack.c.l.b16 %v649
    %v4543 = vunpack.c.l.b16 %v650
    %v4544 = vunpack.c.l.b16 %v651
    %v4545 = vpack.c.b16 %v4530, %v4529
    %v4546 = vpack.c.b16 %v4532, %v4531
    %v4547 = vpack.c.b16 %v4534, %v4533
    %v4548 = vpack.c.b16 %v4536, %v4535
    %v4549 = vpack.c.b16 %v4538, %v4537
    %v4550 = vpack.c.b16 %v4540, %v4539
    %v4551 = vpack.c.b16 %v4542, %v4541
    %v4552 = vpack.c.b16 %v4544, %v4543
    %4561 = vmatpush.bf16.msra.mxu0 %v4552
    %4562 = vmatpush.bf16.msra.mxu0 %v4551
    %4563 = vmatpush.bf16.msra.mxu0 %v4550
    %4564 = vmatpush.bf16.msra.mxu0 %v4549
    %4565 = vmatpush.bf16.msra.mxu0 %v4548
    %4566 = vmatpush.bf16.msra.mxu0 %v4547
    %4567 = vmatpush.bf16.msra.mxu0 %v4546
    %4568 = vmatpush.bf16.msra.mxu0 %v4545
    %4569 = vmatmul.bf16.gmra.mxu0 %v4505
    %v4570 = vpop.f32.mrf.mxu0
    %v4571 = vadd.f32 0.0, %v4570
    %v4572 = vpop.f32.mrf.mxu0
    %v4573 = vadd.f32 0.0, %v4572
    %4574 = vmatmul.bf16.gmra.mxu0 %v4506
    %v4575 = vpop.f32.mrf.mxu0
    %v4576 = vadd.f32 0.0, %v4575
    %v4577 = vpop.f32.mrf.mxu0
    %v4578 = vadd.f32 0.0, %v4577
    %4579 = vmatmul.bf16.gmra.mxu0 %v4507
    %v4580 = vpop.f32.mrf.mxu0
    %v4581 = vadd.f32 0.0, %v4580
    %v4582 = vpop.f32.mrf.mxu0
    %v4583 = vadd.f32 0.0, %v4582
    %4584 = vmatmul.bf16.gmra.mxu0 %v4508
    %v4585 = vpop.f32.mrf.mxu0
    %v4586 = vadd.f32 0.0, %v4585
    %v4587 = vpop.f32.mrf.mxu0
    %v4588 = vadd.f32 0.0, %v4587
    %4589 = vmatmul.bf16.gmra.mxu0 %v4509
    %v4590 = vpop.f32.mrf.mxu0
    %v4591 = vadd.f32 0.0, %v4590
    %v4592 = vpop.f32.mrf.mxu0
    %v4593 = vadd.f32 0.0, %v4592
    %4594 = vmatmul.bf16.gmra.mxu0 %v4510
    %v4595 = vpop.f32.mrf.mxu0
    %v4596 = vadd.f32 0.0, %v4595
    %v4597 = vpop.f32.mrf.mxu0
    %v4598 = vadd.f32 0.0, %v4597
    %4599 = vmatmul.bf16.gmra.mxu0 %v4511
    %v4600 = vpop.f32.mrf.mxu0
    %v4601 = vadd.f32 0.0, %v4600
    %v4602 = vpop.f32.mrf.mxu0
    %v4603 = vadd.f32 0.0, %v4602
    %4604 = vmatmul.bf16.gmra.mxu0 %v4512
    %v4605 = vpop.f32.mrf.mxu0
    %v4606 = vadd.f32 0.0, %v4605
    %v4607 = vpop.f32.mrf.mxu0
    %v4608 = vadd.f32 0.0, %v4607
    %4609 = vdwg.mxu0
    %v4610 = vlaneseq
    %v4611 = vshrl.u32 %v4610, 7
    %4613 = vset.pattern.permute.xlu0 %v4611
    %4614 = vperm.xlu0 %4613, %v4156
    %v4615 = vpop.permute.xlu0 %4614
    %v4616 = vlaneseq
    %v4617 = vshrl.u32 %v4616, 7
    %v4618 = vadd.s32 %v4617, 8
    %4619 = vset.pattern.permute.xlu0 %v4618
    %4620 = vperm.xlu0 %4619, %v4156
    %v4621 = vpop.permute.xlu0 %4620
    %v4622 = vlaneseq
    %v4623 = vshrl.u32 %v4622, 7
    %v4624 = vadd.s32 %v4623, 16
    %4625 = vset.pattern.permute.xlu0 %v4624
    %4626 = vperm.xlu0 %4625, %v4156
    %v4627 = vpop.permute.xlu0 %4626
    %v4628 = vlaneseq
    %v4629 = vshrl.u32 %v4628, 7
    %v4630 = vadd.s32 %v4629, 24
    %4631 = vset.pattern.permute.xlu0 %v4630
    %4632 = vperm.xlu0 %4631, %v4156
    %v4633 = vpop.permute.xlu0 %4632
    %v4634 = vlaneseq
    %v4635 = vshrl.u32 %v4634, 7
    %v4636 = vadd.s32 %v4635, 32
    %4637 = vset.pattern.permute.xlu0 %v4636
    %4638 = vperm.xlu0 %4637, %v4156
    %v4639 = vpop.permute.xlu0 %4638
    %v4640 = vlaneseq
    %v4641 = vshrl.u32 %v4640, 7
    %v4642 = vadd.s32 %v4641, 40
    %4643 = vset.pattern.permute.xlu0 %v4642
    %4644 = vperm.xlu0 %4643, %v4156
    %v4645 = vpop.permute.xlu0 %4644
    %v4646 = vlaneseq
    %v4647 = vshrl.u32 %v4646, 7
    %v4648 = vadd.s32 %v4647, 48
    %4649 = vset.pattern.permute.xlu0 %v4648
    %4650 = vperm.xlu0 %4649, %v4156
    %v4651 = vpop.permute.xlu0 %4650
    %v4652 = vlaneseq
    %v4653 = vshrl.u32 %v4652, 7
    %v4654 = vadd.s32 %v4653, 56
    %4655 = vset.pattern.permute.xlu0 %v4654
    %4656 = vperm.xlu0 %4655, %v4156
    %v4657 = vpop.permute.xlu0 %4656
    %v4658 = vlaneseq
    %v4659 = vshrl.u32 %v4658, 7
    %v4660 = vadd.s32 %v4659, 64
    %4661 = vset.pattern.permute.xlu0 %v4660
    %4662 = vperm.xlu0 %4661, %v4156
    %v4663 = vpop.permute.xlu0 %4662
    %v4664 = vlaneseq
    %v4665 = vshrl.u32 %v4664, 7
    %v4666 = vadd.s32 %v4665, 72
    %4667 = vset.pattern.permute.xlu0 %v4666
    %4668 = vperm.xlu0 %4667, %v4156
    %v4669 = vpop.permute.xlu0 %4668
    %v4670 = vlaneseq
    %v4671 = vshrl.u32 %v4670, 7
    %v4672 = vadd.s32 %v4671, 80
    %4673 = vset.pattern.permute.xlu0 %v4672
    %4674 = vperm.xlu0 %4673, %v4156
    %v4675 = vpop.permute.xlu0 %4674
    %v4676 = vlaneseq
    %v4677 = vshrl.u32 %v4676, 7
    %v4678 = vadd.s32 %v4677, 88
    %4679 = vset.pattern.permute.xlu0 %v4678
    %4680 = vperm.xlu0 %4679, %v4156
    %v4681 = vpop.permute.xlu0 %4680
    %v4682 = vlaneseq
    %v4683 = vshrl.u32 %v4682, 7
    %v4684 = vadd.s32 %v4683, 96
    %4685 = vset.pattern.permute.xlu0 %v4684
    %4686 = vperm.xlu0 %4685, %v4156
    %v4687 = vpop.permute.xlu0 %4686
    %v4688 = vlaneseq
    %v4689 = vshrl.u32 %v4688, 7
    %v4690 = vadd.s32 %v4689, 104
    %4691 = vset.pattern.permute.xlu0 %v4690
    %4692 = vperm.xlu0 %4691, %v4156
    %v4693 = vpop.permute.xlu0 %4692
    %v4694 = vlaneseq
    %v4695 = vshrl.u32 %v4694, 7
    %v4696 = vadd.s32 %v4695, 112
    %4697 = vset.pattern.permute.xlu0 %v4696
    %4698 = vperm.xlu0 %4697, %v4156
    %v4699 = vpop.permute.xlu0 %4698
    %v4700 = vlaneseq
    %v4701 = vshrl.u32 %v4700, 7
    %v4702 = vadd.s32 %v4701, 120
    %4703 = vset.pattern.permute.xlu0 %v4702
    %4704 = vperm.xlu0 %4703, %v4156
    %v4705 = vpop.permute.xlu0 %4704
    %v4706 = vlaneseq
    %v4707 = vshrl.u32 %v4706, 7
    %4709 = vset.pattern.permute.xlu0 %v4707
    %4710 = vperm.xlu0 %4709, %v4171
    %v4711 = vpop.permute.xlu0 %4710
    %v4712 = vlaneseq
    %v4713 = vshrl.u32 %v4712, 7
    %v4714 = vadd.s32 %v4713, 8
    %4715 = vset.pattern.permute.xlu0 %v4714
    %4716 = vperm.xlu0 %4715, %v4171
    %v4717 = vpop.permute.xlu0 %4716
    %v4718 = vlaneseq
    %v4719 = vshrl.u32 %v4718, 7
    %v4720 = vadd.s32 %v4719, 16
    %4721 = vset.pattern.permute.xlu0 %v4720
    %4722 = vperm.xlu0 %4721, %v4171
    %v4723 = vpop.permute.xlu0 %4722
    %v4724 = vlaneseq
    %v4725 = vshrl.u32 %v4724, 7
    %v4726 = vadd.s32 %v4725, 24
    %4727 = vset.pattern.permute.xlu0 %v4726
    %4728 = vperm.xlu0 %4727, %v4171
    %v4729 = vpop.permute.xlu0 %4728
    %v4730 = vlaneseq
    %v4731 = vshrl.u32 %v4730, 7
    %v4732 = vadd.s32 %v4731, 32
    %4733 = vset.pattern.permute.xlu0 %v4732
    %4734 = vperm.xlu0 %4733, %v4171
    %v4735 = vpop.permute.xlu0 %4734
    %v4736 = vlaneseq
    %v4737 = vshrl.u32 %v4736, 7
    %v4738 = vadd.s32 %v4737, 40
    %4739 = vset.pattern.permute.xlu0 %v4738
    %4740 = vperm.xlu0 %4739, %v4171
    %v4741 = vpop.permute.xlu0 %4740
    %v4742 = vlaneseq
    %v4743 = vshrl.u32 %v4742, 7
    %v4744 = vadd.s32 %v4743, 48
    %4745 = vset.pattern.permute.xlu0 %v4744
    %4746 = vperm.xlu0 %4745, %v4171
    %v4747 = vpop.permute.xlu0 %4746
    %v4748 = vlaneseq
    %v4749 = vshrl.u32 %v4748, 7
    %v4750 = vadd.s32 %v4749, 56
    %4751 = vset.pattern.permute.xlu0 %v4750
    %4752 = vperm.xlu0 %4751, %v4171
    %v4753 = vpop.permute.xlu0 %4752
    %v4754 = vlaneseq
    %v4755 = vshrl.u32 %v4754, 7
    %v4756 = vadd.s32 %v4755, 64
    %4757 = vset.pattern.permute.xlu0 %v4756
    %4758 = vperm.xlu0 %4757, %v4171
    %v4759 = vpop.permute.xlu0 %4758
    %v4760 = vlaneseq
    %v4761 = vshrl.u32 %v4760, 7
    %v4762 = vadd.s32 %v4761, 72
    %4763 = vset.pattern.permute.xlu0 %v4762
    %4764 = vperm.xlu0 %4763, %v4171
    %v4765 = vpop.permute.xlu0 %4764
    %v4766 = vlaneseq
    %v4767 = vshrl.u32 %v4766, 7
    %v4768 = vadd.s32 %v4767, 80
    %4769 = vset.pattern.permute.xlu0 %v4768
    %4770 = vperm.xlu0 %4769, %v4171
    %v4771 = vpop.permute.xlu0 %4770
    %v4772 = vlaneseq
    %v4773 = vshrl.u32 %v4772, 7
    %v4774 = vadd.s32 %v4773, 88
    %4775 = vset.pattern.permute.xlu0 %v4774
    %4776 = vperm.xlu0 %4775, %v4171
    %v4777 = vpop.permute.xlu0 %4776
    %v4778 = vlaneseq
    %v4779 = vshrl.u32 %v4778, 7
    %v4780 = vadd.s32 %v4779, 96
    %4781 = vset.pattern.permute.xlu0 %v4780
    %4782 = vperm.xlu0 %4781, %v4171
    %v4783 = vpop.permute.xlu0 %4782
    %v4784 = vlaneseq
    %v4785 = vshrl.u32 %v4784, 7
    %v4786 = vadd.s32 %v4785, 104
    %4787 = vset.pattern.permute.xlu0 %v4786
    %4788 = vperm.xlu0 %4787, %v4171
    %v4789 = vpop.permute.xlu0 %4788
    %v4790 = vlaneseq
    %v4791 = vshrl.u32 %v4790, 7
    %v4792 = vadd.s32 %v4791, 112
    %4793 = vset.pattern.permute.xlu0 %v4792
    %4794 = vperm.xlu0 %4793, %v4171
    %v4795 = vpop.permute.xlu0 %4794
    %v4796 = vlaneseq
    %v4797 = vshrl.u32 %v4796, 7
    %v4798 = vadd.s32 %v4797, 120
    %4799 = vset.pattern.permute.xlu0 %v4798
    %4800 = vperm.xlu0 %4799, %v4171
    %v4801 = vpop.permute.xlu0 %4800
    %v4802 = vmul.f32 %v4240, %v4615
    %v4803 = vmul.f32 %v4241, %v4621
    %v4804 = vmul.f32 %v4242, %v4627
    %v4805 = vmul.f32 %v4243, %v4633
    %v4806 = vmul.f32 %v4244, %v4639
    %v4807 = vmul.f32 %v4245, %v4645
    %v4808 = vmul.f32 %v4246, %v4651
    %v4809 = vmul.f32 %v4247, %v4657
    %v4810 = vmul.f32 %v4248, %v4663
    %v4811 = vmul.f32 %v4249, %v4669
    %v4812 = vmul.f32 %v4250, %v4675
    %v4813 = vmul.f32 %v4251, %v4681
    %v4814 = vmul.f32 %v4252, %v4687
    %v4815 = vmul.f32 %v4253, %v4693
    %v4816 = vmul.f32 %v4254, %v4699
    %v4817 = vmul.f32 %v4255, %v4705
    %v4818 = vmul.f32 %v4240, %v4711
    %v4819 = vmul.f32 %v4241, %v4717
    %v4820 = vmul.f32 %v4242, %v4723
    %v4821 = vmul.f32 %v4243, %v4729
    %v4822 = vmul.f32 %v4244, %v4735
    %v4823 = vmul.f32 %v4245, %v4741
    %v4824 = vmul.f32 %v4246, %v4747
    %v4825 = vmul.f32 %v4247, %v4753
    %v4826 = vmul.f32 %v4248, %v4759
    %v4827 = vmul.f32 %v4249, %v4765
    %v4828 = vmul.f32 %v4250, %v4771
    %v4829 = vmul.f32 %v4251, %v4777
    %v4830 = vmul.f32 %v4252, %v4783
    %v4831 = vmul.f32 %v4253, %v4789
    %v4832 = vmul.f32 %v4254, %v4795
    %v4833 = vmul.f32 %v4255, %v4801
    %v4834 = vmul.f32 %v4410, %v4802
    %v4835 = vmul.f32 %v4412, %v4803
    %v4836 = vmul.f32 %v4415, %v4804
    %v4837 = vmul.f32 %v4417, %v4805
    %v4838 = vmul.f32 %v4420, %v4806
    %v4839 = vmul.f32 %v4422, %v4807
    %v4840 = vmul.f32 %v4425, %v4808
    %v4841 = vmul.f32 %v4427, %v4809
    %v4842 = vmul.f32 %v4430, %v4810
    %v4843 = vmul.f32 %v4432, %v4811
    %v4844 = vmul.f32 %v4435, %v4812
    %v4845 = vmul.f32 %v4437, %v4813
    %v4846 = vmul.f32 %v4440, %v4814
    %v4847 = vmul.f32 %v4442, %v4815
    %v4848 = vmul.f32 %v4445, %v4816
    %v4849 = vmul.f32 %v4447, %v4817
    %v4850 = vmul.f32 %v4571, %v4818
    %v4851 = vmul.f32 %v4573, %v4819
    %v4852 = vmul.f32 %v4576, %v4820
    %v4853 = vmul.f32 %v4578, %v4821
    %v4854 = vmul.f32 %v4581, %v4822
    %v4855 = vmul.f32 %v4583, %v4823
    %v4856 = vmul.f32 %v4586, %v4824
    %v4857 = vmul.f32 %v4588, %v4825
    %v4858 = vmul.f32 %v4591, %v4826
    %v4859 = vmul.f32 %v4593, %v4827
    %v4860 = vmul.f32 %v4596, %v4828
    %v4861 = vmul.f32 %v4598, %v4829
    %v4862 = vmul.f32 %v4601, %v4830
    %v4863 = vmul.f32 %v4603, %v4831
    %v4864 = vmul.f32 %v4606, %v4832
    %v4865 = vmul.f32 %v4608, %v4833
    %v4866 = vpack.c.bf16 %v4834, %v4834
    %v4867 = vpack.c.bf16 %v4835, %v4835
    %v4868 = vpack.c.bf16 %v4836, %v4836
    %v4869 = vpack.c.bf16 %v4837, %v4837
    %v4870 = vpack.c.bf16 %v4838, %v4838
    %v4871 = vpack.c.bf16 %v4839, %v4839
    %v4872 = vpack.c.bf16 %v4840, %v4840
    %v4873 = vpack.c.bf16 %v4841, %v4841
    %v4874 = vpack.c.bf16 %v4842, %v4842
    %v4875 = vpack.c.bf16 %v4843, %v4843
    %v4876 = vpack.c.bf16 %v4844, %v4844
    %v4877 = vpack.c.bf16 %v4845, %v4845
    %v4878 = vpack.c.bf16 %v4846, %v4846
    %v4879 = vpack.c.bf16 %v4847, %v4847
    %v4880 = vpack.c.bf16 %v4848, %v4848
    %v4881 = vpack.c.bf16 %v4849, %v4849
    %v4882 = vpack.c.bf16 %v4850, %v4850
    %v4883 = vpack.c.bf16 %v4851, %v4851
    %v4884 = vpack.c.bf16 %v4852, %v4852
    %v4885 = vpack.c.bf16 %v4853, %v4853
    %v4886 = vpack.c.bf16 %v4854, %v4854
    %v4887 = vpack.c.bf16 %v4855, %v4855
    %v4888 = vpack.c.bf16 %v4856, %v4856
    %v4889 = vpack.c.bf16 %v4857, %v4857
    %v4890 = vpack.c.bf16 %v4858, %v4858
    %v4891 = vpack.c.bf16 %v4859, %v4859
    %v4892 = vpack.c.bf16 %v4860, %v4860
    %v4893 = vpack.c.bf16 %v4861, %v4861
    %v4894 = vpack.c.bf16 %v4862, %v4862
    %v4895 = vpack.c.bf16 %v4863, %v4863
    %v4896 = vpack.c.bf16 %v4864, %v4864
    %v4897 = vpack.c.bf16 %v4865, %v4865
    %v4914 = vunpack.c.l.b16 %v3930
    %v4915 = vunpack.c.l.b16 %v3931
    %v4916 = vunpack.c.l.b16 %v3932
    %v4917 = vunpack.c.l.b16 %v3933
    %v4918 = vunpack.c.l.b16 %v3934
    %v4919 = vunpack.c.l.b16 %v3935
    %v4920 = vunpack.c.l.b16 %v3936
    %v4921 = vunpack.c.l.b16 %v3937
    %v4922 = vunpack.c.l.b16 %v3938
    %v4923 = vunpack.c.l.b16 %v3939
    %v4924 = vunpack.c.l.b16 %v3940
    %v4925 = vunpack.c.l.b16 %v3941
    %v4926 = vunpack.c.l.b16 %v3942
    %v4927 = vunpack.c.l.b16 %v3943
    %v4928 = vunpack.c.l.b16 %v3944
    %v4929 = vunpack.c.l.b16 %v3945
    %v4930 = vpack.c.b16 %v4915, %v4914
    %v4931 = vpack.c.b16 %v4917, %v4916
    %v4932 = vpack.c.b16 %v4919, %v4918
    %v4933 = vpack.c.b16 %v4921, %v4920
    %v4934 = vpack.c.b16 %v4923, %v4922
    %v4935 = vpack.c.b16 %v4925, %v4924
    %v4936 = vpack.c.b16 %v4927, %v4926
    %v4937 = vpack.c.b16 %v4929, %v4928
    %v4962 = vunpack.c.l.b16 %v4866
    %v4963 = vunpack.c.l.b16 %v4867
    %v4964 = vunpack.c.l.b16 %v4868
    %v4965 = vunpack.c.l.b16 %v4869
    %v4966 = vunpack.c.l.b16 %v4870
    %v4967 = vunpack.c.l.b16 %v4871
    %v4968 = vunpack.c.l.b16 %v4872
    %v4969 = vunpack.c.l.b16 %v4873
    %v4970 = vunpack.c.l.b16 %v4874
    %v4971 = vunpack.c.l.b16 %v4875
    %v4972 = vunpack.c.l.b16 %v4876
    %v4973 = vunpack.c.l.b16 %v4877
    %v4974 = vunpack.c.l.b16 %v4878
    %v4975 = vunpack.c.l.b16 %v4879
    %v4976 = vunpack.c.l.b16 %v4880
    %v4977 = vunpack.c.l.b16 %v4881
    %v4978 = vpack.c.b16 %v4963, %v4962
    %v4979 = vpack.c.b16 %v4965, %v4964
    %v4980 = vpack.c.b16 %v4967, %v4966
    %v4981 = vpack.c.b16 %v4969, %v4968
    %v4982 = vpack.c.b16 %v4971, %v4970
    %v4983 = vpack.c.b16 %v4973, %v4972
    %v4984 = vpack.c.b16 %v4975, %v4974
    %v4985 = vpack.c.b16 %v4977, %v4976
    %4994 = vmatpush.bf16.msra.mxu0 %v4985
    %4995 = vmatpush.bf16.msra.mxu0 %v4984
    %4996 = vmatpush.bf16.msra.mxu0 %v4983
    %4997 = vmatpush.bf16.msra.mxu0 %v4982
    %4998 = vmatpush.bf16.msra.mxu0 %v4981
    %4999 = vmatpush.bf16.msra.mxu0 %v4980
    %5000 = vmatpush.bf16.msra.mxu0 %v4979
    %5001 = vmatpush.bf16.msra.mxu0 %v4978
    %5002 = vmatmul.bf16.gmra.mxu0 %v4930
    %v5003 = vpop.f32.mrf.mxu0
    %v5004 = vadd.f32 0.0, %v5003
    %v5005 = vpop.f32.mrf.mxu0
    %v5006 = vadd.f32 0.0, %v5005
    %5007 = vmatmul.bf16.gmra.mxu0 %v4931
    %v5008 = vpop.f32.mrf.mxu0
    %v5009 = vadd.f32 0.0, %v5008
    %v5010 = vpop.f32.mrf.mxu0
    %v5011 = vadd.f32 0.0, %v5010
    %5012 = vmatmul.bf16.gmra.mxu0 %v4932
    %v5013 = vpop.f32.mrf.mxu0
    %v5014 = vadd.f32 0.0, %v5013
    %v5015 = vpop.f32.mrf.mxu0
    %v5016 = vadd.f32 0.0, %v5015
    %5017 = vmatmul.bf16.gmra.mxu0 %v4933
    %v5018 = vpop.f32.mrf.mxu0
    %v5019 = vadd.f32 0.0, %v5018
    %v5020 = vpop.f32.mrf.mxu0
    %v5021 = vadd.f32 0.0, %v5020
    %5022 = vmatmul.bf16.gmra.mxu0 %v4934
    %v5023 = vpop.f32.mrf.mxu0
    %v5024 = vadd.f32 0.0, %v5023
    %v5025 = vpop.f32.mrf.mxu0
    %v5026 = vadd.f32 0.0, %v5025
    %5027 = vmatmul.bf16.gmra.mxu0 %v4935
    %v5028 = vpop.f32.mrf.mxu0
    %v5029 = vadd.f32 0.0, %v5028
    %v5030 = vpop.f32.mrf.mxu0
    %v5031 = vadd.f32 0.0, %v5030
    %5032 = vmatmul.bf16.gmra.mxu0 %v4936
    %v5033 = vpop.f32.mrf.mxu0
    %v5034 = vadd.f32 0.0, %v5033
    %v5035 = vpop.f32.mrf.mxu0
    %v5036 = vadd.f32 0.0, %v5035
    %5037 = vmatmul.bf16.gmra.mxu0 %v4937
    %v5038 = vpop.f32.mrf.mxu0
    %v5039 = vadd.f32 0.0, %v5038
    %v5040 = vpop.f32.mrf.mxu0
    %v5041 = vadd.f32 0.0, %v5040
    %5042 = vdwg.mxu0
    %v5059 = vunpack.c.l.b16 %v3946
    %v5060 = vunpack.c.l.b16 %v3947
    %v5061 = vunpack.c.l.b16 %v3948
    %v5062 = vunpack.c.l.b16 %v3949
    %v5063 = vunpack.c.l.b16 %v3950
    %v5064 = vunpack.c.l.b16 %v3951
    %v5065 = vunpack.c.l.b16 %v3952
    %v5066 = vunpack.c.l.b16 %v3953
    %v5067 = vunpack.c.l.b16 %v3954
    %v5068 = vunpack.c.l.b16 %v3955
    %v5069 = vunpack.c.l.b16 %v3956
    %v5070 = vunpack.c.l.b16 %v3957
    %v5071 = vunpack.c.l.b16 %v3958
    %v5072 = vunpack.c.l.b16 %v3959
    %v5073 = vunpack.c.l.b16 %v3960
    %v5074 = vunpack.c.l.b16 %v3961
    %v5075 = vpack.c.b16 %v5060, %v5059
    %v5076 = vpack.c.b16 %v5062, %v5061
    %v5077 = vpack.c.b16 %v5064, %v5063
    %v5078 = vpack.c.b16 %v5066, %v5065
    %v5079 = vpack.c.b16 %v5068, %v5067
    %v5080 = vpack.c.b16 %v5070, %v5069
    %v5081 = vpack.c.b16 %v5072, %v5071
    %v5082 = vpack.c.b16 %v5074, %v5073
    %v5107 = vunpack.c.l.b16 %v4882
    %v5108 = vunpack.c.l.b16 %v4883
    %v5109 = vunpack.c.l.b16 %v4884
    %v5110 = vunpack.c.l.b16 %v4885
    %v5111 = vunpack.c.l.b16 %v4886
    %v5112 = vunpack.c.l.b16 %v4887
    %v5113 = vunpack.c.l.b16 %v4888
    %v5114 = vunpack.c.l.b16 %v4889
    %v5115 = vunpack.c.l.b16 %v4890
    %v5116 = vunpack.c.l.b16 %v4891
    %v5117 = vunpack.c.l.b16 %v4892
    %v5118 = vunpack.c.l.b16 %v4893
    %v5119 = vunpack.c.l.b16 %v4894
    %v5120 = vunpack.c.l.b16 %v4895
    %v5121 = vunpack.c.l.b16 %v4896
    %v5122 = vunpack.c.l.b16 %v4897
    %v5123 = vpack.c.b16 %v5108, %v5107
    %v5124 = vpack.c.b16 %v5110, %v5109
    %v5125 = vpack.c.b16 %v5112, %v5111
    %v5126 = vpack.c.b16 %v5114, %v5113
    %v5127 = vpack.c.b16 %v5116, %v5115
    %v5128 = vpack.c.b16 %v5118, %v5117
    %v5129 = vpack.c.b16 %v5120, %v5119
    %v5130 = vpack.c.b16 %v5122, %v5121
    %5139 = vmatpush.bf16.msra.mxu0 %v5130
    %5140 = vmatpush.bf16.msra.mxu0 %v5129
    %5141 = vmatpush.bf16.msra.mxu0 %v5128
    %5142 = vmatpush.bf16.msra.mxu0 %v5127
    %5143 = vmatpush.bf16.msra.mxu0 %v5126
    %5144 = vmatpush.bf16.msra.mxu0 %v5125
    %5145 = vmatpush.bf16.msra.mxu0 %v5124
    %5146 = vmatpush.bf16.msra.mxu0 %v5123
    %5147 = vmatmul.bf16.gmra.mxu0 %v5075
    %v5148 = vpop.f32.mrf.mxu0
    %v5149 = vadd.f32 0.0, %v5148
    %v5150 = vpop.f32.mrf.mxu0
    %v5151 = vadd.f32 0.0, %v5150
    %5152 = vmatmul.bf16.gmra.mxu0 %v5076
    %v5153 = vpop.f32.mrf.mxu0
    %v5154 = vadd.f32 0.0, %v5153
    %v5155 = vpop.f32.mrf.mxu0
    %v5156 = vadd.f32 0.0, %v5155
    %5157 = vmatmul.bf16.gmra.mxu0 %v5077
    %v5158 = vpop.f32.mrf.mxu0
    %v5159 = vadd.f32 0.0, %v5158
    %v5160 = vpop.f32.mrf.mxu0
    %v5161 = vadd.f32 0.0, %v5160
    %5162 = vmatmul.bf16.gmra.mxu0 %v5078
    %v5163 = vpop.f32.mrf.mxu0
    %v5164 = vadd.f32 0.0, %v5163
    %v5165 = vpop.f32.mrf.mxu0
    %v5166 = vadd.f32 0.0, %v5165
    %5167 = vmatmul.bf16.gmra.mxu0 %v5079
    %v5168 = vpop.f32.mrf.mxu0
    %v5169 = vadd.f32 0.0, %v5168
    %v5170 = vpop.f32.mrf.mxu0
    %v5171 = vadd.f32 0.0, %v5170
    %5172 = vmatmul.bf16.gmra.mxu0 %v5080
    %v5173 = vpop.f32.mrf.mxu0
    %v5174 = vadd.f32 0.0, %v5173
    %v5175 = vpop.f32.mrf.mxu0
    %v5176 = vadd.f32 0.0, %v5175
    %5177 = vmatmul.bf16.gmra.mxu0 %v5081
    %v5178 = vpop.f32.mrf.mxu0
    %v5179 = vadd.f32 0.0, %v5178
    %v5180 = vpop.f32.mrf.mxu0
    %v5181 = vadd.f32 0.0, %v5180
    %5182 = vmatmul.bf16.gmra.mxu0 %v5082
    %v5183 = vpop.f32.mrf.mxu0
    %v5184 = vadd.f32 0.0, %v5183
    %v5185 = vpop.f32.mrf.mxu0
    %v5186 = vadd.f32 0.0, %v5185
    %5187 = vdwg.mxu0
    %v5188 = vpack.c.bf16 %v5004, %v5004
    %v5189 = vpack.c.bf16 %v5006, %v5006
    %v5190 = vpack.c.bf16 %v5009, %v5009
    %v5191 = vpack.c.bf16 %v5011, %v5011
    %v5192 = vpack.c.bf16 %v5014, %v5014
    %v5193 = vpack.c.bf16 %v5016, %v5016
    %v5194 = vpack.c.bf16 %v5019, %v5019
    %v5195 = vpack.c.bf16 %v5021, %v5021
    %v5196 = vpack.c.bf16 %v5024, %v5024
    %v5197 = vpack.c.bf16 %v5026, %v5026
    %v5198 = vpack.c.bf16 %v5029, %v5029
    %v5199 = vpack.c.bf16 %v5031, %v5031
    %v5200 = vpack.c.bf16 %v5034, %v5034
    %v5201 = vpack.c.bf16 %v5036, %v5036
    %v5202 = vpack.c.bf16 %v5039, %v5039
    %v5203 = vpack.c.bf16 %v5041, %v5041
    %v5204 = vpack.c.bf16 %v5149, %v5149
    %v5205 = vpack.c.bf16 %v5151, %v5151
    %v5206 = vpack.c.bf16 %v5154, %v5154
    %v5207 = vpack.c.bf16 %v5156, %v5156
    %v5208 = vpack.c.bf16 %v5159, %v5159
    %v5209 = vpack.c.bf16 %v5161, %v5161
    %v5210 = vpack.c.bf16 %v5164, %v5164
    %v5211 = vpack.c.bf16 %v5166, %v5166
    %v5212 = vpack.c.bf16 %v5169, %v5169
    %v5213 = vpack.c.bf16 %v5171, %v5171
    %v5214 = vpack.c.bf16 %v5174, %v5174
    %v5215 = vpack.c.bf16 %v5176, %v5176
    %v5216 = vpack.c.bf16 %v5179, %v5179
    %v5217 = vpack.c.bf16 %v5181, %v5181
    %v5218 = vpack.c.bf16 %v5184, %v5184
    %v5219 = vpack.c.bf16 %v5186, %v5186
    %v5220 = vld [vmem:[#allocation7] sm:$0xf]
    %v5221 = vld [vmem:[#allocation7 + $0x4] sm:$0xf]
    %v5222 = vld [vmem:[#allocation7 + $0x8] sm:$0xf]
    %v5223 = vld [vmem:[#allocation7 + $0xc] sm:$0xf]
    %v5224 = vld [vmem:[#allocation7 + $0x10] sm:$0xf]
    %v5225 = vld [vmem:[#allocation7 + $0x14] sm:$0xf]
    %v5226 = vld [vmem:[#allocation7 + $0x18] sm:$0xf]
    %v5227 = vld [vmem:[#allocation7 + $0x1c] sm:$0xf]
    %v5228 = vld [vmem:[#allocation7 + $0x20] sm:$0xf]
    %v5229 = vld [vmem:[#allocation7 + $0x24] sm:$0xf]
    %v5230 = vld [vmem:[#allocation7 + $0x28] sm:$0xf]
    %v5231 = vld [vmem:[#allocation7 + $0x2c] sm:$0xf]
    %v5232 = vld [vmem:[#allocation7 + $0x30] sm:$0xf]
    %v5233 = vld [vmem:[#allocation7 + $0x34] sm:$0xf]
    %v5234 = vld [vmem:[#allocation7 + $0x38] sm:$0xf]
    %v5235 = vld [vmem:[#allocation7 + $0x3c] sm:$0xf]
    %v5268 = vunpack.c.l.b16 %v5188
    %v5269 = vunpack.c.l.b16 %v5189
    %v5270 = vunpack.c.l.b16 %v5190
    %v5271 = vunpack.c.l.b16 %v5191
    %v5272 = vunpack.c.l.b16 %v5192
    %v5273 = vunpack.c.l.b16 %v5193
    %v5274 = vunpack.c.l.b16 %v5194
    %v5275 = vunpack.c.l.b16 %v5195
    %v5276 = vunpack.c.l.b16 %v5196
    %v5277 = vunpack.c.l.b16 %v5197
    %v5278 = vunpack.c.l.b16 %v5198
    %v5279 = vunpack.c.l.b16 %v5199
    %v5280 = vunpack.c.l.b16 %v5200
    %v5281 = vunpack.c.l.b16 %v5201
    %v5282 = vunpack.c.l.b16 %v5202
    %v5283 = vunpack.c.l.b16 %v5203
    %v5284 = vunpack.c.l.b16 %v5204
    %v5285 = vunpack.c.l.b16 %v5205
    %v5286 = vunpack.c.l.b16 %v5206
    %v5287 = vunpack.c.l.b16 %v5207
    %v5288 = vunpack.c.l.b16 %v5208
    %v5289 = vunpack.c.l.b16 %v5209
    %v5290 = vunpack.c.l.b16 %v5210
    %v5291 = vunpack.c.l.b16 %v5211
    %v5292 = vunpack.c.l.b16 %v5212
    %v5293 = vunpack.c.l.b16 %v5213
    %v5294 = vunpack.c.l.b16 %v5214
    %v5295 = vunpack.c.l.b16 %v5215
    %v5296 = vunpack.c.l.b16 %v5216
    %v5297 = vunpack.c.l.b16 %v5217
    %v5298 = vunpack.c.l.b16 %v5218
    %v5299 = vunpack.c.l.b16 %v5219
    %v5300 = vpack.c.b16 %v5269, %v5268
    %v5301 = vpack.c.b16 %v5271, %v5270
    %v5302 = vpack.c.b16 %v5273, %v5272
    %v5303 = vpack.c.b16 %v5275, %v5274
    %v5304 = vpack.c.b16 %v5277, %v5276
    %v5305 = vpack.c.b16 %v5279, %v5278
    %v5306 = vpack.c.b16 %v5281, %v5280
    %v5307 = vpack.c.b16 %v5283, %v5282
    %v5308 = vpack.c.b16 %v5285, %v5284
    %v5309 = vpack.c.b16 %v5287, %v5286
    %v5310 = vpack.c.b16 %v5289, %v5288
    %v5311 = vpack.c.b16 %v5291, %v5290
    %v5312 = vpack.c.b16 %v5293, %v5292
    %v5313 = vpack.c.b16 %v5295, %v5294
    %v5314 = vpack.c.b16 %v5297, %v5296
    %v5315 = vpack.c.b16 %v5299, %v5298
    %v5348 = vunpack.c.l.b16 %v5220
    %v5349 = vunpack.c.l.b16 %v5221
    %v5350 = vunpack.c.l.b16 %v5222
    %v5351 = vunpack.c.l.b16 %v5223
    %v5352 = vunpack.c.l.b16 %v5224
    %v5353 = vunpack.c.l.b16 %v5225
    %v5354 = vunpack.c.l.b16 %v5226
    %v5355 = vunpack.c.l.b16 %v5227
    %v5356 = vunpack.c.l.b16 %v5228
    %v5357 = vunpack.c.l.b16 %v5229
    %v5358 = vunpack.c.l.b16 %v5230
    %v5359 = vunpack.c.l.b16 %v5231
    %v5360 = vunpack.c.l.b16 %v5232
    %v5361 = vunpack.c.l.b16 %v5233
    %v5362 = vunpack.c.l.b16 %v5234
    %v5363 = vunpack.c.l.b16 %v5235
    %v5364 = vpack.c.b16 %v5349, %v5348
    %v5365 = vpack.c.b16 %v5351, %v5350
    %v5366 = vpack.c.b16 %v5353, %v5352
    %v5367 = vpack.c.b16 %v5355, %v5354
    %v5368 = vpack.c.b16 %v5357, %v5356
    %v5369 = vpack.c.b16 %v5359, %v5358
    %v5370 = vpack.c.b16 %v5361, %v5360
    %v5371 = vpack.c.b16 %v5363, %v5362
    %5380 = vmatpush.bf16.msra.mxu0 %v5371
    %5381 = vmatpush.bf16.msra.mxu0 %v5370
    %5382 = vmatpush.bf16.msra.mxu0 %v5369
    %5383 = vmatpush.bf16.msra.mxu0 %v5368
    %5384 = vmatpush.bf16.msra.mxu0 %v5367
    %5385 = vmatpush.bf16.msra.mxu0 %v5366
    %5386 = vmatpush.bf16.msra.mxu0 %v5365
    %5387 = vmatpush.bf16.msra.mxu0 %v5364
    %5388 = vmatmul.bf16.gmra.mxu0 %v5300
    %v5389 = vpop.f32.mrf.mxu0
    %v5390 = vadd.f32 0.0, %v5389
    %v5391 = vpop.f32.mrf.mxu0
    %v5392 = vadd.f32 0.0, %v5391
    %5393 = vmatmul.bf16.gmra.mxu0 %v5301
    %v5394 = vpop.f32.mrf.mxu0
    %v5395 = vadd.f32 0.0, %v5394
    %v5396 = vpop.f32.mrf.mxu0
    %v5397 = vadd.f32 0.0, %v5396
    %5398 = vmatmul.bf16.gmra.mxu0 %v5302
    %v5399 = vpop.f32.mrf.mxu0
    %v5400 = vadd.f32 0.0, %v5399
    %v5401 = vpop.f32.mrf.mxu0
    %v5402 = vadd.f32 0.0, %v5401
    %5403 = vmatmul.bf16.gmra.mxu0 %v5303
    %v5404 = vpop.f32.mrf.mxu0
    %v5405 = vadd.f32 0.0, %v5404
    %v5406 = vpop.f32.mrf.mxu0
    %v5407 = vadd.f32 0.0, %v5406
    %5408 = vmatmul.bf16.gmra.mxu0 %v5304
    %v5409 = vpop.f32.mrf.mxu0
    %v5410 = vadd.f32 0.0, %v5409
    %v5411 = vpop.f32.mrf.mxu0
    %v5412 = vadd.f32 0.0, %v5411
    %5413 = vmatmul.bf16.gmra.mxu0 %v5305
    %v5414 = vpop.f32.mrf.mxu0
    %v5415 = vadd.f32 0.0, %v5414
    %v5416 = vpop.f32.mrf.mxu0
    %v5417 = vadd.f32 0.0, %v5416
    %5418 = vmatmul.bf16.gmra.mxu0 %v5306
    %v5419 = vpop.f32.mrf.mxu0
    %v5420 = vadd.f32 0.0, %v5419
    %v5421 = vpop.f32.mrf.mxu0
    %v5422 = vadd.f32 0.0, %v5421
    %5423 = vmatmul.bf16.gmra.mxu0 %v5307
    %v5424 = vpop.f32.mrf.mxu0
    %v5425 = vadd.f32 0.0, %v5424
    %v5426 = vpop.f32.mrf.mxu0
    %v5427 = vadd.f32 0.0, %v5426
    %5428 = vmatmul.bf16.gmra.mxu0 %v5308
    %v5429 = vpop.f32.mrf.mxu0
    %v5430 = vadd.f32 0.0, %v5429
    %v5431 = vpop.f32.mrf.mxu0
    %v5432 = vadd.f32 0.0, %v5431
    %5433 = vmatmul.bf16.gmra.mxu0 %v5309
    %v5434 = vpop.f32.mrf.mxu0
    %v5435 = vadd.f32 0.0, %v5434
    %v5436 = vpop.f32.mrf.mxu0
    %v5437 = vadd.f32 0.0, %v5436
    %5438 = vmatmul.bf16.gmra.mxu0 %v5310
    %v5439 = vpop.f32.mrf.mxu0
    %v5440 = vadd.f32 0.0, %v5439
    %v5441 = vpop.f32.mrf.mxu0
    %v5442 = vadd.f32 0.0, %v5441
    %5443 = vmatmul.bf16.gmra.mxu0 %v5311
    %v5444 = vpop.f32.mrf.mxu0
    %v5445 = vadd.f32 0.0, %v5444
    %v5446 = vpop.f32.mrf.mxu0
    %v5447 = vadd.f32 0.0, %v5446
    %5448 = vmatmul.bf16.gmra.mxu0 %v5312
    %v5449 = vpop.f32.mrf.mxu0
    %v5450 = vadd.f32 0.0, %v5449
    %v5451 = vpop.f32.mrf.mxu0
    %v5452 = vadd.f32 0.0, %v5451
    %5453 = vmatmul.bf16.gmra.mxu0 %v5313
    %v5454 = vpop.f32.mrf.mxu0
    %v5455 = vadd.f32 0.0, %v5454
    %v5456 = vpop.f32.mrf.mxu0
    %v5457 = vadd.f32 0.0, %v5456
    %5458 = vmatmul.bf16.gmra.mxu0 %v5314
    %v5459 = vpop.f32.mrf.mxu0
    %v5460 = vadd.f32 0.0, %v5459
    %v5461 = vpop.f32.mrf.mxu0
    %v5462 = vadd.f32 0.0, %v5461
    %5463 = vmatmul.bf16.gmra.mxu0 %v5315
    %v5464 = vpop.f32.mrf.mxu0
    %v5465 = vadd.f32 0.0, %v5464
    %v5466 = vpop.f32.mrf.mxu0
    %v5467 = vadd.f32 0.0, %v5466
    %5468 = vdwg.mxu0
    %v5469 = vld [vmem:[%s3] sm:$0x1]
    %v5471 = vperm.slane %v5469, 0
    %v5473 = vadd.f32 %v5390, %v5471
    %v5474 = vadd.f32 %v5392, %v5471
    %v5475 = vadd.f32 %v5395, %v5471
    %v5476 = vadd.f32 %v5397, %v5471
    %v5477 = vadd.f32 %v5400, %v5471
    %v5478 = vadd.f32 %v5402, %v5471
    %v5479 = vadd.f32 %v5405, %v5471
    %v5480 = vadd.f32 %v5407, %v5471
    %v5481 = vadd.f32 %v5410, %v5471
    %v5482 = vadd.f32 %v5412, %v5471
    %v5483 = vadd.f32 %v5415, %v5471
    %v5484 = vadd.f32 %v5417, %v5471
    %v5485 = vadd.f32 %v5420, %v5471
    %v5486 = vadd.f32 %v5422, %v5471
    %v5487 = vadd.f32 %v5425, %v5471
    %v5488 = vadd.f32 %v5427, %v5471
    %v5489 = vadd.f32 %v5430, %v5471
    %v5490 = vadd.f32 %v5432, %v5471
    %v5491 = vadd.f32 %v5435, %v5471
    %v5492 = vadd.f32 %v5437, %v5471
    %v5493 = vadd.f32 %v5440, %v5471
    %v5494 = vadd.f32 %v5442, %v5471
    %v5495 = vadd.f32 %v5445, %v5471
    %v5496 = vadd.f32 %v5447, %v5471
    %v5497 = vadd.f32 %v5450, %v5471
    %v5498 = vadd.f32 %v5452, %v5471
    %v5499 = vadd.f32 %v5455, %v5471
    %v5500 = vadd.f32 %v5457, %v5471
    %v5501 = vadd.f32 %v5460, %v5471
    %v5502 = vadd.f32 %v5462, %v5471
    %v5503 = vadd.f32 %v5465, %v5471
    %v5504 = vadd.f32 %v5467, %v5471
    %v5505 = vpack.c.bf16 %v5473, %v5473
    %v5506 = vpack.c.bf16 %v5474, %v5474
    %v5507 = vpack.c.bf16 %v5475, %v5475
    %v5508 = vpack.c.bf16 %v5476, %v5476
    %v5509 = vpack.c.bf16 %v5477, %v5477
    %v5510 = vpack.c.bf16 %v5478, %v5478
    %v5511 = vpack.c.bf16 %v5479, %v5479
    %v5512 = vpack.c.bf16 %v5480, %v5480
    %v5513 = vpack.c.bf16 %v5481, %v5481
    %v5514 = vpack.c.bf16 %v5482, %v5482
    %v5515 = vpack.c.bf16 %v5483, %v5483
    %v5516 = vpack.c.bf16 %v5484, %v5484
    %v5517 = vpack.c.bf16 %v5485, %v5485
    %v5518 = vpack.c.bf16 %v5486, %v5486
    %v5519 = vpack.c.bf16 %v5487, %v5487
    %v5520 = vpack.c.bf16 %v5488, %v5488
    %v5521 = vpack.c.bf16 %v5489, %v5489
    %v5522 = vpack.c.bf16 %v5490, %v5490
    %v5523 = vpack.c.bf16 %v5491, %v5491
    %v5524 = vpack.c.bf16 %v5492, %v5492
    %v5525 = vpack.c.bf16 %v5493, %v5493
    %v5526 = vpack.c.bf16 %v5494, %v5494
    %v5527 = vpack.c.bf16 %v5495, %v5495
    %v5528 = vpack.c.bf16 %v5496, %v5496
    %v5529 = vpack.c.bf16 %v5497, %v5497
    %v5530 = vpack.c.bf16 %v5498, %v5498
    %v5531 = vpack.c.bf16 %v5499, %v5499
    %v5532 = vpack.c.bf16 %v5500, %v5500
    %v5533 = vpack.c.bf16 %v5501, %v5501
    %v5534 = vpack.c.bf16 %v5502, %v5502
    %v5535 = vpack.c.bf16 %v5503, %v5503
    %v5536 = vpack.c.bf16 %v5504, %v5504
    %5537 = vst [vmem:[#allocation8] sm:$0xf] %v5505
    %5538 = vst [vmem:[#allocation8 + $0x4] sm:$0xf] %v5506
    %5539 = vst [vmem:[#allocation8 + $0x8] sm:$0xf] %v5507
    %5540 = vst [vmem:[#allocation8 + $0xc] sm:$0xf] %v5508
    %5541 = vst [vmem:[#allocation8 + $0x10] sm:$0xf] %v5509
    %5542 = vst [vmem:[#allocation8 + $0x14] sm:$0xf] %v5510
    %5543 = vst [vmem:[#allocation8 + $0x18] sm:$0xf] %v5511
    %5544 = vst [vmem:[#allocation8 + $0x1c] sm:$0xf] %v5512
    %5545 = vst [vmem:[#allocation8 + $0x20] sm:$0xf] %v5513
    %5546 = vst [vmem:[#allocation8 + $0x24] sm:$0xf] %v5514
    %5547 = vst [vmem:[#allocation8 + $0x28] sm:$0xf] %v5515
    %5548 = vst [vmem:[#allocation8 + $0x2c] sm:$0xf] %v5516
    %5549 = vst [vmem:[#allocation8 + $0x30] sm:$0xf] %v5517
    %5550 = vst [vmem:[#allocation8 + $0x34] sm:$0xf] %v5518
    %5551 = vst [vmem:[#allocation8 + $0x38] sm:$0xf] %v5519
    %5552 = vst [vmem:[#allocation8 + $0x3c] sm:$0xf] %v5520
    %5553 = vst [vmem:[#allocation8 + $0x40] sm:$0xf] %v5521
    %5554 = vst [vmem:[#allocation8 + $0x44] sm:$0xf] %v5522
    %5555 = vst [vmem:[#allocation8 + $0x48] sm:$0xf] %v5523
    %5556 = vst [vmem:[#allocation8 + $0x4c] sm:$0xf] %v5524
    %5557 = vst [vmem:[#allocation8 + $0x50] sm:$0xf] %v5525
    %5558 = vst [vmem:[#allocation8 + $0x54] sm:$0xf] %v5526
    %5559 = vst [vmem:[#allocation8 + $0x58] sm:$0xf] %v5527
    %5560 = vst [vmem:[#allocation8 + $0x5c] sm:$0xf] %v5528
    %5561 = vst [vmem:[#allocation8 + $0x60] sm:$0xf] %v5529
    %5562 = vst [vmem:[#allocation8 + $0x64] sm:$0xf] %v5530
    %5563 = vst [vmem:[#allocation8 + $0x68] sm:$0xf] %v5531
    %5564 = vst [vmem:[#allocation8 + $0x6c] sm:$0xf] %v5532
    %5565 = vst [vmem:[#allocation8 + $0x70] sm:$0xf] %v5533
    %5566 = vst [vmem:[#allocation8 + $0x74] sm:$0xf] %v5534
    %5567 = vst [vmem:[#allocation8 + $0x78] sm:$0xf] %v5535
    %5568 = vst [vmem:[#allocation8 + $0x7c] sm:$0xf] %v5536
    // Predicated region
    $region30: #{tpu_custom_call.1} parent=1 // pred_check
      _
    $region31: #{tpu_custom_call.1} parent=1 // pred_check_branch
      %5570 = sbr.rel (0) target = $region33
    $region32: #{tpu_custom_call.1} parent=1 // pred_region
      %5572 = vsyncadd [#allocation4], 0
      %s5573 = sshll.u32 [#allocation8], 4
      %s5574 = int_to_ptr.vmem [resolvable:$true] %s5573
      %s5575 = sshll.u32 %s4, 4
      %s5576 = int_to_ptr.hbm [resolvable:$true] %s5575
      %5581 = dma.vmem_to_hbm [thread:$0]  %s5574, 2048, %s5576, [#allocation4], 64, 64, 4
    $region33: #{tpu_custom_call.1} parent=1 // pred_fallthru
      _
    // Predicated region
    $region34: #{tpu_custom_call.1} parent=1 // pred_check
      _
    $region35: #{tpu_custom_call.1} parent=1 // pred_check_branch
      %5583 = sbr.rel (0) target = $region37
    $region36: #{tpu_custom_call.1} parent=1 // pred_region
      %5585 = dma.done [#allocation4], 2048
    $region37: #{tpu_custom_call.1} parent=1 // pred_fallthru
      _
    %5586 = vsyncpa [#allocation3], 1
    %5587 = vsyncpa [#allocation6], 1
    %5588 = vsyncpa [#allocation4], 1

// kernel: tpu_custom_call.1
$region0: #{tpu_custom_call.1}
  #allocation0 [shape = 'u32[]', space=smem, size = 0x4, offset = 0x4, fixed_abs, tag = 'smem constant byte address 0x4 - core index']
  #allocation1 [shape = 'u32[72,128]{1,0:T(1,128)}', space=vmem, size = 0x9000, scoped, tag = 'internal scratch']
  %s0 = inlined_call_operand.hbm [shape: bf16[2,128,128], index: 0, kind: input, shape index: {}]
  %s1 = inlined_call_operand.hbm [shape: bf16[128,384], index: 1, kind: input, shape index: {}]
  %s2 = inlined_call_operand.hbm [shape: bf16[128,128], index: 2, kind: input, shape index: {}]
  %s3 = inlined_call_operand.vmem [shape: f32[1,128], index: 3, kind: input, shape index: {}]
  %s4 = inlined_call_operand.hbm [shape: bf16[2,128,128], index: 4, kind: output, shape index: {}]
  %s5 = sld [smem:[#allocation0]]
  $region38: #{tpu_custom_call.1} parent=0
    _
  %s7 = ssub.s32 1, %s5
  %s8 = scalar_select 0, %s7, %s5
  $region1: #{tpu_custom_call.1} parent=0
    #allocation2 [shape = 'u8[65536]{0}', space=vmem, size = 0x10000, scoped, tag = 'input window, operand 0, single buffered']
    #allocation3 [shape = 's32[1]{0}', space=sflag, size = 0x4, scoped, tag = 'scoped memory for tpu_custom_call.1']
    #allocation4 [shape = 's32[1]{0}', space=sflag, size = 0x4, scoped, tag = 'scoped memory for tpu_custom_call.1']
    #allocation5 [shape = 'u8[98304]{0}', space=vmem, size = 0x18000, scoped, tag = 'input window, operand 1, single buffered']
    #allocation6 [shape = 's32[1]{0}', space=sflag, size = 0x4, scoped, tag = 'scoped memory for tpu_custom_call.1']
    #allocation7 [shape = 'u8[32768]{0}', space=vmem, size = 0x8000, scoped, tag = 'input window, operand 2, single buffered']
    #allocation8 [shape = 'u8[65536]{0}', space=vmem, size = 0x10000, scoped, tag = 'output window, operand 0, single buffered']
    %9 = vsyncpa [#allocation3], 0
    %10 = vsyncpa [#allocation6], 0
    %11 = vsyncpa [#allocation4], 0
    // Predicated region
    $region2: #{tpu_custom_call.1} parent=1 // pred_check
      _
    $region3: #{tpu_custom_call.1} parent=1 // pred_check_branch
      %13 = sbr.rel (0) target = $region5
    $region4: #{tpu_custom_call.1} parent=1 // pred_region
      %15 = vsyncadd [#allocation3], 0
      %s16 = sshll.u32 %s0, 4
      %s17 = int_to_ptr.hbm [resolvable:$true] %s16
      %s18 = sshll.u32 [#allocation2], 4
      %s19 = int_to_ptr.vmem [resolvable:$true] %s18
      %24 = dma.hbm_to_vmem [thread:$0]  %s17, 2048, %s19, [#allocation3], 64, 64, 4
    $region5: #{tpu_custom_call.1} parent=1 // pred_fallthru
      _
    // Predicated region
    $region6: #{tpu_custom_call.1} parent=1 // pred_check
      _
    $region7: #{tpu_custom_call.1} parent=1 // pred_check_branch
      %26 = sbr.rel (0) target = $region9
    $region8: #{tpu_custom_call.1} parent=1 // pred_region
      %28 = vsyncadd [#allocation6], 0
      %s29 = sshll.u32 %s1, 4
      %s30 = int_to_ptr.hbm [resolvable:$true] %s29
      %s31 = sshll.u32 [#allocation5], 4
      %s32 = int_to_ptr.vmem [resolvable:$true] %s31
      %37 = dma.hbm_to_vmem [thread:$0]  %s30, 3072, %s32, [#allocation6], 192, 192, 12
    $region9: #{tpu_custom_call.1} parent=1 // pred_fallthru
      _
    // Predicated region
    $region10: #{tpu_custom_call.1} parent=1 // pred_check
      _
    $region11: #{tpu_custom_call.1} parent=1 // pred_check_branch
      %39 = sbr.rel (0) target = $region13
    $region12: #{tpu_custom_call.1} parent=1 // pred_region
      %41 = vsyncadd [#allocation6], 0
      %s42 = sshll.u32 %s2, 4
      %s43 = int_to_ptr.hbm [resolvable:$true] %s42
      %s44 = sshll.u32 [#allocation7], 4
      %s45 = int_to_ptr.vmem [resolvable:$true] %s44
      %50 = dma.hbm_to_vmem [thread:$0]  %s43, 1024, %s45, [#allocation6], 64, 64, 4
    $region13: #{tpu_custom_call.1} parent=1 // pred_fallthru
      _
    // Predicated region
    $region14: #{tpu_custom_call.1} parent=1 // pred_check
      _
    $region15: #{tpu_custom_call.1} parent=1 // pred_check_branch
      %52 = sbr.rel (0) target = $region17
    $region16: #{tpu_custom_call.1} parent=1 // pred_region
      _
    $region17: #{tpu_custom_call.1} parent=1 // pred_fallthru
      _
    // Predicated region
    $region18: #{tpu_custom_call.1} parent=1 // pred_check
      _
    $region19: #{tpu_custom_call.1} parent=1 // pred_check_branch
      %54 = sbr.rel (0) target = $region21
    $region20: #{tpu_custom_call.1} parent=1 // pred_region
      %56 = dma.done [#allocation3], 2048
    $region21: #{tpu_custom_call.1} parent=1 // pred_fallthru
      _
    // Predicated region
    $region22: #{tpu_custom_call.1} parent=1 // pred_check
      _
    $region23: #{tpu_custom_call.1} parent=1 // pred_check_branch
      %58 = sbr.rel (0) target = $region25
    $region24: #{tpu_custom_call.1} parent=1 // pred_region
      %60 = dma.done [#allocation6], 3072
    $region25: #{tpu_custom_call.1} parent=1 // pred_fallthru
      _
    // Predicated region
    $region26: #{tpu_custom_call.1} parent=1 // pred_check
      _
    $region27: #{tpu_custom_call.1} parent=1 // pred_check_branch
      %62 = sbr.rel (0) target = $region29
    $region28: #{tpu_custom_call.1} parent=1 // pred_region
      %64 = dma.done [#allocation6], 1024
    $region29: #{tpu_custom_call.1} parent=1 // pred_fallthru
      _
    %v65 = vld [vmem:[#allocation2] sm:$0xf]
    %v66 = vld [vmem:[#allocation2 + $0x4] sm:$0xf]
    %v67 = vld [vmem:[#allocation2 + $0x8] sm:$0xf]
    %v68 = vld [vmem:[#allocation2 + $0xc] sm:$0xf]
    %v69 = vld [vmem:[#allocation2 + $0x10] sm:$0xf]
    %v70 = vld [vmem:[#allocation2 + $0x14] sm:$0xf]
    %v71 = vld [vmem:[#allocation2 + $0x18] sm:$0xf]
    %v72 = vld [vmem:[#allocation2 + $0x1c] sm:$0xf]
    %v73 = vld [vmem:[#allocation2 + $0x20] sm:$0xf]
    %v74 = vld [vmem:[#allocation2 + $0x24] sm:$0xf]
    %v75 = vld [vmem:[#allocation2 + $0x28] sm:$0xf]
    %v76 = vld [vmem:[#allocation2 + $0x2c] sm:$0xf]
    %v77 = vld [vmem:[#allocation2 + $0x30] sm:$0xf]
    %v78 = vld [vmem:[#allocation2 + $0x34] sm:$0xf]
    %v79 = vld [vmem:[#allocation2 + $0x38] sm:$0xf]
    %v80 = vld [vmem:[#allocation2 + $0x3c] sm:$0xf]
    %v81 = vld [vmem:[#allocation2 + $0x40] sm:$0xf]
    %v82 = vld [vmem:[#allocation2 + $0x44] sm:$0xf]
    %v83 = vld [vmem:[#allocation2 + $0x48] sm:$0xf]
    %v84 = vld [vmem:[#allocation2 + $0x4c] sm:$0xf]
    %v85 = vld [vmem:[#allocation2 + $0x50] sm:$0xf]
    %v86 = vld [vmem:[#allocation2 + $0x54] sm:$0xf]
    %v87 = vld [vmem:[#allocation2 + $0x58] sm:$0xf]
    %v88 = vld [vmem:[#allocation2 + $0x5c] sm:$0xf]
    %v89 = vld [vmem:[#allocation2 + $0x60] sm:$0xf]
    %v90 = vld [vmem:[#allocation2 + $0x64] sm:$0xf]
    %v91 = vld [vmem:[#allocation2 + $0x68] sm:$0xf]
    %v92 = vld [vmem:[#allocation2 + $0x6c] sm:$0xf]
    %v93 = vld [vmem:[#allocation2 + $0x70] sm:$0xf]
    %v94 = vld [vmem:[#allocation2 + $0x74] sm:$0xf]
    %v95 = vld [vmem:[#allocation2 + $0x78] sm:$0xf]
    %v96 = vld [vmem:[#allocation2 + $0x7c] sm:$0xf]
    %v97 = vld [vmem:[#allocation5] sm:$0xff]
    %v98 = vld [vmem:[#allocation5 + $0x8] sm:$0xf]
    %v99 = vld [vmem:[#allocation5 + $0xc] sm:$0xff]
    %v100 = vld [vmem:[#allocation5 + $0x14] sm:$0xf]
    %v101 = vld [vmem:[#allocation5 + $0x18] sm:$0xff]
    %v102 = vld [vmem:[#allocation5 + $0x20] sm:$0xf]
    %v103 = vld [vmem:[#allocation5 + $0x24] sm:$0xff]
    %v104 = vld [vmem:[#allocation5 + $0x2c] sm:$0xf]
    %v105 = vld [vmem:[#allocation5 + $0x30] sm:$0xff]
    %v106 = vld [vmem:[#allocation5 + $0x38] sm:$0xf]
    %v107 = vld [vmem:[#allocation5 + $0x3c] sm:$0xff]
    %v108 = vld [vmem:[#allocation5 + $0x44] sm:$0xf]
    %v109 = vld [vmem:[#allocation5 + $0x48] sm:$0xff]
    %v110 = vld [vmem:[#allocation5 + $0x50] sm:$0xf]
    %v111 = vld [vmem:[#allocation5 + $0x54] sm:$0xff]
    %v112 = vld [vmem:[#allocation5 + $0x5c] sm:$0xf]
    %v113 = vld [vmem:[#allocation5 + $0x60] sm:$0xff]
    %v114 = vld [vmem:[#allocation5 + $0x68] sm:$0xf]
    %v115 = vld [vmem:[#allocation5 + $0x6c] sm:$0xff]
    %v116 = vld [vmem:[#allocation5 + $0x74] sm:$0xf]
    %v117 = vld [vmem:[#allocation5 + $0x78] sm:$0xff]
    %v118 = vld [vmem:[#allocation5 + $0x80] sm:$0xf]
    %v119 = vld [vmem:[#allocation5 + $0x84] sm:$0xff]
    %v120 = vld [vmem:[#allocation5 + $0x8c] sm:$0xf]
    %v121 = vld [vmem:[#allocation5 + $0x90] sm:$0xff]
    %v122 = vld [vmem:[#allocation5 + $0x98] sm:$0xf]
    %v123 = vld [vmem:[#allocation5 + $0x9c] sm:$0xff]
    %v124 = vld [vmem:[#allocation5 + $0xa4] sm:$0xf]
    %v125 = vld [vmem:[#allocation5 + $0xa8] sm:$0xff]
    %v126 = vld [vmem:[#allocation5 + $0xb0] sm:$0xf]
    %v127 = vld [vmem:[#allocation5 + $0xb4] sm:$0xff]
    %v128 = vld [vmem:[#allocation5 + $0xbc] sm:$0xf]
    %v161 = vunpack.c.l.b16 %v65
    %v162 = vunpack.c.l.b16 %v66
    %v163 = vunpack.c.l.b16 %v67
    %v164 = vunpack.c.l.b16 %v68
    %v165 = vunpack.c.l.b16 %v69
    %v166 = vunpack.c.l.b16 %v70
    %v167 = vunpack.c.l.b16 %v71
    %v168 = vunpack.c.l.b16 %v72
    %v169 = vunpack.c.l.b16 %v73
    %v170 = vunpack.c.l.b16 %v74
    %v171 = vunpack.c.l.b16 %v75
    %v172 = vunpack.c.l.b16 %v76
    %v173 = vunpack.c.l.b16 %v77
    %v174 = vunpack.c.l.b16 %v78
    %v175 = vunpack.c.l.b16 %v79
    %v176 = vunpack.c.l.b16 %v80
    %v177 = vunpack.c.l.b16 %v81
    %v178 = vunpack.c.l.b16 %v82
    %v179 = vunpack.c.l.b16 %v83
    %v180 = vunpack.c.l.b16 %v84
    %v181 = vunpack.c.l.b16 %v85
    %v182 = vunpack.c.l.b16 %v86
    %v183 = vunpack.c.l.b16 %v87
    %v184 = vunpack.c.l.b16 %v88
    %v185 = vunpack.c.l.b16 %v89
    %v186 = vunpack.c.l.b16 %v90
    %v187 = vunpack.c.l.b16 %v91
    %v188 = vunpack.c.l.b16 %v92
    %v189 = vunpack.c.l.b16 %v93
    %v190 = vunpack.c.l.b16 %v94
    %v191 = vunpack.c.l.b16 %v95
    %v192 = vunpack.c.l.b16 %v96
    %v193 = vpack.c.b16 %v162, %v161
    %v194 = vpack.c.b16 %v164, %v163
    %v195 = vpack.c.b16 %v166, %v165
    %v196 = vpack.c.b16 %v168, %v167
    %v197 = vpack.c.b16 %v170, %v169
    %v198 = vpack.c.b16 %v172, %v171
    %v199 = vpack.c.b16 %v174, %v173
    %v200 = vpack.c.b16 %v176, %v175
    %v201 = vpack.c.b16 %v178, %v177
    %v202 = vpack.c.b16 %v180, %v179
    %v203 = vpack.c.b16 %v182, %v181
    %v204 = vpack.c.b16 %v184, %v183
    %v205 = vpack.c.b16 %v186, %v185
    %v206 = vpack.c.b16 %v188, %v187
    %v207 = vpack.c.b16 %v190, %v189
    %v208 = vpack.c.b16 %v192, %v191
    %v241 = vunpack.c.l.b16 %v97
    %v242 = vunpack.c.l.b16 %v99
    %v243 = vunpack.c.l.b16 %v101
    %v244 = vunpack.c.l.b16 %v103
    %v245 = vunpack.c.l.b16 %v105
    %v246 = vunpack.c.l.b16 %v107
    %v247 = vunpack.c.l.b16 %v109
    %v248 = vunpack.c.l.b16 %v111
    %v249 = vunpack.c.l.b16 %v113
    %v250 = vunpack.c.l.b16 %v115
    %v251 = vunpack.c.l.b16 %v117
    %v252 = vunpack.c.l.b16 %v119
    %v253 = vunpack.c.l.b16 %v121
    %v254 = vunpack.c.l.b16 %v123
    %v255 = vunpack.c.l.b16 %v125
    %v256 = vunpack.c.l.b16 %v127
    %v257 = vpack.c.b16 %v242, %v241
    %v258 = vpack.c.b16 %v244, %v243
    %v259 = vpack.c.b16 %v246, %v245
    %v260 = vpack.c.b16 %v248, %v247
    %v261 = vpack.c.b16 %v250, %v249
    %v262 = vpack.c.b16 %v252, %v251
    %v263 = vpack.c.b16 %v254, %v253
    %v264 = vpack.c.b16 %v256, %v255
    %273 = vmatpush.bf16.msra.mxu0 %v264
    %274 = vmatpush.bf16.msra.mxu0 %v263
    %275 = vmatpush.bf16.msra.mxu0 %v262
    %276 = vmatpush.bf16.msra.mxu0 %v261
    %277 = vmatpush.bf16.msra.mxu0 %v260
    %278 = vmatpush.bf16.msra.mxu0 %v259
    %279 = vmatpush.bf16.msra.mxu0 %v258
    %280 = vmatpush.bf16.msra.mxu0 %v257
    %281 = vmatmul.bf16.gmra.mxu0 %v193
    %v282 = vpop.f32.mrf.mxu0
    %v283 = vadd.f32 0.0, %v282
    %v284 = vpop.f32.mrf.mxu0
    %v285 = vadd.f32 0.0, %v284
    %286 = vmatmul.bf16.gmra.mxu0 %v194
    %v287 = vpop.f32.mrf.mxu0
    %v288 = vadd.f32 0.0, %v287
    %v289 = vpop.f32.mrf.mxu0
    %v290 = vadd.f32 0.0, %v289
    %291 = vmatmul.bf16.gmra.mxu0 %v195
    %v292 = vpop.f32.mrf.mxu0
    %v293 = vadd.f32 0.0, %v292
    %v294 = vpop.f32.mrf.mxu0
    %v295 = vadd.f32 0.0, %v294
    %296 = vmatmul.bf16.gmra.mxu0 %v196
    %v297 = vpop.f32.mrf.mxu0
    %v298 = vadd.f32 0.0, %v297
    %v299 = vpop.f32.mrf.mxu0
    %v300 = vadd.f32 0.0, %v299
    %301 = vmatmul.bf16.gmra.mxu0 %v197
    %v302 = vpop.f32.mrf.mxu0
    %v303 = vadd.f32 0.0, %v302
    %v304 = vpop.f32.mrf.mxu0
    %v305 = vadd.f32 0.0, %v304
    %306 = vmatmul.bf16.gmra.mxu0 %v198
    %v307 = vpop.f32.mrf.mxu0
    %v308 = vadd.f32 0.0, %v307
    %v309 = vpop.f32.mrf.mxu0
    %v310 = vadd.f32 0.0, %v309
    %311 = vmatmul.bf16.gmra.mxu0 %v199
    %v312 = vpop.f32.mrf.mxu0
    %v313 = vadd.f32 0.0, %v312
    %v314 = vpop.f32.mrf.mxu0
    %v315 = vadd.f32 0.0, %v314
    %316 = vmatmul.bf16.gmra.mxu0 %v200
    %v317 = vpop.f32.mrf.mxu0
    %v318 = vadd.f32 0.0, %v317
    %v319 = vpop.f32.mrf.mxu0
    %v320 = vadd.f32 0.0, %v319
    %321 = vmatmul.bf16.gmra.mxu0 %v201
    %v322 = vpop.f32.mrf.mxu0
    %v323 = vadd.f32 0.0, %v322
    %v324 = vpop.f32.mrf.mxu0
    %v325 = vadd.f32 0.0, %v324
    %326 = vmatmul.bf16.gmra.mxu0 %v202
    %v327 = vpop.f32.mrf.mxu0
    %v328 = vadd.f32 0.0, %v327
    %v329 = vpop.f32.mrf.mxu0
    %v330 = vadd.f32 0.0, %v329
    %331 = vmatmul.bf16.gmra.mxu0 %v203
    %v332 = vpop.f32.mrf.mxu0
    %v333 = vadd.f32 0.0, %v332
    %v334 = vpop.f32.mrf.mxu0
    %v335 = vadd.f32 0.0, %v334
    %336 = vmatmul.bf16.gmra.mxu0 %v204
    %v337 = vpop.f32.mrf.mxu0
    %v338 = vadd.f32 0.0, %v337
    %v339 = vpop.f32.mrf.mxu0
    %v340 = vadd.f32 0.0, %v339
    %341 = vmatmul.bf16.gmra.mxu0 %v205
    %v342 = vpop.f32.mrf.mxu0
    %v343 = vadd.f32 0.0, %v342
    %v344 = vpop.f32.mrf.mxu0
    %v345 = vadd.f32 0.0, %v344
    %346 = vmatmul.bf16.gmra.mxu0 %v206
    %v347 = vpop.f32.mrf.mxu0
    %v348 = vadd.f32 0.0, %v347
    %v349 = vpop.f32.mrf.mxu0
    %v350 = vadd.f32 0.0, %v349
    %351 = vmatmul.bf16.gmra.mxu0 %v207
    %v352 = vpop.f32.mrf.mxu0
    %v353 = vadd.f32 0.0, %v352
    %v354 = vpop.f32.mrf.mxu0
    %v355 = vadd.f32 0.0, %v354
    %356 = vmatmul.bf16.gmra.mxu0 %v208
    %v357 = vpop.f32.mrf.mxu0
    %v358 = vadd.f32 0.0, %v357
    %v359 = vpop.f32.mrf.mxu0
    %v360 = vadd.f32 0.0, %v359
    %361 = vdwg.mxu0
    %v362 = vunpack.c.h.b16 %v97
    %v363 = vunpack.c.h.b16 %v99
    %v364 = vunpack.c.h.b16 %v101
    %v365 = vunpack.c.h.b16 %v103
    %v366 = vunpack.c.h.b16 %v105
    %v367 = vunpack.c.h.b16 %v107
    %v368 = vunpack.c.h.b16 %v109
    %v369 = vunpack.c.h.b16 %v111
    %v370 = vunpack.c.h.b16 %v113
    %v371 = vunpack.c.h.b16 %v115
    %v372 = vunpack.c.h.b16 %v117
    %v373 = vunpack.c.h.b16 %v119
    %v374 = vunpack.c.h.b16 %v121
    %v375 = vunpack.c.h.b16 %v123
    %v376 = vunpack.c.h.b16 %v125
    %v377 = vunpack.c.h.b16 %v127
    %v378 = vpack.c.b16 %v363, %v362
    %v379 = vpack.c.b16 %v365, %v364
    %v380 = vpack.c.b16 %v367, %v366
    %v381 = vpack.c.b16 %v369, %v368
    %v382 = vpack.c.b16 %v371, %v370
    %v383 = vpack.c.b16 %v373, %v372
    %v384 = vpack.c.b16 %v375, %v374
    %v385 = vpack.c.b16 %v377, %v376
    %394 = vmatpush.bf16.msra.mxu0 %v385
    %395 = vmatpush.bf16.msra.mxu0 %v384
    %396 = vmatpush.bf16.msra.mxu0 %v383
    %397 = vmatpush.bf16.msra.mxu0 %v382
    %398 = vmatpush.bf16.msra.mxu0 %v381
    %399 = vmatpush.bf16.msra.mxu0 %v380
    %400 = vmatpush.bf16.msra.mxu0 %v379
    %401 = vmatpush.bf16.msra.mxu0 %v378
    %402 = vmatmul.bf16.gmra.mxu0 %v193
    %v403 = vpop.f32.mrf.mxu0
    %v404 = vadd.f32 0.0, %v403
    %v405 = vpop.f32.mrf.mxu0
    %v406 = vadd.f32 0.0, %v405
    %407 = vmatmul.bf16.gmra.mxu0 %v194
    %v408 = vpop.f32.mrf.mxu0
    %v409 = vadd.f32 0.0, %v408
    %v410 = vpop.f32.mrf.mxu0
    %v411 = vadd.f32 0.0, %v410
    %412 = vmatmul.bf16.gmra.mxu0 %v195
    %v413 = vpop.f32.mrf.mxu0
    %v414 = vadd.f32 0.0, %v413
    %v415 = vpop.f32.mrf.mxu0
    %v416 = vadd.f32 0.0, %v415
    %417 = vmatmul.bf16.gmra.mxu0 %v196
    %v418 = vpop.f32.mrf.mxu0
    %v419 = vadd.f32 0.0, %v418
    %v420 = vpop.f32.mrf.mxu0
    %v421 = vadd.f32 0.0, %v420
    %422 = vmatmul.bf16.gmra.mxu0 %v197
    %v423 = vpop.f32.mrf.mxu0
    %v424 = vadd.f32 0.0, %v423
    %v425 = vpop.f32.mrf.mxu0
    %v426 = vadd.f32 0.0, %v425
    %427 = vmatmul.bf16.gmra.mxu0 %v198
    %v428 = vpop.f32.mrf.mxu0
    %v429 = vadd.f32 0.0, %v428
    %v430 = vpop.f32.mrf.mxu0
    %v431 = vadd.f32 0.0, %v430
    %432 = vmatmul.bf16.gmra.mxu0 %v199
    %v433 = vpop.f32.mrf.mxu0
    %v434 = vadd.f32 0.0, %v433
    %v435 = vpop.f32.mrf.mxu0
    %v436 = vadd.f32 0.0, %v435
    %437 = vmatmul.bf16.gmra.mxu0 %v200
    %v438 = vpop.f32.mrf.mxu0
    %v439 = vadd.f32 0.0, %v438
    %v440 = vpop.f32.mrf.mxu0
    %v441 = vadd.f32 0.0, %v440
    %442 = vmatmul.bf16.gmra.mxu0 %v201
    %v443 = vpop.f32.mrf.mxu0
    %v444 = vadd.f32 0.0, %v443
    %v445 = vpop.f32.mrf.mxu0
    %v446 = vadd.f32 0.0, %v445
    %447 = vmatmul.bf16.gmra.mxu0 %v202
    %v448 = vpop.f32.mrf.mxu0
    %v449 = vadd.f32 0.0, %v448
    %v450 = vpop.f32.mrf.mxu0
    %v451 = vadd.f32 0.0, %v450
    %452 = vmatmul.bf16.gmra.mxu0 %v203
    %v453 = vpop.f32.mrf.mxu0
    %v454 = vadd.f32 0.0, %v453
    %v455 = vpop.f32.mrf.mxu0
    %v456 = vadd.f32 0.0, %v455
    %457 = vmatmul.bf16.gmra.mxu0 %v204
    %v458 = vpop.f32.mrf.mxu0
    %v459 = vadd.f32 0.0, %v458
    %v460 = vpop.f32.mrf.mxu0
    %v461 = vadd.f32 0.0, %v460
    %462 = vmatmul.bf16.gmra.mxu0 %v205
    %v463 = vpop.f32.mrf.mxu0
    %v464 = vadd.f32 0.0, %v463
    %v465 = vpop.f32.mrf.mxu0
    %v466 = vadd.f32 0.0, %v465
    %467 = vmatmul.bf16.gmra.mxu0 %v206
    %v468 = vpop.f32.mrf.mxu0
    %v469 = vadd.f32 0.0, %v468
    %v470 = vpop.f32.mrf.mxu0
    %v471 = vadd.f32 0.0, %v470
    %472 = vmatmul.bf16.gmra.mxu0 %v207
    %v473 = vpop.f32.mrf.mxu0
    %v474 = vadd.f32 0.0, %v473
    %v475 = vpop.f32.mrf.mxu0
    %v476 = vadd.f32 0.0, %v475
    %477 = vmatmul.bf16.gmra.mxu0 %v208
    %v478 = vpop.f32.mrf.mxu0
    %v479 = vadd.f32 0.0, %v478
    %v480 = vpop.f32.mrf.mxu0
    %v481 = vadd.f32 0.0, %v480
    %482 = vdwg.mxu0
    %v499 = vunpack.c.l.b16 %v98
    %v500 = vunpack.c.l.b16 %v100
    %v501 = vunpack.c.l.b16 %v102
    %v502 = vunpack.c.l.b16 %v104
    %v503 = vunpack.c.l.b16 %v106
    %v504 = vunpack.c.l.b16 %v108
    %v505 = vunpack.c.l.b16 %v110
    %v506 = vunpack.c.l.b16 %v112
    %v507 = vunpack.c.l.b16 %v114
    %v508 = vunpack.c.l.b16 %v116
    %v509 = vunpack.c.l.b16 %v118
    %v510 = vunpack.c.l.b16 %v120
    %v511 = vunpack.c.l.b16 %v122
    %v512 = vunpack.c.l.b16 %v124
    %v513 = vunpack.c.l.b16 %v126
    %v514 = vunpack.c.l.b16 %v128
    %v515 = vpack.c.b16 %v500, %v499
    %v516 = vpack.c.b16 %v502, %v501
    %v517 = vpack.c.b16 %v504, %v503
    %v518 = vpack.c.b16 %v506, %v505
    %v519 = vpack.c.b16 %v508, %v507
    %v520 = vpack.c.b16 %v510, %v509
    %v521 = vpack.c.b16 %v512, %v511
    %v522 = vpack.c.b16 %v514, %v513
    %531 = vmatpush.bf16.msra.mxu0 %v522
    %532 = vmatpush.bf16.msra.mxu0 %v521
    %533 = vmatpush.bf16.msra.mxu0 %v520
    %534 = vmatpush.bf16.msra.mxu0 %v519
    %535 = vmatpush.bf16.msra.mxu0 %v518
    %536 = vmatpush.bf16.msra.mxu0 %v517
    %537 = vmatpush.bf16.msra.mxu0 %v516
    %538 = vmatpush.bf16.msra.mxu0 %v515
    %539 = vmatmul.bf16.gmra.mxu0 %v193
    %v540 = vpop.f32.mrf.mxu0
    %v541 = vadd.f32 0.0, %v540
    %v542 = vpop.f32.mrf.mxu0
    %v543 = vadd.f32 0.0, %v542
    %544 = vmatmul.bf16.gmra.mxu0 %v194
    %v545 = vpop.f32.mrf.mxu0
    %v546 = vadd.f32 0.0, %v545
    %v547 = vpop.f32.mrf.mxu0
    %v548 = vadd.f32 0.0, %v547
    %549 = vmatmul.bf16.gmra.mxu0 %v195
    %v550 = vpop.f32.mrf.mxu0
    %v551 = vadd.f32 0.0, %v550
    %v552 = vpop.f32.mrf.mxu0
    %v553 = vadd.f32 0.0, %v552
    %554 = vmatmul.bf16.gmra.mxu0 %v196
    %v555 = vpop.f32.mrf.mxu0
    %v556 = vadd.f32 0.0, %v555
    %v557 = vpop.f32.mrf.mxu0
    %v558 = vadd.f32 0.0, %v557
    %559 = vmatmul.bf16.gmra.mxu0 %v197
    %v560 = vpop.f32.mrf.mxu0
    %v561 = vadd.f32 0.0, %v560
    %v562 = vpop.f32.mrf.mxu0
    %v563 = vadd.f32 0.0, %v562
    %564 = vmatmul.bf16.gmra.mxu0 %v198
    %v565 = vpop.f32.mrf.mxu0
    %v566 = vadd.f32 0.0, %v565
    %v567 = vpop.f32.mrf.mxu0
    %v568 = vadd.f32 0.0, %v567
    %569 = vmatmul.bf16.gmra.mxu0 %v199
    %v570 = vpop.f32.mrf.mxu0
    %v571 = vadd.f32 0.0, %v570
    %v572 = vpop.f32.mrf.mxu0
    %v573 = vadd.f32 0.0, %v572
    %574 = vmatmul.bf16.gmra.mxu0 %v200
    %v575 = vpop.f32.mrf.mxu0
    %v576 = vadd.f32 0.0, %v575
    %v577 = vpop.f32.mrf.mxu0
    %v578 = vadd.f32 0.0, %v577
    %579 = vmatmul.bf16.gmra.mxu0 %v201
    %v580 = vpop.f32.mrf.mxu0
    %v581 = vadd.f32 0.0, %v580
    %v582 = vpop.f32.mrf.mxu0
    %v583 = vadd.f32 0.0, %v582
    %584 = vmatmul.bf16.gmra.mxu0 %v202
    %v585 = vpop.f32.mrf.mxu0
    %v586 = vadd.f32 0.0, %v585
    %v587 = vpop.f32.mrf.mxu0
    %v588 = vadd.f32 0.0, %v587
    %589 = vmatmul.bf16.gmra.mxu0 %v203
    %v590 = vpop.f32.mrf.mxu0
    %v591 = vadd.f32 0.0, %v590
    %v592 = vpop.f32.mrf.mxu0
    %v593 = vadd.f32 0.0, %v592
    %594 = vmatmul.bf16.gmra.mxu0 %v204
    %v595 = vpop.f32.mrf.mxu0
    %v596 = vadd.f32 0.0, %v595
    %v597 = vpop.f32.mrf.mxu0
    %v598 = vadd.f32 0.0, %v597
    %599 = vmatmul.bf16.gmra.mxu0 %v205
    %v600 = vpop.f32.mrf.mxu0
    %v601 = vadd.f32 0.0, %v600
    %v602 = vpop.f32.mrf.mxu0
    %v603 = vadd.f32 0.0, %v602
    %604 = vmatmul.bf16.gmra.mxu0 %v206
    %v605 = vpop.f32.mrf.mxu0
    %v606 = vadd.f32 0.0, %v605
    %v607 = vpop.f32.mrf.mxu0
    %v608 = vadd.f32 0.0, %v607
    %609 = vmatmul.bf16.gmra.mxu0 %v207
    %v610 = vpop.f32.mrf.mxu0
    %v611 = vadd.f32 0.0, %v610
    %v612 = vpop.f32.mrf.mxu0
    %v613 = vadd.f32 0.0, %v612
    %614 = vmatmul.bf16.gmra.mxu0 %v208
    %v615 = vpop.f32.mrf.mxu0
    %v616 = vadd.f32 0.0, %v615
    %v617 = vpop.f32.mrf.mxu0
    %v618 = vadd.f32 0.0, %v617
    %619 = vdwg.mxu0
    %v620 = vpack.c.bf16 %v541, %v541
    %v621 = vpack.c.bf16 %v543, %v543
    %v622 = vpack.c.bf16 %v546, %v546
    %v623 = vpack.c.bf16 %v548, %v548
    %v624 = vpack.c.bf16 %v551, %v551
    %v625 = vpack.c.bf16 %v553, %v553
    %v626 = vpack.c.bf16 %v556, %v556
    %v627 = vpack.c.bf16 %v558, %v558
    %v628 = vpack.c.bf16 %v561, %v561
    %v629 = vpack.c.bf16 %v563, %v563
    %v630 = vpack.c.bf16 %v566, %v566
    %v631 = vpack.c.bf16 %v568, %v568
    %v632 = vpack.c.bf16 %v571, %v571
    %v633 = vpack.c.bf16 %v573, %v573
    %v634 = vpack.c.bf16 %v576, %v576
    %v635 = vpack.c.bf16 %v578, %v578
    %v636 = vpack.c.bf16 %v581, %v581
    %v637 = vpack.c.bf16 %v583, %v583
    %v638 = vpack.c.bf16 %v586, %v586
    %v639 = vpack.c.bf16 %v588, %v588
    %v640 = vpack.c.bf16 %v591, %v591
    %v641 = vpack.c.bf16 %v593, %v593
    %v642 = vpack.c.bf16 %v596, %v596
    %v643 = vpack.c.bf16 %v598, %v598
    %v644 = vpack.c.bf16 %v601, %v601
    %v645 = vpack.c.bf16 %v603, %v603
    %v646 = vpack.c.bf16 %v606, %v606
    %v647 = vpack.c.bf16 %v608, %v608
    %v648 = vpack.c.bf16 %v611, %v611
    %v649 = vpack.c.bf16 %v613, %v613
    %v650 = vpack.c.bf16 %v616, %v616
    %v651 = vpack.c.bf16 %v618, %v618
    %vm652 = vcmask 130048
    %v653 = vsel %vm652, %v283, -inf
    %654 = vmax.xlane.f32.xlu0 %v653
    %v655 = vpop.xlane.xlu0 %654
    %v656 = vsel %vm652, %v285, -inf
    %657 = vmax.xlane.f32.xlu0 %v656
    %v658 = vpop.xlane.xlu0 %657
    %v659 = vsel %vm652, %v288, -inf
    %660 = vmax.xlane.f32.xlu0 %v659
    %v661 = vpop.xlane.xlu0 %660
    %v662 = vsel %vm652, %v290, -inf
    %663 = vmax.xlane.f32.xlu0 %v662
    %v664 = vpop.xlane.xlu0 %663
    %v665 = vsel %vm652, %v293, -inf
    %666 = vmax.xlane.f32.xlu0 %v665
    %v667 = vpop.xlane.xlu0 %666
    %v668 = vsel %vm652, %v295, -inf
    %669 = vmax.xlane.f32.xlu0 %v668
    %v670 = vpop.xlane.xlu0 %669
    %v671 = vsel %vm652, %v298, -inf
    %672 = vmax.xlane.f32.xlu0 %v671
    %v673 = vpop.xlane.xlu0 %672
    %v674 = vsel %vm652, %v300, -inf
    %675 = vmax.xlane.f32.xlu0 %v674
    %v676 = vpop.xlane.xlu0 %675
    %v677 = vsel %vm652, %v303, -inf
    %678 = vmax.xlane.f32.xlu0 %v677
    %v679 = vpop.xlane.xlu0 %678
    %v680 = vsel %vm652, %v305, -inf
    %681 = vmax.xlane.f32.xlu0 %v680
    %v682 = vpop.xlane.xlu0 %681
    %v683 = vsel %vm652, %v308, -inf
    %684 = vmax.xlane.f32.xlu0 %v683
    %v685 = vpop.xlane.xlu0 %684
    %v686 = vsel %vm652, %v310, -inf
    %687 = vmax.xlane.f32.xlu0 %v686
    %v688 = vpop.xlane.xlu0 %687
    %v689 = vsel %vm652, %v313, -inf
    %690 = vmax.xlane.f32.xlu0 %v689
    %v691 = vpop.xlane.xlu0 %690
    %v692 = vsel %vm652, %v315, -inf
    %693 = vmax.xlane.f32.xlu0 %v692
    %v694 = vpop.xlane.xlu0 %693
    %v695 = vsel %vm652, %v318, -inf
    %696 = vmax.xlane.f32.xlu0 %v695
    %v697 = vpop.xlane.xlu0 %696
    %v698 = vsel %vm652, %v320, -inf
    %699 = vmax.xlane.f32.xlu0 %v698
    %v700 = vpop.xlane.xlu0 %699
    %v701 = vsel %vm652, %v323, -inf
    %702 = vmax.xlane.f32.xlu0 %v701
    %v703 = vpop.xlane.xlu0 %702
    %v704 = vsel %vm652, %v325, -inf
    %705 = vmax.xlane.f32.xlu0 %v704
    %v706 = vpop.xlane.xlu0 %705
    %v707 = vsel %vm652, %v328, -inf
    %708 = vmax.xlane.f32.xlu0 %v707
    %v709 = vpop.xlane.xlu0 %708
    %v710 = vsel %vm652, %v330, -inf
    %711 = vmax.xlane.f32.xlu0 %v710
    %v712 = vpop.xlane.xlu0 %711
    %v713 = vsel %vm652, %v333, -inf
    %714 = vmax.xlane.f32.xlu0 %v713
    %v715 = vpop.xlane.xlu0 %714
    %v716 = vsel %vm652, %v335, -inf
    %717 = vmax.xlane.f32.xlu0 %v716
    %v718 = vpop.xlane.xlu0 %717
    %v719 = vsel %vm652, %v338, -inf
    %720 = vmax.xlane.f32.xlu0 %v719
    %v721 = vpop.xlane.xlu0 %720
    %v722 = vsel %vm652, %v340, -inf
    %723 = vmax.xlane.f32.xlu0 %v722
    %v724 = vpop.xlane.xlu0 %723
    %v725 = vsel %vm652, %v343, -inf
    %726 = vmax.xlane.f32.xlu0 %v725
    %v727 = vpop.xlane.xlu0 %726
    %v728 = vsel %vm652, %v345, -inf
    %729 = vmax.xlane.f32.xlu0 %v728
    %v730 = vpop.xlane.xlu0 %729
    %v731 = vsel %vm652, %v348, -inf
    %732 = vmax.xlane.f32.xlu0 %v731
    %v733 = vpop.xlane.xlu0 %732
    %v734 = vsel %vm652, %v350, -inf
    %735 = vmax.xlane.f32.xlu0 %v734
    %v736 = vpop.xlane.xlu0 %735
    %v737 = vsel %vm652, %v353, -inf
    %738 = vmax.xlane.f32.xlu0 %v737
    %v739 = vpop.xlane.xlu0 %738
    %v740 = vsel %vm652, %v355, -inf
    %741 = vmax.xlane.f32.xlu0 %v740
    %v742 = vpop.xlane.xlu0 %741
    %v743 = vsel %vm652, %v358, -inf
    %744 = vmax.xlane.f32.xlu0 %v743
    %v745 = vpop.xlane.xlu0 %744
    %v746 = vsel %vm652, %v360, -inf
    %747 = vmax.xlane.f32.xlu0 %v746
    %v748 = vpop.xlane.xlu0 %747
    %vm749 = vcmask 261248
    %v750 = vsel %vm749, %v283, -inf
    %751 = vmax.xlane.f32.xlu0 %v750
    %v752 = vpop.xlane.xlu0 %751
    %v753 = vsel %vm749, %v285, -inf
    %754 = vmax.xlane.f32.xlu0 %v753
    %v755 = vpop.xlane.xlu0 %754
    %v756 = vsel %vm749, %v288, -inf
    %757 = vmax.xlane.f32.xlu0 %v756
    %v758 = vpop.xlane.xlu0 %757
    %v759 = vsel %vm749, %v290, -inf
    %760 = vmax.xlane.f32.xlu0 %v759
    %v761 = vpop.xlane.xlu0 %760
    %v762 = vsel %vm749, %v293, -inf
    %763 = vmax.xlane.f32.xlu0 %v762
    %v764 = vpop.xlane.xlu0 %763
    %v765 = vsel %vm749, %v295, -inf
    %766 = vmax.xlane.f32.xlu0 %v765
    %v767 = vpop.xlane.xlu0 %766
    %v768 = vsel %vm749, %v298, -inf
    %769 = vmax.xlane.f32.xlu0 %v768
    %v770 = vpop.xlane.xlu0 %769
    %v771 = vsel %vm749, %v300, -inf
    %772 = vmax.xlane.f32.xlu0 %v771
    %v773 = vpop.xlane.xlu0 %772
    %v774 = vsel %vm749, %v303, -inf
    %775 = vmax.xlane.f32.xlu0 %v774
    %v776 = vpop.xlane.xlu0 %775
    %v777 = vsel %vm749, %v305, -inf
    %778 = vmax.xlane.f32.xlu0 %v777
    %v779 = vpop.xlane.xlu0 %778
    %v780 = vsel %vm749, %v308, -inf
    %781 = vmax.xlane.f32.xlu0 %v780
    %v782 = vpop.xlane.xlu0 %781
    %v783 = vsel %vm749, %v310, -inf
    %784 = vmax.xlane.f32.xlu0 %v783
    %v785 = vpop.xlane.xlu0 %784
    %v786 = vsel %vm749, %v313, -inf
    %787 = vmax.xlane.f32.xlu0 %v786
    %v788 = vpop.xlane.xlu0 %787
    %v789 = vsel %vm749, %v315, -inf
    %790 = vmax.xlane.f32.xlu0 %v789
    %v791 = vpop.xlane.xlu0 %790
    %v792 = vsel %vm749, %v318, -inf
    %793 = vmax.xlane.f32.xlu0 %v792
    %v794 = vpop.xlane.xlu0 %793
    %v795 = vsel %vm749, %v320, -inf
    %796 = vmax.xlane.f32.xlu0 %v795
    %v797 = vpop.xlane.xlu0 %796
    %v798 = vsel %vm749, %v323, -inf
    %799 = vmax.xlane.f32.xlu0 %v798
    %v800 = vpop.xlane.xlu0 %799
    %v801 = vsel %vm749, %v325, -inf
    %802 = vmax.xlane.f32.xlu0 %v801
    %v803 = vpop.xlane.xlu0 %802
    %v804 = vsel %vm749, %v328, -inf
    %805 = vmax.xlane.f32.xlu0 %v804
    %v806 = vpop.xlane.xlu0 %805
    %v807 = vsel %vm749, %v330, -inf
    %808 = vmax.xlane.f32.xlu0 %v807
    %v809 = vpop.xlane.xlu0 %808
    %v810 = vsel %vm749, %v333, -inf
    %811 = vmax.xlane.f32.xlu0 %v810
    %v812 = vpop.xlane.xlu0 %811
    %v813 = vsel %vm749, %v335, -inf
    %814 = vmax.xlane.f32.xlu0 %v813
    %v815 = vpop.xlane.xlu0 %814
    %v816 = vsel %vm749, %v338, -inf
    %817 = vmax.xlane.f32.xlu0 %v816
    %v818 = vpop.xlane.xlu0 %817
    %v819 = vsel %vm749, %v340, -inf
    %820 = vmax.xlane.f32.xlu0 %v819
    %v821 = vpop.xlane.xlu0 %820
    %v822 = vsel %vm749, %v343, -inf
    %823 = vmax.xlane.f32.xlu0 %v822
    %v824 = vpop.xlane.xlu0 %823
    %v825 = vsel %vm749, %v345, -inf
    %826 = vmax.xlane.f32.xlu0 %v825
    %v827 = vpop.xlane.xlu0 %826
    %v828 = vsel %vm749, %v348, -inf
    %829 = vmax.xlane.f32.xlu0 %v828
    %v830 = vpop.xlane.xlu0 %829
    %v831 = vsel %vm749, %v350, -inf
    %832 = vmax.xlane.f32.xlu0 %v831
    %v833 = vpop.xlane.xlu0 %832
    %v834 = vsel %vm749, %v353, -inf
    %835 = vmax.xlane.f32.xlu0 %v834
    %v836 = vpop.xlane.xlu0 %835
    %v837 = vsel %vm749, %v355, -inf
    %838 = vmax.xlane.f32.xlu0 %v837
    %v839 = vpop.xlane.xlu0 %838
    %v840 = vsel %vm749, %v358, -inf
    %841 = vmax.xlane.f32.xlu0 %v840
    %v842 = vpop.xlane.xlu0 %841
    %v843 = vsel %vm749, %v360, -inf
    %844 = vmax.xlane.f32.xlu0 %v843
    %v845 = vpop.xlane.xlu0 %844
    %vm846 = vcmask 392448
    %v847 = vsel %vm846, %v283, -inf
    %848 = vmax.xlane.f32.xlu0 %v847
    %v849 = vpop.xlane.xlu0 %848
    %v850 = vsel %vm846, %v285, -inf
    %851 = vmax.xlane.f32.xlu0 %v850
    %v852 = vpop.xlane.xlu0 %851
    %v853 = vsel %vm846, %v288, -inf
    %854 = vmax.xlane.f32.xlu0 %v853
    %v855 = vpop.xlane.xlu0 %854
    %v856 = vsel %vm846, %v290, -inf
    %857 = vmax.xlane.f32.xlu0 %v856
    %v858 = vpop.xlane.xlu0 %857
    %v859 = vsel %vm846, %v293, -inf
    %860 = vmax.xlane.f32.xlu0 %v859
    %v861 = vpop.xlane.xlu0 %860
    %v862 = vsel %vm846, %v295, -inf
    %863 = vmax.xlane.f32.xlu0 %v862
    %v864 = vpop.xlane.xlu0 %863
    %v865 = vsel %vm846, %v298, -inf
    %866 = vmax.xlane.f32.xlu0 %v865
    %v867 = vpop.xlane.xlu0 %866
    %v868 = vsel %vm846, %v300, -inf
    %869 = vmax.xlane.f32.xlu0 %v868
    %v870 = vpop.xlane.xlu0 %869
    %v871 = vsel %vm846, %v303, -inf
    %872 = vmax.xlane.f32.xlu0 %v871
    %v873 = vpop.xlane.xlu0 %872
    %v874 = vsel %vm846, %v305, -inf
    %875 = vmax.xlane.f32.xlu0 %v874
    %v876 = vpop.xlane.xlu0 %875
    %v877 = vsel %vm846, %v308, -inf
    %878 = vmax.xlane.f32.xlu0 %v877
    %v879 = vpop.xlane.xlu0 %878
    %v880 = vsel %vm846, %v310, -inf
    %881 = vmax.xlane.f32.xlu0 %v880
    %v882 = vpop.xlane.xlu0 %881
    %v883 = vsel %vm846, %v313, -inf
    %884 = vmax.xlane.f32.xlu0 %v883
    %v885 = vpop.xlane.xlu0 %884
    %v886 = vsel %vm846, %v315, -inf
    %887 = vmax.xlane.f32.xlu0 %v886
    %v888 = vpop.xlane.xlu0 %887
    %v889 = vsel %vm846, %v318, -inf
    %890 = vmax.xlane.f32.xlu0 %v889
    %v891 = vpop.xlane.xlu0 %890
    %v892 = vsel %vm846, %v320, -inf
    %893 = vmax.xlane.f32.xlu0 %v892
    %v894 = vpop.xlane.xlu0 %893
    %v895 = vsel %vm846, %v323, -inf
    %896 = vmax.xlane.f32.xlu0 %v895
    %v897 = vpop.xlane.xlu0 %896
    %v898 = vsel %vm846, %v325, -inf
    %899 = vmax.xlane.f32.xlu0 %v898
    %v900 = vpop.xlane.xlu0 %899
    %v901 = vsel %vm846, %v328, -inf
    %902 = vmax.xlane.f32.xlu0 %v901
    %v903 = vpop.xlane.xlu0 %902
    %v904 = vsel %vm846, %v330, -inf
    %905 = vmax.xlane.f32.xlu0 %v904
    %v906 = vpop.xlane.xlu0 %905
    %v907 = vsel %vm846, %v333, -inf
    %908 = vmax.xlane.f32.xlu0 %v907
    %v909 = vpop.xlane.xlu0 %908
    %v910 = vsel %vm846, %v335, -inf
    %911 = vmax.xlane.f32.xlu0 %v910
    %v912 = vpop.xlane.xlu0 %911
    %v913 = vsel %vm846, %v338, -inf
    %914 = vmax.xlane.f32.xlu0 %v913
    %v915 = vpop.xlane.xlu0 %914
    %v916 = vsel %vm846, %v340, -inf
    %917 = vmax.xlane.f32.xlu0 %v916
    %v918 = vpop.xlane.xlu0 %917
    %v919 = vsel %vm846, %v343, -inf
    %920 = vmax.xlane.f32.xlu0 %v919
    %v921 = vpop.xlane.xlu0 %920
    %v922 = vsel %vm846, %v345, -inf
    %923 = vmax.xlane.f32.xlu0 %v922
    %v924 = vpop.xlane.xlu0 %923
    %v925 = vsel %vm846, %v348, -inf
    %926 = vmax.xlane.f32.xlu0 %v925
    %v927 = vpop.xlane.xlu0 %926
    %v928 = vsel %vm846, %v350, -inf
    %929 = vmax.xlane.f32.xlu0 %v928
    %v930 = vpop.xlane.xlu0 %929
    %v931 = vsel %vm846, %v353, -inf
    %932 = vmax.xlane.f32.xlu0 %v931
    %v933 = vpop.xlane.xlu0 %932
    %v934 = vsel %vm846, %v355, -inf
    %935 = vmax.xlane.f32.xlu0 %v934
    %v936 = vpop.xlane.xlu0 %935
    %v937 = vsel %vm846, %v358, -inf
    %938 = vmax.xlane.f32.xlu0 %v937
    %v939 = vpop.xlane.xlu0 %938
    %v940 = vsel %vm846, %v360, -inf
    %941 = vmax.xlane.f32.xlu0 %v940
    %v942 = vpop.xlane.xlu0 %941
    %vm943 = vcmask 523648
    %v944 = vsel %vm943, %v283, -inf
    %945 = vmax.xlane.f32.xlu0 %v944
    %v946 = vpop.xlane.xlu0 %945
    %v947 = vsel %vm943, %v285, -inf
    %948 = vmax.xlane.f32.xlu0 %v947
    %v949 = vpop.xlane.xlu0 %948
    %v950 = vsel %vm943, %v288, -inf
    %951 = vmax.xlane.f32.xlu0 %v950
    %v952 = vpop.xlane.xlu0 %951
    %v953 = vsel %vm943, %v290, -inf
    %954 = vmax.xlane.f32.xlu0 %v953
    %v955 = vpop.xlane.xlu0 %954
    %v956 = vsel %vm943, %v293, -inf
    %957 = vmax.xlane.f32.xlu0 %v956
    %v958 = vpop.xlane.xlu0 %957
    %v959 = vsel %vm943, %v295, -inf
    %960 = vmax.xlane.f32.xlu0 %v959
    %v961 = vpop.xlane.xlu0 %960
    %v962 = vsel %vm943, %v298, -inf
    %963 = vmax.xlane.f32.xlu0 %v962
    %v964 = vpop.xlane.xlu0 %963
    %v965 = vsel %vm943, %v300, -inf
    %966 = vmax.xlane.f32.xlu0 %v965
    %v967 = vpop.xlane.xlu0 %966
    %v968 = vsel %vm943, %v303, -inf
    %969 = vmax.xlane.f32.xlu0 %v968
    %v970 = vpop.xlane.xlu0 %969
    %v971 = vsel %vm943, %v305, -inf
    %972 = vmax.xlane.f32.xlu0 %v971
    %v973 = vpop.xlane.xlu0 %972
    %v974 = vsel %vm943, %v308, -inf
    %975 = vmax.xlane.f32.xlu0 %v974
    %v976 = vpop.xlane.xlu0 %975
    %v977 = vsel %vm943, %v310, -inf
    %978 = vmax.xlane.f32.xlu0 %v977
    %v979 = vpop.xlane.xlu0 %978
    %v980 = vsel %vm943, %v313, -inf
    %981 = vmax.xlane.f32.xlu0 %v980
    %v982 = vpop.xlane.xlu0 %981
    %v983 = vsel %vm943, %v315, -inf
    %984 = vmax.xlane.f32.xlu0 %v983
    %v985 = vpop.xlane.xlu0 %984
    %v986 = vsel %vm943, %v318, -inf
    %987 = vmax.xlane.f32.xlu0 %v986
    %v988 = vpop.xlane.xlu0 %987
    %v989 = vsel %vm943, %v320, -inf
    %990 = vmax.xlane.f32.xlu0 %v989
    %v991 = vpop.xlane.xlu0 %990
    %v992 = vsel %vm943, %v323, -inf
    %993 = vmax.xlane.f32.xlu0 %v992
    %v994 = vpop.xlane.xlu0 %993
    %v995 = vsel %vm943, %v325, -inf
    %996 = vmax.xlane.f32.xlu0 %v995
    %v997 = vpop.xlane.xlu0 %996
    %v998 = vsel %vm943, %v328, -inf
    %999 = vmax.xlane.f32.xlu0 %v998
    %v1000 = vpop.xlane.xlu0 %999
    %v1001 = vsel %vm943, %v330, -inf
    %1002 = vmax.xlane.f32.xlu0 %v1001
    %v1003 = vpop.xlane.xlu0 %1002
    %v1004 = vsel %vm943, %v333, -inf
    %1005 = vmax.xlane.f32.xlu0 %v1004
    %v1006 = vpop.xlane.xlu0 %1005
    %v1007 = vsel %vm943, %v335, -inf
    %1008 = vmax.xlane.f32.xlu0 %v1007
    %v1009 = vpop.xlane.xlu0 %1008
    %v1010 = vsel %vm943, %v338, -inf
    %1011 = vmax.xlane.f32.xlu0 %v1010
    %v1012 = vpop.xlane.xlu0 %1011
    %v1013 = vsel %vm943, %v340, -inf
    %1014 = vmax.xlane.f32.xlu0 %v1013
    %v1015 = vpop.xlane.xlu0 %1014
    %v1016 = vsel %vm943, %v343, -inf
    %1017 = vmax.xlane.f32.xlu0 %v1016
    %v1018 = vpop.xlane.xlu0 %1017
    %v1019 = vsel %vm943, %v345, -inf
    %1020 = vmax.xlane.f32.xlu0 %v1019
    %v1021 = vpop.xlane.xlu0 %1020
    %v1022 = vsel %vm943, %v348, -inf
    %1023 = vmax.xlane.f32.xlu0 %v1022
    %v1024 = vpop.xlane.xlu0 %1023
    %v1025 = vsel %vm943, %v350, -inf
    %1026 = vmax.xlane.f32.xlu0 %v1025
    %v1027 = vpop.xlane.xlu0 %1026
    %v1028 = vsel %vm943, %v353, -inf
    %1029 = vmax.xlane.f32.xlu0 %v1028
    %v1030 = vpop.xlane.xlu0 %1029
    %v1031 = vsel %vm943, %v355, -inf
    %1032 = vmax.xlane.f32.xlu0 %v1031
    %v1033 = vpop.xlane.xlu0 %1032
    %v1034 = vsel %vm943, %v358, -inf
    %1035 = vmax.xlane.f32.xlu0 %v1034
    %v1036 = vpop.xlane.xlu0 %1035
    %v1037 = vsel %vm943, %v360, -inf
    %1038 = vmax.xlane.f32.xlu0 %v1037
    %v1039 = vpop.xlane.xlu0 %1038
    %vm1040 = vcmask 654848
    %v1041 = vsel %vm1040, %v283, -inf
    %1042 = vmax.xlane.f32.xlu0 %v1041
    %v1043 = vpop.xlane.xlu0 %1042
    %v1044 = vsel %vm1040, %v285, -inf
    %1045 = vmax.xlane.f32.xlu0 %v1044
    %v1046 = vpop.xlane.xlu0 %1045
    %v1047 = vsel %vm1040, %v288, -inf
    %1048 = vmax.xlane.f32.xlu0 %v1047
    %v1049 = vpop.xlane.xlu0 %1048
    %v1050 = vsel %vm1040, %v290, -inf
    %1051 = vmax.xlane.f32.xlu0 %v1050
    %v1052 = vpop.xlane.xlu0 %1051
    %v1053 = vsel %vm1040, %v293, -inf
    %1054 = vmax.xlane.f32.xlu0 %v1053
    %v1055 = vpop.xlane.xlu0 %1054
    %v1056 = vsel %vm1040, %v295, -inf
    %1057 = vmax.xlane.f32.xlu0 %v1056
    %v1058 = vpop.xlane.xlu0 %1057
    %v1059 = vsel %vm1040, %v298, -inf
    %1060 = vmax.xlane.f32.xlu0 %v1059
    %v1061 = vpop.xlane.xlu0 %1060
    %v1062 = vsel %vm1040, %v300, -inf
    %1063 = vmax.xlane.f32.xlu0 %v1062
    %v1064 = vpop.xlane.xlu0 %1063
    %v1065 = vsel %vm1040, %v303, -inf
    %1066 = vmax.xlane.f32.xlu0 %v1065
    %v1067 = vpop.xlane.xlu0 %1066
    %v1068 = vsel %vm1040, %v305, -inf
    %1069 = vmax.xlane.f32.xlu0 %v1068
    %v1070 = vpop.xlane.xlu0 %1069
    %v1071 = vsel %vm1040, %v308, -inf
    %1072 = vmax.xlane.f32.xlu0 %v1071
    %v1073 = vpop.xlane.xlu0 %1072
    %v1074 = vsel %vm1040, %v310, -inf
    %1075 = vmax.xlane.f32.xlu0 %v1074
    %v1076 = vpop.xlane.xlu0 %1075
    %v1077 = vsel %vm1040, %v313, -inf
    %1078 = vmax.xlane.f32.xlu0 %v1077
    %v1079 = vpop.xlane.xlu0 %1078
    %v1080 = vsel %vm1040, %v315, -inf
    %1081 = vmax.xlane.f32.xlu0 %v1080
    %v1082 = vpop.xlane.xlu0 %1081
    %v1083 = vsel %vm1040, %v318, -inf
    %1084 = vmax.xlane.f32.xlu0 %v1083
    %v1085 = vpop.xlane.xlu0 %1084
    %v1086 = vsel %vm1040, %v320, -inf
    %1087 = vmax.xlane.f32.xlu0 %v1086
    %v1088 = vpop.xlane.xlu0 %1087
    %v1089 = vsel %vm1040, %v323, -inf
    %1090 = vmax.xlane.f32.xlu0 %v1089
    %v1091 = vpop.xlane.xlu0 %1090
    %v1092 = vsel %vm1040, %v325, -inf
    %1093 = vmax.xlane.f32.xlu0 %v1092
    %v1094 = vpop.xlane.xlu0 %1093
    %v1095 = vsel %vm1040, %v328, -inf
    %1096 = vmax.xlane.f32.xlu0 %v1095
    %v1097 = vpop.xlane.xlu0 %1096
    %v1098 = vsel %vm1040, %v330, -inf
    %1099 = vmax.xlane.f32.xlu0 %v1098
    %v1100 = vpop.xlane.xlu0 %1099
    %v1101 = vsel %vm1040, %v333, -inf
    %1102 = vmax.xlane.f32.xlu0 %v1101
    %v1103 = vpop.xlane.xlu0 %1102
    %v1104 = vsel %vm1040, %v335, -inf
    %1105 = vmax.xlane.f32.xlu0 %v1104
    %v1106 = vpop.xlane.xlu0 %1105
    %v1107 = vsel %vm1040, %v338, -inf
    %1108 = vmax.xlane.f32.xlu0 %v1107
    %v1109 = vpop.xlane.xlu0 %1108
    %v1110 = vsel %vm1040, %v340, -inf
    %1111 = vmax.xlane.f32.xlu0 %v1110
    %v1112 = vpop.xlane.xlu0 %1111
    %v1113 = vsel %vm1040, %v343, -inf
    %1114 = vmax.xlane.f32.xlu0 %v1113
    %v1115 = vpop.xlane.xlu0 %1114
    %v1116 = vsel %vm1040, %v345, -inf
    %1117 = vmax.xlane.f32.xlu0 %v1116
    %v1118 = vpop.xlane.xlu0 %1117
    %v1119 = vsel %vm1040, %v348, -inf
    %1120 = vmax.xlane.f32.xlu0 %v1119
    %v1121 = vpop.xlane.xlu0 %1120
    %v1122 = vsel %vm1040, %v350, -inf
    %1123 = vmax.xlane.f32.xlu0 %v1122
    %v1124 = vpop.xlane.xlu0 %1123
    %v1125 = vsel %vm1040, %v353, -inf
    %1126 = vmax.xlane.f32.xlu0 %v1125
    %v1127 = vpop.xlane.xlu0 %1126
    %v1128 = vsel %vm1040, %v355, -inf
    %1129 = vmax.xlane.f32.xlu0 %v1128
    %v1130 = vpop.xlane.xlu0 %1129
    %v1131 = vsel %vm1040, %v358, -inf
    %1132 = vmax.xlane.f32.xlu0 %v1131
    %v1133 = vpop.xlane.xlu0 %1132
    %v1134 = vsel %vm1040, %v360, -inf
    %1135 = vmax.xlane.f32.xlu0 %v1134
    %v1136 = vpop.xlane.xlu0 %1135
    %vm1137 = vcmask 786048
    %v1138 = vsel %vm1137, %v283, -inf
    %1139 = vmax.xlane.f32.xlu0 %v1138
    %v1140 = vpop.xlane.xlu0 %1139
    %v1141 = vsel %vm1137, %v285, -inf
    %1142 = vmax.xlane.f32.xlu0 %v1141
    %v1143 = vpop.xlane.xlu0 %1142
    %v1144 = vsel %vm1137, %v288, -inf
    %1145 = vmax.xlane.f32.xlu0 %v1144
    %v1146 = vpop.xlane.xlu0 %1145
    %v1147 = vsel %vm1137, %v290, -inf
    %1148 = vmax.xlane.f32.xlu0 %v1147
    %v1149 = vpop.xlane.xlu0 %1148
    %v1150 = vsel %vm1137, %v293, -inf
    %1151 = vmax.xlane.f32.xlu0 %v1150
    %v1152 = vpop.xlane.xlu0 %1151
    %v1153 = vsel %vm1137, %v295, -inf
    %1154 = vmax.xlane.f32.xlu0 %v1153
    %v1155 = vpop.xlane.xlu0 %1154
    %v1156 = vsel %vm1137, %v298, -inf
    %1157 = vmax.xlane.f32.xlu0 %v1156
    %v1158 = vpop.xlane.xlu0 %1157
    %v1159 = vsel %vm1137, %v300, -inf
    %1160 = vmax.xlane.f32.xlu0 %v1159
    %v1161 = vpop.xlane.xlu0 %1160
    %v1162 = vsel %vm1137, %v303, -inf
    %1163 = vmax.xlane.f32.xlu0 %v1162
    %v1164 = vpop.xlane.xlu0 %1163
    %v1165 = vsel %vm1137, %v305, -inf
    %1166 = vmax.xlane.f32.xlu0 %v1165
    %v1167 = vpop.xlane.xlu0 %1166
    %v1168 = vsel %vm1137, %v308, -inf
    %1169 = vmax.xlane.f32.xlu0 %v1168
    %v1170 = vpop.xlane.xlu0 %1169
    %v1171 = vsel %vm1137, %v310, -inf
    %1172 = vmax.xlane.f32.xlu0 %v1171
    %v1173 = vpop.xlane.xlu0 %1172
    %v1174 = vsel %vm1137, %v313, -inf
    %1175 = vmax.xlane.f32.xlu0 %v1174
    %v1176 = vpop.xlane.xlu0 %1175
    %v1177 = vsel %vm1137, %v315, -inf
    %1178 = vmax.xlane.f32.xlu0 %v1177
    %v1179 = vpop.xlane.xlu0 %1178
    %v1180 = vsel %vm1137, %v318, -inf
    %1181 = vmax.xlane.f32.xlu0 %v1180
    %v1182 = vpop.xlane.xlu0 %1181
    %v1183 = vsel %vm1137, %v320, -inf
    %1184 = vmax.xlane.f32.xlu0 %v1183
    %v1185 = vpop.xlane.xlu0 %1184
    %v1186 = vsel %vm1137, %v323, -inf
    %1187 = vmax.xlane.f32.xlu0 %v1186
    %v1188 = vpop.xlane.xlu0 %1187
    %v1189 = vsel %vm1137, %v325, -inf
    %1190 = vmax.xlane.f32.xlu0 %v1189
    %v1191 = vpop.xlane.xlu0 %1190
    %v1192 = vsel %vm1137, %v328, -inf
    %1193 = vmax.xlane.f32.xlu0 %v1192
    %v1194 = vpop.xlane.xlu0 %1193
    %v1195 = vsel %vm1137, %v330, -inf
    %1196 = vmax.xlane.f32.xlu0 %v1195
    %v1197 = vpop.xlane.xlu0 %1196
    %v1198 = vsel %vm1137, %v333, -inf
    %1199 = vmax.xlane.f32.xlu0 %v1198
    %v1200 = vpop.xlane.xlu0 %1199
    %v1201 = vsel %vm1137, %v335, -inf
    %1202 = vmax.xlane.f32.xlu0 %v1201
    %v1203 = vpop.xlane.xlu0 %1202
    %v1204 = vsel %vm1137, %v338, -inf
    %1205 = vmax.xlane.f32.xlu0 %v1204
    %v1206 = vpop.xlane.xlu0 %1205
    %v1207 = vsel %vm1137, %v340, -inf
    %1208 = vmax.xlane.f32.xlu0 %v1207
    %v1209 = vpop.xlane.xlu0 %1208
    %v1210 = vsel %vm1137, %v343, -inf
    %1211 = vmax.xlane.f32.xlu0 %v1210
    %v1212 = vpop.xlane.xlu0 %1211
    %v1213 = vsel %vm1137, %v345, -inf
    %1214 = vmax.xlane.f32.xlu0 %v1213
    %v1215 = vpop.xlane.xlu0 %1214
    %v1216 = vsel %vm1137, %v348, -inf
    %1217 = vmax.xlane.f32.xlu0 %v1216
    %v1218 = vpop.xlane.xlu0 %1217
    %v1219 = vsel %vm1137, %v350, -inf
    %1220 = vmax.xlane.f32.xlu0 %v1219
    %v1221 = vpop.xlane.xlu0 %1220
    %v1222 = vsel %vm1137, %v353, -inf
    %1223 = vmax.xlane.f32.xlu0 %v1222
    %v1224 = vpop.xlane.xlu0 %1223
    %v1225 = vsel %vm1137, %v355, -inf
    %1226 = vmax.xlane.f32.xlu0 %v1225
    %v1227 = vpop.xlane.xlu0 %1226
    %v1228 = vsel %vm1137, %v358, -inf
    %1229 = vmax.xlane.f32.xlu0 %v1228
    %v1230 = vpop.xlane.xlu0 %1229
    %v1231 = vsel %vm1137, %v360, -inf
    %1232 = vmax.xlane.f32.xlu0 %v1231
    %v1233 = vpop.xlane.xlu0 %1232
    %vm1234 = vcmask 917248
    %v1235 = vsel %vm1234, %v283, -inf
    %1236 = vmax.xlane.f32.xlu0 %v1235
    %v1237 = vpop.xlane.xlu0 %1236
    %v1238 = vsel %vm1234, %v285, -inf
    %1239 = vmax.xlane.f32.xlu0 %v1238
    %v1240 = vpop.xlane.xlu0 %1239
    %v1241 = vsel %vm1234, %v288, -inf
    %1242 = vmax.xlane.f32.xlu0 %v1241
    %v1243 = vpop.xlane.xlu0 %1242
    %v1244 = vsel %vm1234, %v290, -inf
    %1245 = vmax.xlane.f32.xlu0 %v1244
    %v1246 = vpop.xlane.xlu0 %1245
    %v1247 = vsel %vm1234, %v293, -inf
    %1248 = vmax.xlane.f32.xlu0 %v1247
    %v1249 = vpop.xlane.xlu0 %1248
    %v1250 = vsel %vm1234, %v295, -inf
    %1251 = vmax.xlane.f32.xlu0 %v1250
    %v1252 = vpop.xlane.xlu0 %1251
    %v1253 = vsel %vm1234, %v298, -inf
    %1254 = vmax.xlane.f32.xlu0 %v1253
    %v1255 = vpop.xlane.xlu0 %1254
    %v1256 = vsel %vm1234, %v300, -inf
    %1257 = vmax.xlane.f32.xlu0 %v1256
    %v1258 = vpop.xlane.xlu0 %1257
    %v1259 = vsel %vm1234, %v303, -inf
    %1260 = vmax.xlane.f32.xlu0 %v1259
    %v1261 = vpop.xlane.xlu0 %1260
    %v1262 = vsel %vm1234, %v305, -inf
    %1263 = vmax.xlane.f32.xlu0 %v1262
    %v1264 = vpop.xlane.xlu0 %1263
    %v1265 = vsel %vm1234, %v308, -inf
    %1266 = vmax.xlane.f32.xlu0 %v1265
    %v1267 = vpop.xlane.xlu0 %1266
    %v1268 = vsel %vm1234, %v310, -inf
    %1269 = vmax.xlane.f32.xlu0 %v1268
    %v1270 = vpop.xlane.xlu0 %1269
    %v1271 = vsel %vm1234, %v313, -inf
    %1272 = vmax.xlane.f32.xlu0 %v1271
    %v1273 = vpop.xlane.xlu0 %1272
    %v1274 = vsel %vm1234, %v315, -inf
    %1275 = vmax.xlane.f32.xlu0 %v1274
    %v1276 = vpop.xlane.xlu0 %1275
    %v1277 = vsel %vm1234, %v318, -inf
    %1278 = vmax.xlane.f32.xlu0 %v1277
    %v1279 = vpop.xlane.xlu0 %1278
    %v1280 = vsel %vm1234, %v320, -inf
    %1281 = vmax.xlane.f32.xlu0 %v1280
    %v1282 = vpop.xlane.xlu0 %1281
    %v1283 = vsel %vm1234, %v323, -inf
    %1284 = vmax.xlane.f32.xlu0 %v1283
    %v1285 = vpop.xlane.xlu0 %1284
    %v1286 = vsel %vm1234, %v325, -inf
    %1287 = vmax.xlane.f32.xlu0 %v1286
    %v1288 = vpop.xlane.xlu0 %1287
    %v1289 = vsel %vm1234, %v328, -inf
    %1290 = vmax.xlane.f32.xlu0 %v1289
    %v1291 = vpop.xlane.xlu0 %1290
    %v1292 = vsel %vm1234, %v330, -inf
    %1293 = vmax.xlane.f32.xlu0 %v1292
    %v1294 = vpop.xlane.xlu0 %1293
    %v1295 = vsel %vm1234, %v333, -inf
    %1296 = vmax.xlane.f32.xlu0 %v1295
    %v1297 = vpop.xlane.xlu0 %1296
    %v1298 = vsel %vm1234, %v335, -inf
    %1299 = vmax.xlane.f32.xlu0 %v1298
    %v1300 = vpop.xlane.xlu0 %1299
    %v1301 = vsel %vm1234, %v338, -inf
    %1302 = vmax.xlane.f32.xlu0 %v1301
    %v1303 = vpop.xlane.xlu0 %1302
    %v1304 = vsel %vm1234, %v340, -inf
    %1305 = vmax.xlane.f32.xlu0 %v1304
    %v1306 = vpop.xlane.xlu0 %1305
    %v1307 = vsel %vm1234, %v343, -inf
    %1308 = vmax.xlane.f32.xlu0 %v1307
    %v1309 = vpop.xlane.xlu0 %1308
    %v1310 = vsel %vm1234, %v345, -inf
    %1311 = vmax.xlane.f32.xlu0 %v1310
    %v1312 = vpop.xlane.xlu0 %1311
    %v1313 = vsel %vm1234, %v348, -inf
    %1314 = vmax.xlane.f32.xlu0 %v1313
    %v1315 = vpop.xlane.xlu0 %1314
    %v1316 = vsel %vm1234, %v350, -inf
    %1317 = vmax.xlane.f32.xlu0 %v1316
    %v1318 = vpop.xlane.xlu0 %1317
    %v1319 = vsel %vm1234, %v353, -inf
    %1320 = vmax.xlane.f32.xlu0 %v1319
    %v1321 = vpop.xlane.xlu0 %1320
    %v1322 = vsel %vm1234, %v355, -inf
    %1323 = vmax.xlane.f32.xlu0 %v1322
    %v1324 = vpop.xlane.xlu0 %1323
    %v1325 = vsel %vm1234, %v358, -inf
    %1326 = vmax.xlane.f32.xlu0 %v1325
    %v1327 = vpop.xlane.xlu0 %1326
    %v1328 = vsel %vm1234, %v360, -inf
    %1329 = vmax.xlane.f32.xlu0 %v1328
    %v1330 = vpop.xlane.xlu0 %1329
    %vm1331 = vcmask 1048448
    %v1332 = vsel %vm1331, %v283, -inf
    %1333 = vmax.xlane.f32.xlu0 %v1332
    %v1334 = vpop.xlane.xlu0 %1333
    %v1335 = vsel %vm1331, %v285, -inf
    %1336 = vmax.xlane.f32.xlu0 %v1335
    %v1337 = vpop.xlane.xlu0 %1336
    %v1338 = vsel %vm1331, %v288, -inf
    %1339 = vmax.xlane.f32.xlu0 %v1338
    %v1340 = vpop.xlane.xlu0 %1339
    %v1341 = vsel %vm1331, %v290, -inf
    %1342 = vmax.xlane.f32.xlu0 %v1341
    %v1343 = vpop.xlane.xlu0 %1342
    %v1344 = vsel %vm1331, %v293, -inf
    %1345 = vmax.xlane.f32.xlu0 %v1344
    %v1346 = vpop.xlane.xlu0 %1345
    %v1347 = vsel %vm1331, %v295, -inf
    %1348 = vmax.xlane.f32.xlu0 %v1347
    %v1349 = vpop.xlane.xlu0 %1348
    %v1350 = vsel %vm1331, %v298, -inf
    %1351 = vmax.xlane.f32.xlu0 %v1350
    %v1352 = vpop.xlane.xlu0 %1351
    %v1353 = vsel %vm1331, %v300, -inf
    %1354 = vmax.xlane.f32.xlu0 %v1353
    %v1355 = vpop.xlane.xlu0 %1354
    %v1356 = vsel %vm1331, %v303, -inf
    %1357 = vmax.xlane.f32.xlu0 %v1356
    %v1358 = vpop.xlane.xlu0 %1357
    %v1359 = vsel %vm1331, %v305, -inf
    %1360 = vmax.xlane.f32.xlu0 %v1359
    %v1361 = vpop.xlane.xlu0 %1360
    %v1362 = vsel %vm1331, %v308, -inf
    %1363 = vmax.xlane.f32.xlu0 %v1362
    %v1364 = vpop.xlane.xlu0 %1363
    %v1365 = vsel %vm1331, %v310, -inf
    %1366 = vmax.xlane.f32.xlu0 %v1365
    %v1367 = vpop.xlane.xlu0 %1366
    %v1368 = vsel %vm1331, %v313, -inf
    %1369 = vmax.xlane.f32.xlu0 %v1368
    %v1370 = vpop.xlane.xlu0 %1369
    %v1371 = vsel %vm1331, %v315, -inf
    %1372 = vmax.xlane.f32.xlu0 %v1371
    %v1373 = vpop.xlane.xlu0 %1372
    %v1374 = vsel %vm1331, %v318, -inf
    %1375 = vmax.xlane.f32.xlu0 %v1374
    %v1376 = vpop.xlane.xlu0 %1375
    %v1377 = vsel %vm1331, %v320, -inf
    %1378 = vmax.xlane.f32.xlu0 %v1377
    %v1379 = vpop.xlane.xlu0 %1378
    %v1380 = vsel %vm1331, %v323, -inf
    %1381 = vmax.xlane.f32.xlu0 %v1380
    %v1382 = vpop.xlane.xlu0 %1381
    %v1383 = vsel %vm1331, %v325, -inf
    %1384 = vmax.xlane.f32.xlu0 %v1383
    %v1385 = vpop.xlane.xlu0 %1384
    %v1386 = vsel %vm1331, %v328, -inf
    %1387 = vmax.xlane.f32.xlu0 %v1386
    %v1388 = vpop.xlane.xlu0 %1387
    %v1389 = vsel %vm1331, %v330, -inf
    %1390 = vmax.xlane.f32.xlu0 %v1389
    %v1391 = vpop.xlane.xlu0 %1390
    %v1392 = vsel %vm1331, %v333, -inf
    %1393 = vmax.xlane.f32.xlu0 %v1392
    %v1394 = vpop.xlane.xlu0 %1393
    %v1395 = vsel %vm1331, %v335, -inf
    %1396 = vmax.xlane.f32.xlu0 %v1395
    %v1397 = vpop.xlane.xlu0 %1396
    %v1398 = vsel %vm1331, %v338, -inf
    %1399 = vmax.xlane.f32.xlu0 %v1398
    %v1400 = vpop.xlane.xlu0 %1399
    %v1401 = vsel %vm1331, %v340, -inf
    %1402 = vmax.xlane.f32.xlu0 %v1401
    %v1403 = vpop.xlane.xlu0 %1402
    %v1404 = vsel %vm1331, %v343, -inf
    %1405 = vmax.xlane.f32.xlu0 %v1404
    %v1406 = vpop.xlane.xlu0 %1405
    %v1407 = vsel %vm1331, %v345, -inf
    %1408 = vmax.xlane.f32.xlu0 %v1407
    %v1409 = vpop.xlane.xlu0 %1408
    %v1410 = vsel %vm1331, %v348, -inf
    %1411 = vmax.xlane.f32.xlu0 %v1410
    %v1412 = vpop.xlane.xlu0 %1411
    %v1413 = vsel %vm1331, %v350, -inf
    %1414 = vmax.xlane.f32.xlu0 %v1413
    %v1415 = vpop.xlane.xlu0 %1414
    %v1416 = vsel %vm1331, %v353, -inf
    %1417 = vmax.xlane.f32.xlu0 %v1416
    %v1418 = vpop.xlane.xlu0 %1417
    %v1419 = vsel %vm1331, %v355, -inf
    %1420 = vmax.xlane.f32.xlu0 %v1419
    %v1421 = vpop.xlane.xlu0 %1420
    %v1422 = vsel %vm1331, %v358, -inf
    %1423 = vmax.xlane.f32.xlu0 %v1422
    %v1424 = vpop.xlane.xlu0 %1423
    %v1425 = vsel %vm1331, %v360, -inf
    %1426 = vmax.xlane.f32.xlu0 %v1425
    %v1427 = vpop.xlane.xlu0 %1426
    %v1428 = vsel %vm652, %v655, %v752
    %v1429 = vsel %vm652, %v658, %v755
    %v1430 = vsel %vm652, %v661, %v758
    %v1431 = vsel %vm652, %v664, %v761
    %v1432 = vsel %vm652, %v667, %v764
    %v1433 = vsel %vm652, %v670, %v767
    %v1434 = vsel %vm652, %v673, %v770
    %v1435 = vsel %vm652, %v676, %v773
    %v1436 = vsel %vm652, %v679, %v776
    %v1437 = vsel %vm652, %v682, %v779
    %v1438 = vsel %vm652, %v685, %v782
    %v1439 = vsel %vm652, %v688, %v785
    %v1440 = vsel %vm652, %v691, %v788
    %v1441 = vsel %vm652, %v694, %v791
    %v1442 = vsel %vm652, %v697, %v794
    %v1443 = vsel %vm652, %v700, %v797
    %v1444 = vsel %vm652, %v703, %v800
    %v1445 = vsel %vm652, %v706, %v803
    %v1446 = vsel %vm652, %v709, %v806
    %v1447 = vsel %vm652, %v712, %v809
    %v1448 = vsel %vm652, %v715, %v812
    %v1449 = vsel %vm652, %v718, %v815
    %v1450 = vsel %vm652, %v721, %v818
    %v1451 = vsel %vm652, %v724, %v821
    %v1452 = vsel %vm652, %v727, %v824
    %v1453 = vsel %vm652, %v730, %v827
    %v1454 = vsel %vm652, %v733, %v830
    %v1455 = vsel %vm652, %v736, %v833
    %v1456 = vsel %vm652, %v739, %v836
    %v1457 = vsel %vm652, %v742, %v839
    %v1458 = vsel %vm652, %v745, %v842
    %v1459 = vsel %vm652, %v748, %v845
    %vm1460 = vcmask 261120
    %v1461 = vsel %vm1460, %v1428, %v849
    %v1462 = vsel %vm1460, %v1429, %v852
    %v1463 = vsel %vm1460, %v1430, %v855
    %v1464 = vsel %vm1460, %v1431, %v858
    %v1465 = vsel %vm1460, %v1432, %v861
    %v1466 = vsel %vm1460, %v1433, %v864
    %v1467 = vsel %vm1460, %v1434, %v867
    %v1468 = vsel %vm1460, %v1435, %v870
    %v1469 = vsel %vm1460, %v1436, %v873
    %v1470 = vsel %vm1460, %v1437, %v876
    %v1471 = vsel %vm1460, %v1438, %v879
    %v1472 = vsel %vm1460, %v1439, %v882
    %v1473 = vsel %vm1460, %v1440, %v885
    %v1474 = vsel %vm1460, %v1441, %v888
    %v1475 = vsel %vm1460, %v1442, %v891
    %v1476 = vsel %vm1460, %v1443, %v894
    %v1477 = vsel %vm1460, %v1444, %v897
    %v1478 = vsel %vm1460, %v1445, %v900
    %v1479 = vsel %vm1460, %v1446, %v903
    %v1480 = vsel %vm1460, %v1447, %v906
    %v1481 = vsel %vm1460, %v1448, %v909
    %v1482 = vsel %vm1460, %v1449, %v912
    %v1483 = vsel %vm1460, %v1450, %v915
    %v1484 = vsel %vm1460, %v1451, %v918
    %v1485 = vsel %vm1460, %v1452, %v921
    %v1486 = vsel %vm1460, %v1453, %v924
    %v1487 = vsel %vm1460, %v1454, %v927
    %v1488 = vsel %vm1460, %v1455, %v930
    %v1489 = vsel %vm1460, %v1456, %v933
    %v1490 = vsel %vm1460, %v1457, %v936
    %v1491 = vsel %vm1460, %v1458, %v939
    %v1492 = vsel %vm1460, %v1459, %v942
    %vm1493 = vcmask 392192
    %v1494 = vsel %vm1493, %v1461, %v946
    %v1495 = vsel %vm1493, %v1462, %v949
    %v1496 = vsel %vm1493, %v1463, %v952
    %v1497 = vsel %vm1493, %v1464, %v955
    %v1498 = vsel %vm1493, %v1465, %v958
    %v1499 = vsel %vm1493, %v1466, %v961
    %v1500 = vsel %vm1493, %v1467, %v964
    %v1501 = vsel %vm1493, %v1468, %v967
    %v1502 = vsel %vm1493, %v1469, %v970
    %v1503 = vsel %vm1493, %v1470, %v973
    %v1504 = vsel %vm1493, %v1471, %v976
    %v1505 = vsel %vm1493, %v1472, %v979
    %v1506 = vsel %vm1493, %v1473, %v982
    %v1507 = vsel %vm1493, %v1474, %v985
    %v1508 = vsel %vm1493, %v1475, %v988
    %v1509 = vsel %vm1493, %v1476, %v991
    %v1510 = vsel %vm1493, %v1477, %v994
    %v1511 = vsel %vm1493, %v1478, %v997
    %v1512 = vsel %vm1493, %v1479, %v1000
    %v1513 = vsel %vm1493, %v1480, %v1003
    %v1514 = vsel %vm1493, %v1481, %v1006
    %v1515 = vsel %vm1493, %v1482, %v1009
    %v1516 = vsel %vm1493, %v1483, %v1012
    %v1517 = vsel %vm1493, %v1484, %v1015
    %v1518 = vsel %vm1493, %v1485, %v1018
    %v1519 = vsel %vm1493, %v1486, %v1021
    %v1520 = vsel %vm1493, %v1487, %v1024
    %v1521 = vsel %vm1493, %v1488, %v1027
    %v1522 = vsel %vm1493, %v1489, %v1030
    %v1523 = vsel %vm1493, %v1490, %v1033
    %v1524 = vsel %vm1493, %v1491, %v1036
    %v1525 = vsel %vm1493, %v1492, %v1039
    %vm1526 = vcmask 523264
    %v1527 = vsel %vm1526, %v1494, %v1043
    %v1528 = vsel %vm1526, %v1495, %v1046
    %v1529 = vsel %vm1526, %v1496, %v1049
    %v1530 = vsel %vm1526, %v1497, %v1052
    %v1531 = vsel %vm1526, %v1498, %v1055
    %v1532 = vsel %vm1526, %v1499, %v1058
    %v1533 = vsel %vm1526, %v1500, %v1061
    %v1534 = vsel %vm1526, %v1501, %v1064
    %v1535 = vsel %vm1526, %v1502, %v1067
    %v1536 = vsel %vm1526, %v1503, %v1070
    %v1537 = vsel %vm1526, %v1504, %v1073
    %v1538 = vsel %vm1526, %v1505, %v1076
    %v1539 = vsel %vm1526, %v1506, %v1079
    %v1540 = vsel %vm1526, %v1507, %v1082
    %v1541 = vsel %vm1526, %v1508, %v1085
    %v1542 = vsel %vm1526, %v1509, %v1088
    %v1543 = vsel %vm1526, %v1510, %v1091
    %v1544 = vsel %vm1526, %v1511, %v1094
    %v1545 = vsel %vm1526, %v1512, %v1097
    %v1546 = vsel %vm1526, %v1513, %v1100
    %v1547 = vsel %vm1526, %v1514, %v1103
    %v1548 = vsel %vm1526, %v1515, %v1106
    %v1549 = vsel %vm1526, %v1516, %v1109
    %v1550 = vsel %vm1526, %v1517, %v1112
    %v1551 = vsel %vm1526, %v1518, %v1115
    %v1552 = vsel %vm1526, %v1519, %v1118
    %v1553 = vsel %vm1526, %v1520, %v1121
    %v1554 = vsel %vm1526, %v1521, %v1124
    %v1555 = vsel %vm1526, %v1522, %v1127
    %v1556 = vsel %vm1526, %v1523, %v1130
    %v1557 = vsel %vm1526, %v1524, %v1133
    %v1558 = vsel %vm1526, %v1525, %v1136
    %vm1559 = vcmask 654336
    %v1560 = vsel %vm1559, %v1527, %v1140
    %v1561 = vsel %vm1559, %v1528, %v1143
    %v1562 = vsel %vm1559, %v1529, %v1146
    %v1563 = vsel %vm1559, %v1530, %v1149
    %v1564 = vsel %vm1559, %v1531, %v1152
    %v1565 = vsel %vm1559, %v1532, %v1155
    %v1566 = vsel %vm1559, %v1533, %v1158
    %v1567 = vsel %vm1559, %v1534, %v1161
    %v1568 = vsel %vm1559, %v1535, %v1164
    %v1569 = vsel %vm1559, %v1536, %v1167
    %v1570 = vsel %vm1559, %v1537, %v1170
    %v1571 = vsel %vm1559, %v1538, %v1173
    %v1572 = vsel %vm1559, %v1539, %v1176
    %v1573 = vsel %vm1559, %v1540, %v1179
    %v1574 = vsel %vm1559, %v1541, %v1182
    %v1575 = vsel %vm1559, %v1542, %v1185
    %v1576 = vsel %vm1559, %v1543, %v1188
    %v1577 = vsel %vm1559, %v1544, %v1191
    %v1578 = vsel %vm1559, %v1545, %v1194
    %v1579 = vsel %vm1559, %v1546, %v1197
    %v1580 = vsel %vm1559, %v1547, %v1200
    %v1581 = vsel %vm1559, %v1548, %v1203
    %v1582 = vsel %vm1559, %v1549, %v1206
    %v1583 = vsel %vm1559, %v1550, %v1209
    %v1584 = vsel %vm1559, %v1551, %v1212
    %v1585 = vsel %vm1559, %v1552, %v1215
    %v1586 = vsel %vm1559, %v1553, %v1218
    %v1587 = vsel %vm1559, %v1554, %v1221
    %v1588 = vsel %vm1559, %v1555, %v1224
    %v1589 = vsel %vm1559, %v1556, %v1227
    %v1590 = vsel %vm1559, %v1557, %v1230
    %v1591 = vsel %vm1559, %v1558, %v1233
    %vm1592 = vcmask 785408
    %v1593 = vsel %vm1592, %v1560, %v1237
    %v1594 = vsel %vm1592, %v1561, %v1240
    %v1595 = vsel %vm1592, %v1562, %v1243
    %v1596 = vsel %vm1592, %v1563, %v1246
    %v1597 = vsel %vm1592, %v1564, %v1249
    %v1598 = vsel %vm1592, %v1565, %v1252
    %v1599 = vsel %vm1592, %v1566, %v1255
    %v1600 = vsel %vm1592, %v1567, %v1258
    %v1601 = vsel %vm1592, %v1568, %v1261
    %v1602 = vsel %vm1592, %v1569, %v1264
    %v1603 = vsel %vm1592, %v1570, %v1267
    %v1604 = vsel %vm1592, %v1571, %v1270
    %v1605 = vsel %vm1592, %v1572, %v1273
    %v1606 = vsel %vm1592, %v1573, %v1276
    %v1607 = vsel %vm1592, %v1574, %v1279
    %v1608 = vsel %vm1592, %v1575, %v1282
    %v1609 = vsel %vm1592, %v1576, %v1285
    %v1610 = vsel %vm1592, %v1577, %v1288
    %v1611 = vsel %vm1592, %v1578, %v1291
    %v1612 = vsel %vm1592, %v1579, %v1294
    %v1613 = vsel %vm1592, %v1580, %v1297
    %v1614 = vsel %vm1592, %v1581, %v1300
    %v1615 = vsel %vm1592, %v1582, %v1303
    %v1616 = vsel %vm1592, %v1583, %v1306
    %v1617 = vsel %vm1592, %v1584, %v1309
    %v1618 = vsel %vm1592, %v1585, %v1312
    %v1619 = vsel %vm1592, %v1586, %v1315
    %v1620 = vsel %vm1592, %v1587, %v1318
    %v1621 = vsel %vm1592, %v1588, %v1321
    %v1622 = vsel %vm1592, %v1589, %v1324
    %v1623 = vsel %vm1592, %v1590, %v1327
    %v1624 = vsel %vm1592, %v1591, %v1330
    %vm1625 = vcmask 916480
    %v1626 = vsel %vm1625, %v1593, %v1334
    %v1627 = vsel %vm1625, %v1594, %v1337
    %v1628 = vsel %vm1625, %v1595, %v1340
    %v1629 = vsel %vm1625, %v1596, %v1343
    %v1630 = vsel %vm1625, %v1597, %v1346
    %v1631 = vsel %vm1625, %v1598, %v1349
    %v1632 = vsel %vm1625, %v1599, %v1352
    %v1633 = vsel %vm1625, %v1600, %v1355
    %v1634 = vsel %vm1625, %v1601, %v1358
    %v1635 = vsel %vm1625, %v1602, %v1361
    %v1636 = vsel %vm1625, %v1603, %v1364
    %v1637 = vsel %vm1625, %v1604, %v1367
    %v1638 = vsel %vm1625, %v1605, %v1370
    %v1639 = vsel %vm1625, %v1606, %v1373
    %v1640 = vsel %vm1625, %v1607, %v1376
    %v1641 = vsel %vm1625, %v1608, %v1379
    %v1642 = vsel %vm1625, %v1609, %v1382
    %v1643 = vsel %vm1625, %v1610, %v1385
    %v1644 = vsel %vm1625, %v1611, %v1388
    %v1645 = vsel %vm1625, %v1612, %v1391
    %v1646 = vsel %vm1625, %v1613, %v1394
    %v1647 = vsel %vm1625, %v1614, %v1397
    %v1648 = vsel %vm1625, %v1615, %v1400
    %v1649 = vsel %vm1625, %v1616, %v1403
    %v1650 = vsel %vm1625, %v1617, %v1406
    %v1651 = vsel %vm1625, %v1618, %v1409
    %v1652 = vsel %vm1625, %v1619, %v1412
    %v1653 = vsel %vm1625, %v1620, %v1415
    %v1654 = vsel %vm1625, %v1621, %v1418
    %v1655 = vsel %vm1625, %v1622, %v1421
    %v1656 = vsel %vm1625, %v1623, %v1424
    %v1657 = vsel %vm1625, %v1624, %v1427
    %v1658 = vsub.f32 %v283, %v1626
    %v1659 = vsub.f32 %v285, %v1627
    %v1660 = vsub.f32 %v288, %v1628
    %v1661 = vsub.f32 %v290, %v1629
    %v1662 = vsub.f32 %v293, %v1630
    %v1663 = vsub.f32 %v295, %v1631
    %v1664 = vsub.f32 %v298, %v1632
    %v1665 = vsub.f32 %v300, %v1633
    %v1666 = vsub.f32 %v303, %v1634
    %v1667 = vsub.f32 %v305, %v1635
    %v1668 = vsub.f32 %v308, %v1636
    %v1669 = vsub.f32 %v310, %v1637
    %v1670 = vsub.f32 %v313, %v1638
    %v1671 = vsub.f32 %v315, %v1639
    %v1672 = vsub.f32 %v318, %v1640
    %v1673 = vsub.f32 %v320, %v1641
    %v1674 = vsub.f32 %v323, %v1642
    %v1675 = vsub.f32 %v325, %v1643
    %v1676 = vsub.f32 %v328, %v1644
    %v1677 = vsub.f32 %v330, %v1645
    %v1678 = vsub.f32 %v333, %v1646
    %v1679 = vsub.f32 %v335, %v1647
    %v1680 = vsub.f32 %v338, %v1648
    %v1681 = vsub.f32 %v340, %v1649
    %v1682 = vsub.f32 %v343, %v1650
    %v1683 = vsub.f32 %v345, %v1651
    %v1684 = vsub.f32 %v348, %v1652
    %v1685 = vsub.f32 %v350, %v1653
    %v1686 = vsub.f32 %v353, %v1654
    %v1687 = vsub.f32 %v355, %v1655
    %v1688 = vsub.f32 %v358, %v1656
    %v1689 = vsub.f32 %v360, %v1657
    %v1690 = vmul.f32 %v1658, 1.442695
    %v1691 = vpow.pop %v1690
    %v1692 = vmul.f32 %v1659, 1.442695
    %v1693 = vpow.pop %v1692
    %v1694 = vmul.f32 %v1660, 1.442695
    %v1695 = vpow.pop %v1694
    %v1696 = vmul.f32 %v1661, 1.442695
    %v1697 = vpow.pop %v1696
    %v1698 = vmul.f32 %v1662, 1.442695
    %v1699 = vpow.pop %v1698
    %v1700 = vmul.f32 %v1663, 1.442695
    %v1701 = vpow.pop %v1700
    %v1702 = vmul.f32 %v1664, 1.442695
    %v1703 = vpow.pop %v1702
    %v1704 = vmul.f32 %v1665, 1.442695
    %v1705 = vpow.pop %v1704
    %v1706 = vmul.f32 %v1666, 1.442695
    %v1707 = vpow.pop %v1706
    %v1708 = vmul.f32 %v1667, 1.442695
    %v1709 = vpow.pop %v1708
    %v1710 = vmul.f32 %v1668, 1.442695
    %v1711 = vpow.pop %v1710
    %v1712 = vmul.f32 %v1669, 1.442695
    %v1713 = vpow.pop %v1712
    %v1714 = vmul.f32 %v1670, 1.442695
    %v1715 = vpow.pop %v1714
    %v1716 = vmul.f32 %v1671, 1.442695
    %v1717 = vpow.pop %v1716
    %v1718 = vmul.f32 %v1672, 1.442695
    %v1719 = vpow.pop %v1718
    %v1720 = vmul.f32 %v1673, 1.442695
    %v1721 = vpow.pop %v1720
    %v1722 = vmul.f32 %v1674, 1.442695
    %v1723 = vpow.pop %v1722
    %v1724 = vmul.f32 %v1675, 1.442695
    %v1725 = vpow.pop %v1724
    %v1726 = vmul.f32 %v1676, 1.442695
    %v1727 = vpow.pop %v1726
    %v1728 = vmul.f32 %v1677, 1.442695
    %v1729 = vpow.pop %v1728
    %v1730 = vmul.f32 %v1678, 1.442695
    %v1731 = vpow.pop %v1730
    %v1732 = vmul.f32 %v1679, 1.442695
    %v1733 = vpow.pop %v1732
    %v1734 = vmul.f32 %v1680, 1.442695
    %v1735 = vpow.pop %v1734
    %v1736 = vmul.f32 %v1681, 1.442695
    %v1737 = vpow.pop %v1736
    %v1738 = vmul.f32 %v1682, 1.442695
    %v1739 = vpow.pop %v1738
    %v1740 = vmul.f32 %v1683, 1.442695
    %v1741 = vpow.pop %v1740
    %v1742 = vmul.f32 %v1684, 1.442695
    %v1743 = vpow.pop %v1742
    %v1744 = vmul.f32 %v1685, 1.442695
    %v1745 = vpow.pop %v1744
    %v1746 = vmul.f32 %v1686, 1.442695
    %v1747 = vpow.pop %v1746
    %v1748 = vmul.f32 %v1687, 1.442695
    %v1749 = vpow.pop %v1748
    %v1750 = vmul.f32 %v1688, 1.442695
    %v1751 = vpow.pop %v1750
    %v1752 = vmul.f32 %v1689, 1.442695
    %v1753 = vpow.pop %v1752
    %v1754 = vsel %vm652, %v1691, 0.0
    %1755 = vadd.xlane.f32.xlu0 %v1754
    %v1756 = vpop.xlane.xlu0 %1755
    %v1757 = vsel %vm652, %v1693, 0.0
    %1758 = vadd.xlane.f32.xlu0 %v1757
    %v1759 = vpop.xlane.xlu0 %1758
    %v1760 = vsel %vm652, %v1695, 0.0
    %1761 = vadd.xlane.f32.xlu0 %v1760
    %v1762 = vpop.xlane.xlu0 %1761
    %v1763 = vsel %vm652, %v1697, 0.0
    %1764 = vadd.xlane.f32.xlu0 %v1763
    %v1765 = vpop.xlane.xlu0 %1764
    %v1766 = vsel %vm652, %v1699, 0.0
    %1767 = vadd.xlane.f32.xlu0 %v1766
    %v1768 = vpop.xlane.xlu0 %1767
    %v1769 = vsel %vm652, %v1701, 0.0
    %1770 = vadd.xlane.f32.xlu0 %v1769
    %v1771 = vpop.xlane.xlu0 %1770
    %v1772 = vsel %vm652, %v1703, 0.0
    %1773 = vadd.xlane.f32.xlu0 %v1772
    %v1774 = vpop.xlane.xlu0 %1773
    %v1775 = vsel %vm652, %v1705, 0.0
    %1776 = vadd.xlane.f32.xlu0 %v1775
    %v1777 = vpop.xlane.xlu0 %1776
    %v1778 = vsel %vm652, %v1707, 0.0
    %1779 = vadd.xlane.f32.xlu0 %v1778
    %v1780 = vpop.xlane.xlu0 %1779
    %v1781 = vsel %vm652, %v1709, 0.0
    %1782 = vadd.xlane.f32.xlu0 %v1781
    %v1783 = vpop.xlane.xlu0 %1782
    %v1784 = vsel %vm652, %v1711, 0.0
    %1785 = vadd.xlane.f32.xlu0 %v1784
    %v1786 = vpop.xlane.xlu0 %1785
    %v1787 = vsel %vm652, %v1713, 0.0
    %1788 = vadd.xlane.f32.xlu0 %v1787
    %v1789 = vpop.xlane.xlu0 %1788
    %v1790 = vsel %vm652, %v1715, 0.0
    %1791 = vadd.xlane.f32.xlu0 %v1790
    %v1792 = vpop.xlane.xlu0 %1791
    %v1793 = vsel %vm652, %v1717, 0.0
    %1794 = vadd.xlane.f32.xlu0 %v1793
    %v1795 = vpop.xlane.xlu0 %1794
    %v1796 = vsel %vm652, %v1719, 0.0
    %1797 = vadd.xlane.f32.xlu0 %v1796
    %v1798 = vpop.xlane.xlu0 %1797
    %v1799 = vsel %vm652, %v1721, 0.0
    %1800 = vadd.xlane.f32.xlu0 %v1799
    %v1801 = vpop.xlane.xlu0 %1800
    %v1802 = vsel %vm652, %v1723, 0.0
    %1803 = vadd.xlane.f32.xlu0 %v1802
    %v1804 = vpop.xlane.xlu0 %1803
    %v1805 = vsel %vm652, %v1725, 0.0
    %1806 = vadd.xlane.f32.xlu0 %v1805
    %v1807 = vpop.xlane.xlu0 %1806
    %v1808 = vsel %vm652, %v1727, 0.0
    %1809 = vadd.xlane.f32.xlu0 %v1808
    %v1810 = vpop.xlane.xlu0 %1809
    %v1811 = vsel %vm652, %v1729, 0.0
    %1812 = vadd.xlane.f32.xlu0 %v1811
    %v1813 = vpop.xlane.xlu0 %1812
    %v1814 = vsel %vm652, %v1731, 0.0
    %1815 = vadd.xlane.f32.xlu0 %v1814
    %v1816 = vpop.xlane.xlu0 %1815
    %v1817 = vsel %vm652, %v1733, 0.0
    %1818 = vadd.xlane.f32.xlu0 %v1817
    %v1819 = vpop.xlane.xlu0 %1818
    %v1820 = vsel %vm652, %v1735, 0.0
    %1821 = vadd.xlane.f32.xlu0 %v1820
    %v1822 = vpop.xlane.xlu0 %1821
    %v1823 = vsel %vm652, %v1737, 0.0
    %1824 = vadd.xlane.f32.xlu0 %v1823
    %v1825 = vpop.xlane.xlu0 %1824
    %v1826 = vsel %vm652, %v1739, 0.0
    %1827 = vadd.xlane.f32.xlu0 %v1826
    %v1828 = vpop.xlane.xlu0 %1827
    %v1829 = vsel %vm652, %v1741, 0.0
    %1830 = vadd.xlane.f32.xlu0 %v1829
    %v1831 = vpop.xlane.xlu0 %1830
    %v1832 = vsel %vm652, %v1743, 0.0
    %1833 = vadd.xlane.f32.xlu0 %v1832
    %v1834 = vpop.xlane.xlu0 %1833
    %v1835 = vsel %vm652, %v1745, 0.0
    %1836 = vadd.xlane.f32.xlu0 %v1835
    %v1837 = vpop.xlane.xlu0 %1836
    %v1838 = vsel %vm652, %v1747, 0.0
    %1839 = vadd.xlane.f32.xlu0 %v1838
    %v1840 = vpop.xlane.xlu0 %1839
    %v1841 = vsel %vm652, %v1749, 0.0
    %1842 = vadd.xlane.f32.xlu0 %v1841
    %v1843 = vpop.xlane.xlu0 %1842
    %v1844 = vsel %vm652, %v1751, 0.0
    %1845 = vadd.xlane.f32.xlu0 %v1844
    %v1846 = vpop.xlane.xlu0 %1845
    %v1847 = vsel %vm652, %v1753, 0.0
    %1848 = vadd.xlane.f32.xlu0 %v1847
    %v1849 = vpop.xlane.xlu0 %1848
    %1882 = vrot.lane.b32.xlu0 %v1691, 112
    %v1883 = vpop.permute.xlu0 %1882
    %1884 = vrot.lane.b32.xlu0 %v1693, 112
    %v1885 = vpop.permute.xlu0 %1884
    %1886 = vrot.lane.b32.xlu0 %v1695, 112
    %v1887 = vpop.permute.xlu0 %1886
    %1888 = vrot.lane.b32.xlu0 %v1697, 112
    %v1889 = vpop.permute.xlu0 %1888
    %1890 = vrot.lane.b32.xlu0 %v1699, 112
    %v1891 = vpop.permute.xlu0 %1890
    %1892 = vrot.lane.b32.xlu0 %v1701, 112
    %v1893 = vpop.permute.xlu0 %1892
    %1894 = vrot.lane.b32.xlu0 %v1703, 112
    %v1895 = vpop.permute.xlu0 %1894
    %1896 = vrot.lane.b32.xlu0 %v1705, 112
    %v1897 = vpop.permute.xlu0 %1896
    %1898 = vrot.lane.b32.xlu0 %v1707, 112
    %v1899 = vpop.permute.xlu0 %1898
    %1900 = vrot.lane.b32.xlu0 %v1709, 112
    %v1901 = vpop.permute.xlu0 %1900
    %1902 = vrot.lane.b32.xlu0 %v1711, 112
    %v1903 = vpop.permute.xlu0 %1902
    %1904 = vrot.lane.b32.xlu0 %v1713, 112
    %v1905 = vpop.permute.xlu0 %1904
    %1906 = vrot.lane.b32.xlu0 %v1715, 112
    %v1907 = vpop.permute.xlu0 %1906
    %1908 = vrot.lane.b32.xlu0 %v1717, 112
    %v1909 = vpop.permute.xlu0 %1908
    %1910 = vrot.lane.b32.xlu0 %v1719, 112
    %v1911 = vpop.permute.xlu0 %1910
    %1912 = vrot.lane.b32.xlu0 %v1721, 112
    %v1913 = vpop.permute.xlu0 %1912
    %1914 = vrot.lane.b32.xlu0 %v1723, 112
    %v1915 = vpop.permute.xlu0 %1914
    %1916 = vrot.lane.b32.xlu0 %v1725, 112
    %v1917 = vpop.permute.xlu0 %1916
    %1918 = vrot.lane.b32.xlu0 %v1727, 112
    %v1919 = vpop.permute.xlu0 %1918
    %1920 = vrot.lane.b32.xlu0 %v1729, 112
    %v1921 = vpop.permute.xlu0 %1920
    %1922 = vrot.lane.b32.xlu0 %v1731, 112
    %v1923 = vpop.permute.xlu0 %1922
    %1924 = vrot.lane.b32.xlu0 %v1733, 112
    %v1925 = vpop.permute.xlu0 %1924
    %1926 = vrot.lane.b32.xlu0 %v1735, 112
    %v1927 = vpop.permute.xlu0 %1926
    %1928 = vrot.lane.b32.xlu0 %v1737, 112
    %v1929 = vpop.permute.xlu0 %1928
    %1930 = vrot.lane.b32.xlu0 %v1739, 112
    %v1931 = vpop.permute.xlu0 %1930
    %1932 = vrot.lane.b32.xlu0 %v1741, 112
    %v1933 = vpop.permute.xlu0 %1932
    %1934 = vrot.lane.b32.xlu0 %v1743, 112
    %v1935 = vpop.permute.xlu0 %1934
    %1936 = vrot.lane.b32.xlu0 %v1745, 112
    %v1937 = vpop.permute.xlu0 %1936
    %1938 = vrot.lane.b32.xlu0 %v1747, 112
    %v1939 = vpop.permute.xlu0 %1938
    %1940 = vrot.lane.b32.xlu0 %v1749, 112
    %v1941 = vpop.permute.xlu0 %1940
    %1942 = vrot.lane.b32.xlu0 %v1751, 112
    %v1943 = vpop.permute.xlu0 %1942
    %1944 = vrot.lane.b32.xlu0 %v1753, 112
    %v1945 = vpop.permute.xlu0 %1944
    %v1978 = vsel %vm652, %v1883, 0.0
    %1979 = vadd.xlane.f32.xlu0 %v1978
    %v1980 = vpop.xlane.xlu0 %1979
    %v1981 = vsel %vm652, %v1885, 0.0
    %1982 = vadd.xlane.f32.xlu0 %v1981
    %v1983 = vpop.xlane.xlu0 %1982
    %v1984 = vsel %vm652, %v1887, 0.0
    %1985 = vadd.xlane.f32.xlu0 %v1984
    %v1986 = vpop.xlane.xlu0 %1985
    %v1987 = vsel %vm652, %v1889, 0.0
    %1988 = vadd.xlane.f32.xlu0 %v1987
    %v1989 = vpop.xlane.xlu0 %1988
    %v1990 = vsel %vm652, %v1891, 0.0
    %1991 = vadd.xlane.f32.xlu0 %v1990
    %v1992 = vpop.xlane.xlu0 %1991
    %v1993 = vsel %vm652, %v1893, 0.0
    %1994 = vadd.xlane.f32.xlu0 %v1993
    %v1995 = vpop.xlane.xlu0 %1994
    %v1996 = vsel %vm652, %v1895, 0.0
    %1997 = vadd.xlane.f32.xlu0 %v1996
    %v1998 = vpop.xlane.xlu0 %1997
    %v1999 = vsel %vm652, %v1897, 0.0
    %2000 = vadd.xlane.f32.xlu0 %v1999
    %v2001 = vpop.xlane.xlu0 %2000
    %v2002 = vsel %vm652, %v1899, 0.0
    %2003 = vadd.xlane.f32.xlu0 %v2002
    %v2004 = vpop.xlane.xlu0 %2003
    %v2005 = vsel %vm652, %v1901, 0.0
    %2006 = vadd.xlane.f32.xlu0 %v2005
    %v2007 = vpop.xlane.xlu0 %2006
    %v2008 = vsel %vm652, %v1903, 0.0
    %2009 = vadd.xlane.f32.xlu0 %v2008
    %v2010 = vpop.xlane.xlu0 %2009
    %v2011 = vsel %vm652, %v1905, 0.0
    %2012 = vadd.xlane.f32.xlu0 %v2011
    %v2013 = vpop.xlane.xlu0 %2012
    %v2014 = vsel %vm652, %v1907, 0.0
    %2015 = vadd.xlane.f32.xlu0 %v2014
    %v2016 = vpop.xlane.xlu0 %2015
    %v2017 = vsel %vm652, %v1909, 0.0
    %2018 = vadd.xlane.f32.xlu0 %v2017
    %v2019 = vpop.xlane.xlu0 %2018
    %v2020 = vsel %vm652, %v1911, 0.0
    %2021 = vadd.xlane.f32.xlu0 %v2020
    %v2022 = vpop.xlane.xlu0 %2021
    %v2023 = vsel %vm652, %v1913, 0.0
    %2024 = vadd.xlane.f32.xlu0 %v2023
    %v2025 = vpop.xlane.xlu0 %2024
    %v2026 = vsel %vm652, %v1915, 0.0
    %2027 = vadd.xlane.f32.xlu0 %v2026
    %v2028 = vpop.xlane.xlu0 %2027
    %v2029 = vsel %vm652, %v1917, 0.0
    %2030 = vadd.xlane.f32.xlu0 %v2029
    %v2031 = vpop.xlane.xlu0 %2030
    %v2032 = vsel %vm652, %v1919, 0.0
    %2033 = vadd.xlane.f32.xlu0 %v2032
    %v2034 = vpop.xlane.xlu0 %2033
    %v2035 = vsel %vm652, %v1921, 0.0
    %2036 = vadd.xlane.f32.xlu0 %v2035
    %v2037 = vpop.xlane.xlu0 %2036
    %v2038 = vsel %vm652, %v1923, 0.0
    %2039 = vadd.xlane.f32.xlu0 %v2038
    %v2040 = vpop.xlane.xlu0 %2039
    %v2041 = vsel %vm652, %v1925, 0.0
    %2042 = vadd.xlane.f32.xlu0 %v2041
    %v2043 = vpop.xlane.xlu0 %2042
    %v2044 = vsel %vm652, %v1927, 0.0
    %2045 = vadd.xlane.f32.xlu0 %v2044
    %v2046 = vpop.xlane.xlu0 %2045
    %v2047 = vsel %vm652, %v1929, 0.0
    %2048 = vadd.xlane.f32.xlu0 %v2047
    %v2049 = vpop.xlane.xlu0 %2048
    %v2050 = vsel %vm652, %v1931, 0.0
    %2051 = vadd.xlane.f32.xlu0 %v2050
    %v2052 = vpop.xlane.xlu0 %2051
    %v2053 = vsel %vm652, %v1933, 0.0
    %2054 = vadd.xlane.f32.xlu0 %v2053
    %v2055 = vpop.xlane.xlu0 %2054
    %v2056 = vsel %vm652, %v1935, 0.0
    %2057 = vadd.xlane.f32.xlu0 %v2056
    %v2058 = vpop.xlane.xlu0 %2057
    %v2059 = vsel %vm652, %v1937, 0.0
    %2060 = vadd.xlane.f32.xlu0 %v2059
    %v2061 = vpop.xlane.xlu0 %2060
    %v2062 = vsel %vm652, %v1939, 0.0
    %2063 = vadd.xlane.f32.xlu0 %v2062
    %v2064 = vpop.xlane.xlu0 %2063
    %v2065 = vsel %vm652, %v1941, 0.0
    %2066 = vadd.xlane.f32.xlu0 %v2065
    %v2067 = vpop.xlane.xlu0 %2066
    %v2068 = vsel %vm652, %v1943, 0.0
    %2069 = vadd.xlane.f32.xlu0 %v2068
    %v2070 = vpop.xlane.xlu0 %2069
    %v2071 = vsel %vm652, %v1945, 0.0
    %2072 = vadd.xlane.f32.xlu0 %v2071
    %v2073 = vpop.xlane.xlu0 %2072
    %2074 = vrot.lane.b32.xlu0 %v1691, 96
    %v2075 = vpop.permute.xlu0 %2074
    %2076 = vrot.lane.b32.xlu0 %v1693, 96
    %v2077 = vpop.permute.xlu0 %2076
    %2078 = vrot.lane.b32.xlu0 %v1695, 96
    %v2079 = vpop.permute.xlu0 %2078
    %2080 = vrot.lane.b32.xlu0 %v1697, 96
    %v2081 = vpop.permute.xlu0 %2080
    %2082 = vrot.lane.b32.xlu0 %v1699, 96
    %v2083 = vpop.permute.xlu0 %2082
    %2084 = vrot.lane.b32.xlu0 %v1701, 96
    %v2085 = vpop.permute.xlu0 %2084
    %2086 = vrot.lane.b32.xlu0 %v1703, 96
    %v2087 = vpop.permute.xlu0 %2086
    %2088 = vrot.lane.b32.xlu0 %v1705, 96
    %v2089 = vpop.permute.xlu0 %2088
    %2090 = vrot.lane.b32.xlu0 %v1707, 96
    %v2091 = vpop.permute.xlu0 %2090
    %2092 = vrot.lane.b32.xlu0 %v1709, 96
    %v2093 = vpop.permute.xlu0 %2092
    %2094 = vrot.lane.b32.xlu0 %v1711, 96
    %v2095 = vpop.permute.xlu0 %2094
    %2096 = vrot.lane.b32.xlu0 %v1713, 96
    %v2097 = vpop.permute.xlu0 %2096
    %2098 = vrot.lane.b32.xlu0 %v1715, 96
    %v2099 = vpop.permute.xlu0 %2098
    %2100 = vrot.lane.b32.xlu0 %v1717, 96
    %v2101 = vpop.permute.xlu0 %2100
    %2102 = vrot.lane.b32.xlu0 %v1719, 96
    %v2103 = vpop.permute.xlu0 %2102
    %2104 = vrot.lane.b32.xlu0 %v1721, 96
    %v2105 = vpop.permute.xlu0 %2104
    %2106 = vrot.lane.b32.xlu0 %v1723, 96
    %v2107 = vpop.permute.xlu0 %2106
    %2108 = vrot.lane.b32.xlu0 %v1725, 96
    %v2109 = vpop.permute.xlu0 %2108
    %2110 = vrot.lane.b32.xlu0 %v1727, 96
    %v2111 = vpop.permute.xlu0 %2110
    %2112 = vrot.lane.b32.xlu0 %v1729, 96
    %v2113 = vpop.permute.xlu0 %2112
    %2114 = vrot.lane.b32.xlu0 %v1731, 96
    %v2115 = vpop.permute.xlu0 %2114
    %2116 = vrot.lane.b32.xlu0 %v1733, 96
    %v2117 = vpop.permute.xlu0 %2116
    %2118 = vrot.lane.b32.xlu0 %v1735, 96
    %v2119 = vpop.permute.xlu0 %2118
    %2120 = vrot.lane.b32.xlu0 %v1737, 96
    %v2121 = vpop.permute.xlu0 %2120
    %2122 = vrot.lane.b32.xlu0 %v1739, 96
    %v2123 = vpop.permute.xlu0 %2122
    %2124 = vrot.lane.b32.xlu0 %v1741, 96
    %v2125 = vpop.permute.xlu0 %2124
    %2126 = vrot.lane.b32.xlu0 %v1743, 96
    %v2127 = vpop.permute.xlu0 %2126
    %2128 = vrot.lane.b32.xlu0 %v1745, 96
    %v2129 = vpop.permute.xlu0 %2128
    %2130 = vrot.lane.b32.xlu0 %v1747, 96
    %v2131 = vpop.permute.xlu0 %2130
    %2132 = vrot.lane.b32.xlu0 %v1749, 96
    %v2133 = vpop.permute.xlu0 %2132
    %2134 = vrot.lane.b32.xlu0 %v1751, 96
    %v2135 = vpop.permute.xlu0 %2134
    %2136 = vrot.lane.b32.xlu0 %v1753, 96
    %v2137 = vpop.permute.xlu0 %2136
    %v2170 = vsel %vm652, %v2075, 0.0
    %2171 = vadd.xlane.f32.xlu0 %v2170
    %v2172 = vpop.xlane.xlu0 %2171
    %v2173 = vsel %vm652, %v2077, 0.0
    %2174 = vadd.xlane.f32.xlu0 %v2173
    %v2175 = vpop.xlane.xlu0 %2174
    %v2176 = vsel %vm652, %v2079, 0.0
    %2177 = vadd.xlane.f32.xlu0 %v2176
    %v2178 = vpop.xlane.xlu0 %2177
    %v2179 = vsel %vm652, %v2081, 0.0
    %2180 = vadd.xlane.f32.xlu0 %v2179
    %v2181 = vpop.xlane.xlu0 %2180
    %v2182 = vsel %vm652, %v2083, 0.0
    %2183 = vadd.xlane.f32.xlu0 %v2182
    %v2184 = vpop.xlane.xlu0 %2183
    %v2185 = vsel %vm652, %v2085, 0.0
    %2186 = vadd.xlane.f32.xlu0 %v2185
    %v2187 = vpop.xlane.xlu0 %2186
    %v2188 = vsel %vm652, %v2087, 0.0
    %2189 = vadd.xlane.f32.xlu0 %v2188
    %v2190 = vpop.xlane.xlu0 %2189
    %v2191 = vsel %vm652, %v2089, 0.0
    %2192 = vadd.xlane.f32.xlu0 %v2191
    %v2193 = vpop.xlane.xlu0 %2192
    %v2194 = vsel %vm652, %v2091, 0.0
    %2195 = vadd.xlane.f32.xlu0 %v2194
    %v2196 = vpop.xlane.xlu0 %2195
    %v2197 = vsel %vm652, %v2093, 0.0
    %2198 = vadd.xlane.f32.xlu0 %v2197
    %v2199 = vpop.xlane.xlu0 %2198
    %v2200 = vsel %vm652, %v2095, 0.0
    %2201 = vadd.xlane.f32.xlu0 %v2200
    %v2202 = vpop.xlane.xlu0 %2201
    %v2203 = vsel %vm652, %v2097, 0.0
    %2204 = vadd.xlane.f32.xlu0 %v2203
    %v2205 = vpop.xlane.xlu0 %2204
    %v2206 = vsel %vm652, %v2099, 0.0
    %2207 = vadd.xlane.f32.xlu0 %v2206
    %v2208 = vpop.xlane.xlu0 %2207
    %v2209 = vsel %vm652, %v2101, 0.0
    %2210 = vadd.xlane.f32.xlu0 %v2209
    %v2211 = vpop.xlane.xlu0 %2210
    %v2212 = vsel %vm652, %v2103, 0.0
    %2213 = vadd.xlane.f32.xlu0 %v2212
    %v2214 = vpop.xlane.xlu0 %2213
    %v2215 = vsel %vm652, %v2105, 0.0
    %2216 = vadd.xlane.f32.xlu0 %v2215
    %v2217 = vpop.xlane.xlu0 %2216
    %v2218 = vsel %vm652, %v2107, 0.0
    %2219 = vadd.xlane.f32.xlu0 %v2218
    %v2220 = vpop.xlane.xlu0 %2219
    %v2221 = vsel %vm652, %v2109, 0.0
    %2222 = vadd.xlane.f32.xlu0 %v2221
    %v2223 = vpop.xlane.xlu0 %2222
    %v2224 = vsel %vm652, %v2111, 0.0
    %2225 = vadd.xlane.f32.xlu0 %v2224
    %v2226 = vpop.xlane.xlu0 %2225
    %v2227 = vsel %vm652, %v2113, 0.0
    %2228 = vadd.xlane.f32.xlu0 %v2227
    %v2229 = vpop.xlane.xlu0 %2228
    %v2230 = vsel %vm652, %v2115, 0.0
    %2231 = vadd.xlane.f32.xlu0 %v2230
    %v2232 = vpop.xlane.xlu0 %2231
    %v2233 = vsel %vm652, %v2117, 0.0
    %2234 = vadd.xlane.f32.xlu0 %v2233
    %v2235 = vpop.xlane.xlu0 %2234
    %v2236 = vsel %vm652, %v2119, 0.0
    %2237 = vadd.xlane.f32.xlu0 %v2236
    %v2238 = vpop.xlane.xlu0 %2237
    %v2239 = vsel %vm652, %v2121, 0.0
    %2240 = vadd.xlane.f32.xlu0 %v2239
    %v2241 = vpop.xlane.xlu0 %2240
    %v2242 = vsel %vm652, %v2123, 0.0
    %2243 = vadd.xlane.f32.xlu0 %v2242
    %v2244 = vpop.xlane.xlu0 %2243
    %v2245 = vsel %vm652, %v2125, 0.0
    %2246 = vadd.xlane.f32.xlu0 %v2245
    %v2247 = vpop.xlane.xlu0 %2246
    %v2248 = vsel %vm652, %v2127, 0.0
    %2249 = vadd.xlane.f32.xlu0 %v2248
    %v2250 = vpop.xlane.xlu0 %2249
    %v2251 = vsel %vm652, %v2129, 0.0
    %2252 = vadd.xlane.f32.xlu0 %v2251
    %v2253 = vpop.xlane.xlu0 %2252
    %v2254 = vsel %vm652, %v2131, 0.0
    %2255 = vadd.xlane.f32.xlu0 %v2254
    %v2256 = vpop.xlane.xlu0 %2255
    %v2257 = vsel %vm652, %v2133, 0.0
    %2258 = vadd.xlane.f32.xlu0 %v2257
    %v2259 = vpop.xlane.xlu0 %2258
    %v2260 = vsel %vm652, %v2135, 0.0
    %2261 = vadd.xlane.f32.xlu0 %v2260
    %v2262 = vpop.xlane.xlu0 %2261
    %v2263 = vsel %vm652, %v2137, 0.0
    %2264 = vadd.xlane.f32.xlu0 %v2263
    %v2265 = vpop.xlane.xlu0 %2264
    %2266 = vrot.lane.b32.xlu0 %v1691, 80
    %v2267 = vpop.permute.xlu0 %2266
    %2268 = vrot.lane.b32.xlu0 %v1693, 80
    %v2269 = vpop.permute.xlu0 %2268
    %2270 = vrot.lane.b32.xlu0 %v1695, 80
    %v2271 = vpop.permute.xlu0 %2270
    %2272 = vrot.lane.b32.xlu0 %v1697, 80
    %v2273 = vpop.permute.xlu0 %2272
    %2274 = vrot.lane.b32.xlu0 %v1699, 80
    %v2275 = vpop.permute.xlu0 %2274
    %2276 = vrot.lane.b32.xlu0 %v1701, 80
    %v2277 = vpop.permute.xlu0 %2276
    %2278 = vrot.lane.b32.xlu0 %v1703, 80
    %v2279 = vpop.permute.xlu0 %2278
    %2280 = vrot.lane.b32.xlu0 %v1705, 80
    %v2281 = vpop.permute.xlu0 %2280
    %2282 = vrot.lane.b32.xlu0 %v1707, 80
    %v2283 = vpop.permute.xlu0 %2282
    %2284 = vrot.lane.b32.xlu0 %v1709, 80
    %v2285 = vpop.permute.xlu0 %2284
    %2286 = vrot.lane.b32.xlu0 %v1711, 80
    %v2287 = vpop.permute.xlu0 %2286
    %2288 = vrot.lane.b32.xlu0 %v1713, 80
    %v2289 = vpop.permute.xlu0 %2288
    %2290 = vrot.lane.b32.xlu0 %v1715, 80
    %v2291 = vpop.permute.xlu0 %2290
    %2292 = vrot.lane.b32.xlu0 %v1717, 80
    %v2293 = vpop.permute.xlu0 %2292
    %2294 = vrot.lane.b32.xlu0 %v1719, 80
    %v2295 = vpop.permute.xlu0 %2294
    %2296 = vrot.lane.b32.xlu0 %v1721, 80
    %v2297 = vpop.permute.xlu0 %2296
    %2298 = vrot.lane.b32.xlu0 %v1723, 80
    %v2299 = vpop.permute.xlu0 %2298
    %2300 = vrot.lane.b32.xlu0 %v1725, 80
    %v2301 = vpop.permute.xlu0 %2300
    %2302 = vrot.lane.b32.xlu0 %v1727, 80
    %v2303 = vpop.permute.xlu0 %2302
    %2304 = vrot.lane.b32.xlu0 %v1729, 80
    %v2305 = vpop.permute.xlu0 %2304
    %2306 = vrot.lane.b32.xlu0 %v1731, 80
    %v2307 = vpop.permute.xlu0 %2306
    %2308 = vrot.lane.b32.xlu0 %v1733, 80
    %v2309 = vpop.permute.xlu0 %2308
    %2310 = vrot.lane.b32.xlu0 %v1735, 80
    %v2311 = vpop.permute.xlu0 %2310
    %2312 = vrot.lane.b32.xlu0 %v1737, 80
    %v2313 = vpop.permute.xlu0 %2312
    %2314 = vrot.lane.b32.xlu0 %v1739, 80
    %v2315 = vpop.permute.xlu0 %2314
    %2316 = vrot.lane.b32.xlu0 %v1741, 80
    %v2317 = vpop.permute.xlu0 %2316
    %2318 = vrot.lane.b32.xlu0 %v1743, 80
    %v2319 = vpop.permute.xlu0 %2318
    %2320 = vrot.lane.b32.xlu0 %v1745, 80
    %v2321 = vpop.permute.xlu0 %2320
    %2322 = vrot.lane.b32.xlu0 %v1747, 80
    %v2323 = vpop.permute.xlu0 %2322
    %2324 = vrot.lane.b32.xlu0 %v1749, 80
    %v2325 = vpop.permute.xlu0 %2324
    %2326 = vrot.lane.b32.xlu0 %v1751, 80
    %v2327 = vpop.permute.xlu0 %2326
    %2328 = vrot.lane.b32.xlu0 %v1753, 80
    %v2329 = vpop.permute.xlu0 %2328
    %v2362 = vsel %vm652, %v2267, 0.0
    %2363 = vadd.xlane.f32.xlu0 %v2362
    %v2364 = vpop.xlane.xlu0 %2363
    %v2365 = vsel %vm652, %v2269, 0.0
    %2366 = vadd.xlane.f32.xlu0 %v2365
    %v2367 = vpop.xlane.xlu0 %2366
    %v2368 = vsel %vm652, %v2271, 0.0
    %2369 = vadd.xlane.f32.xlu0 %v2368
    %v2370 = vpop.xlane.xlu0 %2369
    %v2371 = vsel %vm652, %v2273, 0.0
    %2372 = vadd.xlane.f32.xlu0 %v2371
    %v2373 = vpop.xlane.xlu0 %2372
    %v2374 = vsel %vm652, %v2275, 0.0
    %2375 = vadd.xlane.f32.xlu0 %v2374
    %v2376 = vpop.xlane.xlu0 %2375
    %v2377 = vsel %vm652, %v2277, 0.0
    %2378 = vadd.xlane.f32.xlu0 %v2377
    %v2379 = vpop.xlane.xlu0 %2378
    %v2380 = vsel %vm652, %v2279, 0.0
    %2381 = vadd.xlane.f32.xlu0 %v2380
    %v2382 = vpop.xlane.xlu0 %2381
    %v2383 = vsel %vm652, %v2281, 0.0
    %2384 = vadd.xlane.f32.xlu0 %v2383
    %v2385 = vpop.xlane.xlu0 %2384
    %v2386 = vsel %vm652, %v2283, 0.0
    %2387 = vadd.xlane.f32.xlu0 %v2386
    %v2388 = vpop.xlane.xlu0 %2387
    %v2389 = vsel %vm652, %v2285, 0.0
    %2390 = vadd.xlane.f32.xlu0 %v2389
    %v2391 = vpop.xlane.xlu0 %2390
    %v2392 = vsel %vm652, %v2287, 0.0
    %2393 = vadd.xlane.f32.xlu0 %v2392
    %v2394 = vpop.xlane.xlu0 %2393
    %v2395 = vsel %vm652, %v2289, 0.0
    %2396 = vadd.xlane.f32.xlu0 %v2395
    %v2397 = vpop.xlane.xlu0 %2396
    %v2398 = vsel %vm652, %v2291, 0.0
    %2399 = vadd.xlane.f32.xlu0 %v2398
    %v2400 = vpop.xlane.xlu0 %2399
    %v2401 = vsel %vm652, %v2293, 0.0
    %2402 = vadd.xlane.f32.xlu0 %v2401
    %v2403 = vpop.xlane.xlu0 %2402
    %v2404 = vsel %vm652, %v2295, 0.0
    %2405 = vadd.xlane.f32.xlu0 %v2404
    %v2406 = vpop.xlane.xlu0 %2405
    %v2407 = vsel %vm652, %v2297, 0.0
    %2408 = vadd.xlane.f32.xlu0 %v2407
    %v2409 = vpop.xlane.xlu0 %2408
    %v2410 = vsel %vm652, %v2299, 0.0
    %2411 = vadd.xlane.f32.xlu0 %v2410
    %v2412 = vpop.xlane.xlu0 %2411
    %v2413 = vsel %vm652, %v2301, 0.0
    %2414 = vadd.xlane.f32.xlu0 %v2413
    %v2415 = vpop.xlane.xlu0 %2414
    %v2416 = vsel %vm652, %v2303, 0.0
    %2417 = vadd.xlane.f32.xlu0 %v2416
    %v2418 = vpop.xlane.xlu0 %2417
    %v2419 = vsel %vm652, %v2305, 0.0
    %2420 = vadd.xlane.f32.xlu0 %v2419
    %v2421 = vpop.xlane.xlu0 %2420
    %v2422 = vsel %vm652, %v2307, 0.0
    %2423 = vadd.xlane.f32.xlu0 %v2422
    %v2424 = vpop.xlane.xlu0 %2423
    %v2425 = vsel %vm652, %v2309, 0.0
    %2426 = vadd.xlane.f32.xlu0 %v2425
    %v2427 = vpop.xlane.xlu0 %2426
    %v2428 = vsel %vm652, %v2311, 0.0
    %2429 = vadd.xlane.f32.xlu0 %v2428
    %v2430 = vpop.xlane.xlu0 %2429
    %v2431 = vsel %vm652, %v2313, 0.0
    %2432 = vadd.xlane.f32.xlu0 %v2431
    %v2433 = vpop.xlane.xlu0 %2432
    %v2434 = vsel %vm652, %v2315, 0.0
    %2435 = vadd.xlane.f32.xlu0 %v2434
    %v2436 = vpop.xlane.xlu0 %2435
    %v2437 = vsel %vm652, %v2317, 0.0
    %2438 = vadd.xlane.f32.xlu0 %v2437
    %v2439 = vpop.xlane.xlu0 %2438
    %v2440 = vsel %vm652, %v2319, 0.0
    %2441 = vadd.xlane.f32.xlu0 %v2440
    %v2442 = vpop.xlane.xlu0 %2441
    %v2443 = vsel %vm652, %v2321, 0.0
    %2444 = vadd.xlane.f32.xlu0 %v2443
    %v2445 = vpop.xlane.xlu0 %2444
    %v2446 = vsel %vm652, %v2323, 0.0
    %2447 = vadd.xlane.f32.xlu0 %v2446
    %v2448 = vpop.xlane.xlu0 %2447
    %v2449 = vsel %vm652, %v2325, 0.0
    %2450 = vadd.xlane.f32.xlu0 %v2449
    %v2451 = vpop.xlane.xlu0 %2450
    %v2452 = vsel %vm652, %v2327, 0.0
    %2453 = vadd.xlane.f32.xlu0 %v2452
    %v2454 = vpop.xlane.xlu0 %2453
    %v2455 = vsel %vm652, %v2329, 0.0
    %2456 = vadd.xlane.f32.xlu0 %v2455
    %v2457 = vpop.xlane.xlu0 %2456
    %2458 = vrot.lane.b32.xlu0 %v1691, 64
    %v2459 = vpop.permute.xlu0 %2458
    %2460 = vrot.lane.b32.xlu0 %v1693, 64
    %v2461 = vpop.permute.xlu0 %2460
    %2462 = vrot.lane.b32.xlu0 %v1695, 64
    %v2463 = vpop.permute.xlu0 %2462
    %2464 = vrot.lane.b32.xlu0 %v1697, 64
    %v2465 = vpop.permute.xlu0 %2464
    %2466 = vrot.lane.b32.xlu0 %v1699, 64
    %v2467 = vpop.permute.xlu0 %2466
    %2468 = vrot.lane.b32.xlu0 %v1701, 64
    %v2469 = vpop.permute.xlu0 %2468
    %2470 = vrot.lane.b32.xlu0 %v1703, 64
    %v2471 = vpop.permute.xlu0 %2470
    %2472 = vrot.lane.b32.xlu0 %v1705, 64
    %v2473 = vpop.permute.xlu0 %2472
    %2474 = vrot.lane.b32.xlu0 %v1707, 64
    %v2475 = vpop.permute.xlu0 %2474
    %2476 = vrot.lane.b32.xlu0 %v1709, 64
    %v2477 = vpop.permute.xlu0 %2476
    %2478 = vrot.lane.b32.xlu0 %v1711, 64
    %v2479 = vpop.permute.xlu0 %2478
    %2480 = vrot.lane.b32.xlu0 %v1713, 64
    %v2481 = vpop.permute.xlu0 %2480
    %2482 = vrot.lane.b32.xlu0 %v1715, 64
    %v2483 = vpop.permute.xlu0 %2482
    %2484 = vrot.lane.b32.xlu0 %v1717, 64
    %v2485 = vpop.permute.xlu0 %2484
    %2486 = vrot.lane.b32.xlu0 %v1719, 64
    %v2487 = vpop.permute.xlu0 %2486
    %2488 = vrot.lane.b32.xlu0 %v1721, 64
    %v2489 = vpop.permute.xlu0 %2488
    %2490 = vrot.lane.b32.xlu0 %v1723, 64
    %v2491 = vpop.permute.xlu0 %2490
    %2492 = vrot.lane.b32.xlu0 %v1725, 64
    %v2493 = vpop.permute.xlu0 %2492
    %2494 = vrot.lane.b32.xlu0 %v1727, 64
    %v2495 = vpop.permute.xlu0 %2494
    %2496 = vrot.lane.b32.xlu0 %v1729, 64
    %v2497 = vpop.permute.xlu0 %2496
    %2498 = vrot.lane.b32.xlu0 %v1731, 64
    %v2499 = vpop.permute.xlu0 %2498
    %2500 = vrot.lane.b32.xlu0 %v1733, 64
    %v2501 = vpop.permute.xlu0 %2500
    %2502 = vrot.lane.b32.xlu0 %v1735, 64
    %v2503 = vpop.permute.xlu0 %2502
    %2504 = vrot.lane.b32.xlu0 %v1737, 64
    %v2505 = vpop.permute.xlu0 %2504
    %2506 = vrot.lane.b32.xlu0 %v1739, 64
    %v2507 = vpop.permute.xlu0 %2506
    %2508 = vrot.lane.b32.xlu0 %v1741, 64
    %v2509 = vpop.permute.xlu0 %2508
    %2510 = vrot.lane.b32.xlu0 %v1743, 64
    %v2511 = vpop.permute.xlu0 %2510
    %2512 = vrot.lane.b32.xlu0 %v1745, 64
    %v2513 = vpop.permute.xlu0 %2512
    %2514 = vrot.lane.b32.xlu0 %v1747, 64
    %v2515 = vpop.permute.xlu0 %2514
    %2516 = vrot.lane.b32.xlu0 %v1749, 64
    %v2517 = vpop.permute.xlu0 %2516
    %2518 = vrot.lane.b32.xlu0 %v1751, 64
    %v2519 = vpop.permute.xlu0 %2518
    %2520 = vrot.lane.b32.xlu0 %v1753, 64
    %v2521 = vpop.permute.xlu0 %2520
    %v2554 = vsel %vm652, %v2459, 0.0
    %2555 = vadd.xlane.f32.xlu0 %v2554
    %v2556 = vpop.xlane.xlu0 %2555
    %v2557 = vsel %vm652, %v2461, 0.0
    %2558 = vadd.xlane.f32.xlu0 %v2557
    %v2559 = vpop.xlane.xlu0 %2558
    %v2560 = vsel %vm652, %v2463, 0.0
    %2561 = vadd.xlane.f32.xlu0 %v2560
    %v2562 = vpop.xlane.xlu0 %2561
    %v2563 = vsel %vm652, %v2465, 0.0
    %2564 = vadd.xlane.f32.xlu0 %v2563
    %v2565 = vpop.xlane.xlu0 %2564
    %v2566 = vsel %vm652, %v2467, 0.0
    %2567 = vadd.xlane.f32.xlu0 %v2566
    %v2568 = vpop.xlane.xlu0 %2567
    %v2569 = vsel %vm652, %v2469, 0.0
    %2570 = vadd.xlane.f32.xlu0 %v2569
    %v2571 = vpop.xlane.xlu0 %2570
    %v2572 = vsel %vm652, %v2471, 0.0
    %2573 = vadd.xlane.f32.xlu0 %v2572
    %v2574 = vpop.xlane.xlu0 %2573
    %v2575 = vsel %vm652, %v2473, 0.0
    %2576 = vadd.xlane.f32.xlu0 %v2575
    %v2577 = vpop.xlane.xlu0 %2576
    %v2578 = vsel %vm652, %v2475, 0.0
    %2579 = vadd.xlane.f32.xlu0 %v2578
    %v2580 = vpop.xlane.xlu0 %2579
    %v2581 = vsel %vm652, %v2477, 0.0
    %2582 = vadd.xlane.f32.xlu0 %v2581
    %v2583 = vpop.xlane.xlu0 %2582
    %v2584 = vsel %vm652, %v2479, 0.0
    %2585 = vadd.xlane.f32.xlu0 %v2584
    %v2586 = vpop.xlane.xlu0 %2585
    %v2587 = vsel %vm652, %v2481, 0.0
    %2588 = vadd.xlane.f32.xlu0 %v2587
    %v2589 = vpop.xlane.xlu0 %2588
    %v2590 = vsel %vm652, %v2483, 0.0
    %2591 = vadd.xlane.f32.xlu0 %v2590
    %v2592 = vpop.xlane.xlu0 %2591
    %v2593 = vsel %vm652, %v2485, 0.0
    %2594 = vadd.xlane.f32.xlu0 %v2593
    %v2595 = vpop.xlane.xlu0 %2594
    %v2596 = vsel %vm652, %v2487, 0.0
    %2597 = vadd.xlane.f32.xlu0 %v2596
    %v2598 = vpop.xlane.xlu0 %2597
    %v2599 = vsel %vm652, %v2489, 0.0
    %2600 = vadd.xlane.f32.xlu0 %v2599
    %v2601 = vpop.xlane.xlu0 %2600
    %v2602 = vsel %vm652, %v2491, 0.0
    %2603 = vadd.xlane.f32.xlu0 %v2602
    %v2604 = vpop.xlane.xlu0 %2603
    %v2605 = vsel %vm652, %v2493, 0.0
    %2606 = vadd.xlane.f32.xlu0 %v2605
    %v2607 = vpop.xlane.xlu0 %2606
    %v2608 = vsel %vm652, %v2495, 0.0
    %2609 = vadd.xlane.f32.xlu0 %v2608
    %v2610 = vpop.xlane.xlu0 %2609
    %v2611 = vsel %vm652, %v2497, 0.0
    %2612 = vadd.xlane.f32.xlu0 %v2611
    %v2613 = vpop.xlane.xlu0 %2612
    %v2614 = vsel %vm652, %v2499, 0.0
    %2615 = vadd.xlane.f32.xlu0 %v2614
    %v2616 = vpop.xlane.xlu0 %2615
    %v2617 = vsel %vm652, %v2501, 0.0
    %2618 = vadd.xlane.f32.xlu0 %v2617
    %v2619 = vpop.xlane.xlu0 %2618
    %v2620 = vsel %vm652, %v2503, 0.0
    %2621 = vadd.xlane.f32.xlu0 %v2620
    %v2622 = vpop.xlane.xlu0 %2621
    %v2623 = vsel %vm652, %v2505, 0.0
    %2624 = vadd.xlane.f32.xlu0 %v2623
    %v2625 = vpop.xlane.xlu0 %2624
    %v2626 = vsel %vm652, %v2507, 0.0
    %2627 = vadd.xlane.f32.xlu0 %v2626
    %v2628 = vpop.xlane.xlu0 %2627
    %v2629 = vsel %vm652, %v2509, 0.0
    %2630 = vadd.xlane.f32.xlu0 %v2629
    %v2631 = vpop.xlane.xlu0 %2630
    %v2632 = vsel %vm652, %v2511, 0.0
    %2633 = vadd.xlane.f32.xlu0 %v2632
    %v2634 = vpop.xlane.xlu0 %2633
    %v2635 = vsel %vm652, %v2513, 0.0
    %2636 = vadd.xlane.f32.xlu0 %v2635
    %v2637 = vpop.xlane.xlu0 %2636
    %v2638 = vsel %vm652, %v2515, 0.0
    %2639 = vadd.xlane.f32.xlu0 %v2638
    %v2640 = vpop.xlane.xlu0 %2639
    %v2641 = vsel %vm652, %v2517, 0.0
    %2642 = vadd.xlane.f32.xlu0 %v2641
    %v2643 = vpop.xlane.xlu0 %2642
    %v2644 = vsel %vm652, %v2519, 0.0
    %2645 = vadd.xlane.f32.xlu0 %v2644
    %v2646 = vpop.xlane.xlu0 %2645
    %v2647 = vsel %vm652, %v2521, 0.0
    %2648 = vadd.xlane.f32.xlu0 %v2647
    %v2649 = vpop.xlane.xlu0 %2648
    %2650 = vrot.lane.b32.xlu0 %v1691, 48
    %v2651 = vpop.permute.xlu0 %2650
    %2652 = vrot.lane.b32.xlu0 %v1693, 48
    %v2653 = vpop.permute.xlu0 %2652
    %2654 = vrot.lane.b32.xlu0 %v1695, 48
    %v2655 = vpop.permute.xlu0 %2654
    %2656 = vrot.lane.b32.xlu0 %v1697, 48
    %v2657 = vpop.permute.xlu0 %2656
    %2658 = vrot.lane.b32.xlu0 %v1699, 48
    %v2659 = vpop.permute.xlu0 %2658
    %2660 = vrot.lane.b32.xlu0 %v1701, 48
    %v2661 = vpop.permute.xlu0 %2660
    %2662 = vrot.lane.b32.xlu0 %v1703, 48
    %v2663 = vpop.permute.xlu0 %2662
    %2664 = vrot.lane.b32.xlu0 %v1705, 48
    %v2665 = vpop.permute.xlu0 %2664
    %2666 = vrot.lane.b32.xlu0 %v1707, 48
    %v2667 = vpop.permute.xlu0 %2666
    %2668 = vrot.lane.b32.xlu0 %v1709, 48
    %v2669 = vpop.permute.xlu0 %2668
    %2670 = vrot.lane.b32.xlu0 %v1711, 48
    %v2671 = vpop.permute.xlu0 %2670
    %2672 = vrot.lane.b32.xlu0 %v1713, 48
    %v2673 = vpop.permute.xlu0 %2672
    %2674 = vrot.lane.b32.xlu0 %v1715, 48
    %v2675 = vpop.permute.xlu0 %2674
    %2676 = vrot.lane.b32.xlu0 %v1717, 48
    %v2677 = vpop.permute.xlu0 %2676
    %2678 = vrot.lane.b32.xlu0 %v1719, 48
    %v2679 = vpop.permute.xlu0 %2678
    %2680 = vrot.lane.b32.xlu0 %v1721, 48
    %v2681 = vpop.permute.xlu0 %2680
    %2682 = vrot.lane.b32.xlu0 %v1723, 48
    %v2683 = vpop.permute.xlu0 %2682
    %2684 = vrot.lane.b32.xlu0 %v1725, 48
    %v2685 = vpop.permute.xlu0 %2684
    %2686 = vrot.lane.b32.xlu0 %v1727, 48
    %v2687 = vpop.permute.xlu0 %2686
    %2688 = vrot.lane.b32.xlu0 %v1729, 48
    %v2689 = vpop.permute.xlu0 %2688
    %2690 = vrot.lane.b32.xlu0 %v1731, 48
    %v2691 = vpop.permute.xlu0 %2690
    %2692 = vrot.lane.b32.xlu0 %v1733, 48
    %v2693 = vpop.permute.xlu0 %2692
    %2694 = vrot.lane.b32.xlu0 %v1735, 48
    %v2695 = vpop.permute.xlu0 %2694
    %2696 = vrot.lane.b32.xlu0 %v1737, 48
    %v2697 = vpop.permute.xlu0 %2696
    %2698 = vrot.lane.b32.xlu0 %v1739, 48
    %v2699 = vpop.permute.xlu0 %2698
    %2700 = vrot.lane.b32.xlu0 %v1741, 48
    %v2701 = vpop.permute.xlu0 %2700
    %2702 = vrot.lane.b32.xlu0 %v1743, 48
    %v2703 = vpop.permute.xlu0 %2702
    %2704 = vrot.lane.b32.xlu0 %v1745, 48
    %v2705 = vpop.permute.xlu0 %2704
    %2706 = vrot.lane.b32.xlu0 %v1747, 48
    %v2707 = vpop.permute.xlu0 %2706
    %2708 = vrot.lane.b32.xlu0 %v1749, 48
    %v2709 = vpop.permute.xlu0 %2708
    %2710 = vrot.lane.b32.xlu0 %v1751, 48
    %v2711 = vpop.permute.xlu0 %2710
    %2712 = vrot.lane.b32.xlu0 %v1753, 48
    %v2713 = vpop.permute.xlu0 %2712
    %v2746 = vsel %vm652, %v2651, 0.0
    %2747 = vadd.xlane.f32.xlu0 %v2746
    %v2748 = vpop.xlane.xlu0 %2747
    %v2749 = vsel %vm652, %v2653, 0.0
    %2750 = vadd.xlane.f32.xlu0 %v2749
    %v2751 = vpop.xlane.xlu0 %2750
    %v2752 = vsel %vm652, %v2655, 0.0
    %2753 = vadd.xlane.f32.xlu0 %v2752
    %v2754 = vpop.xlane.xlu0 %2753
    %v2755 = vsel %vm652, %v2657, 0.0
    %2756 = vadd.xlane.f32.xlu0 %v2755
    %v2757 = vpop.xlane.xlu0 %2756
    %v2758 = vsel %vm652, %v2659, 0.0
    %2759 = vadd.xlane.f32.xlu0 %v2758
    %v2760 = vpop.xlane.xlu0 %2759
    %v2761 = vsel %vm652, %v2661, 0.0
    %2762 = vadd.xlane.f32.xlu0 %v2761
    %v2763 = vpop.xlane.xlu0 %2762
    %v2764 = vsel %vm652, %v2663, 0.0
    %2765 = vadd.xlane.f32.xlu0 %v2764
    %v2766 = vpop.xlane.xlu0 %2765
    %v2767 = vsel %vm652, %v2665, 0.0
    %2768 = vadd.xlane.f32.xlu0 %v2767
    %v2769 = vpop.xlane.xlu0 %2768
    %v2770 = vsel %vm652, %v2667, 0.0
    %2771 = vadd.xlane.f32.xlu0 %v2770
    %v2772 = vpop.xlane.xlu0 %2771
    %v2773 = vsel %vm652, %v2669, 0.0
    %2774 = vadd.xlane.f32.xlu0 %v2773
    %v2775 = vpop.xlane.xlu0 %2774
    %v2776 = vsel %vm652, %v2671, 0.0
    %2777 = vadd.xlane.f32.xlu0 %v2776
    %v2778 = vpop.xlane.xlu0 %2777
    %v2779 = vsel %vm652, %v2673, 0.0
    %2780 = vadd.xlane.f32.xlu0 %v2779
    %v2781 = vpop.xlane.xlu0 %2780
    %v2782 = vsel %vm652, %v2675, 0.0
    %2783 = vadd.xlane.f32.xlu0 %v2782
    %v2784 = vpop.xlane.xlu0 %2783
    %v2785 = vsel %vm652, %v2677, 0.0
    %2786 = vadd.xlane.f32.xlu0 %v2785
    %v2787 = vpop.xlane.xlu0 %2786
    %v2788 = vsel %vm652, %v2679, 0.0
    %2789 = vadd.xlane.f32.xlu0 %v2788
    %v2790 = vpop.xlane.xlu0 %2789
    %v2791 = vsel %vm652, %v2681, 0.0
    %2792 = vadd.xlane.f32.xlu0 %v2791
    %v2793 = vpop.xlane.xlu0 %2792
    %v2794 = vsel %vm652, %v2683, 0.0
    %2795 = vadd.xlane.f32.xlu0 %v2794
    %v2796 = vpop.xlane.xlu0 %2795
    %v2797 = vsel %vm652, %v2685, 0.0
    %2798 = vadd.xlane.f32.xlu0 %v2797
    %v2799 = vpop.xlane.xlu0 %2798
    %v2800 = vsel %vm652, %v2687, 0.0
    %2801 = vadd.xlane.f32.xlu0 %v2800
    %v2802 = vpop.xlane.xlu0 %2801
    %v2803 = vsel %vm652, %v2689, 0.0
    %2804 = vadd.xlane.f32.xlu0 %v2803
    %v2805 = vpop.xlane.xlu0 %2804
    %v2806 = vsel %vm652, %v2691, 0.0
    %2807 = vadd.xlane.f32.xlu0 %v2806
    %v2808 = vpop.xlane.xlu0 %2807
    %v2809 = vsel %vm652, %v2693, 0.0
    %2810 = vadd.xlane.f32.xlu0 %v2809
    %v2811 = vpop.xlane.xlu0 %2810
    %v2812 = vsel %vm652, %v2695, 0.0
    %2813 = vadd.xlane.f32.xlu0 %v2812
    %v2814 = vpop.xlane.xlu0 %2813
    %v2815 = vsel %vm652, %v2697, 0.0
    %2816 = vadd.xlane.f32.xlu0 %v2815
    %v2817 = vpop.xlane.xlu0 %2816
    %v2818 = vsel %vm652, %v2699, 0.0
    %2819 = vadd.xlane.f32.xlu0 %v2818
    %v2820 = vpop.xlane.xlu0 %2819
    %v2821 = vsel %vm652, %v2701, 0.0
    %2822 = vadd.xlane.f32.xlu0 %v2821
    %v2823 = vpop.xlane.xlu0 %2822
    %v2824 = vsel %vm652, %v2703, 0.0
    %2825 = vadd.xlane.f32.xlu0 %v2824
    %v2826 = vpop.xlane.xlu0 %2825
    %v2827 = vsel %vm652, %v2705, 0.0
    %2828 = vadd.xlane.f32.xlu0 %v2827
    %v2829 = vpop.xlane.xlu0 %2828
    %v2830 = vsel %vm652, %v2707, 0.0
    %2831 = vadd.xlane.f32.xlu0 %v2830
    %v2832 = vpop.xlane.xlu0 %2831
    %v2833 = vsel %vm652, %v2709, 0.0
    %2834 = vadd.xlane.f32.xlu0 %v2833
    %v2835 = vpop.xlane.xlu0 %2834
    %v2836 = vsel %vm652, %v2711, 0.0
    %2837 = vadd.xlane.f32.xlu0 %v2836
    %v2838 = vpop.xlane.xlu0 %2837
    %v2839 = vsel %vm652, %v2713, 0.0
    %2840 = vadd.xlane.f32.xlu0 %v2839
    %v2841 = vpop.xlane.xlu0 %2840
    %2842 = vrot.lane.b32.xlu0 %v1691, 32
    %v2843 = vpop.permute.xlu0 %2842
    %2844 = vrot.lane.b32.xlu0 %v1693, 32
    %v2845 = vpop.permute.xlu0 %2844
    %2846 = vrot.lane.b32.xlu0 %v1695, 32
    %v2847 = vpop.permute.xlu0 %2846
    %2848 = vrot.lane.b32.xlu0 %v1697, 32
    %v2849 = vpop.permute.xlu0 %2848
    %2850 = vrot.lane.b32.xlu0 %v1699, 32
    %v2851 = vpop.permute.xlu0 %2850
    %2852 = vrot.lane.b32.xlu0 %v1701, 32
    %v2853 = vpop.permute.xlu0 %2852
    %2854 = vrot.lane.b32.xlu0 %v1703, 32
    %v2855 = vpop.permute.xlu0 %2854
    %2856 = vrot.lane.b32.xlu0 %v1705, 32
    %v2857 = vpop.permute.xlu0 %2856
    %2858 = vrot.lane.b32.xlu0 %v1707, 32
    %v2859 = vpop.permute.xlu0 %2858
    %2860 = vrot.lane.b32.xlu0 %v1709, 32
    %v2861 = vpop.permute.xlu0 %2860
    %2862 = vrot.lane.b32.xlu0 %v1711, 32
    %v2863 = vpop.permute.xlu0 %2862
    %2864 = vrot.lane.b32.xlu0 %v1713, 32
    %v2865 = vpop.permute.xlu0 %2864
    %2866 = vrot.lane.b32.xlu0 %v1715, 32
    %v2867 = vpop.permute.xlu0 %2866
    %2868 = vrot.lane.b32.xlu0 %v1717, 32
    %v2869 = vpop.permute.xlu0 %2868
    %2870 = vrot.lane.b32.xlu0 %v1719, 32
    %v2871 = vpop.permute.xlu0 %2870
    %2872 = vrot.lane.b32.xlu0 %v1721, 32
    %v2873 = vpop.permute.xlu0 %2872
    %2874 = vrot.lane.b32.xlu0 %v1723, 32
    %v2875 = vpop.permute.xlu0 %2874
    %2876 = vrot.lane.b32.xlu0 %v1725, 32
    %v2877 = vpop.permute.xlu0 %2876
    %2878 = vrot.lane.b32.xlu0 %v1727, 32
    %v2879 = vpop.permute.xlu0 %2878
    %2880 = vrot.lane.b32.xlu0 %v1729, 32
    %v2881 = vpop.permute.xlu0 %2880
    %2882 = vrot.lane.b32.xlu0 %v1731, 32
    %v2883 = vpop.permute.xlu0 %2882
    %2884 = vrot.lane.b32.xlu0 %v1733, 32
    %v2885 = vpop.permute.xlu0 %2884
    %2886 = vrot.lane.b32.xlu0 %v1735, 32
    %v2887 = vpop.permute.xlu0 %2886
    %2888 = vrot.lane.b32.xlu0 %v1737, 32
    %v2889 = vpop.permute.xlu0 %2888
    %2890 = vrot.lane.b32.xlu0 %v1739, 32
    %v2891 = vpop.permute.xlu0 %2890
    %2892 = vrot.lane.b32.xlu0 %v1741, 32
    %v2893 = vpop.permute.xlu0 %2892
    %2894 = vrot.lane.b32.xlu0 %v1743, 32
    %v2895 = vpop.permute.xlu0 %2894
    %2896 = vrot.lane.b32.xlu0 %v1745, 32
    %v2897 = vpop.permute.xlu0 %2896
    %2898 = vrot.lane.b32.xlu0 %v1747, 32
    %v2899 = vpop.permute.xlu0 %2898
    %2900 = vrot.lane.b32.xlu0 %v1749, 32
    %v2901 = vpop.permute.xlu0 %2900
    %2902 = vrot.lane.b32.xlu0 %v1751, 32
    %v2903 = vpop.permute.xlu0 %2902
    %2904 = vrot.lane.b32.xlu0 %v1753, 32
    %v2905 = vpop.permute.xlu0 %2904
    %v2938 = vsel %vm652, %v2843, 0.0
    %2939 = vadd.xlane.f32.xlu0 %v2938
    %v2940 = vpop.xlane.xlu0 %2939
    %v2941 = vsel %vm652, %v2845, 0.0
    %2942 = vadd.xlane.f32.xlu0 %v2941
    %v2943 = vpop.xlane.xlu0 %2942
    %v2944 = vsel %vm652, %v2847, 0.0
    %2945 = vadd.xlane.f32.xlu0 %v2944
    %v2946 = vpop.xlane.xlu0 %2945
    %v2947 = vsel %vm652, %v2849, 0.0
    %2948 = vadd.xlane.f32.xlu0 %v2947
    %v2949 = vpop.xlane.xlu0 %2948
    %v2950 = vsel %vm652, %v2851, 0.0
    %2951 = vadd.xlane.f32.xlu0 %v2950
    %v2952 = vpop.xlane.xlu0 %2951
    %v2953 = vsel %vm652, %v2853, 0.0
    %2954 = vadd.xlane.f32.xlu0 %v2953
    %v2955 = vpop.xlane.xlu0 %2954
    %v2956 = vsel %vm652, %v2855, 0.0
    %2957 = vadd.xlane.f32.xlu0 %v2956
    %v2958 = vpop.xlane.xlu0 %2957
    %v2959 = vsel %vm652, %v2857, 0.0
    %2960 = vadd.xlane.f32.xlu0 %v2959
    %v2961 = vpop.xlane.xlu0 %2960
    %v2962 = vsel %vm652, %v2859, 0.0
    %2963 = vadd.xlane.f32.xlu0 %v2962
    %v2964 = vpop.xlane.xlu0 %2963
    %v2965 = vsel %vm652, %v2861, 0.0
    %2966 = vadd.xlane.f32.xlu0 %v2965
    %v2967 = vpop.xlane.xlu0 %2966
    %v2968 = vsel %vm652, %v2863, 0.0
    %2969 = vadd.xlane.f32.xlu0 %v2968
    %v2970 = vpop.xlane.xlu0 %2969
    %v2971 = vsel %vm652, %v2865, 0.0
    %2972 = vadd.xlane.f32.xlu0 %v2971
    %v2973 = vpop.xlane.xlu0 %2972
    %v2974 = vsel %vm652, %v2867, 0.0
    %2975 = vadd.xlane.f32.xlu0 %v2974
    %v2976 = vpop.xlane.xlu0 %2975
    %v2977 = vsel %vm652, %v2869, 0.0
    %2978 = vadd.xlane.f32.xlu0 %v2977
    %v2979 = vpop.xlane.xlu0 %2978
    %v2980 = vsel %vm652, %v2871, 0.0
    %2981 = vadd.xlane.f32.xlu0 %v2980
    %v2982 = vpop.xlane.xlu0 %2981
    %v2983 = vsel %vm652, %v2873, 0.0
    %2984 = vadd.xlane.f32.xlu0 %v2983
    %v2985 = vpop.xlane.xlu0 %2984
    %v2986 = vsel %vm652, %v2875, 0.0
    %2987 = vadd.xlane.f32.xlu0 %v2986
    %v2988 = vpop.xlane.xlu0 %2987
    %v2989 = vsel %vm652, %v2877, 0.0
    %2990 = vadd.xlane.f32.xlu0 %v2989
    %v2991 = vpop.xlane.xlu0 %2990
    %v2992 = vsel %vm652, %v2879, 0.0
    %2993 = vadd.xlane.f32.xlu0 %v2992
    %v2994 = vpop.xlane.xlu0 %2993
    %v2995 = vsel %vm652, %v2881, 0.0
    %2996 = vadd.xlane.f32.xlu0 %v2995
    %v2997 = vpop.xlane.xlu0 %2996
    %v2998 = vsel %vm652, %v2883, 0.0
    %2999 = vadd.xlane.f32.xlu0 %v2998
    %v3000 = vpop.xlane.xlu0 %2999
    %v3001 = vsel %vm652, %v2885, 0.0
    %3002 = vadd.xlane.f32.xlu0 %v3001
    %v3003 = vpop.xlane.xlu0 %3002
    %v3004 = vsel %vm652, %v2887, 0.0
    %3005 = vadd.xlane.f32.xlu0 %v3004
    %v3006 = vpop.xlane.xlu0 %3005
    %v3007 = vsel %vm652, %v2889, 0.0
    %3008 = vadd.xlane.f32.xlu0 %v3007
    %v3009 = vpop.xlane.xlu0 %3008
    %v3010 = vsel %vm652, %v2891, 0.0
    %3011 = vadd.xlane.f32.xlu0 %v3010
    %v3012 = vpop.xlane.xlu0 %3011
    %v3013 = vsel %vm652, %v2893, 0.0
    %3014 = vadd.xlane.f32.xlu0 %v3013
    %v3015 = vpop.xlane.xlu0 %3014
    %v3016 = vsel %vm652, %v2895, 0.0
    %3017 = vadd.xlane.f32.xlu0 %v3016
    %v3018 = vpop.xlane.xlu0 %3017
    %v3019 = vsel %vm652, %v2897, 0.0
    %3020 = vadd.xlane.f32.xlu0 %v3019
    %v3021 = vpop.xlane.xlu0 %3020
    %v3022 = vsel %vm652, %v2899, 0.0
    %3023 = vadd.xlane.f32.xlu0 %v3022
    %v3024 = vpop.xlane.xlu0 %3023
    %v3025 = vsel %vm652, %v2901, 0.0
    %3026 = vadd.xlane.f32.xlu0 %v3025
    %v3027 = vpop.xlane.xlu0 %3026
    %v3028 = vsel %vm652, %v2903, 0.0
    %3029 = vadd.xlane.f32.xlu0 %v3028
    %v3030 = vpop.xlane.xlu0 %3029
    %v3031 = vsel %vm652, %v2905, 0.0
    %3032 = vadd.xlane.f32.xlu0 %v3031
    %v3033 = vpop.xlane.xlu0 %3032
    %3034 = vrot.lane.b32.xlu0 %v1691, 16
    %v3035 = vpop.permute.xlu0 %3034
    %3036 = vrot.lane.b32.xlu0 %v1693, 16
    %v3037 = vpop.permute.xlu0 %3036
    %3038 = vrot.lane.b32.xlu0 %v1695, 16
    %v3039 = vpop.permute.xlu0 %3038
    %3040 = vrot.lane.b32.xlu0 %v1697, 16
    %v3041 = vpop.permute.xlu0 %3040
    %3042 = vrot.lane.b32.xlu0 %v1699, 16
    %v3043 = vpop.permute.xlu0 %3042
    %3044 = vrot.lane.b32.xlu0 %v1701, 16
    %v3045 = vpop.permute.xlu0 %3044
    %3046 = vrot.lane.b32.xlu0 %v1703, 16
    %v3047 = vpop.permute.xlu0 %3046
    %3048 = vrot.lane.b32.xlu0 %v1705, 16
    %v3049 = vpop.permute.xlu0 %3048
    %3050 = vrot.lane.b32.xlu0 %v1707, 16
    %v3051 = vpop.permute.xlu0 %3050
    %3052 = vrot.lane.b32.xlu0 %v1709, 16
    %v3053 = vpop.permute.xlu0 %3052
    %3054 = vrot.lane.b32.xlu0 %v1711, 16
    %v3055 = vpop.permute.xlu0 %3054
    %3056 = vrot.lane.b32.xlu0 %v1713, 16
    %v3057 = vpop.permute.xlu0 %3056
    %3058 = vrot.lane.b32.xlu0 %v1715, 16
    %v3059 = vpop.permute.xlu0 %3058
    %3060 = vrot.lane.b32.xlu0 %v1717, 16
    %v3061 = vpop.permute.xlu0 %3060
    %3062 = vrot.lane.b32.xlu0 %v1719, 16
    %v3063 = vpop.permute.xlu0 %3062
    %3064 = vrot.lane.b32.xlu0 %v1721, 16
    %v3065 = vpop.permute.xlu0 %3064
    %3066 = vrot.lane.b32.xlu0 %v1723, 16
    %v3067 = vpop.permute.xlu0 %3066
    %3068 = vrot.lane.b32.xlu0 %v1725, 16
    %v3069 = vpop.permute.xlu0 %3068
    %3070 = vrot.lane.b32.xlu0 %v1727, 16
    %v3071 = vpop.permute.xlu0 %3070
    %3072 = vrot.lane.b32.xlu0 %v1729, 16
    %v3073 = vpop.permute.xlu0 %3072
    %3074 = vrot.lane.b32.xlu0 %v1731, 16
    %v3075 = vpop.permute.xlu0 %3074
    %3076 = vrot.lane.b32.xlu0 %v1733, 16
    %v3077 = vpop.permute.xlu0 %3076
    %3078 = vrot.lane.b32.xlu0 %v1735, 16
    %v3079 = vpop.permute.xlu0 %3078
    %3080 = vrot.lane.b32.xlu0 %v1737, 16
    %v3081 = vpop.permute.xlu0 %3080
    %3082 = vrot.lane.b32.xlu0 %v1739, 16
    %v3083 = vpop.permute.xlu0 %3082
    %3084 = vrot.lane.b32.xlu0 %v1741, 16
    %v3085 = vpop.permute.xlu0 %3084
    %3086 = vrot.lane.b32.xlu0 %v1743, 16
    %v3087 = vpop.permute.xlu0 %3086
    %3088 = vrot.lane.b32.xlu0 %v1745, 16
    %v3089 = vpop.permute.xlu0 %3088
    %3090 = vrot.lane.b32.xlu0 %v1747, 16
    %v3091 = vpop.permute.xlu0 %3090
    %3092 = vrot.lane.b32.xlu0 %v1749, 16
    %v3093 = vpop.permute.xlu0 %3092
    %3094 = vrot.lane.b32.xlu0 %v1751, 16
    %v3095 = vpop.permute.xlu0 %3094
    %3096 = vrot.lane.b32.xlu0 %v1753, 16
    %v3097 = vpop.permute.xlu0 %3096
    %v3130 = vsel %vm652, %v3035, 0.0
    %3131 = vadd.xlane.f32.xlu0 %v3130
    %v3132 = vpop.xlane.xlu0 %3131
    %v3133 = vsel %vm652, %v3037, 0.0
    %3134 = vadd.xlane.f32.xlu0 %v3133
    %v3135 = vpop.xlane.xlu0 %3134
    %v3136 = vsel %vm652, %v3039, 0.0
    %3137 = vadd.xlane.f32.xlu0 %v3136
    %v3138 = vpop.xlane.xlu0 %3137
    %v3139 = vsel %vm652, %v3041, 0.0
    %3140 = vadd.xlane.f32.xlu0 %v3139
    %v3141 = vpop.xlane.xlu0 %3140
    %v3142 = vsel %vm652, %v3043, 0.0
    %3143 = vadd.xlane.f32.xlu0 %v3142
    %v3144 = vpop.xlane.xlu0 %3143
    %v3145 = vsel %vm652, %v3045, 0.0
    %3146 = vadd.xlane.f32.xlu0 %v3145
    %v3147 = vpop.xlane.xlu0 %3146
    %v3148 = vsel %vm652, %v3047, 0.0
    %3149 = vadd.xlane.f32.xlu0 %v3148
    %v3150 = vpop.xlane.xlu0 %3149
    %v3151 = vsel %vm652, %v3049, 0.0
    %3152 = vadd.xlane.f32.xlu0 %v3151
    %v3153 = vpop.xlane.xlu0 %3152
    %v3154 = vsel %vm652, %v3051, 0.0
    %3155 = vadd.xlane.f32.xlu0 %v3154
    %v3156 = vpop.xlane.xlu0 %3155
    %v3157 = vsel %vm652, %v3053, 0.0
    %3158 = vadd.xlane.f32.xlu0 %v3157
    %v3159 = vpop.xlane.xlu0 %3158
    %v3160 = vsel %vm652, %v3055, 0.0
    %3161 = vadd.xlane.f32.xlu0 %v3160
    %v3162 = vpop.xlane.xlu0 %3161
    %v3163 = vsel %vm652, %v3057, 0.0
    %3164 = vadd.xlane.f32.xlu0 %v3163
    %v3165 = vpop.xlane.xlu0 %3164
    %v3166 = vsel %vm652, %v3059, 0.0
    %3167 = vadd.xlane.f32.xlu0 %v3166
    %v3168 = vpop.xlane.xlu0 %3167
    %v3169 = vsel %vm652, %v3061, 0.0
    %3170 = vadd.xlane.f32.xlu0 %v3169
    %v3171 = vpop.xlane.xlu0 %3170
    %v3172 = vsel %vm652, %v3063, 0.0
    %3173 = vadd.xlane.f32.xlu0 %v3172
    %v3174 = vpop.xlane.xlu0 %3173
    %v3175 = vsel %vm652, %v3065, 0.0
    %3176 = vadd.xlane.f32.xlu0 %v3175
    %v3177 = vpop.xlane.xlu0 %3176
    %v3178 = vsel %vm652, %v3067, 0.0
    %3179 = vadd.xlane.f32.xlu0 %v3178
    %v3180 = vpop.xlane.xlu0 %3179
    %v3181 = vsel %vm652, %v3069, 0.0
    %3182 = vadd.xlane.f32.xlu0 %v3181
    %v3183 = vpop.xlane.xlu0 %3182
    %v3184 = vsel %vm652, %v3071, 0.0
    %3185 = vadd.xlane.f32.xlu0 %v3184
    %v3186 = vpop.xlane.xlu0 %3185
    %v3187 = vsel %vm652, %v3073, 0.0
    %3188 = vadd.xlane.f32.xlu0 %v3187
    %v3189 = vpop.xlane.xlu0 %3188
    %v3190 = vsel %vm652, %v3075, 0.0
    %3191 = vadd.xlane.f32.xlu0 %v3190
    %v3192 = vpop.xlane.xlu0 %3191
    %v3193 = vsel %vm652, %v3077, 0.0
    %3194 = vadd.xlane.f32.xlu0 %v3193
    %v3195 = vpop.xlane.xlu0 %3194
    %v3196 = vsel %vm652, %v3079, 0.0
    %3197 = vadd.xlane.f32.xlu0 %v3196
    %v3198 = vpop.xlane.xlu0 %3197
    %v3199 = vsel %vm652, %v3081, 0.0
    %3200 = vadd.xlane.f32.xlu0 %v3199
    %v3201 = vpop.xlane.xlu0 %3200
    %v3202 = vsel %vm652, %v3083, 0.0
    %3203 = vadd.xlane.f32.xlu0 %v3202
    %v3204 = vpop.xlane.xlu0 %3203
    %v3205 = vsel %vm652, %v3085, 0.0
    %3206 = vadd.xlane.f32.xlu0 %v3205
    %v3207 = vpop.xlane.xlu0 %3206
    %v3208 = vsel %vm652, %v3087, 0.0
    %3209 = vadd.xlane.f32.xlu0 %v3208
    %v3210 = vpop.xlane.xlu0 %3209
    %v3211 = vsel %vm652, %v3089, 0.0
    %3212 = vadd.xlane.f32.xlu0 %v3211
    %v3213 = vpop.xlane.xlu0 %3212
    %v3214 = vsel %vm652, %v3091, 0.0
    %3215 = vadd.xlane.f32.xlu0 %v3214
    %v3216 = vpop.xlane.xlu0 %3215
    %v3217 = vsel %vm652, %v3093, 0.0
    %3218 = vadd.xlane.f32.xlu0 %v3217
    %v3219 = vpop.xlane.xlu0 %3218
    %v3220 = vsel %vm652, %v3095, 0.0
    %3221 = vadd.xlane.f32.xlu0 %v3220
    %v3222 = vpop.xlane.xlu0 %3221
    %v3223 = vsel %vm652, %v3097, 0.0
    %3224 = vadd.xlane.f32.xlu0 %v3223
    %v3225 = vpop.xlane.xlu0 %3224
    %v3226 = vsel %vm652, %v1756, %v1980
    %v3227 = vsel %vm652, %v1759, %v1983
    %v3228 = vsel %vm652, %v1762, %v1986
    %v3229 = vsel %vm652, %v1765, %v1989
    %v3230 = vsel %vm652, %v1768, %v1992
    %v3231 = vsel %vm652, %v1771, %v1995
    %v3232 = vsel %vm652, %v1774, %v1998
    %v3233 = vsel %vm652, %v1777, %v2001
    %v3234 = vsel %vm652, %v1780, %v2004
    %v3235 = vsel %vm652, %v1783, %v2007
    %v3236 = vsel %vm652, %v1786, %v2010
    %v3237 = vsel %vm652, %v1789, %v2013
    %v3238 = vsel %vm652, %v1792, %v2016
    %v3239 = vsel %vm652, %v1795, %v2019
    %v3240 = vsel %vm652, %v1798, %v2022
    %v3241 = vsel %vm652, %v1801, %v2025
    %v3242 = vsel %vm652, %v1804, %v2028
    %v3243 = vsel %vm652, %v1807, %v2031
    %v3244 = vsel %vm652, %v1810, %v2034
    %v3245 = vsel %vm652, %v1813, %v2037
    %v3246 = vsel %vm652, %v1816, %v2040
    %v3247 = vsel %vm652, %v1819, %v2043
    %v3248 = vsel %vm652, %v1822, %v2046
    %v3249 = vsel %vm652, %v1825, %v2049
    %v3250 = vsel %vm652, %v1828, %v2052
    %v3251 = vsel %vm652, %v1831, %v2055
    %v3252 = vsel %vm652, %v1834, %v2058
    %v3253 = vsel %vm652, %v1837, %v2061
    %v3254 = vsel %vm652, %v1840, %v2064
    %v3255 = vsel %vm652, %v1843, %v2067
    %v3256 = vsel %vm652, %v1846, %v2070
    %v3257 = vsel %vm652, %v1849, %v2073
    %v3258 = vsel %vm1460, %v3226, %v2172
    %v3259 = vsel %vm1460, %v3227, %v2175
    %v3260 = vsel %vm1460, %v3228, %v2178
    %v3261 = vsel %vm1460, %v3229, %v2181
    %v3262 = vsel %vm1460, %v3230, %v2184
    %v3263 = vsel %vm1460, %v3231, %v2187
    %v3264 = vsel %vm1460, %v3232, %v2190
    %v3265 = vsel %vm1460, %v3233, %v2193
    %v3266 = vsel %vm1460, %v3234, %v2196
    %v3267 = vsel %vm1460, %v3235, %v2199
    %v3268 = vsel %vm1460, %v3236, %v2202
    %v3269 = vsel %vm1460, %v3237, %v2205
    %v3270 = vsel %vm1460, %v3238, %v2208
    %v3271 = vsel %vm1460, %v3239, %v2211
    %v3272 = vsel %vm1460, %v3240, %v2214
    %v3273 = vsel %vm1460, %v3241, %v2217
    %v3274 = vsel %vm1460, %v3242, %v2220
    %v3275 = vsel %vm1460, %v3243, %v2223
    %v3276 = vsel %vm1460, %v3244, %v2226
    %v3277 = vsel %vm1460, %v3245, %v2229
    %v3278 = vsel %vm1460, %v3246, %v2232
    %v3279 = vsel %vm1460, %v3247, %v2235
    %v3280 = vsel %vm1460, %v3248, %v2238
    %v3281 = vsel %vm1460, %v3249, %v2241
    %v3282 = vsel %vm1460, %v3250, %v2244
    %v3283 = vsel %vm1460, %v3251, %v2247
    %v3284 = vsel %vm1460, %v3252, %v2250
    %v3285 = vsel %vm1460, %v3253, %v2253
    %v3286 = vsel %vm1460, %v3254, %v2256
    %v3287 = vsel %vm1460, %v3255, %v2259
    %v3288 = vsel %vm1460, %v3256, %v2262
    %v3289 = vsel %vm1460, %v3257, %v2265
    %v3290 = vsel %vm1493, %v3258, %v2364
    %v3291 = vsel %vm1493, %v3259, %v2367
    %v3292 = vsel %vm1493, %v3260, %v2370
    %v3293 = vsel %vm1493, %v3261, %v2373
    %v3294 = vsel %vm1493, %v3262, %v2376
    %v3295 = vsel %vm1493, %v3263, %v2379
    %v3296 = vsel %vm1493, %v3264, %v2382
    %v3297 = vsel %vm1493, %v3265, %v2385
    %v3298 = vsel %vm1493, %v3266, %v2388
    %v3299 = vsel %vm1493, %v3267, %v2391
    %v3300 = vsel %vm1493, %v3268, %v2394
    %v3301 = vsel %vm1493, %v3269, %v2397
    %v3302 = vsel %vm1493, %v3270, %v2400
    %v3303 = vsel %vm1493, %v3271, %v2403
    %v3304 = vsel %vm1493, %v3272, %v2406
    %v3305 = vsel %vm1493, %v3273, %v2409
    %v3306 = vsel %vm1493, %v3274, %v2412
    %v3307 = vsel %vm1493, %v3275, %v2415
    %v3308 = vsel %vm1493, %v3276, %v2418
    %v3309 = vsel %vm1493, %v3277, %v2421
    %v3310 = vsel %vm1493, %v3278, %v2424
    %v3311 = vsel %vm1493, %v3279, %v2427
    %v3312 = vsel %vm1493, %v3280, %v2430
    %v3313 = vsel %vm1493, %v3281, %v2433
    %v3314 = vsel %vm1493, %v3282, %v2436
    %v3315 = vsel %vm1493, %v3283, %v2439
    %v3316 = vsel %vm1493, %v3284, %v2442
    %v3317 = vsel %vm1493, %v3285, %v2445
    %v3318 = vsel %vm1493, %v3286, %v2448
    %v3319 = vsel %vm1493, %v3287, %v2451
    %v3320 = vsel %vm1493, %v3288, %v2454
    %v3321 = vsel %vm1493, %v3289, %v2457
    %v3322 = vsel %vm1526, %v3290, %v2556
    %v3323 = vsel %vm1526, %v3291, %v2559
    %v3324 = vsel %vm1526, %v3292, %v2562
    %v3325 = vsel %vm1526, %v3293, %v2565
    %v3326 = vsel %vm1526, %v3294, %v2568
    %v3327 = vsel %vm1526, %v3295, %v2571
    %v3328 = vsel %vm1526, %v3296, %v2574
    %v3329 = vsel %vm1526, %v3297, %v2577
    %v3330 = vsel %vm1526, %v3298, %v2580
    %v3331 = vsel %vm1526, %v3299, %v2583
    %v3332 = vsel %vm1526, %v3300, %v2586
    %v3333 = vsel %vm1526, %v3301, %v2589
    %v3334 = vsel %vm1526, %v3302, %v2592
    %v3335 = vsel %vm1526, %v3303, %v2595
    %v3336 = vsel %vm1526, %v3304, %v2598
    %v3337 = vsel %vm1526, %v3305, %v2601
    %v3338 = vsel %vm1526, %v3306, %v2604
    %v3339 = vsel %vm1526, %v3307, %v2607
    %v3340 = vsel %vm1526, %v3308, %v2610
    %v3341 = vsel %vm1526, %v3309, %v2613
    %v3342 = vsel %vm1526, %v3310, %v2616
    %v3343 = vsel %vm1526, %v3311, %v2619
    %v3344 = vsel %vm1526, %v3312, %v2622
    %v3345 = vsel %vm1526, %v3313, %v2625
    %v3346 = vsel %vm1526, %v3314, %v2628
    %v3347 = vsel %vm1526, %v3315, %v2631
    %v3348 = vsel %vm1526, %v3316, %v2634
    %v3349 = vsel %vm1526, %v3317, %v2637
    %v3350 = vsel %vm1526, %v3318, %v2640
    %v3351 = vsel %vm1526, %v3319, %v2643
    %v3352 = vsel %vm1526, %v3320, %v2646
    %v3353 = vsel %vm1526, %v3321, %v2649
    %v3354 = vsel %vm1559, %v3322, %v2748
    %v3355 = vsel %vm1559, %v3323, %v2751
    %v3356 = vsel %vm1559, %v3324, %v2754
    %v3357 = vsel %vm1559, %v3325, %v2757
    %v3358 = vsel %vm1559, %v3326, %v2760
    %v3359 = vsel %vm1559, %v3327, %v2763
    %v3360 = vsel %vm1559, %v3328, %v2766
    %v3361 = vsel %vm1559, %v3329, %v2769
    %v3362 = vsel %vm1559, %v3330, %v2772
    %v3363 = vsel %vm1559, %v3331, %v2775
    %v3364 = vsel %vm1559, %v3332, %v2778
    %v3365 = vsel %vm1559, %v3333, %v2781
    %v3366 = vsel %vm1559, %v3334, %v2784
    %v3367 = vsel %vm1559, %v3335, %v2787
    %v3368 = vsel %vm1559, %v3336, %v2790
    %v3369 = vsel %vm1559, %v3337, %v2793
    %v3370 = vsel %vm1559, %v3338, %v2796
    %v3371 = vsel %vm1559, %v3339, %v2799
    %v3372 = vsel %vm1559, %v3340, %v2802
    %v3373 = vsel %vm1559, %v3341, %v2805
    %v3374 = vsel %vm1559, %v3342, %v2808
    %v3375 = vsel %vm1559, %v3343, %v2811
    %v3376 = vsel %vm1559, %v3344, %v2814
    %v3377 = vsel %vm1559, %v3345, %v2817
    %v3378 = vsel %vm1559, %v3346, %v2820
    %v3379 = vsel %vm1559, %v3347, %v2823
    %v3380 = vsel %vm1559, %v3348, %v2826
    %v3381 = vsel %vm1559, %v3349, %v2829
    %v3382 = vsel %vm1559, %v3350, %v2832
    %v3383 = vsel %vm1559, %v3351, %v2835
    %v3384 = vsel %vm1559, %v3352, %v2838
    %v3385 = vsel %vm1559, %v3353, %v2841
    %v3386 = vsel %vm1592, %v3354, %v2940
    %v3387 = vsel %vm1592, %v3355, %v2943
    %v3388 = vsel %vm1592, %v3356, %v2946
    %v3389 = vsel %vm1592, %v3357, %v2949
    %v3390 = vsel %vm1592, %v3358, %v2952
    %v3391 = vsel %vm1592, %v3359, %v2955
    %v3392 = vsel %vm1592, %v3360, %v2958
    %v3393 = vsel %vm1592, %v3361, %v2961
    %v3394 = vsel %vm1592, %v3362, %v2964
    %v3395 = vsel %vm1592, %v3363, %v2967
    %v3396 = vsel %vm1592, %v3364, %v2970
    %v3397 = vsel %vm1592, %v3365, %v2973
    %v3398 = vsel %vm1592, %v3366, %v2976
    %v3399 = vsel %vm1592, %v3367, %v2979
    %v3400 = vsel %vm1592, %v3368, %v2982
    %v3401 = vsel %vm1592, %v3369, %v2985
    %v3402 = vsel %vm1592, %v3370, %v2988
    %v3403 = vsel %vm1592, %v3371, %v2991
    %v3404 = vsel %vm1592, %v3372, %v2994
    %v3405 = vsel %vm1592, %v3373, %v2997
    %v3406 = vsel %vm1592, %v3374, %v3000
    %v3407 = vsel %vm1592, %v3375, %v3003
    %v3408 = vsel %vm1592, %v3376, %v3006
    %v3409 = vsel %vm1592, %v3377, %v3009
    %v3410 = vsel %vm1592, %v3378, %v3012
    %v3411 = vsel %vm1592, %v3379, %v3015
    %v3412 = vsel %vm1592, %v3380, %v3018
    %v3413 = vsel %vm1592, %v3381, %v3021
    %v3414 = vsel %vm1592, %v3382, %v3024
    %v3415 = vsel %vm1592, %v3383, %v3027
    %v3416 = vsel %vm1592, %v3384, %v3030
    %v3417 = vsel %vm1592, %v3385, %v3033
    %v3418 = vsel %vm1625, %v3386, %v3132
    %v3419 = vsel %vm1625, %v3387, %v3135
    %v3420 = vsel %vm1625, %v3388, %v3138
    %v3421 = vsel %vm1625, %v3389, %v3141
    %v3422 = vsel %vm1625, %v3390, %v3144
    %v3423 = vsel %vm1625, %v3391, %v3147
    %v3424 = vsel %vm1625, %v3392, %v3150
    %v3425 = vsel %vm1625, %v3393, %v3153
    %v3426 = vsel %vm1625, %v3394, %v3156
    %v3427 = vsel %vm1625, %v3395, %v3159
    %v3428 = vsel %vm1625, %v3396, %v3162
    %v3429 = vsel %vm1625, %v3397, %v3165
    %v3430 = vsel %vm1625, %v3398, %v3168
    %v3431 = vsel %vm1625, %v3399, %v3171
    %v3432 = vsel %vm1625, %v3400, %v3174
    %v3433 = vsel %vm1625, %v3401, %v3177
    %v3434 = vsel %vm1625, %v3402, %v3180
    %v3435 = vsel %vm1625, %v3403, %v3183
    %v3436 = vsel %vm1625, %v3404, %v3186
    %v3437 = vsel %vm1625, %v3405, %v3189
    %v3438 = vsel %vm1625, %v3406, %v3192
    %v3439 = vsel %vm1625, %v3407, %v3195
    %v3440 = vsel %vm1625, %v3408, %v3198
    %v3441 = vsel %vm1625, %v3409, %v3201
    %v3442 = vsel %vm1625, %v3410, %v3204
    %v3443 = vsel %vm1625, %v3411, %v3207
    %v3444 = vsel %vm1625, %v3412, %v3210
    %v3445 = vsel %vm1625, %v3413, %v3213
    %v3446 = vsel %vm1625, %v3414, %v3216
    %v3447 = vsel %vm1625, %v3415, %v3219
    %v3448 = vsel %vm1625, %v3416, %v3222
    %v3449 = vsel %vm1625, %v3417, %v3225
    %v3450 = vrcp.pop %v3418
    %v3451 = vmul.f32 %v3418, %v3450
    %v3452 = vsub.f32 1.0, %v3451
    %v3453 = vmul.f32 %v3450, %v3452
    %v3454 = vadd.f32 %v3450, %v3453
    %vm3455 = vweird.f32 %v3418
    %vm3456 = vweird.f32 %v3450
    %vm3457 = vmor %vm3455, %vm3456
    %v3458 = vsel %vm3457, %v3450, %v3454
    %v3459 = vand.u32 2147483647, %v3418
    %vm3460 = vcmp.eq.f32.partialorder %v3459, 8.507059e+37
    %v3461 = vand.u32 %v3418, 2147483648
    %v3462 = vor.u32 1.1754944e-38, %v3461
    %v3463 = vsel %vm3460, %v3462, %v3458
    %v3464 = vmul.f32 %v1691, %v3463
    %v3465 = vrcp.pop %v3419
    %v3466 = vmul.f32 %v3419, %v3465
    %v3467 = vsub.f32 1.0, %v3466
    %v3468 = vmul.f32 %v3465, %v3467
    %v3469 = vadd.f32 %v3465, %v3468
    %vm3470 = vweird.f32 %v3419
    %vm3471 = vweird.f32 %v3465
    %vm3472 = vmor %vm3470, %vm3471
    %v3473 = vsel %vm3472, %v3465, %v3469
    %v3474 = vand.u32 2147483647, %v3419
    %vm3475 = vcmp.eq.f32.partialorder %v3474, 8.507059e+37
    %v3476 = vand.u32 %v3419, 2147483648
    %v3477 = vor.u32 1.1754944e-38, %v3476
    %v3478 = vsel %vm3475, %v3477, %v3473
    %v3479 = vmul.f32 %v1693, %v3478
    %v3480 = vrcp.pop %v3420
    %v3481 = vmul.f32 %v3420, %v3480
    %v3482 = vsub.f32 1.0, %v3481
    %v3483 = vmul.f32 %v3480, %v3482
    %v3484 = vadd.f32 %v3480, %v3483
    %vm3485 = vweird.f32 %v3420
    %vm3486 = vweird.f32 %v3480
    %vm3487 = vmor %vm3485, %vm3486
    %v3488 = vsel %vm3487, %v3480, %v3484
    %v3489 = vand.u32 2147483647, %v3420
    %vm3490 = vcmp.eq.f32.partialorder %v3489, 8.507059e+37
    %v3491 = vand.u32 %v3420, 2147483648
    %v3492 = vor.u32 1.1754944e-38, %v3491
    %v3493 = vsel %vm3490, %v3492, %v3488
    %v3494 = vmul.f32 %v1695, %v3493
    %v3495 = vrcp.pop %v3421
    %v3496 = vmul.f32 %v3421, %v3495
    %v3497 = vsub.f32 1.0, %v3496
    %v3498 = vmul.f32 %v3495, %v3497
    %v3499 = vadd.f32 %v3495, %v3498
    %vm3500 = vweird.f32 %v3421
    %vm3501 = vweird.f32 %v3495
    %vm3502 = vmor %vm3500, %vm3501
    %v3503 = vsel %vm3502, %v3495, %v3499
    %v3504 = vand.u32 2147483647, %v3421
    %vm3505 = vcmp.eq.f32.partialorder %v3504, 8.507059e+37
    %v3506 = vand.u32 %v3421, 2147483648
    %v3507 = vor.u32 1.1754944e-38, %v3506
    %v3508 = vsel %vm3505, %v3507, %v3503
    %v3509 = vmul.f32 %v1697, %v3508
    %v3510 = vrcp.pop %v3422
    %v3511 = vmul.f32 %v3422, %v3510
    %v3512 = vsub.f32 1.0, %v3511
    %v3513 = vmul.f32 %v3510, %v3512
    %v3514 = vadd.f32 %v3510, %v3513
    %vm3515 = vweird.f32 %v3422
    %vm3516 = vweird.f32 %v3510
    %vm3517 = vmor %vm3515, %vm3516
    %v3518 = vsel %vm3517, %v3510, %v3514
    %v3519 = vand.u32 2147483647, %v3422
    %vm3520 = vcmp.eq.f32.partialorder %v3519, 8.507059e+37
    %v3521 = vand.u32 %v3422, 2147483648
    %v3522 = vor.u32 1.1754944e-38, %v3521
    %v3523 = vsel %vm3520, %v3522, %v3518
    %v3524 = vmul.f32 %v1699, %v3523
    %v3525 = vrcp.pop %v3423
    %v3526 = vmul.f32 %v3423, %v3525
    %v3527 = vsub.f32 1.0, %v3526
    %v3528 = vmul.f32 %v3525, %v3527
    %v3529 = vadd.f32 %v3525, %v3528
    %vm3530 = vweird.f32 %v3423
    %vm3531 = vweird.f32 %v3525
    %vm3532 = vmor %vm3530, %vm3531
    %v3533 = vsel %vm3532, %v3525, %v3529
    %v3534 = vand.u32 2147483647, %v3423
    %vm3535 = vcmp.eq.f32.partialorder %v3534, 8.507059e+37
    %v3536 = vand.u32 %v3423, 2147483648
    %v3537 = vor.u32 1.1754944e-38, %v3536
    %v3538 = vsel %vm3535, %v3537, %v3533
    %v3539 = vmul.f32 %v1701, %v3538
    %v3540 = vrcp.pop %v3424
    %v3541 = vmul.f32 %v3424, %v3540
    %v3542 = vsub.f32 1.0, %v3541
    %v3543 = vmul.f32 %v3540, %v3542
    %v3544 = vadd.f32 %v3540, %v3543
    %vm3545 = vweird.f32 %v3424
    %vm3546 = vweird.f32 %v3540
    %vm3547 = vmor %vm3545, %vm3546
    %v3548 = vsel %vm3547, %v3540, %v3544
    %v3549 = vand.u32 2147483647, %v3424
    %vm3550 = vcmp.eq.f32.partialorder %v3549, 8.507059e+37
    %v3551 = vand.u32 %v3424, 2147483648
    %v3552 = vor.u32 1.1754944e-38, %v3551
    %v3553 = vsel %vm3550, %v3552, %v3548
    %v3554 = vmul.f32 %v1703, %v3553
    %v3555 = vrcp.pop %v3425
    %v3556 = vmul.f32 %v3425, %v3555
    %v3557 = vsub.f32 1.0, %v3556
    %v3558 = vmul.f32 %v3555, %v3557
    %v3559 = vadd.f32 %v3555, %v3558
    %vm3560 = vweird.f32 %v3425
    %vm3561 = vweird.f32 %v3555
    %vm3562 = vmor %vm3560, %vm3561
    %v3563 = vsel %vm3562, %v3555, %v3559
    %v3564 = vand.u32 2147483647, %v3425
    %vm3565 = vcmp.eq.f32.partialorder %v3564, 8.507059e+37
    %v3566 = vand.u32 %v3425, 2147483648
    %v3567 = vor.u32 1.1754944e-38, %v3566
    %v3568 = vsel %vm3565, %v3567, %v3563
    %v3569 = vmul.f32 %v1705, %v3568
    %v3570 = vrcp.pop %v3426
    %v3571 = vmul.f32 %v3426, %v3570
    %v3572 = vsub.f32 1.0, %v3571
    %v3573 = vmul.f32 %v3570, %v3572
    %v3574 = vadd.f32 %v3570, %v3573
    %vm3575 = vweird.f32 %v3426
    %vm3576 = vweird.f32 %v3570
    %vm3577 = vmor %vm3575, %vm3576
    %v3578 = vsel %vm3577, %v3570, %v3574
    %v3579 = vand.u32 2147483647, %v3426
    %vm3580 = vcmp.eq.f32.partialorder %v3579, 8.507059e+37
    %v3581 = vand.u32 %v3426, 2147483648
    %v3582 = vor.u32 1.1754944e-38, %v3581
    %v3583 = vsel %vm3580, %v3582, %v3578
    %v3584 = vmul.f32 %v1707, %v3583
    %v3585 = vrcp.pop %v3427
    %v3586 = vmul.f32 %v3427, %v3585
    %v3587 = vsub.f32 1.0, %v3586
    %v3588 = vmul.f32 %v3585, %v3587
    %v3589 = vadd.f32 %v3585, %v3588
    %vm3590 = vweird.f32 %v3427
    %vm3591 = vweird.f32 %v3585
    %vm3592 = vmor %vm3590, %vm3591
    %v3593 = vsel %vm3592, %v3585, %v3589
    %v3594 = vand.u32 2147483647, %v3427
    %vm3595 = vcmp.eq.f32.partialorder %v3594, 8.507059e+37
    %v3596 = vand.u32 %v3427, 2147483648
    %v3597 = vor.u32 1.1754944e-38, %v3596
    %v3598 = vsel %vm3595, %v3597, %v3593
    %v3599 = vmul.f32 %v1709, %v3598
    %v3600 = vrcp.pop %v3428
    %v3601 = vmul.f32 %v3428, %v3600
    %v3602 = vsub.f32 1.0, %v3601
    %v3603 = vmul.f32 %v3600, %v3602
    %v3604 = vadd.f32 %v3600, %v3603
    %vm3605 = vweird.f32 %v3428
    %vm3606 = vweird.f32 %v3600
    %vm3607 = vmor %vm3605, %vm3606
    %v3608 = vsel %vm3607, %v3600, %v3604
    %v3609 = vand.u32 2147483647, %v3428
    %vm3610 = vcmp.eq.f32.partialorder %v3609, 8.507059e+37
    %v3611 = vand.u32 %v3428, 2147483648
    %v3612 = vor.u32 1.1754944e-38, %v3611
    %v3613 = vsel %vm3610, %v3612, %v3608
    %v3614 = vmul.f32 %v1711, %v3613
    %v3615 = vrcp.pop %v3429
    %v3616 = vmul.f32 %v3429, %v3615
    %v3617 = vsub.f32 1.0, %v3616
    %v3618 = vmul.f32 %v3615, %v3617
    %v3619 = vadd.f32 %v3615, %v3618
    %vm3620 = vweird.f32 %v3429
    %vm3621 = vweird.f32 %v3615
    %vm3622 = vmor %vm3620, %vm3621
    %v3623 = vsel %vm3622, %v3615, %v3619
    %v3624 = vand.u32 2147483647, %v3429
    %vm3625 = vcmp.eq.f32.partialorder %v3624, 8.507059e+37
    %v3626 = vand.u32 %v3429, 2147483648
    %v3627 = vor.u32 1.1754944e-38, %v3626
    %v3628 = vsel %vm3625, %v3627, %v3623
    %v3629 = vmul.f32 %v1713, %v3628
    %v3630 = vrcp.pop %v3430
    %v3631 = vmul.f32 %v3430, %v3630
    %v3632 = vsub.f32 1.0, %v3631
    %v3633 = vmul.f32 %v3630, %v3632
    %v3634 = vadd.f32 %v3630, %v3633
    %vm3635 = vweird.f32 %v3430
    %vm3636 = vweird.f32 %v3630
    %vm3637 = vmor %vm3635, %vm3636
    %v3638 = vsel %vm3637, %v3630, %v3634
    %v3639 = vand.u32 2147483647, %v3430
    %vm3640 = vcmp.eq.f32.partialorder %v3639, 8.507059e+37
    %v3641 = vand.u32 %v3430, 2147483648
    %v3642 = vor.u32 1.1754944e-38, %v3641
    %v3643 = vsel %vm3640, %v3642, %v3638
    %v3644 = vmul.f32 %v1715, %v3643
    %v3645 = vrcp.pop %v3431
    %v3646 = vmul.f32 %v3431, %v3645
    %v3647 = vsub.f32 1.0, %v3646
    %v3648 = vmul.f32 %v3645, %v3647
    %v3649 = vadd.f32 %v3645, %v3648
    %vm3650 = vweird.f32 %v3431
    %vm3651 = vweird.f32 %v3645
    %vm3652 = vmor %vm3650, %vm3651
    %v3653 = vsel %vm3652, %v3645, %v3649
    %v3654 = vand.u32 2147483647, %v3431
    %vm3655 = vcmp.eq.f32.partialorder %v3654, 8.507059e+37
    %v3656 = vand.u32 %v3431, 2147483648
    %v3657 = vor.u32 1.1754944e-38, %v3656
    %v3658 = vsel %vm3655, %v3657, %v3653
    %v3659 = vmul.f32 %v1717, %v3658
    %v3660 = vrcp.pop %v3432
    %v3661 = vmul.f32 %v3432, %v3660
    %v3662 = vsub.f32 1.0, %v3661
    %v3663 = vmul.f32 %v3660, %v3662
    %v3664 = vadd.f32 %v3660, %v3663
    %vm3665 = vweird.f32 %v3432
    %vm3666 = vweird.f32 %v3660
    %vm3667 = vmor %vm3665, %vm3666
    %v3668 = vsel %vm3667, %v3660, %v3664
    %v3669 = vand.u32 2147483647, %v3432
    %vm3670 = vcmp.eq.f32.partialorder %v3669, 8.507059e+37
    %v3671 = vand.u32 %v3432, 2147483648
    %v3672 = vor.u32 1.1754944e-38, %v3671
    %v3673 = vsel %vm3670, %v3672, %v3668
    %v3674 = vmul.f32 %v1719, %v3673
    %v3675 = vrcp.pop %v3433
    %v3676 = vmul.f32 %v3433, %v3675
    %v3677 = vsub.f32 1.0, %v3676
    %v3678 = vmul.f32 %v3675, %v3677
    %v3679 = vadd.f32 %v3675, %v3678
    %vm3680 = vweird.f32 %v3433
    %vm3681 = vweird.f32 %v3675
    %vm3682 = vmor %vm3680, %vm3681
    %v3683 = vsel %vm3682, %v3675, %v3679
    %v3684 = vand.u32 2147483647, %v3433
    %vm3685 = vcmp.eq.f32.partialorder %v3684, 8.507059e+37
    %v3686 = vand.u32 %v3433, 2147483648
    %v3687 = vor.u32 1.1754944e-38, %v3686
    %v3688 = vsel %vm3685, %v3687, %v3683
    %v3689 = vmul.f32 %v1721, %v3688
    %v3690 = vrcp.pop %v3434
    %v3691 = vmul.f32 %v3434, %v3690
    %v3692 = vsub.f32 1.0, %v3691
    %v3693 = vmul.f32 %v3690, %v3692
    %v3694 = vadd.f32 %v3690, %v3693
    %vm3695 = vweird.f32 %v3434
    %vm3696 = vweird.f32 %v3690
    %vm3697 = vmor %vm3695, %vm3696
    %v3698 = vsel %vm3697, %v3690, %v3694
    %v3699 = vand.u32 2147483647, %v3434
    %vm3700 = vcmp.eq.f32.partialorder %v3699, 8.507059e+37
    %v3701 = vand.u32 %v3434, 2147483648
    %v3702 = vor.u32 1.1754944e-38, %v3701
    %v3703 = vsel %vm3700, %v3702, %v3698
    %v3704 = vmul.f32 %v1723, %v3703
    %v3705 = vrcp.pop %v3435
    %v3706 = vmul.f32 %v3435, %v3705
    %v3707 = vsub.f32 1.0, %v3706
    %v3708 = vmul.f32 %v3705, %v3707
    %v3709 = vadd.f32 %v3705, %v3708
    %vm3710 = vweird.f32 %v3435
    %vm3711 = vweird.f32 %v3705
    %vm3712 = vmor %vm3710, %vm3711
    %v3713 = vsel %vm3712, %v3705, %v3709
    %v3714 = vand.u32 2147483647, %v3435
    %vm3715 = vcmp.eq.f32.partialorder %v3714, 8.507059e+37
    %v3716 = vand.u32 %v3435, 2147483648
    %v3717 = vor.u32 1.1754944e-38, %v3716
    %v3718 = vsel %vm3715, %v3717, %v3713
    %v3719 = vmul.f32 %v1725, %v3718
    %v3720 = vrcp.pop %v3436
    %v3721 = vmul.f32 %v3436, %v3720
    %v3722 = vsub.f32 1.0, %v3721
    %v3723 = vmul.f32 %v3720, %v3722
    %v3724 = vadd.f32 %v3720, %v3723
    %vm3725 = vweird.f32 %v3436
    %vm3726 = vweird.f32 %v3720
    %vm3727 = vmor %vm3725, %vm3726
    %v3728 = vsel %vm3727, %v3720, %v3724
    %v3729 = vand.u32 2147483647, %v3436
    %vm3730 = vcmp.eq.f32.partialorder %v3729, 8.507059e+37
    %v3731 = vand.u32 %v3436, 2147483648
    %v3732 = vor.u32 1.1754944e-38, %v3731
    %v3733 = vsel %vm3730, %v3732, %v3728
    %v3734 = vmul.f32 %v1727, %v3733
    %v3735 = vrcp.pop %v3437
    %v3736 = vmul.f32 %v3437, %v3735
    %v3737 = vsub.f32 1.0, %v3736
    %v3738 = vmul.f32 %v3735, %v3737
    %v3739 = vadd.f32 %v3735, %v3738
    %vm3740 = vweird.f32 %v3437
    %vm3741 = vweird.f32 %v3735
    %vm3742 = vmor %vm3740, %vm3741
    %v3743 = vsel %vm3742, %v3735, %v3739
    %v3744 = vand.u32 2147483647, %v3437
    %vm3745 = vcmp.eq.f32.partialorder %v3744, 8.507059e+37
    %v3746 = vand.u32 %v3437, 2147483648
    %v3747 = vor.u32 1.1754944e-38, %v3746
    %v3748 = vsel %vm3745, %v3747, %v3743
    %v3749 = vmul.f32 %v1729, %v3748
    %v3750 = vrcp.pop %v3438
    %v3751 = vmul.f32 %v3438, %v3750
    %v3752 = vsub.f32 1.0, %v3751
    %v3753 = vmul.f32 %v3750, %v3752
    %v3754 = vadd.f32 %v3750, %v3753
    %vm3755 = vweird.f32 %v3438
    %vm3756 = vweird.f32 %v3750
    %vm3757 = vmor %vm3755, %vm3756
    %v3758 = vsel %vm3757, %v3750, %v3754
    %v3759 = vand.u32 2147483647, %v3438
    %vm3760 = vcmp.eq.f32.partialorder %v3759, 8.507059e+37
    %v3761 = vand.u32 %v3438, 2147483648
    %v3762 = vor.u32 1.1754944e-38, %v3761
    %v3763 = vsel %vm3760, %v3762, %v3758
    %v3764 = vmul.f32 %v1731, %v3763
    %v3765 = vrcp.pop %v3439
    %v3766 = vmul.f32 %v3439, %v3765
    %v3767 = vsub.f32 1.0, %v3766
    %v3768 = vmul.f32 %v3765, %v3767
    %v3769 = vadd.f32 %v3765, %v3768
    %vm3770 = vweird.f32 %v3439
    %vm3771 = vweird.f32 %v3765
    %vm3772 = vmor %vm3770, %vm3771
    %v3773 = vsel %vm3772, %v3765, %v3769
    %v3774 = vand.u32 2147483647, %v3439
    %vm3775 = vcmp.eq.f32.partialorder %v3774, 8.507059e+37
    %v3776 = vand.u32 %v3439, 2147483648
    %v3777 = vor.u32 1.1754944e-38, %v3776
    %v3778 = vsel %vm3775, %v3777, %v3773
    %v3779 = vmul.f32 %v1733, %v3778
    %v3780 = vrcp.pop %v3440
    %v3781 = vmul.f32 %v3440, %v3780
    %v3782 = vsub.f32 1.0, %v3781
    %v3783 = vmul.f32 %v3780, %v3782
    %v3784 = vadd.f32 %v3780, %v3783
    %vm3785 = vweird.f32 %v3440
    %vm3786 = vweird.f32 %v3780
    %vm3787 = vmor %vm3785, %vm3786
    %v3788 = vsel %vm3787, %v3780, %v3784
    %v3789 = vand.u32 2147483647, %v3440
    %vm3790 = vcmp.eq.f32.partialorder %v3789, 8.507059e+37
    %v3791 = vand.u32 %v3440, 2147483648
    %v3792 = vor.u32 1.1754944e-38, %v3791
    %v3793 = vsel %vm3790, %v3792, %v3788
    %v3794 = vmul.f32 %v1735, %v3793
    %v3795 = vrcp.pop %v3441
    %v3796 = vmul.f32 %v3441, %v3795
    %v3797 = vsub.f32 1.0, %v3796
    %v3798 = vmul.f32 %v3795, %v3797
    %v3799 = vadd.f32 %v3795, %v3798
    %vm3800 = vweird.f32 %v3441
    %vm3801 = vweird.f32 %v3795
    %vm3802 = vmor %vm3800, %vm3801
    %v3803 = vsel %vm3802, %v3795, %v3799
    %v3804 = vand.u32 2147483647, %v3441
    %vm3805 = vcmp.eq.f32.partialorder %v3804, 8.507059e+37
    %v3806 = vand.u32 %v3441, 2147483648
    %v3807 = vor.u32 1.1754944e-38, %v3806
    %v3808 = vsel %vm3805, %v3807, %v3803
    %v3809 = vmul.f32 %v1737, %v3808
    %v3810 = vrcp.pop %v3442
    %v3811 = vmul.f32 %v3442, %v3810
    %v3812 = vsub.f32 1.0, %v3811
    %v3813 = vmul.f32 %v3810, %v3812
    %v3814 = vadd.f32 %v3810, %v3813
    %vm3815 = vweird.f32 %v3442
    %vm3816 = vweird.f32 %v3810
    %vm3817 = vmor %vm3815, %vm3816
    %v3818 = vsel %vm3817, %v3810, %v3814
    %v3819 = vand.u32 2147483647, %v3442
    %vm3820 = vcmp.eq.f32.partialorder %v3819, 8.507059e+37
    %v3821 = vand.u32 %v3442, 2147483648
    %v3822 = vor.u32 1.1754944e-38, %v3821
    %v3823 = vsel %vm3820, %v3822, %v3818
    %v3824 = vmul.f32 %v1739, %v3823
    %v3825 = vrcp.pop %v3443
    %v3826 = vmul.f32 %v3443, %v3825
    %v3827 = vsub.f32 1.0, %v3826
    %v3828 = vmul.f32 %v3825, %v3827
    %v3829 = vadd.f32 %v3825, %v3828
    %vm3830 = vweird.f32 %v3443
    %vm3831 = vweird.f32 %v3825
    %vm3832 = vmor %vm3830, %vm3831
    %v3833 = vsel %vm3832, %v3825, %v3829
    %v3834 = vand.u32 2147483647, %v3443
    %vm3835 = vcmp.eq.f32.partialorder %v3834, 8.507059e+37
    %v3836 = vand.u32 %v3443, 2147483648
    %v3837 = vor.u32 1.1754944e-38, %v3836
    %v3838 = vsel %vm3835, %v3837, %v3833
    %v3839 = vmul.f32 %v1741, %v3838
    %v3840 = vrcp.pop %v3444
    %v3841 = vmul.f32 %v3444, %v3840
    %v3842 = vsub.f32 1.0, %v3841
    %v3843 = vmul.f32 %v3840, %v3842
    %v3844 = vadd.f32 %v3840, %v3843
    %vm3845 = vweird.f32 %v3444
    %vm3846 = vweird.f32 %v3840
    %vm3847 = vmor %vm3845, %vm3846
    %v3848 = vsel %vm3847, %v3840, %v3844
    %v3849 = vand.u32 2147483647, %v3444
    %vm3850 = vcmp.eq.f32.partialorder %v3849, 8.507059e+37
    %v3851 = vand.u32 %v3444, 2147483648
    %v3852 = vor.u32 1.1754944e-38, %v3851
    %v3853 = vsel %vm3850, %v3852, %v3848
    %v3854 = vmul.f32 %v1743, %v3853
    %v3855 = vrcp.pop %v3445
    %v3856 = vmul.f32 %v3445, %v3855
    %v3857 = vsub.f32 1.0, %v3856
    %v3858 = vmul.f32 %v3855, %v3857
    %v3859 = vadd.f32 %v3855, %v3858
    %vm3860 = vweird.f32 %v3445
    %vm3861 = vweird.f32 %v3855
    %vm3862 = vmor %vm3860, %vm3861
    %v3863 = vsel %vm3862, %v3855, %v3859
    %v3864 = vand.u32 2147483647, %v3445
    %vm3865 = vcmp.eq.f32.partialorder %v3864, 8.507059e+37
    %v3866 = vand.u32 %v3445, 2147483648
    %v3867 = vor.u32 1.1754944e-38, %v3866
    %v3868 = vsel %vm3865, %v3867, %v3863
    %v3869 = vmul.f32 %v1745, %v3868
    %v3870 = vrcp.pop %v3446
    %v3871 = vmul.f32 %v3446, %v3870
    %v3872 = vsub.f32 1.0, %v3871
    %v3873 = vmul.f32 %v3870, %v3872
    %v3874 = vadd.f32 %v3870, %v3873
    %vm3875 = vweird.f32 %v3446
    %vm3876 = vweird.f32 %v3870
    %vm3877 = vmor %vm3875, %vm3876
    %v3878 = vsel %vm3877, %v3870, %v3874
    %v3879 = vand.u32 2147483647, %v3446
    %vm3880 = vcmp.eq.f32.partialorder %v3879, 8.507059e+37
    %v3881 = vand.u32 %v3446, 2147483648
    %v3882 = vor.u32 1.1754944e-38, %v3881
    %v3883 = vsel %vm3880, %v3882, %v3878
    %v3884 = vmul.f32 %v1747, %v3883
    %v3885 = vrcp.pop %v3447
    %v3886 = vmul.f32 %v3447, %v3885
    %v3887 = vsub.f32 1.0, %v3886
    %v3888 = vmul.f32 %v3885, %v3887
    %v3889 = vadd.f32 %v3885, %v3888
    %vm3890 = vweird.f32 %v3447
    %vm3891 = vweird.f32 %v3885
    %vm3892 = vmor %vm3890, %vm3891
    %v3893 = vsel %vm3892, %v3885, %v3889
    %v3894 = vand.u32 2147483647, %v3447
    %vm3895 = vcmp.eq.f32.partialorder %v3894, 8.507059e+37
    %v3896 = vand.u32 %v3447, 2147483648
    %v3897 = vor.u32 1.1754944e-38, %v3896
    %v3898 = vsel %vm3895, %v3897, %v3893
    %v3899 = vmul.f32 %v1749, %v3898
    %v3900 = vrcp.pop %v3448
    %v3901 = vmul.f32 %v3448, %v3900
    %v3902 = vsub.f32 1.0, %v3901
    %v3903 = vmul.f32 %v3900, %v3902
    %v3904 = vadd.f32 %v3900, %v3903
    %vm3905 = vweird.f32 %v3448
    %vm3906 = vweird.f32 %v3900
    %vm3907 = vmor %vm3905, %vm3906
    %v3908 = vsel %vm3907, %v3900, %v3904
    %v3909 = vand.u32 2147483647, %v3448
    %vm3910 = vcmp.eq.f32.partialorder %v3909, 8.507059e+37
    %v3911 = vand.u32 %v3448, 2147483648
    %v3912 = vor.u32 1.1754944e-38, %v3911
    %v3913 = vsel %vm3910, %v3912, %v3908
    %v3914 = vmul.f32 %v1751, %v3913
    %v3915 = vrcp.pop %v3449
    %v3916 = vmul.f32 %v3449, %v3915
    %v3917 = vsub.f32 1.0, %v3916
    %v3918 = vmul.f32 %v3915, %v3917
    %v3919 = vadd.f32 %v3915, %v3918
    %vm3920 = vweird.f32 %v3449
    %vm3921 = vweird.f32 %v3915
    %vm3922 = vmor %vm3920, %vm3921
    %v3923 = vsel %vm3922, %v3915, %v3919
    %v3924 = vand.u32 2147483647, %v3449
    %vm3925 = vcmp.eq.f32.partialorder %v3924, 8.507059e+37
    %v3926 = vand.u32 %v3449, 2147483648
    %v3927 = vor.u32 1.1754944e-38, %v3926
    %v3928 = vsel %vm3925, %v3927, %v3923
    %v3929 = vmul.f32 %v1753, %v3928
    %v3930 = vpack.c.bf16 %v3464, %v3464
    %v3931 = vpack.c.bf16 %v3479, %v3479
    %v3932 = vpack.c.bf16 %v3494, %v3494
    %v3933 = vpack.c.bf16 %v3509, %v3509
    %v3934 = vpack.c.bf16 %v3524, %v3524
    %v3935 = vpack.c.bf16 %v3539, %v3539
    %v3936 = vpack.c.bf16 %v3554, %v3554
    %v3937 = vpack.c.bf16 %v3569, %v3569
    %v3938 = vpack.c.bf16 %v3584, %v3584
    %v3939 = vpack.c.bf16 %v3599, %v3599
    %v3940 = vpack.c.bf16 %v3614, %v3614
    %v3941 = vpack.c.bf16 %v3629, %v3629
    %v3942 = vpack.c.bf16 %v3644, %v3644
    %v3943 = vpack.c.bf16 %v3659, %v3659
    %v3944 = vpack.c.bf16 %v3674, %v3674
    %v3945 = vpack.c.bf16 %v3689, %v3689
    %v3946 = vpack.c.bf16 %v3704, %v3704
    %v3947 = vpack.c.bf16 %v3719, %v3719
    %v3948 = vpack.c.bf16 %v3734, %v3734
    %v3949 = vpack.c.bf16 %v3749, %v3749
    %v3950 = vpack.c.bf16 %v3764, %v3764
    %v3951 = vpack.c.bf16 %v3779, %v3779
    %v3952 = vpack.c.bf16 %v3794, %v3794
    %v3953 = vpack.c.bf16 %v3809, %v3809
    %v3954 = vpack.c.bf16 %v3824, %v3824
    %v3955 = vpack.c.bf16 %v3839, %v3839
    %v3956 = vpack.c.bf16 %v3854, %v3854
    %v3957 = vpack.c.bf16 %v3869, %v3869
    %v3958 = vpack.c.bf16 %v3884, %v3884
    %v3959 = vpack.c.bf16 %v3899, %v3899
    %v3960 = vpack.c.bf16 %v3914, %v3914
    %v3961 = vpack.c.bf16 %v3929, %v3929
    %v3962 = vmax.f32 %v404, %v409
    %v3963 = vmax.f32 %v406, %v411
    %v3964 = vmax.f32 %v3962, %v414
    %v3965 = vmax.f32 %v3963, %v416
    %v3966 = vmax.f32 %v3964, %v419
    %v3967 = vmax.f32 %v3965, %v421
    %v3968 = vmax.f32 %v3966, %v424
    %v3969 = vmax.f32 %v3967, %v426
    %v3970 = vmax.f32 %v3968, %v429
    %v3971 = vmax.f32 %v3969, %v431
    %v3972 = vmax.f32 %v3970, %v434
    %v3973 = vmax.f32 %v3971, %v436
    %v3974 = vmax.f32 %v3972, %v439
    %v3975 = vmax.f32 %v3973, %v441
    %v3976 = vmax.f32 %v3974, %v3975
    %v3977 = vrot.slane %v3976, 4
    %v3978 = vmax.f32 %v3976, %v3977
    %v3979 = vrot.slane %v3978, 2
    %v3980 = vmax.f32 %v3978, %v3979
    %v3981 = vrot.slane %v3980, 1
    %v3982 = vmax.f32 %v3980, %v3981
    %v3983 = vmax.f32 %v444, %v449
    %v3984 = vmax.f32 %v446, %v451
    %v3985 = vmax.f32 %v3983, %v454
    %v3986 = vmax.f32 %v3984, %v456
    %v3987 = vmax.f32 %v3985, %v459
    %v3988 = vmax.f32 %v3986, %v461
    %v3989 = vmax.f32 %v3987, %v464
    %v3990 = vmax.f32 %v3988, %v466
    %v3991 = vmax.f32 %v3989, %v469
    %v3992 = vmax.f32 %v3990, %v471
    %v3993 = vmax.f32 %v3991, %v474
    %v3994 = vmax.f32 %v3992, %v476
    %v3995 = vmax.f32 %v3993, %v479
    %v3996 = vmax.f32 %v3994, %v481
    %v3997 = vmax.f32 %v3995, %v3996
    %v3998 = vrot.slane %v3997, 4
    %v3999 = vmax.f32 %v3997, %v3998
    %v4000 = vrot.slane %v3999, 2
    %v4001 = vmax.f32 %v3999, %v4000
    %v4002 = vrot.slane %v4001, 1
    %v4003 = vmax.f32 %v4001, %v4002
    %v4004 = vsub.f32 %v404, %v3982
    %v4005 = vsub.f32 %v406, %v3982
    %v4006 = vsub.f32 %v409, %v3982
    %v4007 = vsub.f32 %v411, %v3982
    %v4008 = vsub.f32 %v414, %v3982
    %v4009 = vsub.f32 %v416, %v3982
    %v4010 = vsub.f32 %v419, %v3982
    %v4011 = vsub.f32 %v421, %v3982
    %v4012 = vsub.f32 %v424, %v3982
    %v4013 = vsub.f32 %v426, %v3982
    %v4014 = vsub.f32 %v429, %v3982
    %v4015 = vsub.f32 %v431, %v3982
    %v4016 = vsub.f32 %v434, %v3982
    %v4017 = vsub.f32 %v436, %v3982
    %v4018 = vsub.f32 %v439, %v3982
    %v4019 = vsub.f32 %v441, %v3982
    %v4020 = vsub.f32 %v444, %v4003
    %v4021 = vsub.f32 %v446, %v4003
    %v4022 = vsub.f32 %v449, %v4003
    %v4023 = vsub.f32 %v451, %v4003
    %v4024 = vsub.f32 %v454, %v4003
    %v4025 = vsub.f32 %v456, %v4003
    %v4026 = vsub.f32 %v459, %v4003
    %v4027 = vsub.f32 %v461, %v4003
    %v4028 = vsub.f32 %v464, %v4003
    %v4029 = vsub.f32 %v466, %v4003
    %v4030 = vsub.f32 %v469, %v4003
    %v4031 = vsub.f32 %v471, %v4003
    %v4032 = vsub.f32 %v474, %v4003
    %v4033 = vsub.f32 %v476, %v4003
    %v4034 = vsub.f32 %v479, %v4003
    %v4035 = vsub.f32 %v481, %v4003
    %v4036 = vmul.f32 %v4004, 1.442695
    %v4037 = vpow.pop %v4036
    %v4038 = vmul.f32 %v4005, 1.442695
    %v4039 = vpow.pop %v4038
    %v4040 = vmul.f32 %v4006, 1.442695
    %v4041 = vpow.pop %v4040
    %v4042 = vmul.f32 %v4007, 1.442695
    %v4043 = vpow.pop %v4042
    %v4044 = vmul.f32 %v4008, 1.442695
    %v4045 = vpow.pop %v4044
    %v4046 = vmul.f32 %v4009, 1.442695
    %v4047 = vpow.pop %v4046
    %v4048 = vmul.f32 %v4010, 1.442695
    %v4049 = vpow.pop %v4048
    %v4050 = vmul.f32 %v4011, 1.442695
    %v4051 = vpow.pop %v4050
    %v4052 = vmul.f32 %v4012, 1.442695
    %v4053 = vpow.pop %v4052
    %v4054 = vmul.f32 %v4013, 1.442695
    %v4055 = vpow.pop %v4054
    %v4056 = vmul.f32 %v4014, 1.442695
    %v4057 = vpow.pop %v4056
    %v4058 = vmul.f32 %v4015, 1.442695
    %v4059 = vpow.pop %v4058
    %v4060 = vmul.f32 %v4016, 1.442695
    %v4061 = vpow.pop %v4060
    %v4062 = vmul.f32 %v4017, 1.442695
    %v4063 = vpow.pop %v4062
    %v4064 = vmul.f32 %v4018, 1.442695
    %v4065 = vpow.pop %v4064
    %v4066 = vmul.f32 %v4019, 1.442695
    %v4067 = vpow.pop %v4066
    %v4068 = vmul.f32 %v4020, 1.442695
    %v4069 = vpow.pop %v4068
    %v4070 = vmul.f32 %v4021, 1.442695
    %v4071 = vpow.pop %v4070
    %v4072 = vmul.f32 %v4022, 1.442695
    %v4073 = vpow.pop %v4072
    %v4074 = vmul.f32 %v4023, 1.442695
    %v4075 = vpow.pop %v4074
    %v4076 = vmul.f32 %v4024, 1.442695
    %v4077 = vpow.pop %v4076
    %v4078 = vmul.f32 %v4025, 1.442695
    %v4079 = vpow.pop %v4078
    %v4080 = vmul.f32 %v4026, 1.442695
    %v4081 = vpow.pop %v4080
    %v4082 = vmul.f32 %v4027, 1.442695
    %v4083 = vpow.pop %v4082
    %v4084 = vmul.f32 %v4028, 1.442695
    %v4085 = vpow.pop %v4084
    %v4086 = vmul.f32 %v4029, 1.442695
    %v4087 = vpow.pop %v4086
    %v4088 = vmul.f32 %v4030, 1.442695
    %v4089 = vpow.pop %v4088
    %v4090 = vmul.f32 %v4031, 1.442695
    %v4091 = vpow.pop %v4090
    %v4092 = vmul.f32 %v4032, 1.442695
    %v4093 = vpow.pop %v4092
    %v4094 = vmul.f32 %v4033, 1.442695
    %v4095 = vpow.pop %v4094
    %v4096 = vmul.f32 %v4034, 1.442695
    %v4097 = vpow.pop %v4096
    %v4098 = vmul.f32 %v4035, 1.442695
    %v4099 = vpow.pop %v4098
    %v4100 = vadd.f32 %v4037, %v4039
    %v4101 = vadd.f32 %v4100, %v4041
    %v4102 = vadd.f32 %v4101, %v4043
    %v4103 = vadd.f32 %v4102, %v4045
    %v4104 = vadd.f32 %v4103, %v4047
    %v4105 = vadd.f32 %v4104, %v4049
    %v4106 = vadd.f32 %v4105, %v4051
    %v4107 = vadd.f32 %v4106, %v4053
    %v4108 = vadd.f32 %v4107, %v4055
    %v4109 = vadd.f32 %v4108, %v4057
    %v4110 = vadd.f32 %v4109, %v4059
    %v4111 = vadd.f32 %v4110, %v4061
    %v4112 = vadd.f32 %v4111, %v4063
    %v4113 = vadd.f32 %v4112, %v4065
    %v4114 = vadd.f32 %v4113, %v4067
    %v4115 = vrot.slane %v4114, 4
    %v4116 = vadd.f32 %v4114, %v4115
    %v4117 = vrot.slane %v4116, 2
    %v4118 = vadd.f32 %v4116, %v4117
    %v4119 = vrot.slane %v4118, 1
    %v4120 = vadd.f32 %v4118, %v4119
    %v4121 = vadd.f32 %v4069, %v4071
    %v4122 = vadd.f32 %v4121, %v4073
    %v4123 = vadd.f32 %v4122, %v4075
    %v4124 = vadd.f32 %v4123, %v4077
    %v4125 = vadd.f32 %v4124, %v4079
    %v4126 = vadd.f32 %v4125, %v4081
    %v4127 = vadd.f32 %v4126, %v4083
    %v4128 = vadd.f32 %v4127, %v4085
    %v4129 = vadd.f32 %v4128, %v4087
    %v4130 = vadd.f32 %v4129, %v4089
    %v4131 = vadd.f32 %v4130, %v4091
    %v4132 = vadd.f32 %v4131, %v4093
    %v4133 = vadd.f32 %v4132, %v4095
    %v4134 = vadd.f32 %v4133, %v4097
    %v4135 = vadd.f32 %v4134, %v4099
    %v4136 = vrot.slane %v4135, 4
    %v4137 = vadd.f32 %v4135, %v4136
    %v4138 = vrot.slane %v4137, 2
    %v4139 = vadd.f32 %v4137, %v4138
    %v4140 = vrot.slane %v4139, 1
    %v4141 = vadd.f32 %v4139, %v4140
    %v4142 = vrcp.pop %v4120
    %v4143 = vmul.f32 %v4120, %v4142
    %v4144 = vsub.f32 1.0, %v4143
    %v4145 = vmul.f32 %v4142, %v4144
    %v4146 = vadd.f32 %v4142, %v4145
    %vm4147 = vweird.f32 %v4120
    %vm4148 = vweird.f32 %v4142
    %vm4149 = vmor %vm4147, %vm4148
    %v4150 = vsel %vm4149, %v4142, %v4146
    %v4151 = vand.u32 2147483647, %v4120
    %vm4152 = vcmp.eq.f32.partialorder %v4151, 8.507059e+37
    %v4153 = vand.u32 %v4120, 2147483648
    %v4154 = vor.u32 1.1754944e-38, %v4153
    %v4155 = vsel %vm4152, %v4154, %v4150
    %v4156 = vmul.f32 1.0, %v4155
    %v4157 = vrcp.pop %v4141
    %v4158 = vmul.f32 %v4141, %v4157
    %v4159 = vsub.f32 1.0, %v4158
    %v4160 = vmul.f32 %v4157, %v4159
    %v4161 = vadd.f32 %v4157, %v4160
    %vm4162 = vweird.f32 %v4141
    %vm4163 = vweird.f32 %v4157
    %vm4164 = vmor %vm4162, %vm4163
    %v4165 = vsel %vm4164, %v4157, %v4161
    %v4166 = vand.u32 2147483647, %v4141
    %vm4167 = vcmp.eq.f32.partialorder %v4166, 8.507059e+37
    %v4168 = vand.u32 %v4141, 2147483648
    %v4169 = vor.u32 1.1754944e-38, %v4168
    %v4170 = vsel %vm4167, %v4169, %v4165
    %v4171 = vmul.f32 1.0, %v4170
    %v4172 = vlaneseq
    %v4173 = vshrl.u32 %v4172, 7
    %v4174 = vadd.s32 %v4173, 8
    %v4175 = vadd.s32 %v4173, 16
    %v4176 = vadd.s32 %v4173, 24
    %v4177 = vadd.s32 %v4173, 32
    %v4178 = vadd.s32 %v4173, 40
    %v4179 = vadd.s32 %v4173, 48
    %v4180 = vadd.s32 %v4173, 56
    %v4181 = vadd.s32 %v4173, 64
    %v4182 = vadd.s32 %v4173, 72
    %v4183 = vadd.s32 %v4173, 80
    %v4184 = vadd.s32 %v4173, 88
    %v4185 = vadd.s32 %v4173, 96
    %v4186 = vadd.s32 %v4173, 104
    %v4187 = vadd.s32 %v4173, 112
    %v4188 = vadd.s32 %v4173, 120
    %v4189 = vlaneseq
    %v4190 = vand.u32 %v4189, 127
    %v4191 = vand.u32 %v4173, 4294967280
    %v4192 = vand.u32 %v4174, 4294967280
    %v4193 = vand.u32 %v4175, 4294967280
    %v4194 = vand.u32 %v4176, 4294967280
    %v4195 = vand.u32 %v4177, 4294967280
    %v4196 = vand.u32 %v4178, 4294967280
    %v4197 = vand.u32 %v4179, 4294967280
    %v4198 = vand.u32 %v4180, 4294967280
    %v4199 = vand.u32 %v4181, 4294967280
    %v4200 = vand.u32 %v4182, 4294967280
    %v4201 = vand.u32 %v4183, 4294967280
    %v4202 = vand.u32 %v4184, 4294967280
    %v4203 = vand.u32 %v4185, 4294967280
    %v4204 = vand.u32 %v4186, 4294967280
    %v4205 = vand.u32 %v4187, 4294967280
    %v4206 = vand.u32 %v4188, 4294967280
    %v4207 = vand.u32 %v4190, 4294967280
    %vm4208 = vcmp.eq.s32.totalorder %v4191, %v4207
    %vm4209 = vcmp.eq.s32.totalorder %v4192, %v4207
    %vm4210 = vcmp.eq.s32.totalorder %v4193, %v4207
    %vm4211 = vcmp.eq.s32.totalorder %v4194, %v4207
    %vm4212 = vcmp.eq.s32.totalorder %v4195, %v4207
    %vm4213 = vcmp.eq.s32.totalorder %v4196, %v4207
    %vm4214 = vcmp.eq.s32.totalorder %v4197, %v4207
    %vm4215 = vcmp.eq.s32.totalorder %v4198, %v4207
    %vm4216 = vcmp.eq.s32.totalorder %v4199, %v4207
    %vm4217 = vcmp.eq.s32.totalorder %v4200, %v4207
    %vm4218 = vcmp.eq.s32.totalorder %v4201, %v4207
    %vm4219 = vcmp.eq.s32.totalorder %v4202, %v4207
    %vm4220 = vcmp.eq.s32.totalorder %v4203, %v4207
    %vm4221 = vcmp.eq.s32.totalorder %v4204, %v4207
    %vm4222 = vcmp.eq.s32.totalorder %v4205, %v4207
    %vm4223 = vcmp.eq.s32.totalorder %v4206, %v4207
    %v4224 = vsel %vm4208, 1, 0
    %v4225 = vsel %vm4209, 1, 0
    %v4226 = vsel %vm4210, 1, 0
    %v4227 = vsel %vm4211, 1, 0
    %v4228 = vsel %vm4212, 1, 0
    %v4229 = vsel %vm4213, 1, 0
    %v4230 = vsel %vm4214, 1, 0
    %v4231 = vsel %vm4215, 1, 0
    %v4232 = vsel %vm4216, 1, 0
    %v4233 = vsel %vm4217, 1, 0
    %v4234 = vsel %vm4218, 1, 0
    %v4235 = vsel %vm4219, 1, 0
    %v4236 = vsel %vm4220, 1, 0
    %v4237 = vsel %vm4221, 1, 0
    %v4238 = vsel %vm4222, 1, 0
    %v4239 = vsel %vm4223, 1, 0
    %v4240 = vcvt.s32.f32 %v4224
    %v4241 = vcvt.s32.f32 %v4225
    %v4242 = vcvt.s32.f32 %v4226
    %v4243 = vcvt.s32.f32 %v4227
    %v4244 = vcvt.s32.f32 %v4228
    %v4245 = vcvt.s32.f32 %v4229
    %v4246 = vcvt.s32.f32 %v4230
    %v4247 = vcvt.s32.f32 %v4231
    %v4248 = vcvt.s32.f32 %v4232
    %v4249 = vcvt.s32.f32 %v4233
    %v4250 = vcvt.s32.f32 %v4234
    %v4251 = vcvt.s32.f32 %v4235
    %v4252 = vcvt.s32.f32 %v4236
    %v4253 = vcvt.s32.f32 %v4237
    %v4254 = vcvt.s32.f32 %v4238
    %v4255 = vcvt.s32.f32 %v4239
    %v4256 = vpack.c.bf16 %v4037, %v4037
    %v4257 = vpack.c.bf16 %v4039, %v4039
    %v4258 = vpack.c.bf16 %v4041, %v4041
    %v4259 = vpack.c.bf16 %v4043, %v4043
    %v4260 = vpack.c.bf16 %v4045, %v4045
    %v4261 = vpack.c.bf16 %v4047, %v4047
    %v4262 = vpack.c.bf16 %v4049, %v4049
    %v4263 = vpack.c.bf16 %v4051, %v4051
    %v4264 = vpack.c.bf16 %v4053, %v4053
    %v4265 = vpack.c.bf16 %v4055, %v4055
    %v4266 = vpack.c.bf16 %v4057, %v4057
    %v4267 = vpack.c.bf16 %v4059, %v4059
    %v4268 = vpack.c.bf16 %v4061, %v4061
    %v4269 = vpack.c.bf16 %v4063, %v4063
    %v4270 = vpack.c.bf16 %v4065, %v4065
    %v4271 = vpack.c.bf16 %v4067, %v4067
    %v4272 = vpack.c.bf16 %v4069, %v4069
    %v4273 = vpack.c.bf16 %v4071, %v4071
    %v4274 = vpack.c.bf16 %v4073, %v4073
    %v4275 = vpack.c.bf16 %v4075, %v4075
    %v4276 = vpack.c.bf16 %v4077, %v4077
    %v4277 = vpack.c.bf16 %v4079, %v4079
    %v4278 = vpack.c.bf16 %v4081, %v4081
    %v4279 = vpack.c.bf16 %v4083, %v4083
    %v4280 = vpack.c.bf16 %v4085, %v4085
    %v4281 = vpack.c.bf16 %v4087, %v4087
    %v4282 = vpack.c.bf16 %v4089, %v4089
    %v4283 = vpack.c.bf16 %v4091, %v4091
    %v4284 = vpack.c.bf16 %v4093, %v4093
    %v4285 = vpack.c.bf16 %v4095, %v4095
    %v4286 = vpack.c.bf16 %v4097, %v4097
    %v4287 = vpack.c.bf16 %v4099, %v4099
    %v4304 = vunpack.c.l.b16 %v4256
    %v4305 = vunpack.c.l.b16 %v4257
    %v4306 = vunpack.c.l.b16 %v4258
    %v4307 = vunpack.c.l.b16 %v4259
    %v4308 = vunpack.c.l.b16 %v4260
    %v4309 = vunpack.c.l.b16 %v4261
    %v4310 = vunpack.c.l.b16 %v4262
    %v4311 = vunpack.c.l.b16 %v4263
    %v4312 = vunpack.c.l.b16 %v4264
    %v4313 = vunpack.c.l.b16 %v4265
    %v4314 = vunpack.c.l.b16 %v4266
    %v4315 = vunpack.c.l.b16 %v4267
    %v4316 = vunpack.c.l.b16 %v4268
    %v4317 = vunpack.c.l.b16 %v4269
    %v4318 = vunpack.c.l.b16 %v4270
    %v4319 = vunpack.c.l.b16 %v4271
    %v4320 = vpack.c.b16 %v4305, %v4304
    %v4321 = vpack.c.b16 %v4307, %v4306
    %v4322 = vpack.c.b16 %v4309, %v4308
    %v4323 = vpack.c.b16 %v4311, %v4310
    %v4324 = vpack.c.b16 %v4313, %v4312
    %v4325 = vpack.c.b16 %v4315, %v4314
    %v4326 = vpack.c.b16 %v4317, %v4316
    %v4327 = vpack.c.b16 %v4319, %v4318
    %4336 = vxpose.xlu0.c.b16.start [1/8] %v4320, 128
    %4337 = vxpose.xlu0.c.b16.cont [2/8] %v4321, 128
    %4338 = vxpose.xlu0.c.b16.cont [3/8] %v4322, 128
    %4339 = vxpose.xlu0.c.b16.cont [4/8] %v4323, 128
    %4340 = vxpose.xlu0.c.b16.cont [5/8] %v4324, 128
    %4341 = vxpose.xlu0.c.b16.cont [6/8] %v4325, 128
    %4342 = vxpose.xlu0.c.b16.cont [7/8] %v4326, 128
    %4343 = vxpose.xlu0.c.b16.end [8/8] %v4327, 128
    %v4344 = vpop.trf.xlu0
    %v4345 = vpop.trf.xlu0
    %v4346 = vpop.trf.xlu0
    %v4347 = vpop.trf.xlu0
    %v4348 = vpop.trf.xlu0
    %v4349 = vpop.trf.xlu0
    %v4350 = vpop.trf.xlu0
    %v4351 = vpop.trf.xlu0
    %v4368 = vunpack.c.l.b16 %v620
    %v4369 = vunpack.c.l.b16 %v621
    %v4370 = vunpack.c.l.b16 %v622
    %v4371 = vunpack.c.l.b16 %v623
    %v4372 = vunpack.c.l.b16 %v624
    %v4373 = vunpack.c.l.b16 %v625
    %v4374 = vunpack.c.l.b16 %v626
    %v4375 = vunpack.c.l.b16 %v627
    %v4376 = vunpack.c.l.b16 %v628
    %v4377 = vunpack.c.l.b16 %v629
    %v4378 = vunpack.c.l.b16 %v630
    %v4379 = vunpack.c.l.b16 %v631
    %v4380 = vunpack.c.l.b16 %v632
    %v4381 = vunpack.c.l.b16 %v633
    %v4382 = vunpack.c.l.b16 %v634
    %v4383 = vunpack.c.l.b16 %v635
    %v4384 = vpack.c.b16 %v4369, %v4368
    %v4385 = vpack.c.b16 %v4371, %v4370
    %v4386 = vpack.c.b16 %v4373, %v4372
    %v4387 = vpack.c.b16 %v4375, %v4374
    %v4388 = vpack.c.b16 %v4377, %v4376
    %v4389 = vpack.c.b16 %v4379, %v4378
    %v4390 = vpack.c.b16 %v4381, %v4380
    %v4391 = vpack.c.b16 %v4383, %v4382
    %4400 = vmatpush.bf16.msra.mxu0 %v4391
    %4401 = vmatpush.bf16.msra.mxu0 %v4390
    %4402 = vmatpush.bf16.msra.mxu0 %v4389
    %4403 = vmatpush.bf16.msra.mxu0 %v4388
    %4404 = vmatpush.bf16.msra.mxu0 %v4387
    %4405 = vmatpush.bf16.msra.mxu0 %v4386
    %4406 = vmatpush.bf16.msra.mxu0 %v4385
    %4407 = vmatpush.bf16.msra.mxu0 %v4384
    %4408 = vmatmul.bf16.gmra.mxu0 %v4344
    %v4409 = vpop.f32.mrf.mxu0
    %v4410 = vadd.f32 0.0, %v4409
    %v4411 = vpop.f32.mrf.mxu0
    %v4412 = vadd.f32 0.0, %v4411
    %4413 = vmatmul.bf16.gmra.mxu0 %v4345
    %v4414 = vpop.f32.mrf.mxu0
    %v4415 = vadd.f32 0.0, %v4414
    %v4416 = vpop.f32.mrf.mxu0
    %v4417 = vadd.f32 0.0, %v4416
    %4418 = vmatmul.bf16.gmra.mxu0 %v4346
    %v4419 = vpop.f32.mrf.mxu0
    %v4420 = vadd.f32 0.0, %v4419
    %v4421 = vpop.f32.mrf.mxu0
    %v4422 = vadd.f32 0.0, %v4421
    %4423 = vmatmul.bf16.gmra.mxu0 %v4347
    %v4424 = vpop.f32.mrf.mxu0
    %v4425 = vadd.f32 0.0, %v4424
    %v4426 = vpop.f32.mrf.mxu0
    %v4427 = vadd.f32 0.0, %v4426
    %4428 = vmatmul.bf16.gmra.mxu0 %v4348
    %v4429 = vpop.f32.mrf.mxu0
    %v4430 = vadd.f32 0.0, %v4429
    %v4431 = vpop.f32.mrf.mxu0
    %v4432 = vadd.f32 0.0, %v4431
    %4433 = vmatmul.bf16.gmra.mxu0 %v4349
    %v4434 = vpop.f32.mrf.mxu0
    %v4435 = vadd.f32 0.0, %v4434
    %v4436 = vpop.f32.mrf.mxu0
    %v4437 = vadd.f32 0.0, %v4436
    %4438 = vmatmul.bf16.gmra.mxu0 %v4350
    %v4439 = vpop.f32.mrf.mxu0
    %v4440 = vadd.f32 0.0, %v4439
    %v4441 = vpop.f32.mrf.mxu0
    %v4442 = vadd.f32 0.0, %v4441
    %4443 = vmatmul.bf16.gmra.mxu0 %v4351
    %v4444 = vpop.f32.mrf.mxu0
    %v4445 = vadd.f32 0.0, %v4444
    %v4446 = vpop.f32.mrf.mxu0
    %v4447 = vadd.f32 0.0, %v4446
    %4448 = vdwg.mxu0
    %v4465 = vunpack.c.l.b16 %v4272
    %v4466 = vunpack.c.l.b16 %v4273
    %v4467 = vunpack.c.l.b16 %v4274
    %v4468 = vunpack.c.l.b16 %v4275
    %v4469 = vunpack.c.l.b16 %v4276
    %v4470 = vunpack.c.l.b16 %v4277
    %v4471 = vunpack.c.l.b16 %v4278
    %v4472 = vunpack.c.l.b16 %v4279
    %v4473 = vunpack.c.l.b16 %v4280
    %v4474 = vunpack.c.l.b16 %v4281
    %v4475 = vunpack.c.l.b16 %v4282
    %v4476 = vunpack.c.l.b16 %v4283
    %v4477 = vunpack.c.l.b16 %v4284
    %v4478 = vunpack.c.l.b16 %v4285
    %v4479 = vunpack.c.l.b16 %v4286
    %v4480 = vunpack.c.l.b16 %v4287
    %v4481 = vpack.c.b16 %v4466, %v4465
    %v4482 = vpack.c.b16 %v4468, %v4467
    %v4483 = vpack.c.b16 %v4470, %v4469
    %v4484 = vpack.c.b16 %v4472, %v4471
    %v4485 = vpack.c.b16 %v4474, %v4473
    %v4486 = vpack.c.b16 %v4476, %v4475
    %v4487 = vpack.c.b16 %v4478, %v4477
    %v4488 = vpack.c.b16 %v4480, %v4479
    %4497 = vxpose.xlu0.c.b16.start [1/8] %v4481, 128
    %4498 = vxpose.xlu0.c.b16.cont [2/8] %v4482, 128
    %4499 = vxpose.xlu0.c.b16.cont [3/8] %v4483, 128
    %4500 = vxpose.xlu0.c.b16.cont [4/8] %v4484, 128
    %4501 = vxpose.xlu0.c.b16.cont [5/8] %v4485, 128
    %4502 = vxpose.xlu0.c.b16.cont [6/8] %v4486, 128
    %4503 = vxpose.xlu0.c.b16.cont [7/8] %v4487, 128
    %4504 = vxpose.xlu0.c.b16.end [8/8] %v4488, 128
    %v4505 = vpop.trf.xlu0
    %v4506 = vpop.trf.xlu0
    %v4507 = vpop.trf.xlu0
    %v4508 = vpop.trf.xlu0
    %v4509 = vpop.trf.xlu0
    %v4510 = vpop.trf.xlu0
    %v4511 = vpop.trf.xlu0
    %v4512 = vpop.trf.xlu0
    %v4529 = vunpack.c.l.b16 %v636
    %v4530 = vunpack.c.l.b16 %v637
    %v4531 = vunpack.c.l.b16 %v638
    %v4532 = vunpack.c.l.b16 %v639
    %v4533 = vunpack.c.l.b16 %v640
    %v4534 = vunpack.c.l.b16 %v641
    %v4535 = vunpack.c.l.b16 %v642
    %v4536 = vunpack.c.l.b16 %v643
    %v4537 = vunpack.c.l.b16 %v644
    %v4538 = vunpack.c.l.b16 %v645
    %v4539 = vunpack.c.l.b16 %v646
    %v4540 = vunpack.c.l.b16 %v647
    %v4541 = vunpack.c.l.b16 %v648
    %v4542 = vunpack.c.l.b16 %v649
    %v4543 = vunpack.c.l.b16 %v650
    %v4544 = vunpack.c.l.b16 %v651
    %v4545 = vpack.c.b16 %v4530, %v4529
    %v4546 = vpack.c.b16 %v4532, %v4531
    %v4547 = vpack.c.b16 %v4534, %v4533
    %v4548 = vpack.c.b16 %v4536, %v4535
    %v4549 = vpack.c.b16 %v4538, %v4537
    %v4550 = vpack.c.b16 %v4540, %v4539
    %v4551 = vpack.c.b16 %v4542, %v4541
    %v4552 = vpack.c.b16 %v4544, %v4543
    %4561 = vmatpush.bf16.msra.mxu0 %v4552
    %4562 = vmatpush.bf16.msra.mxu0 %v4551
    %4563 = vmatpush.bf16.msra.mxu0 %v4550
    %4564 = vmatpush.bf16.msra.mxu0 %v4549
    %4565 = vmatpush.bf16.msra.mxu0 %v4548
    %4566 = vmatpush.bf16.msra.mxu0 %v4547
    %4567 = vmatpush.bf16.msra.mxu0 %v4546
    %4568 = vmatpush.bf16.msra.mxu0 %v4545
    %4569 = vmatmul.bf16.gmra.mxu0 %v4505
    %v4570 = vpop.f32.mrf.mxu0
    %v4571 = vadd.f32 0.0, %v4570
    %v4572 = vpop.f32.mrf.mxu0
    %v4573 = vadd.f32 0.0, %v4572
    %4574 = vmatmul.bf16.gmra.mxu0 %v4506
    %v4575 = vpop.f32.mrf.mxu0
    %v4576 = vadd.f32 0.0, %v4575
    %v4577 = vpop.f32.mrf.mxu0
    %v4578 = vadd.f32 0.0, %v4577
    %4579 = vmatmul.bf16.gmra.mxu0 %v4507
    %v4580 = vpop.f32.mrf.mxu0
    %v4581 = vadd.f32 0.0, %v4580
    %v4582 = vpop.f32.mrf.mxu0
    %v4583 = vadd.f32 0.0, %v4582
    %4584 = vmatmul.bf16.gmra.mxu0 %v4508
    %v4585 = vpop.f32.mrf.mxu0
    %v4586 = vadd.f32 0.0, %v4585
    %v4587 = vpop.f32.mrf.mxu0
    %v4588 = vadd.f32 0.0, %v4587
    %4589 = vmatmul.bf16.gmra.mxu0 %v4509
    %v4590 = vpop.f32.mrf.mxu0
    %v4591 = vadd.f32 0.0, %v4590
    %v4592 = vpop.f32.mrf.mxu0
    %v4593 = vadd.f32 0.0, %v4592
    %4594 = vmatmul.bf16.gmra.mxu0 %v4510
    %v4595 = vpop.f32.mrf.mxu0
    %v4596 = vadd.f32 0.0, %v4595
    %v4597 = vpop.f32.mrf.mxu0
    %v4598 = vadd.f32 0.0, %v4597
    %4599 = vmatmul.bf16.gmra.mxu0 %v4511
    %v4600 = vpop.f32.mrf.mxu0
    %v4601 = vadd.f32 0.0, %v4600
    %v4602 = vpop.f32.mrf.mxu0
    %v4603 = vadd.f32 0.0, %v4602
    %4604 = vmatmul.bf16.gmra.mxu0 %v4512
    %v4605 = vpop.f32.mrf.mxu0
    %v4606 = vadd.f32 0.0, %v4605
    %v4607 = vpop.f32.mrf.mxu0
    %v4608 = vadd.f32 0.0, %v4607
    %4609 = vdwg.mxu0
    %v4610 = vlaneseq
    %v4611 = vshrl.u32 %v4610, 7
    %4613 = vset.pattern.permute.xlu0 %v4611
    %4614 = vperm.xlu0 %4613, %v4156
    %v4615 = vpop.permute.xlu0 %4614
    %v4616 = vlaneseq
    %v4617 = vshrl.u32 %v4616, 7
    %v4618 = vadd.s32 %v4617, 8
    %4619 = vset.pattern.permute.xlu0 %v4618
    %4620 = vperm.xlu0 %4619, %v4156
    %v4621 = vpop.permute.xlu0 %4620
    %v4622 = vlaneseq
    %v4623 = vshrl.u32 %v4622, 7
    %v4624 = vadd.s32 %v4623, 16
    %4625 = vset.pattern.permute.xlu0 %v4624
    %4626 = vperm.xlu0 %4625, %v4156
    %v4627 = vpop.permute.xlu0 %4626
    %v4628 = vlaneseq
    %v4629 = vshrl.u32 %v4628, 7
    %v4630 = vadd.s32 %v4629, 24
    %4631 = vset.pattern.permute.xlu0 %v4630
    %4632 = vperm.xlu0 %4631, %v4156
    %v4633 = vpop.permute.xlu0 %4632
    %v4634 = vlaneseq
    %v4635 = vshrl.u32 %v4634, 7
    %v4636 = vadd.s32 %v4635, 32
    %4637 = vset.pattern.permute.xlu0 %v4636
    %4638 = vperm.xlu0 %4637, %v4156
    %v4639 = vpop.permute.xlu0 %4638
    %v4640 = vlaneseq
    %v4641 = vshrl.u32 %v4640, 7
    %v4642 = vadd.s32 %v4641, 40
    %4643 = vset.pattern.permute.xlu0 %v4642
    %4644 = vperm.xlu0 %4643, %v4156
    %v4645 = vpop.permute.xlu0 %4644
    %v4646 = vlaneseq
    %v4647 = vshrl.u32 %v4646, 7
    %v4648 = vadd.s32 %v4647, 48
    %4649 = vset.pattern.permute.xlu0 %v4648
    %4650 = vperm.xlu0 %4649, %v4156
    %v4651 = vpop.permute.xlu0 %4650
    %v4652 = vlaneseq
    %v4653 = vshrl.u32 %v4652, 7
    %v4654 = vadd.s32 %v4653, 56
    %4655 = vset.pattern.permute.xlu0 %v4654
    %4656 = vperm.xlu0 %4655, %v4156
    %v4657 = vpop.permute.xlu0 %4656
    %v4658 = vlaneseq
    %v4659 = vshrl.u32 %v4658, 7
    %v4660 = vadd.s32 %v4659, 64
    %4661 = vset.pattern.permute.xlu0 %v4660
    %4662 = vperm.xlu0 %4661, %v4156
    %v4663 = vpop.permute.xlu0 %4662
    %v4664 = vlaneseq
    %v4665 = vshrl.u32 %v4664, 7
    %v4666 = vadd.s32 %v4665, 72
    %4667 = vset.pattern.permute.xlu0 %v4666
    %4668 = vperm.xlu0 %4667, %v4156
    %v4669 = vpop.permute.xlu0 %4668
    %v4670 = vlaneseq
    %v4671 = vshrl.u32 %v4670, 7
    %v4672 = vadd.s32 %v4671, 80
    %4673 = vset.pattern.permute.xlu0 %v4672
    %4674 = vperm.xlu0 %4673, %v4156
    %v4675 = vpop.permute.xlu0 %4674
    %v4676 = vlaneseq
    %v4677 = vshrl.u32 %v4676, 7
    %v4678 = vadd.s32 %v4677, 88
    %4679 = vset.pattern.permute.xlu0 %v4678
    %4680 = vperm.xlu0 %4679, %v4156
    %v4681 = vpop.permute.xlu0 %4680
    %v4682 = vlaneseq
    %v4683 = vshrl.u32 %v4682, 7
    %v4684 = vadd.s32 %v4683, 96
    %4685 = vset.pattern.permute.xlu0 %v4684
    %4686 = vperm.xlu0 %4685, %v4156
    %v4687 = vpop.permute.xlu0 %4686
    %v4688 = vlaneseq
    %v4689 = vshrl.u32 %v4688, 7
    %v4690 = vadd.s32 %v4689, 104
    %4691 = vset.pattern.permute.xlu0 %v4690
    %4692 = vperm.xlu0 %4691, %v4156
    %v4693 = vpop.permute.xlu0 %4692
    %v4694 = vlaneseq
    %v4695 = vshrl.u32 %v4694, 7
    %v4696 = vadd.s32 %v4695, 112
    %4697 = vset.pattern.permute.xlu0 %v4696
    %4698 = vperm.xlu0 %4697, %v4156
    %v4699 = vpop.permute.xlu0 %4698
    %v4700 = vlaneseq
    %v4701 = vshrl.u32 %v4700, 7
    %v4702 = vadd.s32 %v4701, 120
    %4703 = vset.pattern.permute.xlu0 %v4702
    %4704 = vperm.xlu0 %4703, %v4156
    %v4705 = vpop.permute.xlu0 %4704
    %v4706 = vlaneseq
    %v4707 = vshrl.u32 %v4706, 7
    %4709 = vset.pattern.permute.xlu0 %v4707
    %4710 = vperm.xlu0 %4709, %v4171
    %v4711 = vpop.permute.xlu0 %4710
    %v4712 = vlaneseq
    %v4713 = vshrl.u32 %v4712, 7
    %v4714 = vadd.s32 %v4713, 8
    %4715 = vset.pattern.permute.xlu0 %v4714
    %4716 = vperm.xlu0 %4715, %v4171
    %v4717 = vpop.permute.xlu0 %4716
    %v4718 = vlaneseq
    %v4719 = vshrl.u32 %v4718, 7
    %v4720 = vadd.s32 %v4719, 16
    %4721 = vset.pattern.permute.xlu0 %v4720
    %4722 = vperm.xlu0 %4721, %v4171
    %v4723 = vpop.permute.xlu0 %4722
    %v4724 = vlaneseq
    %v4725 = vshrl.u32 %v4724, 7
    %v4726 = vadd.s32 %v4725, 24
    %4727 = vset.pattern.permute.xlu0 %v4726
    %4728 = vperm.xlu0 %4727, %v4171
    %v4729 = vpop.permute.xlu0 %4728
    %v4730 = vlaneseq
    %v4731 = vshrl.u32 %v4730, 7
    %v4732 = vadd.s32 %v4731, 32
    %4733 = vset.pattern.permute.xlu0 %v4732
    %4734 = vperm.xlu0 %4733, %v4171
    %v4735 = vpop.permute.xlu0 %4734
    %v4736 = vlaneseq
    %v4737 = vshrl.u32 %v4736, 7
    %v4738 = vadd.s32 %v4737, 40
    %4739 = vset.pattern.permute.xlu0 %v4738
    %4740 = vperm.xlu0 %4739, %v4171
    %v4741 = vpop.permute.xlu0 %4740
    %v4742 = vlaneseq
    %v4743 = vshrl.u32 %v4742, 7
    %v4744 = vadd.s32 %v4743, 48
    %4745 = vset.pattern.permute.xlu0 %v4744
    %4746 = vperm.xlu0 %4745, %v4171
    %v4747 = vpop.permute.xlu0 %4746
    %v4748 = vlaneseq
    %v4749 = vshrl.u32 %v4748, 7
    %v4750 = vadd.s32 %v4749, 56
    %4751 = vset.pattern.permute.xlu0 %v4750
    %4752 = vperm.xlu0 %4751, %v4171
    %v4753 = vpop.permute.xlu0 %4752
    %v4754 = vlaneseq
    %v4755 = vshrl.u32 %v4754, 7
    %v4756 = vadd.s32 %v4755, 64
    %4757 = vset.pattern.permute.xlu0 %v4756
    %4758 = vperm.xlu0 %4757, %v4171
    %v4759 = vpop.permute.xlu0 %4758
    %v4760 = vlaneseq
    %v4761 = vshrl.u32 %v4760, 7
    %v4762 = vadd.s32 %v4761, 72
    %4763 = vset.pattern.permute.xlu0 %v4762
    %4764 = vperm.xlu0 %4763, %v4171
    %v4765 = vpop.permute.xlu0 %4764
    %v4766 = vlaneseq
    %v4767 = vshrl.u32 %v4766, 7
    %v4768 = vadd.s32 %v4767, 80
    %4769 = vset.pattern.permute.xlu0 %v4768
    %4770 = vperm.xlu0 %4769, %v4171
    %v4771 = vpop.permute.xlu0 %4770
    %v4772 = vlaneseq
    %v4773 = vshrl.u32 %v4772, 7
    %v4774 = vadd.s32 %v4773, 88
    %4775 = vset.pattern.permute.xlu0 %v4774
    %4776 = vperm.xlu0 %4775, %v4171
    %v4777 = vpop.permute.xlu0 %4776
    %v4778 = vlaneseq
    %v4779 = vshrl.u32 %v4778, 7
    %v4780 = vadd.s32 %v4779, 96
    %4781 = vset.pattern.permute.xlu0 %v4780
    %4782 = vperm.xlu0 %4781, %v4171
    %v4783 = vpop.permute.xlu0 %4782
    %v4784 = vlaneseq
    %v4785 = vshrl.u32 %v4784, 7
    %v4786 = vadd.s32 %v4785, 104
    %4787 = vset.pattern.permute.xlu0 %v4786
    %4788 = vperm.xlu0 %4787, %v4171
    %v4789 = vpop.permute.xlu0 %4788
    %v4790 = vlaneseq
    %v4791 = vshrl.u32 %v4790, 7
    %v4792 = vadd.s32 %v4791, 112
    %4793 = vset.pattern.permute.xlu0 %v4792
    %4794 = vperm.xlu0 %4793, %v4171
    %v4795 = vpop.permute.xlu0 %4794
    %v4796 = vlaneseq
    %v4797 = vshrl.u32 %v4796, 7
    %v4798 = vadd.s32 %v4797, 120
    %4799 = vset.pattern.permute.xlu0 %v4798
    %4800 = vperm.xlu0 %4799, %v4171
    %v4801 = vpop.permute.xlu0 %4800
    %v4802 = vmul.f32 %v4240, %v4615
    %v4803 = vmul.f32 %v4241, %v4621
    %v4804 = vmul.f32 %v4242, %v4627
    %v4805 = vmul.f32 %v4243, %v4633
    %v4806 = vmul.f32 %v4244, %v4639
    %v4807 = vmul.f32 %v4245, %v4645
    %v4808 = vmul.f32 %v4246, %v4651
    %v4809 = vmul.f32 %v4247, %v4657
    %v4810 = vmul.f32 %v4248, %v4663
    %v4811 = vmul.f32 %v4249, %v4669
    %v4812 = vmul.f32 %v4250, %v4675
    %v4813 = vmul.f32 %v4251, %v4681
    %v4814 = vmul.f32 %v4252, %v4687
    %v4815 = vmul.f32 %v4253, %v4693
    %v4816 = vmul.f32 %v4254, %v4699
    %v4817 = vmul.f32 %v4255, %v4705
    %v4818 = vmul.f32 %v4240, %v4711
    %v4819 = vmul.f32 %v4241, %v4717
    %v4820 = vmul.f32 %v4242, %v4723
    %v4821 = vmul.f32 %v4243, %v4729
    %v4822 = vmul.f32 %v4244, %v4735
    %v4823 = vmul.f32 %v4245, %v4741
    %v4824 = vmul.f32 %v4246, %v4747
    %v4825 = vmul.f32 %v4247, %v4753
    %v4826 = vmul.f32 %v4248, %v4759
    %v4827 = vmul.f32 %v4249, %v4765
    %v4828 = vmul.f32 %v4250, %v4771
    %v4829 = vmul.f32 %v4251, %v4777
    %v4830 = vmul.f32 %v4252, %v4783
    %v4831 = vmul.f32 %v4253, %v4789
    %v4832 = vmul.f32 %v4254, %v4795
    %v4833 = vmul.f32 %v4255, %v4801
    %v4834 = vmul.f32 %v4410, %v4802
    %v4835 = vmul.f32 %v4412, %v4803
    %v4836 = vmul.f32 %v4415, %v4804
    %v4837 = vmul.f32 %v4417, %v4805
    %v4838 = vmul.f32 %v4420, %v4806
    %v4839 = vmul.f32 %v4422, %v4807
    %v4840 = vmul.f32 %v4425, %v4808
    %v4841 = vmul.f32 %v4427, %v4809
    %v4842 = vmul.f32 %v4430, %v4810
    %v4843 = vmul.f32 %v4432, %v4811
    %v4844 = vmul.f32 %v4435, %v4812
    %v4845 = vmul.f32 %v4437, %v4813
    %v4846 = vmul.f32 %v4440, %v4814
    %v4847 = vmul.f32 %v4442, %v4815
    %v4848 = vmul.f32 %v4445, %v4816
    %v4849 = vmul.f32 %v4447, %v4817
    %v4850 = vmul.f32 %v4571, %v4818
    %v4851 = vmul.f32 %v4573, %v4819
    %v4852 = vmul.f32 %v4576, %v4820
    %v4853 = vmul.f32 %v4578, %v4821
    %v4854 = vmul.f32 %v4581, %v4822
    %v4855 = vmul.f32 %v4583, %v4823
    %v4856 = vmul.f32 %v4586, %v4824
    %v4857 = vmul.f32 %v4588, %v4825
    %v4858 = vmul.f32 %v4591, %v4826
    %v4859 = vmul.f32 %v4593, %v4827
    %v4860 = vmul.f32 %v4596, %v4828
    %v4861 = vmul.f32 %v4598, %v4829
    %v4862 = vmul.f32 %v4601, %v4830
    %v4863 = vmul.f32 %v4603, %v4831
    %v4864 = vmul.f32 %v4606, %v4832
    %v4865 = vmul.f32 %v4608, %v4833
    %v4866 = vpack.c.bf16 %v4834, %v4834
    %v4867 = vpack.c.bf16 %v4835, %v4835
    %v4868 = vpack.c.bf16 %v4836, %v4836
    %v4869 = vpack.c.bf16 %v4837, %v4837
    %v4870 = vpack.c.bf16 %v4838, %v4838
    %v4871 = vpack.c.bf16 %v4839, %v4839
    %v4872 = vpack.c.bf16 %v4840, %v4840
    %v4873 = vpack.c.bf16 %v4841, %v4841
    %v4874 = vpack.c.bf16 %v4842, %v4842
    %v4875 = vpack.c.bf16 %v4843, %v4843
    %v4876 = vpack.c.bf16 %v4844, %v4844
    %v4877 = vpack.c.bf16 %v4845, %v4845
    %v4878 = vpack.c.bf16 %v4846, %v4846
    %v4879 = vpack.c.bf16 %v4847, %v4847
    %v4880 = vpack.c.bf16 %v4848, %v4848
    %v4881 = vpack.c.bf16 %v4849, %v4849
    %v4882 = vpack.c.bf16 %v4850, %v4850
    %v4883 = vpack.c.bf16 %v4851, %v4851
    %v4884 = vpack.c.bf16 %v4852, %v4852
    %v4885 = vpack.c.bf16 %v4853, %v4853
    %v4886 = vpack.c.bf16 %v4854, %v4854
    %v4887 = vpack.c.bf16 %v4855, %v4855
    %v4888 = vpack.c.bf16 %v4856, %v4856
    %v4889 = vpack.c.bf16 %v4857, %v4857
    %v4890 = vpack.c.bf16 %v4858, %v4858
    %v4891 = vpack.c.bf16 %v4859, %v4859
    %v4892 = vpack.c.bf16 %v4860, %v4860
    %v4893 = vpack.c.bf16 %v4861, %v4861
    %v4894 = vpack.c.bf16 %v4862, %v4862
    %v4895 = vpack.c.bf16 %v4863, %v4863
    %v4896 = vpack.c.bf16 %v4864, %v4864
    %v4897 = vpack.c.bf16 %v4865, %v4865
    %v4914 = vunpack.c.l.b16 %v3930
    %v4915 = vunpack.c.l.b16 %v3931
    %v4916 = vunpack.c.l.b16 %v3932
    %v4917 = vunpack.c.l.b16 %v3933
    %v4918 = vunpack.c.l.b16 %v3934
    %v4919 = vunpack.c.l.b16 %v3935
    %v4920 = vunpack.c.l.b16 %v3936
    %v4921 = vunpack.c.l.b16 %v3937
    %v4922 = vunpack.c.l.b16 %v3938
    %v4923 = vunpack.c.l.b16 %v3939
    %v4924 = vunpack.c.l.b16 %v3940
    %v4925 = vunpack.c.l.b16 %v3941
    %v4926 = vunpack.c.l.b16 %v3942
    %v4927 = vunpack.c.l.b16 %v3943
    %v4928 = vunpack.c.l.b16 %v3944
    %v4929 = vunpack.c.l.b16 %v3945
    %v4930 = vpack.c.b16 %v4915, %v4914
    %v4931 = vpack.c.b16 %v4917, %v4916
    %v4932 = vpack.c.b16 %v4919, %v4918
    %v4933 = vpack.c.b16 %v4921, %v4920
    %v4934 = vpack.c.b16 %v4923, %v4922
    %v4935 = vpack.c.b16 %v4925, %v4924
    %v4936 = vpack.c.b16 %v4927, %v4926
    %v4937 = vpack.c.b16 %v4929, %v4928
    %v4962 = vunpack.c.l.b16 %v4866
    %v4963 = vunpack.c.l.b16 %v4867
    %v4964 = vunpack.c.l.b16 %v4868
    %v4965 = vunpack.c.l.b16 %v4869
    %v4966 = vunpack.c.l.b16 %v4870
    %v4967 = vunpack.c.l.b16 %v4871
    %v4968 = vunpack.c.l.b16 %v4872
    %v4969 = vunpack.c.l.b16 %v4873
    %v4970 = vunpack.c.l.b16 %v4874
    %v4971 = vunpack.c.l.b16 %v4875
    %v4972 = vunpack.c.l.b16 %v4876
    %v4973 = vunpack.c.l.b16 %v4877
    %v4974 = vunpack.c.l.b16 %v4878
    %v4975 = vunpack.c.l.b16 %v4879
    %v4976 = vunpack.c.l.b16 %v4880
    %v4977 = vunpack.c.l.b16 %v4881
    %v4978 = vpack.c.b16 %v4963, %v4962
    %v4979 = vpack.c.b16 %v4965, %v4964
    %v4980 = vpack.c.b16 %v4967, %v4966
    %v4981 = vpack.c.b16 %v4969, %v4968
    %v4982 = vpack.c.b16 %v4971, %v4970
    %v4983 = vpack.c.b16 %v4973, %v4972
    %v4984 = vpack.c.b16 %v4975, %v4974
    %v4985 = vpack.c.b16 %v4977, %v4976
    %4994 = vmatpush.bf16.msra.mxu0 %v4985
    %4995 = vmatpush.bf16.msra.mxu0 %v4984
    %4996 = vmatpush.bf16.msra.mxu0 %v4983
    %4997 = vmatpush.bf16.msra.mxu0 %v4982
    %4998 = vmatpush.bf16.msra.mxu0 %v4981
    %4999 = vmatpush.bf16.msra.mxu0 %v4980
    %5000 = vmatpush.bf16.msra.mxu0 %v4979
    %5001 = vmatpush.bf16.msra.mxu0 %v4978
    %5002 = vmatmul.bf16.gmra.mxu0 %v4930
    %v5003 = vpop.f32.mrf.mxu0
    %v5004 = vadd.f32 0.0, %v5003
    %v5005 = vpop.f32.mrf.mxu0
    %v5006 = vadd.f32 0.0, %v5005
    %5007 = vmatmul.bf16.gmra.mxu0 %v4931
    %v5008 = vpop.f32.mrf.mxu0
    %v5009 = vadd.f32 0.0, %v5008
    %v5010 = vpop.f32.mrf.mxu0
    %v5011 = vadd.f32 0.0, %v5010
    %5012 = vmatmul.bf16.gmra.mxu0 %v4932
    %v5013 = vpop.f32.mrf.mxu0
    %v5014 = vadd.f32 0.0, %v5013
    %v5015 = vpop.f32.mrf.mxu0
    %v5016 = vadd.f32 0.0, %v5015
    %5017 = vmatmul.bf16.gmra.mxu0 %v4933
    %v5018 = vpop.f32.mrf.mxu0
    %v5019 = vadd.f32 0.0, %v5018
    %v5020 = vpop.f32.mrf.mxu0
    %v5021 = vadd.f32 0.0, %v5020
    %5022 = vmatmul.bf16.gmra.mxu0 %v4934
    %v5023 = vpop.f32.mrf.mxu0
    %v5024 = vadd.f32 0.0, %v5023
    %v5025 = vpop.f32.mrf.mxu0
    %v5026 = vadd.f32 0.0, %v5025
    %5027 = vmatmul.bf16.gmra.mxu0 %v4935
    %v5028 = vpop.f32.mrf.mxu0
    %v5029 = vadd.f32 0.0, %v5028
    %v5030 = vpop.f32.mrf.mxu0
    %v5031 = vadd.f32 0.0, %v5030
    %5032 = vmatmul.bf16.gmra.mxu0 %v4936
    %v5033 = vpop.f32.mrf.mxu0
    %v5034 = vadd.f32 0.0, %v5033
    %v5035 = vpop.f32.mrf.mxu0
    %v5036 = vadd.f32 0.0, %v5035
    %5037 = vmatmul.bf16.gmra.mxu0 %v4937
    %v5038 = vpop.f32.mrf.mxu0
    %v5039 = vadd.f32 0.0, %v5038
    %v5040 = vpop.f32.mrf.mxu0
    %v5041 = vadd.f32 0.0, %v5040
    %5042 = vdwg.mxu0
    %v5059 = vunpack.c.l.b16 %v3946
    %v5060 = vunpack.c.l.b16 %v3947
    %v5061 = vunpack.c.l.b16 %v3948
    %v5062 = vunpack.c.l.b16 %v3949
    %v5063 = vunpack.c.l.b16 %v3950
    %v5064 = vunpack.c.l.b16 %v3951
    %v5065 = vunpack.c.l.b16 %v3952
    %v5066 = vunpack.c.l.b16 %v3953
    %v5067 = vunpack.c.l.b16 %v3954
    %v5068 = vunpack.c.l.b16 %v3955
    %v5069 = vunpack.c.l.b16 %v3956
    %v5070 = vunpack.c.l.b16 %v3957
    %v5071 = vunpack.c.l.b16 %v3958
    %v5072 = vunpack.c.l.b16 %v3959
    %v5073 = vunpack.c.l.b16 %v3960
    %v5074 = vunpack.c.l.b16 %v3961
    %v5075 = vpack.c.b16 %v5060, %v5059
    %v5076 = vpack.c.b16 %v5062, %v5061
    %v5077 = vpack.c.b16 %v5064, %v5063
    %v5078 = vpack.c.b16 %v5066, %v5065
    %v5079 = vpack.c.b16 %v5068, %v5067
    %v5080 = vpack.c.b16 %v5070, %v5069
    %v5081 = vpack.c.b16 %v5072, %v5071
    %v5082 = vpack.c.b16 %v5074, %v5073
    %v5107 = vunpack.c.l.b16 %v4882
    %v5108 = vunpack.c.l.b16 %v4883
    %v5109 = vunpack.c.l.b16 %v4884
    %v5110 = vunpack.c.l.b16 %v4885
    %v5111 = vunpack.c.l.b16 %v4886
    %v5112 = vunpack.c.l.b16 %v4887
    %v5113 = vunpack.c.l.b16 %v4888
    %v5114 = vunpack.c.l.b16 %v4889
    %v5115 = vunpack.c.l.b16 %v4890
    %v5116 = vunpack.c.l.b16 %v4891
    %v5117 = vunpack.c.l.b16 %v4892
    %v5118 = vunpack.c.l.b16 %v4893
    %v5119 = vunpack.c.l.b16 %v4894
    %v5120 = vunpack.c.l.b16 %v4895
    %v5121 = vunpack.c.l.b16 %v4896
    %v5122 = vunpack.c.l.b16 %v4897
    %v5123 = vpack.c.b16 %v5108, %v5107
    %v5124 = vpack.c.b16 %v5110, %v5109
    %v5125 = vpack.c.b16 %v5112, %v5111
    %v5126 = vpack.c.b16 %v5114, %v5113
    %v5127 = vpack.c.b16 %v5116, %v5115
    %v5128 = vpack.c.b16 %v5118, %v5117
    %v5129 = vpack.c.b16 %v5120, %v5119
    %v5130 = vpack.c.b16 %v5122, %v5121
    %5139 = vmatpush.bf16.msra.mxu0 %v5130
    %5140 = vmatpush.bf16.msra.mxu0 %v5129
    %5141 = vmatpush.bf16.msra.mxu0 %v5128
    %5142 = vmatpush.bf16.msra.mxu0 %v5127
    %5143 = vmatpush.bf16.msra.mxu0 %v5126
    %5144 = vmatpush.bf16.msra.mxu0 %v5125
    %5145 = vmatpush.bf16.msra.mxu0 %v5124
    %5146 = vmatpush.bf16.msra.mxu0 %v5123
    %5147 = vmatmul.bf16.gmra.mxu0 %v5075
    %v5148 = vpop.f32.mrf.mxu0
    %v5149 = vadd.f32 0.0, %v5148
    %v5150 = vpop.f32.mrf.mxu0
    %v5151 = vadd.f32 0.0, %v5150
    %5152 = vmatmul.bf16.gmra.mxu0 %v5076
    %v5153 = vpop.f32.mrf.mxu0
    %v5154 = vadd.f32 0.0, %v5153
    %v5155 = vpop.f32.mrf.mxu0
    %v5156 = vadd.f32 0.0, %v5155
    %5157 = vmatmul.bf16.gmra.mxu0 %v5077
    %v5158 = vpop.f32.mrf.mxu0
    %v5159 = vadd.f32 0.0, %v5158
    %v5160 = vpop.f32.mrf.mxu0
    %v5161 = vadd.f32 0.0, %v5160
    %5162 = vmatmul.bf16.gmra.mxu0 %v5078
    %v5163 = vpop.f32.mrf.mxu0
    %v5164 = vadd.f32 0.0, %v5163
    %v5165 = vpop.f32.mrf.mxu0
    %v5166 = vadd.f32 0.0, %v5165
    %5167 = vmatmul.bf16.gmra.mxu0 %v5079
    %v5168 = vpop.f32.mrf.mxu0
    %v5169 = vadd.f32 0.0, %v5168
    %v5170 = vpop.f32.mrf.mxu0
    %v5171 = vadd.f32 0.0, %v5170
    %5172 = vmatmul.bf16.gmra.mxu0 %v5080
    %v5173 = vpop.f32.mrf.mxu0
    %v5174 = vadd.f32 0.0, %v5173
    %v5175 = vpop.f32.mrf.mxu0
    %v5176 = vadd.f32 0.0, %v5175
    %5177 = vmatmul.bf16.gmra.mxu0 %v5081
    %v5178 = vpop.f32.mrf.mxu0
    %v5179 = vadd.f32 0.0, %v5178
    %v5180 = vpop.f32.mrf.mxu0
    %v5181 = vadd.f32 0.0, %v5180
    %5182 = vmatmul.bf16.gmra.mxu0 %v5082
    %v5183 = vpop.f32.mrf.mxu0
    %v5184 = vadd.f32 0.0, %v5183
    %v5185 = vpop.f32.mrf.mxu0
    %v5186 = vadd.f32 0.0, %v5185
    %5187 = vdwg.mxu0
    %v5188 = vpack.c.bf16 %v5004, %v5004
    %v5189 = vpack.c.bf16 %v5006, %v5006
    %v5190 = vpack.c.bf16 %v5009, %v5009
    %v5191 = vpack.c.bf16 %v5011, %v5011
    %v5192 = vpack.c.bf16 %v5014, %v5014
    %v5193 = vpack.c.bf16 %v5016, %v5016
    %v5194 = vpack.c.bf16 %v5019, %v5019
    %v5195 = vpack.c.bf16 %v5021, %v5021
    %v5196 = vpack.c.bf16 %v5024, %v5024
    %v5197 = vpack.c.bf16 %v5026, %v5026
    %v5198 = vpack.c.bf16 %v5029, %v5029
    %v5199 = vpack.c.bf16 %v5031, %v5031
    %v5200 = vpack.c.bf16 %v5034, %v5034
    %v5201 = vpack.c.bf16 %v5036, %v5036
    %v5202 = vpack.c.bf16 %v5039, %v5039
    %v5203 = vpack.c.bf16 %v5041, %v5041
    %v5204 = vpack.c.bf16 %v5149, %v5149
    %v5205 = vpack.c.bf16 %v5151, %v5151
    %v5206 = vpack.c.bf16 %v5154, %v5154
    %v5207 = vpack.c.bf16 %v5156, %v5156
    %v5208 = vpack.c.bf16 %v5159, %v5159
    %v5209 = vpack.c.bf16 %v5161, %v5161
    %v5210 = vpack.c.bf16 %v5164, %v5164
    %v5211 = vpack.c.bf16 %v5166, %v5166
    %v5212 = vpack.c.bf16 %v5169, %v5169
    %v5213 = vpack.c.bf16 %v5171, %v5171
    %v5214 = vpack.c.bf16 %v5174, %v5174
    %v5215 = vpack.c.bf16 %v5176, %v5176
    %v5216 = vpack.c.bf16 %v5179, %v5179
    %v5217 = vpack.c.bf16 %v5181, %v5181
    %v5218 = vpack.c.bf16 %v5184, %v5184
    %v5219 = vpack.c.bf16 %v5186, %v5186
    %v5220 = vld [vmem:[#allocation7] sm:$0xf]
    %v5221 = vld [vmem:[#allocation7 + $0x4] sm:$0xf]
    %v5222 = vld [vmem:[#allocation7 + $0x8] sm:$0xf]
    %v5223 = vld [vmem:[#allocation7 + $0xc] sm:$0xf]
    %v5224 = vld [vmem:[#allocation7 + $0x10] sm:$0xf]
    %v5225 = vld [vmem:[#allocation7 + $0x14] sm:$0xf]
    %v5226 = vld [vmem:[#allocation7 + $0x18] sm:$0xf]
    %v5227 = vld [vmem:[#allocation7 + $0x1c] sm:$0xf]
    %v5228 = vld [vmem:[#allocation7 + $0x20] sm:$0xf]
    %v5229 = vld [vmem:[#allocation7 + $0x24] sm:$0xf]
    %v5230 = vld [vmem:[#allocation7 + $0x28] sm:$0xf]
    %v5231 = vld [vmem:[#allocation7 + $0x2c] sm:$0xf]
    %v5232 = vld [vmem:[#allocation7 + $0x30] sm:$0xf]
    %v5233 = vld [vmem:[#allocation7 + $0x34] sm:$0xf]
    %v5234 = vld [vmem:[#allocation7 + $0x38] sm:$0xf]
    %v5235 = vld [vmem:[#allocation7 + $0x3c] sm:$0xf]
    %v5268 = vunpack.c.l.b16 %v5188
    %v5269 = vunpack.c.l.b16 %v5189
    %v5270 = vunpack.c.l.b16 %v5190
    %v5271 = vunpack.c.l.b16 %v5191
    %v5272 = vunpack.c.l.b16 %v5192
    %v5273 = vunpack.c.l.b16 %v5193
    %v5274 = vunpack.c.l.b16 %v5194
    %v5275 = vunpack.c.l.b16 %v5195
    %v5276 = vunpack.c.l.b16 %v5196
    %v5277 = vunpack.c.l.b16 %v5197
    %v5278 = vunpack.c.l.b16 %v5198
    %v5279 = vunpack.c.l.b16 %v5199
    %v5280 = vunpack.c.l.b16 %v5200
    %v5281 = vunpack.c.l.b16 %v5201
    %v5282 = vunpack.c.l.b16 %v5202
    %v5283 = vunpack.c.l.b16 %v5203
    %v5284 = vunpack.c.l.b16 %v5204
    %v5285 = vunpack.c.l.b16 %v5205
    %v5286 = vunpack.c.l.b16 %v5206
    %v5287 = vunpack.c.l.b16 %v5207
    %v5288 = vunpack.c.l.b16 %v5208
    %v5289 = vunpack.c.l.b16 %v5209
    %v5290 = vunpack.c.l.b16 %v5210
    %v5291 = vunpack.c.l.b16 %v5211
    %v5292 = vunpack.c.l.b16 %v5212
    %v5293 = vunpack.c.l.b16 %v5213
    %v5294 = vunpack.c.l.b16 %v5214
    %v5295 = vunpack.c.l.b16 %v5215
    %v5296 = vunpack.c.l.b16 %v5216
    %v5297 = vunpack.c.l.b16 %v5217
    %v5298 = vunpack.c.l.b16 %v5218
    %v5299 = vunpack.c.l.b16 %v5219
    %v5300 = vpack.c.b16 %v5269, %v5268
    %v5301 = vpack.c.b16 %v5271, %v5270
    %v5302 = vpack.c.b16 %v5273, %v5272
    %v5303 = vpack.c.b16 %v5275, %v5274
    %v5304 = vpack.c.b16 %v5277, %v5276
    %v5305 = vpack.c.b16 %v5279, %v5278
    %v5306 = vpack.c.b16 %v5281, %v5280
    %v5307 = vpack.c.b16 %v5283, %v5282
    %v5308 = vpack.c.b16 %v5285, %v5284
    %v5309 = vpack.c.b16 %v5287, %v5286
    %v5310 = vpack.c.b16 %v5289, %v5288
    %v5311 = vpack.c.b16 %v5291, %v5290
    %v5312 = vpack.c.b16 %v5293, %v5292
    %v5313 = vpack.c.b16 %v5295, %v5294
    %v5314 = vpack.c.b16 %v5297, %v5296
    %v5315 = vpack.c.b16 %v5299, %v5298
    %v5348 = vunpack.c.l.b16 %v5220
    %v5349 = vunpack.c.l.b16 %v5221
    %v5350 = vunpack.c.l.b16 %v5222
    %v5351 = vunpack.c.l.b16 %v5223
    %v5352 = vunpack.c.l.b16 %v5224
    %v5353 = vunpack.c.l.b16 %v5225
    %v5354 = vunpack.c.l.b16 %v5226
    %v5355 = vunpack.c.l.b16 %v5227
    %v5356 = vunpack.c.l.b16 %v5228
    %v5357 = vunpack.c.l.b16 %v5229
    %v5358 = vunpack.c.l.b16 %v5230
    %v5359 = vunpack.c.l.b16 %v5231
    %v5360 = vunpack.c.l.b16 %v5232
    %v5361 = vunpack.c.l.b16 %v5233
    %v5362 = vunpack.c.l.b16 %v5234
    %v5363 = vunpack.c.l.b16 %v5235
    %v5364 = vpack.c.b16 %v5349, %v5348
    %v5365 = vpack.c.b16 %v5351, %v5350
    %v5366 = vpack.c.b16 %v5353, %v5352
    %v5367 = vpack.c.b16 %v5355, %v5354
    %v5368 = vpack.c.b16 %v5357, %v5356
    %v5369 = vpack.c.b16 %v5359, %v5358
    %v5370 = vpack.c.b16 %v5361, %v5360
    %v5371 = vpack.c.b16 %v5363, %v5362
    %5380 = vmatpush.bf16.msra.mxu0 %v5371
    %5381 = vmatpush.bf16.msra.mxu0 %v5370
    %5382 = vmatpush.bf16.msra.mxu0 %v5369
    %5383 = vmatpush.bf16.msra.mxu0 %v5368
    %5384 = vmatpush.bf16.msra.mxu0 %v5367
    %5385 = vmatpush.bf16.msra.mxu0 %v5366
    %5386 = vmatpush.bf16.msra.mxu0 %v5365
    %5387 = vmatpush.bf16.msra.mxu0 %v5364
    %5388 = vmatmul.bf16.gmra.mxu0 %v5300
    %v5389 = vpop.f32.mrf.mxu0
    %v5390 = vadd.f32 0.0, %v5389
    %v5391 = vpop.f32.mrf.mxu0
    %v5392 = vadd.f32 0.0, %v5391
    %5393 = vmatmul.bf16.gmra.mxu0 %v5301
    %v5394 = vpop.f32.mrf.mxu0
    %v5395 = vadd.f32 0.0, %v5394
    %v5396 = vpop.f32.mrf.mxu0
    %v5397 = vadd.f32 0.0, %v5396
    %5398 = vmatmul.bf16.gmra.mxu0 %v5302
    %v5399 = vpop.f32.mrf.mxu0
    %v5400 = vadd.f32 0.0, %v5399
    %v5401 = vpop.f32.mrf.mxu0
    %v5402 = vadd.f32 0.0, %v5401
    %5403 = vmatmul.bf16.gmra.mxu0 %v5303
    %v5404 = vpop.f32.mrf.mxu0
    %v5405 = vadd.f32 0.0, %v5404
    %v5406 = vpop.f32.mrf.mxu0
    %v5407 = vadd.f32 0.0, %v5406
    %5408 = vmatmul.bf16.gmra.mxu0 %v5304
    %v5409 = vpop.f32.mrf.mxu0
    %v5410 = vadd.f32 0.0, %v5409
    %v5411 = vpop.f32.mrf.mxu0
    %v5412 = vadd.f32 0.0, %v5411
    %5413 = vmatmul.bf16.gmra.mxu0 %v5305
    %v5414 = vpop.f32.mrf.mxu0
    %v5415 = vadd.f32 0.0, %v5414
    %v5416 = vpop.f32.mrf.mxu0
    %v5417 = vadd.f32 0.0, %v5416
    %5418 = vmatmul.bf16.gmra.mxu0 %v5306
    %v5419 = vpop.f32.mrf.mxu0
    %v5420 = vadd.f32 0.0, %v5419
    %v5421 = vpop.f32.mrf.mxu0
    %v5422 = vadd.f32 0.0, %v5421
    %5423 = vmatmul.bf16.gmra.mxu0 %v5307
    %v5424 = vpop.f32.mrf.mxu0
    %v5425 = vadd.f32 0.0, %v5424
    %v5426 = vpop.f32.mrf.mxu0
    %v5427 = vadd.f32 0.0, %v5426
    %5428 = vmatmul.bf16.gmra.mxu0 %v5308
    %v5429 = vpop.f32.mrf.mxu0
    %v5430 = vadd.f32 0.0, %v5429
    %v5431 = vpop.f32.mrf.mxu0
    %v5432 = vadd.f32 0.0, %v5431
    %5433 = vmatmul.bf16.gmra.mxu0 %v5309
    %v5434 = vpop.f32.mrf.mxu0
    %v5435 = vadd.f32 0.0, %v5434
    %v5436 = vpop.f32.mrf.mxu0
    %v5437 = vadd.f32 0.0, %v5436
    %5438 = vmatmul.bf16.gmra.mxu0 %v5310
    %v5439 = vpop.f32.mrf.mxu0
    %v5440 = vadd.f32 0.0, %v5439
    %v5441 = vpop.f32.mrf.mxu0
    %v5442 = vadd.f32 0.0, %v5441
    %5443 = vmatmul.bf16.gmra.mxu0 %v5311
    %v5444 = vpop.f32.mrf.mxu0
    %v5445 = vadd.f32 0.0, %v5444
    %v5446 = vpop.f32.mrf.mxu0
    %v5447 = vadd.f32 0.0, %v5446
    %5448 = vmatmul.bf16.gmra.mxu0 %v5312
    %v5449 = vpop.f32.mrf.mxu0
    %v5450 = vadd.f32 0.0, %v5449
    %v5451 = vpop.f32.mrf.mxu0
    %v5452 = vadd.f32 0.0, %v5451
    %5453 = vmatmul.bf16.gmra.mxu0 %v5313
    %v5454 = vpop.f32.mrf.mxu0
    %v5455 = vadd.f32 0.0, %v5454
    %v5456 = vpop.f32.mrf.mxu0
    %v5457 = vadd.f32 0.0, %v5456
    %5458 = vmatmul.bf16.gmra.mxu0 %v5314
    %v5459 = vpop.f32.mrf.mxu0
    %v5460 = vadd.f32 0.0, %v5459
    %v5461 = vpop.f32.mrf.mxu0
    %v5462 = vadd.f32 0.0, %v5461
    %5463 = vmatmul.bf16.gmra.mxu0 %v5315
    %v5464 = vpop.f32.mrf.mxu0
    %v5465 = vadd.f32 0.0, %v5464
    %v5466 = vpop.f32.mrf.mxu0
    %v5467 = vadd.f32 0.0, %v5466
    %5468 = vdwg.mxu0
    %v5469 = vld [vmem:[%s3] sm:$0x1]
    %v5471 = vperm.slane %v5469, 0
    %v5473 = vadd.f32 %v5390, %v5471
    %v5474 = vadd.f32 %v5392, %v5471
    %v5475 = vadd.f32 %v5395, %v5471
    %v5476 = vadd.f32 %v5397, %v5471
    %v5477 = vadd.f32 %v5400, %v5471
    %v5478 = vadd.f32 %v5402, %v5471
    %v5479 = vadd.f32 %v5405, %v5471
    %v5480 = vadd.f32 %v5407, %v5471
    %v5481 = vadd.f32 %v5410, %v5471
    %v5482 = vadd.f32 %v5412, %v5471
    %v5483 = vadd.f32 %v5415, %v5471
    %v5484 = vadd.f32 %v5417, %v5471
    %v5485 = vadd.f32 %v5420, %v5471
    %v5486 = vadd.f32 %v5422, %v5471
    %v5487 = vadd.f32 %v5425, %v5471
    %v5488 = vadd.f32 %v5427, %v5471
    %v5489 = vadd.f32 %v5430, %v5471
    %v5490 = vadd.f32 %v5432, %v5471
    %v5491 = vadd.f32 %v5435, %v5471
    %v5492 = vadd.f32 %v5437, %v5471
    %v5493 = vadd.f32 %v5440, %v5471
    %v5494 = vadd.f32 %v5442, %v5471
    %v5495 = vadd.f32 %v5445, %v5471
    %v5496 = vadd.f32 %v5447, %v5471
    %v5497 = vadd.f32 %v5450, %v5471
    %v5498 = vadd.f32 %v5452, %v5471
    %v5499 = vadd.f32 %v5455, %v5471
    %v5500 = vadd.f32 %v5457, %v5471
    %v5501 = vadd.f32 %v5460, %v5471
    %v5502 = vadd.f32 %v5462, %v5471
    %v5503 = vadd.f32 %v5465, %v5471
    %v5504 = vadd.f32 %v5467, %v5471
    %v5505 = vpack.c.bf16 %v5473, %v5473
    %v5506 = vpack.c.bf16 %v5474, %v5474
    %v5507 = vpack.c.bf16 %v5475, %v5475
    %v5508 = vpack.c.bf16 %v5476, %v5476
    %v5509 = vpack.c.bf16 %v5477, %v5477
    %v5510 = vpack.c.bf16 %v5478, %v5478
    %v5511 = vpack.c.bf16 %v5479, %v5479
    %v5512 = vpack.c.bf16 %v5480, %v5480
    %v5513 = vpack.c.bf16 %v5481, %v5481
    %v5514 = vpack.c.bf16 %v5482, %v5482
    %v5515 = vpack.c.bf16 %v5483, %v5483
    %v5516 = vpack.c.bf16 %v5484, %v5484
    %v5517 = vpack.c.bf16 %v5485, %v5485
    %v5518 = vpack.c.bf16 %v5486, %v5486
    %v5519 = vpack.c.bf16 %v5487, %v5487
    %v5520 = vpack.c.bf16 %v5488, %v5488
    %v5521 = vpack.c.bf16 %v5489, %v5489
    %v5522 = vpack.c.bf16 %v5490, %v5490
    %v5523 = vpack.c.bf16 %v5491, %v5491
    %v5524 = vpack.c.bf16 %v5492, %v5492
    %v5525 = vpack.c.bf16 %v5493, %v5493
    %v5526 = vpack.c.bf16 %v5494, %v5494
    %v5527 = vpack.c.bf16 %v5495, %v5495
    %v5528 = vpack.c.bf16 %v5496, %v5496
    %v5529 = vpack.c.bf16 %v5497, %v5497
    %v5530 = vpack.c.bf16 %v5498, %v5498
    %v5531 = vpack.c.bf16 %v5499, %v5499
    %v5532 = vpack.c.bf16 %v5500, %v5500
    %v5533 = vpack.c.bf16 %v5501, %v5501
    %v5534 = vpack.c.bf16 %v5502, %v5502
    %v5535 = vpack.c.bf16 %v5503, %v5503
    %v5536 = vpack.c.bf16 %v5504, %v5504
    %5537 = vst [vmem:[#allocation8] sm:$0xf] %v5505
    %5538 = vst [vmem:[#allocation8 + $0x4] sm:$0xf] %v5506
    %5539 = vst [vmem:[#allocation8 + $0x8] sm:$0xf] %v5507
    %5540 = vst [vmem:[#allocation8 + $0xc] sm:$0xf] %v5508
    %5541 = vst [vmem:[#allocation8 + $0x10] sm:$0xf] %v5509
    %5542 = vst [vmem:[#allocation8 + $0x14] sm:$0xf] %v5510
    %5543 = vst [vmem:[#allocation8 + $0x18] sm:$0xf] %v5511
    %5544 = vst [vmem:[#allocation8 + $0x1c] sm:$0xf] %v5512
    %5545 = vst [vmem:[#allocation8 + $0x20] sm:$0xf] %v5513
    %5546 = vst [vmem:[#allocation8 + $0x24] sm:$0xf] %v5514
    %5547 = vst [vmem:[#allocation8 + $0x28] sm:$0xf] %v5515
    %5548 = vst [vmem:[#allocation8 + $0x2c] sm:$0xf] %v5516
    %5549 = vst [vmem:[#allocation8 + $0x30] sm:$0xf] %v5517
    %5550 = vst [vmem:[#allocation8 + $0x34] sm:$0xf] %v5518
    %5551 = vst [vmem:[#allocation8 + $0x38] sm:$0xf] %v5519
    %5552 = vst [vmem:[#allocation8 + $0x3c] sm:$0xf] %v5520
    %5553 = vst [vmem:[#allocation8 + $0x40] sm:$0xf] %v5521
    %5554 = vst [vmem:[#allocation8 + $0x44] sm:$0xf] %v5522
    %5555 = vst [vmem:[#allocation8 + $0x48] sm:$0xf] %v5523
    %5556 = vst [vmem:[#allocation8 + $0x4c] sm:$0xf] %v5524
    %5557 = vst [vmem:[#allocation8 + $0x50] sm:$0xf] %v5525
    %5558 = vst [vmem:[#allocation8 + $0x54] sm:$0xf] %v5526
    %5559 = vst [vmem:[#allocation8 + $0x58] sm:$0xf] %v5527
    %5560 = vst [vmem:[#allocation8 + $0x5c] sm:$0xf] %v5528
    %5561 = vst [vmem:[#allocation8 + $0x60] sm:$0xf] %v5529
    %5562 = vst [vmem:[#allocation8 + $0x64] sm:$0xf] %v5530
    %5563 = vst [vmem:[#allocation8 + $0x68] sm:$0xf] %v5531
    %5564 = vst [vmem:[#allocation8 + $0x6c] sm:$0xf] %v5532
    %5565 = vst [vmem:[#allocation8 + $0x70] sm:$0xf] %v5533
    %5566 = vst [vmem:[#allocation8 + $0x74] sm:$0xf] %v5534
    %5567 = vst [vmem:[#allocation8 + $0x78] sm:$0xf] %v5535
    %5568 = vst [vmem:[#allocation8 + $0x7c] sm:$0xf] %v5536
    // Predicated region
    $region30: #{tpu_custom_call.1} parent=1 // pred_check
      _
    $region31: #{tpu_custom_call.1} parent=1 // pred_check_branch
      %5570 = sbr.rel (0) target = $region33
    $region32: #{tpu_custom_call.1} parent=1 // pred_region
      %5572 = vsyncadd [#allocation4], 0
      %s5573 = sshll.u32 [#allocation8], 4
      %s5574 = int_to_ptr.vmem [resolvable:$true] %s5573
      %s5575 = sshll.u32 %s4, 4
      %s5576 = int_to_ptr.hbm [resolvable:$true] %s5575
      %5581 = dma.vmem_to_hbm [thread:$0]  %s5574, 2048, %s5576, [#allocation4], 64, 64, 4
    $region33: #{tpu_custom_call.1} parent=1 // pred_fallthru
      _
    // Predicated region
    $region34: #{tpu_custom_call.1} parent=1 // pred_check
      _
    $region35: #{tpu_custom_call.1} parent=1 // pred_check_branch
      %5583 = sbr.rel (0) target = $region37
    $region36: #{tpu_custom_call.1} parent=1 // pred_region
      %5585 = dma.done [#allocation4], 2048
    $region37: #{tpu_custom_call.1} parent=1 // pred_fallthru
      _
    %5586 = vsyncpa [#allocation3], 1
    %5587 = vsyncpa [#allocation6], 1
    %5588 = vsyncpa [#allocation4], 1

</llo_original>
